<compile_context>
chip_gen: v6e
topology: v6e:2x2x1
jax: 0.10.0
libtpu: 0.0.40
codegen_flags: <defaults>
</compile_context>

<pallas_src>
import jax
import jax.numpy as jnp
from jax.experimental import pallas as pl
from jax.experimental.pallas import tpu as pltpu

_MXU_DTYPE = jnp.bfloat16
_VMEM_BUDGET = 24 * 1024 * 1024      # per-call working-set target
_VMEM_CEIL = 48 * 1024 * 1024        # hard cap: fits v7x's 64 MiB VMEM/TC


# ---------------------------------------------------------------------------
# Tiling helpers
# ---------------------------------------------------------------------------
def _pick_tile(dim, target, aligns=(256, 128, 16, 8)):
    """Largest tile <= target that divides `dim`, preferring MXU/lane-friendly
    alignments.  A dim <= target is returned whole (full-extent blocks bypass
    the (8,128) divisibility rule)."""
    if dim <= target:
        return dim
    for align in aligns:
        t = (target // align) * align
        while t >= align:
            if dim % t == 0:
                return t
            t -= align
    return dim                        # caller budget-checks and fails loudly


def _vmem_limit(need_bytes):
    if need_bytes > _VMEM_CEIL:
        raise ValueError(
            f"Pallas tile selection needs {need_bytes} B of VMEM, above the "
            f"{_VMEM_CEIL} B ceiling (v7x has 64 MiB per TensorCore).")
    return int(min(_VMEM_CEIL, max(32 * 1024 * 1024, 2 * need_bytes)))


def _fold_bn(bn, c):
    """Inference BatchNorm folded to per-channel scale/bias (f32)."""
    inv = bn['gamma'] * jax.lax.rsqrt(bn['var'] + bn['eps'])
    scale = inv.reshape(1, c).astype(jnp.float32)
    bias = (bn['beta'] - bn['mean'] * inv).reshape(1, c).astype(jnp.float32)
    return scale, bias


# ---------------------------------------------------------------------------
# Fused GEMM + BN scale/bias (+ residual) (+ ReLU) kernel -- 1x1 convs and
# the strided-3x3 im2col fallback.
# ---------------------------------------------------------------------------
def _make_gemm_kernel(has_res, relu):
    def kernel(*refs):
        if has_res:
            x_ref, w_ref, s_ref, b_ref, r_ref, o_ref, acc_ref = refs
        else:
            x_ref, w_ref, s_ref, b_ref, o_ref, acc_ref = refs
            r_ref = None
        k = pl.program_id(2)          # reduction axis (last, "arbitrary")

        @pl.when(k == 0)
        def _init():
            acc_ref[...] = jnp.zeros_like(acc_ref)

        acc_ref[...] += jnp.dot(x_ref[...], w_ref[...],
                                preferred_element_type=jnp.float32)

        @pl.when(k == pl.num_programs(2) - 1)
        def _finalize():
            out = acc_ref[...] * s_ref[...] + b_ref[...]
            if has_res:
                out = out + r_ref[...].astype(jnp.float32)
            if relu:
                out = jnp.maximum(out, 0.0)
            o_ref[...] = out.astype(o_ref.dtype)

    return kernel


def _gemm_tiles(M, K, N, has_res):
    tm_t, tn_t, tk_t = 256, 512, 4096
    while True:
        TM = _pick_tile(M, tm_t)
        TN = _pick_tile(N, tn_t, aligns=(256, 128))
        TK = _pick_tile(K, tk_t, aligns=(256, 128))
        need = (2 * (TM * TK + TK * TN + 2 * TN) * 2          # bf16 ins (x2 buf)
                + (2 * TM * TN * 2 if has_res else 0)         # residual
                + 2 * TM * TN * 2                             # bf16 out (x2 buf)
                + TM * TN * 4)                                # f32 accumulator
        if need <= _VMEM_BUDGET or (tm_t <= 64 and tn_t <= 128 and tk_t <= 256):
            break
        if tk_t > 256:
            tk_t //= 2
        elif tn_t > 128:
            tn_t //= 2
        else:
            tm_t //= 2
    # v7x has two TensorCores: ensure a "parallel" grid axis has >= 2 steps.
    if (M // TM) * (N // TN) == 1:
        if TM % 16 == 0:
            TM //= 2
        elif TN % 256 == 0:
            TN //= 2
    return TM, TN, TK, need


def fused_matmul_bn(x, w, scale, bias, residual=None, relu=False):
    """act((x @ w) * scale + bias [+ residual]).
    x:(M,K) bf16, w:(K,N) bf16, scale/bias:(1,N) f32, residual:(M,N) bf16.
    Returns (M,N) bf16 (accumulation in f32 VMEM scratch)."""
    M, K = x.shape
    N = w.shape[1]
    has_res = residual is not None
    TM, TN, TK, need = _gemm_tiles(M, K, N, has_res)
    grid = (M // TM, N // TN, K // TK)

    in_specs = [
        pl.BlockSpec((TM, TK), lambda i, j, k: (i, k)),
        pl.BlockSpec((TK, TN), lambda i, j, k: (k, j)),
        pl.BlockSpec((1, TN), lambda i, j, k: (0, j)),
        pl.BlockSpec((1, TN), lambda i, j, k: (0, j)),
    ]
    args = [x, w, scale, bias]
    if has_res:
        in_specs.append(pl.BlockSpec((TM, TN), lambda i, j, k: (i, j)))
        args.append(residual)

    cost = pl.CostEstimate(
        flops=2 * M * K * N, transcendentals=0,
        bytes_accessed=int(x.size * 2 + w.size * 2
                           + M * N * 2 * (2 if has_res else 1) + 2 * N * 4))

    return pl.pallas_call(
        _make_gemm_kernel(has_res, relu),
        out_shape=jax.ShapeDtypeStruct((M, N), _MXU_DTYPE),
        grid_spec=pltpu.PrefetchScalarGridSpec(
            num_scalar_prefetch=0,
            grid=grid,
            in_specs=in_specs,
            out_specs=pl.BlockSpec((TM, TN), lambda i, j, k: (i, j)),
            scratch_shapes=[pltpu.VMEM((TM, TN), jnp.float32)],
        ),
        compiler_params=pltpu.CompilerParams(
            dimension_semantics=("parallel", "parallel", "arbitrary"),
            vmem_limit_bytes=_vmem_limit(need),
        ),
        cost_estimate=cost,
    )(*args)


# ---------------------------------------------------------------------------
# Implicit-GEMM 3x3 (stride 1) conv + BN (+ ReLU) kernel.
# ---------------------------------------------------------------------------
def _make_conv_kernel(KH, KW, OH, OW, relu):
    def kernel(x_ref, w_ref, s_ref, b_ref, o_ref, acc_ref):
        c = pl.program_id(2)          # Cin-tile (reduction) -- last grid axis

        @pl.when(c == 0)
        def _init():
            acc_ref[...] = jnp.zeros_like(acc_ref)

        tkc = x_ref.shape[-1]
        tn = acc_ref.shape[-1]
        for t in range(KH * KW):      # static tap loop over shifted windows
            di, dj = divmod(t, KW)
            win = x_ref[pl.ds(di, OH), pl.ds(dj, OW), :]        # (OH, OW, TKc)
            part = jnp.dot(win.reshape(OH * OW, tkc), w_ref[t],
                           preferred_element_type=jnp.float32)
            acc_ref[...] += part.reshape(OH, OW, tn)

        @pl.when(c == pl.num_programs(2) - 1)
        def _finalize():
            out = acc_ref[...] * s_ref[...] + b_ref[...]
            if relu:
                out = jnp.maximum(out, 0.0)
            o_ref[...] = out.astype(o_ref.dtype)

    return kernel


def _im2col_slab(x, kh, kw, stride, padding):
    """Fallback only (stride>1): single (M, KK*Cin) slab, written/read once."""
    N, H, W, C = x.shape
    OH = (H + 2 * padding - kh) // stride + 1
    OW = (W + 2 * padding - kw) // stride + 1
    xp = jnp.pad(x, ((0, 0), (padding, padding), (padding, padding), (0, 0)))
    taps = []
    for i in range(kh):
        for j in range(kw):
            sl = xp[:, i:i + stride * (OH - 1) + 1:stride,
                    j:j + stride * (OW - 1) + 1:stride, :]
            taps.append(sl.reshape(N * OH * OW, C))
    return jnp.concatenate(taps, axis=-1), (N, OH, OW)


def conv3x3_bn(x, w_oihw, bn, *, stride=1, padding=1, relu=False):
    """x: NHWC bf16.  Returns NHWC bf16 = act(BN(conv3x3(x)))."""
    N, H, W, Cin = x.shape
    Cout, _, KH, KW = w_oihw.shape
    scale, bias = _fold_bn(bn, Cout)

    if stride != 1:
        # TODO(synk): implicit-GEMM path for strided 3x3 not implemented.
        cols, (n, oh, ow) = _im2col_slab(x.astype(_MXU_DTYPE), KH, KW,
                                         stride, padding)
        wmat = jnp.transpose(w_oihw, (2, 3, 1, 0)).reshape(
            KH * KW * Cin, Cout).astype(_MXU_DTYPE)
        out = fused_matmul_bn(cols, wmat, scale, bias, relu=relu)
        return out.reshape(n, oh, ow, Cout)

    x_pad = jnp.pad(x.astype(_MXU_DTYPE),
                    ((0, 0), (padding, padding), (padding, padding), (0, 0)))
    Hp, Wp = H + 2 * padding, W + 2 * padding
    OH, OW = Hp - KH + 1, Wp - KW + 1
    w = jnp.transpose(w_oihw, (2, 3, 1, 0)).reshape(
        KH * KW, Cin, Cout).astype(_MXU_DTYPE)          # tap-major, Cin, Cout

    # Tile Cout / Cin; shrink to fit the VMEM budget.
    tn_t, tc_t = 512, 512
    while True:
        TN = _pick_tile(Cout, tn_t, aligns=(256, 128))
        TC = _pick_tile(Cin, tc_t, aligns=(256, 128))
        need = (2 * (Hp * Wp * TC + KH * KW * TC * TN + 2 * TN) * 2
                + 2 * OH * OW * TN * 2 + OH * OW * TN * 4)
        if need <= _VMEM_BUDGET or (tn_t <= 128 and tc_t <= 128):
            break
        if tc_t > 128:
            tc_t //= 2
        else:
            tn_t //= 2

    grid = (N, Cout // TN, Cin // TC)
    cost = pl.CostEstimate(
        flops=2 * N * OH * OW * KH * KW * Cin * Cout, transcendentals=0,
        bytes_accessed=int(x_pad.size * 2 + w.size * 2 + N * OH * OW * Cout * 2))

    return pl.pallas_call(
        _make_conv_kernel(KH, KW, OH, OW, relu),
        out_shape=jax.ShapeDtypeStruct((N, OH, OW, Cout), _MXU_DTYPE),
        grid_spec=pltpu.PrefetchScalarGridSpec(
            num_scalar_prefetch=0,
            grid=grid,
            in_specs=[
                pl.BlockSpec((None, Hp, Wp, TC), lambda n, j, c: (n, 0, 0, c)),
                pl.BlockSpec((KH * KW, TC, TN), lambda n, j, c: (0, c, j)),
                pl.BlockSpec((1, TN), lambda n, j, c: (0, j)),
                pl.BlockSpec((1, TN), lambda n, j, c: (0, j)),
            ],
            out_specs=pl.BlockSpec((None, OH, OW, TN),
                                   lambda n, j, c: (n, 0, 0, j)),
            scratch_shapes=[pltpu.VMEM((OH, OW, TN), jnp.float32)],
        ),
        compiler_params=pltpu.CompilerParams(
            dimension_semantics=("parallel", "parallel", "arbitrary"),
            vmem_limit_bytes=_vmem_limit(need),
        ),
        cost_estimate=cost,
    )(x_pad, w, scale, bias)


def conv1x1_bn(x, w_oihw, bn, *, stride=1, relu=False, residual=None):
    """x: NHWC bf16.  Returns NHWC bf16 = act(BN(conv1x1(x)) [+ residual])."""
    Cout, Cin = w_oihw.shape[:2]
    if stride != 1:
        x = x[:, ::stride, ::stride, :]
    N, OH, OW, _ = x.shape
    cols = x.reshape(N * OH * OW, Cin).astype(_MXU_DTYPE)
    wmat = jnp.transpose(w_oihw.reshape(Cout, Cin)).astype(_MXU_DTYPE)
    scale, bias = _fold_bn(bn, Cout)
    res = None
    if residual is not None:
        res = residual.reshape(N * OH * OW, Cout).astype(_MXU_DTYPE)
    out = fused_matmul_bn(cols, wmat, scale, bias, residual=res, relu=relu)
    return out.reshape(N, OH, OW, Cout)


# ---------------------------------------------------------------------------
# Bottleneck forward (eval mode).  MaskedConv2d returns BN(conv(x)) (no ReLU);
# Bottleneck applies ReLU after conv1/conv2 and after the residual add.
# ---------------------------------------------------------------------------
def bottleneck_forward(params, x_nchw):
    x = jnp.transpose(x_nchw, (0, 2, 3, 1)).astype(_MXU_DTYPE)   # NHWC bf16
    identity = x
    out = conv1x1_bn(x, params['conv1_w'], params['bn1'], relu=True)
    out = conv3x3_bn(out, params['conv2_w'], params['bn2'],
                     stride=params['stride'], padding=1, relu=True)
    if 'down_w' in params:
        identity = conv1x1_bn(x, params['down_w'], params['down_bn'],
                              stride=params['stride'], relu=False)
    # conv3 + bn3 + residual add + final ReLU fused into one kernel epilogue.
    out = conv1x1_bn(out, params['conv3_w'], params['bn3'],
                     relu=True, residual=identity)
    return jnp.transpose(out, (0, 3, 1, 2)).astype(jnp.float32)   # back to NCHW


# ---------------------------------------------------------------------------
# Pure-XLA reference (same bf16 rounding points as the kernel path).
# ---------------------------------------------------------------------------
def _ref_conv_bn(x, w, bn, stride, padding, relu=False, residual=None):
    y = jax.lax.conv_general_dilated(
        x, w, window_strides=(stride, stride),
        padding=[(padding, padding), (padding, padding)],
        dimension_numbers=('NHWC', 'OIHW', 'NHWC'))
    inv = bn['gamma'] * jax.lax.rsqrt(bn['var'] + bn['eps'])
    y = y * inv + (bn['beta'] - bn['mean'] * inv)
    if residual is not None:
        y = y + residual
    if relu:
        y = jnp.maximum(y, 0.0)
    return y


def bottleneck_reference(params, x_nchw):
    rd = lambda a: a.astype(_MXU_DTYPE).astype(jnp.float32)
    x = rd(jnp.transpose(x_nchw, (0, 2, 3, 1)))
    identity = x
    out = rd(_ref_conv_bn(x, rd(params['conv1_w']), params['bn1'], 1, 0, True))
    out = rd(_ref_conv_bn(out, rd(params['conv2_w']), params['bn2'],
                          params['stride'], 1, True))
    if 'down_w' in params:
        identity = rd(_ref_conv_bn(x, rd(params['down_w']), params['down_bn'],
                                   params['stride'], 0, False))
    out = rd(_ref_conv_bn(out, rd(params['conv3_w']), params['bn3'], 1, 0, True,
                          residual=identity))
    return jnp.transpose(out, (0, 3, 1, 2))


# ---------------------------------------------------------------------------
# Deterministic synthetic parameters
# ---------------------------------------------------------------------------
def make_params(key, *, inplanes, planes, stride=1, base_width=128, groups=1):
    expansion = 4
    width = int(planes * (base_width / 64.0)) * groups
    outp = planes * expansion
    ks = jax.random.split(key, 8)

    def conv_w(k, cout, cin, kh, kw):
        fan_in = cin * kh * kw
        bound = (1.0 / fan_in) ** 0.5
        return jax.random.uniform(k, (cout, cin, kh, kw), jnp.float32,
                                  -bound, bound)

    def bn_p(k, c):
        k1, k2, k3, k4 = jax.random.split(k, 4)
        return dict(gamma=jax.random.uniform(k1, (c,), jnp.float32, 0.5, 1.5),
                    beta=0.1 * jax.random.normal(k2, (c,), jnp.float32),
                    mean=0.1 * jax.random.normal(k3, (c,), jnp.float32),
                    var=jax.random.uniform(k4, (c,), jnp.float32, 0.5, 1.5),
                    eps=1e-5)

    p = dict(stride=stride,
             conv1_w=conv_w(ks[0], width, inplanes, 1, 1), bn1=bn_p(ks[1], width),
             conv2_w=conv_w(ks[2], width, width, 3, 3),    bn2=bn_p(ks[3], width),
             conv3_w=conv_w(ks[4], outp, width, 1, 1),     bn3=bn_p(ks[5], outp))
    if stride != 1 or inplanes != outp:
        p['down_w'] = conv_w(ks[6], outp, inplanes, 1, 1)
        p['down_bn'] = bn_p(ks[7], outp)
    return p


if __name__ == "__main__":
    key = jax.random.PRNGKey(0)
    k_params, k_x = jax.random.split(key)

    # Bottleneck(inplanes=64, planes=32, stride=1, base_width=128) as used by
    # WRN_AAP (width_per_group=128): width=64, out_channels=128 -> the block
    # has a conv1x1+BN downsample branch; conv2 runs the implicit-GEMM kernel.
    params = make_params(k_params, inplanes=64, planes=32, stride=1,
                         base_width=128)
    x = jax.random.normal(k_x, (2, 64, 16, 16), jnp.float32)      # NCHW

    fwd = jax.jit(lambda inp: bottleneck_forward(params, inp))
    y = jax.block_until_ready(fwd(x))
    assert y.shape == (2, 128, 16, 16), y.shape
    assert bool(jnp.all(jnp.isfinite(y)))

    y_ref = jax.block_until_ready(
        jax.jit(lambda inp: bottleneck_reference(params, inp))(x))
    max_err = float(jnp.max(jnp.abs(y - y_ref)))
    ref_mag = float(jnp.max(jnp.abs(y_ref))) + 1e-6
    assert max_err / ref_mag < 5e-2, (max_err, ref_mag)

    print("KERNEL_OK")
</pallas_src>

<mosaic_0001>
module attributes {stable_mosaic.version = 11 : i64} {
  func.func @kernel(%arg0: i32, %arg1: i32, %arg2: i32, %arg3: memref<256x64xbf16, #tpu.memory_space<vmem>>, %arg4: memref<64x128xbf16, #tpu.memory_space<vmem>>, %arg5: memref<1x128xf32, #tpu.memory_space<vmem>>, %arg6: memref<1x128xf32, #tpu.memory_space<vmem>>, %arg7: memref<256x128xbf16, #tpu.memory_space<vmem>>, %arg8: memref<256x128xf32, #tpu.memory_space<vmem>>) attributes {dimension_semantics = [#tpu.dimension_semantics<parallel>, #tpu.dimension_semantics<parallel>, #tpu.dimension_semantics<arbitrary>], iteration_bounds = array<i64: 2, 1, 1>, scalar_prefetch = 0 : i64, scratch_operands = 1 : i64, tpu.core_type = #tpu.core_type<tc>, window_params = [{transform_indices = @transform_0, window_bounds = array<i64: 256, 64>}, {transform_indices = @transform_1, window_bounds = array<i64: 64, 128>}, {transform_indices = @transform_2, window_bounds = array<i64: 1, 128>}, {transform_indices = @transform_3, window_bounds = array<i64: 1, 128>}, {transform_indices = @transform_4, window_bounds = array<i64: 256, 128>}]} {
    %c0_i32 = arith.constant 0 : i32
    %0 = arith.cmpi eq, %arg2, %c0_i32 : i32
    %1 = arith.extui %0 : i1 to i32
    %c0_i32_0 = arith.constant 0 : i32
    %2 = arith.cmpi ne, %1, %c0_i32_0 : i32
    scf.if %2 {
      %cst_10 = arith.constant 0.000000e+00 : f32
      %12 = vector.broadcast %cst_10 : f32 to vector<256x128xf32>
      %c0_11 = arith.constant 0 : index
      %c0_12 = arith.constant 0 : index
      %13 = vector.load %arg8[%c0_11, %c0_12] : memref<256x128xf32, #tpu.memory_space<vmem>>, vector<256x128xf32>
      tpu.vector_store %arg8[%c0_11, %c0_12], %12 {strides = array<i32>} : memref<256x128xf32, #tpu.memory_space<vmem>>, vector<256x128xf32>,
    } else {
    }
    %c0 = arith.constant 0 : index
    %c0_1 = arith.constant 0 : index
    %3 = vector.load %arg8[%c0, %c0_1] : memref<256x128xf32, #tpu.memory_space<vmem>>, vector<256x128xf32>
    %c0_2 = arith.constant 0 : index
    %c0_3 = arith.constant 0 : index
    %4 = vector.load %arg3[%c0_2, %c0_3] : memref<256x64xbf16, #tpu.memory_space<vmem>>, vector<256x64xbf16>
    %c0_4 = arith.constant 0 : index
    %c0_5 = arith.constant 0 : index
    %5 = vector.load %arg4[%c0_4, %c0_5] : memref<64x128xbf16, #tpu.memory_space<vmem>>, vector<64x128xbf16>
    %cst = arith.constant dense<0.000000e+00> : vector<256x128xf32>
    %6 = tpu.matmul %4, %5, %cst {dimension_numbers = #tpu.dot_dimension_numbers<[1], [0], [0], [1], [0, 0, 1, 1], [], []>} : vector<256x64xbf16>, vector<64x128xbf16>, vector<256x128xf32> -> vector<256x128xf32>
    %7 = arith.addf %3, %6 : vector<256x128xf32>
    %c0_6 = arith.constant 0 : index
    %c0_7 = arith.constant 0 : index
    %8 = vector.load %arg8[%c0_6, %c0_7] : memref<256x128xf32, #tpu.memory_space<vmem>>, vector<256x128xf32>
    tpu.vector_store %arg8[%c0_6, %c0_7], %7 {strides = array<i32>} : memref<256x128xf32, #tpu.memory_space<vmem>>, vector<256x128xf32>,
    %c0_i32_8 = arith.constant 0 : i32
    %9 = arith.cmpi eq, %arg2, %c0_i32_8 : i32
    %10 = arith.extui %9 : i1 to i32
    %c0_i32_9 = arith.constant 0 : i32
    %11 = arith.cmpi ne, %10, %c0_i32_9 : i32
    scf.if %11 {
      %c0_10 = arith.constant 0 : index
      %c0_11 = arith.constant 0 : index
      %12 = vector.load %arg8[%c0_10, %c0_11] : memref<256x128xf32, #tpu.memory_space<vmem>>, vector<256x128xf32>
      %c0_12 = arith.constant 0 : index
      %c0_13 = arith.constant 0 : index
      %13 = vector.load %arg5[%c0_12, %c0_13] : memref<1x128xf32, #tpu.memory_space<vmem>>, vector<1x128xf32>
      %14 = vector.broadcast %13 : vector<1x128xf32> to vector<256x128xf32>
      %15 = arith.mulf %12, %14 : vector<256x128xf32>
      %c0_14 = arith.constant 0 : index
      %c0_15 = arith.constant 0 : index
      %16 = vector.load %arg6[%c0_14, %c0_15] : memref<1x128xf32, #tpu.memory_space<vmem>>, vector<1x128xf32>
      %17 = vector.broadcast %16 : vector<1x128xf32> to vector<256x128xf32>
      %18 = arith.addf %15, %17 : vector<256x128xf32>
      %19 = arith.truncf %18 : vector<256x128xf32> to vector<256x128xbf16>
      %c0_16 = arith.constant 0 : index
      %c0_17 = arith.constant 0 : index
      %20 = vector.load %arg7[%c0_16, %c0_17] : memref<256x128xbf16, #tpu.memory_space<vmem>>, vector<256x128xbf16>
      tpu.vector_store %arg7[%c0_16, %c0_17], %19 {strides = array<i32>} : memref<256x128xbf16, #tpu.memory_space<vmem>>, vector<256x128xbf16>,
    } else {
    }
    return
  }
  func.func @transform_0(%arg0: i32, %arg1: i32, %arg2: i32) -> (i32, i32) {
    %c0_i32 = arith.constant 0 : i32
    return %arg0, %arg2 : i32, i32
  }
  func.func @transform_1(%arg0: i32, %arg1: i32, %arg2: i32) -> (i32, i32) {
    %c0_i32 = arith.constant 0 : i32
    return %arg2, %arg1 : i32, i32
  }
  func.func @transform_2(%arg0: i32, %arg1: i32, %arg2: i32) -> (i32, i32) {
    %c0_i32 = arith.constant 0 : i32
    %c0_i32_0 = arith.constant 0 : i32
    return %c0_i32, %arg1 : i32, i32
  }
  func.func @transform_3(%arg0: i32, %arg1: i32, %arg2: i32) -> (i32, i32) {
    %c0_i32 = arith.constant 0 : i32
    %c0_i32_0 = arith.constant 0 : i32
    return %c0_i32, %arg1 : i32, i32
  }
  func.func @transform_4(%arg0: i32, %arg1: i32, %arg2: i32) -> (i32, i32) {
    %c0_i32 = arith.constant 0 : i32
    return %arg0, %arg1 : i32, i32
  }
}

module attributes {stable_mosaic.version = 11 : i64} {
  func.func @kernel(%arg0: i32, %arg1: i32, %arg2: i32, %arg3: memref<256x64xbf16, #tpu.memory_space<vmem>>, %arg4: memref<64x64xbf16, #tpu.memory_space<vmem>>, %arg5: memref<1x64xf32, #tpu.memory_space<vmem>>, %arg6: memref<1x64xf32, #tpu.memory_space<vmem>>, %arg7: memref<256x64xbf16, #tpu.memory_space<vmem>>, %arg8: memref<256x64xf32, #tpu.memory_space<vmem>>) attributes {dimension_semantics = [#tpu.dimension_semantics<parallel>, #tpu.dimension_semantics<parallel>, #tpu.dimension_semantics<arbitrary>], iteration_bounds = array<i64: 2, 1, 1>, scalar_prefetch = 0 : i64, scratch_operands = 1 : i64, tpu.core_type = #tpu.core_type<tc>, window_params = [{transform_indices = @transform_0, window_bounds = array<i64: 256, 64>}, {transform_indices = @transform_1, window_bounds = array<i64: 64, 64>}, {transform_indices = @transform_2, window_bounds = array<i64: 1, 64>}, {transform_indices = @transform_3, window_bounds = array<i64: 1, 64>}, {transform_indices = @transform_4, window_bounds = array<i64: 256, 64>}]} {
    %c0_i32 = arith.constant 0 : i32
    %0 = arith.cmpi eq, %arg2, %c0_i32 : i32
    %1 = arith.extui %0 : i1 to i32
    %c0_i32_0 = arith.constant 0 : i32
    %2 = arith.cmpi ne, %1, %c0_i32_0 : i32
    scf.if %2 {
      %cst_10 = arith.constant 0.000000e+00 : f32
      %12 = vector.broadcast %cst_10 : f32 to vector<256x64xf32>
      %c0_11 = arith.constant 0 : index
      %c0_12 = arith.constant 0 : index
      %13 = vector.load %arg8[%c0_11, %c0_12] : memref<256x64xf32, #tpu.memory_space<vmem>>, vector<256x64xf32>
      tpu.vector_store %arg8[%c0_11, %c0_12], %12 {strides = array<i32>} : memref<256x64xf32, #tpu.memory_space<vmem>>, vector<256x64xf32>,
    } else {
    }
    %c0 = arith.constant 0 : index
    %c0_1 = arith.constant 0 : index
    %3 = vector.load %arg8[%c0, %c0_1] : memref<256x64xf32, #tpu.memory_space<vmem>>, vector<256x64xf32>
    %c0_2 = arith.constant 0 : index
    %c0_3 = arith.constant 0 : index
    %4 = vector.load %arg3[%c0_2, %c0_3] : memref<256x64xbf16, #tpu.memory_space<vmem>>, vector<256x64xbf16>
    %c0_4 = arith.constant 0 : index
    %c0_5 = arith.constant 0 : index
    %5 = vector.load %arg4[%c0_4, %c0_5] : memref<64x64xbf16, #tpu.memory_space<vmem>>, vector<64x64xbf16>
    %cst = arith.constant dense<0.000000e+00> : vector<256x64xf32>
    %6 = tpu.matmul %4, %5, %cst {dimension_numbers = #tpu.dot_dimension_numbers<[1], [0], [0], [1], [0, 0, 1, 1], [], []>} : vector<256x64xbf16>, vector<64x64xbf16>, vector<256x64xf32> -> vector<256x64xf32>
    %7 = arith.addf %3, %6 : vector<256x64xf32>
    %c0_6 = arith.constant 0 : index
    %c0_7 = arith.constant 0 : index
    %8 = vector.load %arg8[%c0_6, %c0_7] : memref<256x64xf32, #tpu.memory_space<vmem>>, vector<256x64xf32>
    tpu.vector_store %arg8[%c0_6, %c0_7], %7 {strides = array<i32>} : memref<256x64xf32, #tpu.memory_space<vmem>>, vector<256x64xf32>,
    %c0_i32_8 = arith.constant 0 : i32
    %9 = arith.cmpi eq, %arg2, %c0_i32_8 : i32
    %10 = arith.extui %9 : i1 to i32
    %c0_i32_9 = arith.constant 0 : i32
    %11 = arith.cmpi ne, %10, %c0_i32_9 : i32
    scf.if %11 {
      %c0_10 = arith.constant 0 : index
      %c0_11 = arith.constant 0 : index
      %12 = vector.load %arg8[%c0_10, %c0_11] : memref<256x64xf32, #tpu.memory_space<vmem>>, vector<256x64xf32>
      %c0_12 = arith.constant 0 : index
      %c0_13 = arith.constant 0 : index
      %13 = vector.load %arg5[%c0_12, %c0_13] : memref<1x64xf32, #tpu.memory_space<vmem>>, vector<1x64xf32>
      %14 = vector.broadcast %13 : vector<1x64xf32> to vector<256x64xf32>
      %15 = arith.mulf %12, %14 : vector<256x64xf32>
      %c0_14 = arith.constant 0 : index
      %c0_15 = arith.constant 0 : index
      %16 = vector.load %arg6[%c0_14, %c0_15] : memref<1x64xf32, #tpu.memory_space<vmem>>, vector<1x64xf32>
      %17 = vector.broadcast %16 : vector<1x64xf32> to vector<256x64xf32>
      %18 = arith.addf %15, %17 : vector<256x64xf32>
      %cst_16 = arith.constant 0.000000e+00 : f32
      %19 = vector.broadcast %cst_16 : f32 to vector<256x64xf32>
      %20 = arith.maximumf %18, %19 : vector<256x64xf32>
      %21 = arith.truncf %20 : vector<256x64xf32> to vector<256x64xbf16>
      %c0_17 = arith.constant 0 : index
      %c0_18 = arith.constant 0 : index
      %22 = vector.load %arg7[%c0_17, %c0_18] : memref<256x64xbf16, #tpu.memory_space<vmem>>, vector<256x64xbf16>
      tpu.vector_store %arg7[%c0_17, %c0_18], %21 {strides = array<i32>} : memref<256x64xbf16, #tpu.memory_space<vmem>>, vector<256x64xbf16>,
    } else {
    }
    return
  }
  func.func @transform_0(%arg0: i32, %arg1: i32, %arg2: i32) -> (i32, i32) {
    %c0_i32 = arith.constant 0 : i32
    return %arg0, %arg2 : i32, i32
  }
  func.func @transform_1(%arg0: i32, %arg1: i32, %arg2: i32) -> (i32, i32) {
    %c0_i32 = arith.constant 0 : i32
    return %arg2, %arg1 : i32, i32
  }
  func.func @transform_2(%arg0: i32, %arg1: i32, %arg2: i32) -> (i32, i32) {
    %c0_i32 = arith.constant 0 : i32
    %c0_i32_0 = arith.constant 0 : i32
    return %c0_i32, %arg1 : i32, i32
  }
  func.func @transform_3(%arg0: i32, %arg1: i32, %arg2: i32) -> (i32, i32) {
    %c0_i32 = arith.constant 0 : i32
    %c0_i32_0 = arith.constant 0 : i32
    return %c0_i32, %arg1 : i32, i32
  }
  func.func @transform_4(%arg0: i32, %arg1: i32, %arg2: i32) -> (i32, i32) {
    %c0_i32 = arith.constant 0 : i32
    return %arg0, %arg1 : i32, i32
  }
}

module attributes {stable_mosaic.version = 11 : i64} {
  func.func @kernel(%arg0: i32, %arg1: i32, %arg2: i32, %arg3: memref<1x18x18x64xbf16, #tpu.memory_space<vmem>>, %arg4: memref<9x64x64xbf16, #tpu.memory_space<vmem>>, %arg5: memref<1x64xf32, #tpu.memory_space<vmem>>, %arg6: memref<1x64xf32, #tpu.memory_space<vmem>>, %arg7: memref<1x16x16x64xbf16, #tpu.memory_space<vmem>>, %arg8: memref<16x16x64xf32, #tpu.memory_space<vmem>>) attributes {dimension_semantics = [#tpu.dimension_semantics<parallel>, #tpu.dimension_semantics<parallel>, #tpu.dimension_semantics<arbitrary>], iteration_bounds = array<i64: 2, 1, 1>, scalar_prefetch = 0 : i64, scratch_operands = 1 : i64, tpu.core_type = #tpu.core_type<tc>, window_params = [{transform_indices = @transform_0, window_bounds = array<i64: 1, 18, 18, 64>}, {transform_indices = @transform_1, window_bounds = array<i64: 9, 64, 64>}, {transform_indices = @transform_2, window_bounds = array<i64: 1, 64>}, {transform_indices = @transform_3, window_bounds = array<i64: 1, 64>}, {transform_indices = @transform_4, window_bounds = array<i64: 1, 16, 16, 64>}]} {
    %c0_i32 = arith.constant 0 : i32
    %0 = arith.cmpi eq, %arg2, %c0_i32 : i32
    %1 = arith.extui %0 : i1 to i32
    %c0_i32_0 = arith.constant 0 : i32
    %2 = arith.cmpi ne, %1, %c0_i32_0 : i32
    scf.if %2 {
      %cst_119 = arith.constant 0.000000e+00 : f32
      %96 = vector.broadcast %cst_119 : f32 to vector<16x16x64xf32>
      %c0_120 = arith.constant 0 : index
      %c0_121 = arith.constant 0 : index
      %c0_122 = arith.constant 0 : index
      %97 = vector.load %arg8[%c0_120, %c0_121, %c0_122] : memref<16x16x64xf32, #tpu.memory_space<vmem>>, vector<16x16x64xf32>
      tpu.vector_store %arg8[%c0_120, %c0_121, %c0_122], %96 {strides = array<i32>} : memref<16x16x64xf32, #tpu.memory_space<vmem>>, vector<16x16x64xf32>,
    } else {
    }
    %c0 = arith.constant 0 : index
    %c0_1 = arith.constant 0 : index
    %c0_2 = arith.constant 0 : index
    %c0_3 = arith.constant 0 : index
    %3 = vector.load %arg3[%c0, %c0_1, %c0_2, %c0_3] : memref<1x18x18x64xbf16, #tpu.memory_space<vmem>>, vector<1x16x16x64xbf16>
    %4 = vector.shape_cast %3 : vector<1x16x16x64xbf16> to vector<16x16x64xbf16>
    %5 = vector.shape_cast %4 : vector<16x16x64xbf16> to vector<256x64xbf16>
    %c0_4 = arith.constant 0 : index
    %c0_5 = arith.constant 0 : index
    %c0_6 = arith.constant 0 : index
    %6 = vector.load %arg4[%c0_4, %c0_5, %c0_6] : memref<9x64x64xbf16, #tpu.memory_space<vmem>>, vector<1x64x64xbf16>
    %7 = vector.shape_cast %6 : vector<1x64x64xbf16> to vector<64x64xbf16>
    %cst = arith.constant dense<0.000000e+00> : vector<256x64xf32>
    %8 = tpu.matmul %5, %7, %cst {dimension_numbers = #tpu.dot_dimension_numbers<[1], [0], [0], [1], [0, 0, 1, 1], [], []>} : vector<256x64xbf16>, vector<64x64xbf16>, vector<256x64xf32> -> vector<256x64xf32>
    %c0_7 = arith.constant 0 : index
    %c0_8 = arith.constant 0 : index
    %c0_9 = arith.constant 0 : index
    %9 = vector.load %arg8[%c0_7, %c0_8, %c0_9] : memref<16x16x64xf32, #tpu.memory_space<vmem>>, vector<16x16x64xf32>
    %10 = vector.shape_cast %8 : vector<256x64xf32> to vector<16x16x64xf32>
    %11 = arith.addf %9, %10 : vector<16x16x64xf32>
    %c0_10 = arith.constant 0 : index
    %c0_11 = arith.constant 0 : index
    %c0_12 = arith.constant 0 : index
    %12 = vector.load %arg8[%c0_10, %c0_11, %c0_12] : memref<16x16x64xf32, #tpu.memory_space<vmem>>, vector<16x16x64xf32>
    tpu.vector_store %arg8[%c0_10, %c0_11, %c0_12], %11 {strides = array<i32>} : memref<16x16x64xf32, #tpu.memory_space<vmem>>, vector<16x16x64xf32>,
    %c0_13 = arith.constant 0 : index
    %c0_14 = arith.constant 0 : index
    %c1 = arith.constant 1 : index
    %c0_15 = arith.constant 0 : index
    %13 = vector.load %arg3[%c0_13, %c0_14, %c1, %c0_15] : memref<1x18x18x64xbf16, #tpu.memory_space<vmem>>, vector<1x16x16x64xbf16>
    %14 = vector.shape_cast %13 : vector<1x16x16x64xbf16> to vector<16x16x64xbf16>
    %15 = vector.shape_cast %14 : vector<16x16x64xbf16> to vector<256x64xbf16>
    %c1_16 = arith.constant 1 : index
    %c0_17 = arith.constant 0 : index
    %c0_18 = arith.constant 0 : index
    %16 = vector.load %arg4[%c1_16, %c0_17, %c0_18] : memref<9x64x64xbf16, #tpu.memory_space<vmem>>, vector<1x64x64xbf16>
    %17 = vector.shape_cast %16 : vector<1x64x64xbf16> to vector<64x64xbf16>
    %cst_19 = arith.constant dense<0.000000e+00> : vector<256x64xf32>
    %18 = tpu.matmul %15, %17, %cst_19 {dimension_numbers = #tpu.dot_dimension_numbers<[1], [0], [0], [1], [0, 0, 1, 1], [], []>} : vector<256x64xbf16>, vector<64x64xbf16>, vector<256x64xf32> -> vector<256x64xf32>
    %c0_20 = arith.constant 0 : index
    %c0_21 = arith.constant 0 : index
    %c0_22 = arith.constant 0 : index
    %19 = vector.load %arg8[%c0_20, %c0_21, %c0_22] : memref<16x16x64xf32, #tpu.memory_space<vmem>>, vector<16x16x64xf32>
    %20 = vector.shape_cast %18 : vector<256x64xf32> to vector<16x16x64xf32>
    %21 = arith.addf %19, %20 : vector<16x16x64xf32>
    %c0_23 = arith.constant 0 : index
    %c0_24 = arith.constant 0 : index
    %c0_25 = arith.constant 0 : index
    %22 = vector.load %arg8[%c0_23, %c0_24, %c0_25] : memref<16x16x64xf32, #tpu.memory_space<vmem>>, vector<16x16x64xf32>
    tpu.vector_store %arg8[%c0_23, %c0_24, %c0_25], %21 {strides = array<i32>} : memref<16x16x64xf32, #tpu.memory_space<vmem>>, vector<16x16x64xf32>,
    %c0_26 = arith.constant 0 : index
    %c0_27 = arith.constant 0 : index
    %c2 = arith.constant 2 : index
    %c0_28 = arith.constant 0 : index
    %23 = vector.load %arg3[%c0_26, %c0_27, %c2, %c0_28] : memref<1x18x18x64xbf16, #tpu.memory_space<vmem>>, vector<1x16x16x64xbf16>
    %24 = vector.shape_cast %23 : vector<1x16x16x64xbf16> to vector<16x16x64xbf16>
    %25 = vector.shape_cast %24 : vector<16x16x64xbf16> to vector<256x64xbf16>
    %c2_29 = arith.constant 2 : index
    %c0_30 = arith.constant 0 : index
    %c0_31 = arith.constant 0 : index
    %26 = vector.load %arg4[%c2_29, %c0_30, %c0_31] : memref<9x64x64xbf16, #tpu.memory_space<vmem>>, vector<1x64x64xbf16>
    %27 = vector.shape_cast %26 : vector<1x64x64xbf16> to vector<64x64xbf16>
    %cst_32 = arith.constant dense<0.000000e+00> : vector<256x64xf32>
    %28 = tpu.matmul %25, %27, %cst_32 {dimension_numbers = #tpu.dot_dimension_numbers<[1], [0], [0], [1], [0, 0, 1, 1], [], []>} : vector<256x64xbf16>, vector<64x64xbf16>, vector<256x64xf32> -> vector<256x64xf32>
    %c0_33 = arith.constant 0 : index
    %c0_34 = arith.constant 0 : index
    %c0_35 = arith.constant 0 : index
    %29 = vector.load %arg8[%c0_33, %c0_34, %c0_35] : memref<16x16x64xf32, #tpu.memory_space<vmem>>, vector<16x16x64xf32>
    %30 = vector.shape_cast %28 : vector<256x64xf32> to vector<16x16x64xf32>
    %31 = arith.addf %29, %30 : vector<16x16x64xf32>
    %c0_36 = arith.constant 0 : index
    %c0_37 = arith.constant 0 : index
    %c0_38 = arith.constant 0 : index
    %32 = vector.load %arg8[%c0_36, %c0_37, %c0_38] : memref<16x16x64xf32, #tpu.memory_space<vmem>>, vector<16x16x64xf32>
    tpu.vector_store %arg8[%c0_36, %c0_37, %c0_38], %31 {strides = array<i32>} : memref<16x16x64xf32, #tpu.memory_space<vmem>>, vector<16x16x64xf32>,
    %c0_39 = arith.constant 0 : index
    %c1_40 = arith.constant 1 : index
    %c0_41 = arith.constant 0 : index
    %c0_42 = arith.constant 0 : index
    %33 = vector.load %arg3[%c0_39, %c1_40, %c0_41, %c0_42] : memref<1x18x18x64xbf16, #tpu.memory_space<vmem>>, vector<1x16x16x64xbf16>
    %34 = vector.shape_cast %33 : vector<1x16x16x64xbf16> to vector<16x16x64xbf16>
    %35 = vector.shape_cast %34 : vector<16x16x64xbf16> to vector<256x64xbf16>
    %c3 = arith.constant 3 : index
    %c0_43 = arith.constant 0 : index
    %c0_44 = arith.constant 0 : index
    %36 = vector.load %arg4[%c3, %c0_43, %c0_44] : memref<9x64x64xbf16, #tpu.memory_space<vmem>>, vector<1x64x64xbf16>
    %37 = vector.shape_cast %36 : vector<1x64x64xbf16> to vector<64x64xbf16>
    %cst_45 = arith.constant dense<0.000000e+00> : vector<256x64xf32>
    %38 = tpu.matmul %35, %37, %cst_45 {dimension_numbers = #tpu.dot_dimension_numbers<[1], [0], [0], [1], [0, 0, 1, 1], [], []>} : vector<256x64xbf16>, vector<64x64xbf16>, vector<256x64xf32> -> vector<256x64xf32>
    %c0_46 = arith.constant 0 : index
    %c0_47 = arith.constant 0 : index
    %c0_48 = arith.constant 0 : index
    %39 = vector.load %arg8[%c0_46, %c0_47, %c0_48] : memref<16x16x64xf32, #tpu.memory_space<vmem>>, vector<16x16x64xf32>
    %40 = vector.shape_cast %38 : vector<256x64xf32> to vector<16x16x64xf32>
    %41 = arith.addf %39, %40 : vector<16x16x64xf32>
    %c0_49 = arith.constant 0 : index
    %c0_50 = arith.constant 0 : index
    %c0_51 = arith.constant 0 : index
    %42 = vector.load %arg8[%c0_49, %c0_50, %c0_51] : memref<16x16x64xf32, #tpu.memory_space<vmem>>, vector<16x16x64xf32>
    tpu.vector_store %arg8[%c0_49, %c0_50, %c0_51], %41 {strides = array<i32>} : memref<16x16x64xf32, #tpu.memory_space<vmem>>, vector<16x16x64xf32>,
    %c0_52 = arith.constant 0 : index
    %c1_53 = arith.constant 1 : index
    %c1_54 = arith.constant 1 : index
    %c0_55 = arith.constant 0 : index
    %43 = vector.load %arg3[%c0_52, %c1_53, %c1_54, %c0_55] : memref<1x18x18x64xbf16, #tpu.memory_space<vmem>>, vector<1x16x16x64xbf16>
    %44 = vector.shape_cast %43 : vector<1x16x16x64xbf16> to vector<16x16x64xbf16>
    %45 = vector.shape_cast %44 : vector<16x16x64xbf16> to vector<256x64xbf16>
    %c4 = arith.constant 4 : index
    %c0_56 = arith.constant 0 : index
    %c0_57 = arith.constant 0 : index
    %46 = vector.load %arg4[%c4, %c0_56, %c0_57] : memref<9x64x64xbf16, #tpu.memory_space<vmem>>, vector<1x64x64xbf16>
    %47 = vector.shape_cast %46 : vector<1x64x64xbf16> to vector<64x64xbf16>
    %cst_58 = arith.constant dense<0.000000e+00> : vector<256x64xf32>
    %48 = tpu.matmul %45, %47, %cst_58 {dimension_numbers = #tpu.dot_dimension_numbers<[1], [0], [0], [1], [0, 0, 1, 1], [], []>} : vector<256x64xbf16>, vector<64x64xbf16>, vector<256x64xf32> -> vector<256x64xf32>
    %c0_59 = arith.constant 0 : index
    %c0_60 = arith.constant 0 : index
    %c0_61 = arith.constant 0 : index
    %49 = vector.load %arg8[%c0_59, %c0_60, %c0_61] : memref<16x16x64xf32, #tpu.memory_space<vmem>>, vector<16x16x64xf32>
    %50 = vector.shape_cast %48 : vector<256x64xf32> to vector<16x16x64xf32>
    %51 = arith.addf %49, %50 : vector<16x16x64xf32>
    %c0_62 = arith.constant 0 : index
    %c0_63 = arith.constant 0 : index
    %c0_64 = arith.constant 0 : index
    %52 = vector.load %arg8[%c0_62, %c0_63, %c0_64] : memref<16x16x64xf32, #tpu.memory_space<vmem>>, vector<16x16x64xf32>
    tpu.vector_store %arg8[%c0_62, %c0_63, %c0_64], %51 {strides = array<i32>} : memref<16x16x64xf32, #tpu.memory_space<vmem>>, vector<16x16x64xf32>,
    %c0_65 = arith.constant 0 : index
    %c1_66 = arith.constant 1 : index
    %c2_67 = arith.constant 2 : index
    %c0_68 = arith.constant 0 : index
    %53 = vector.load %arg3[%c0_65, %c1_66, %c2_67, %c0_68] : memref<1x18x18x64xbf16, #tpu.memory_space<vmem>>, vector<1x16x16x64xbf16>
    %54 = vector.shape_cast %53 : vector<1x16x16x64xbf16> to vector<16x16x64xbf16>
    %55 = vector.shape_cast %54 : vector<16x16x64xbf16> to vector<256x64xbf16>
    %c5 = arith.constant 5 : index
    %c0_69 = arith.constant 0 : index
    %c0_70 = arith.constant 0 : index
    %56 = vector.load %arg4[%c5, %c0_69, %c0_70] : memref<9x64x64xbf16, #tpu.memory_space<vmem>>, vector<1x64x64xbf16>
    %57 = vector.shape_cast %56 : vector<1x64x64xbf16> to vector<64x64xbf16>
    %cst_71 = arith.constant dense<0.000000e+00> : vector<256x64xf32>
    %58 = tpu.matmul %55, %57, %cst_71 {dimension_numbers = #tpu.dot_dimension_numbers<[1], [0], [0], [1], [0, 0, 1, 1], [], []>} : vector<256x64xbf16>, vector<64x64xbf16>, vector<256x64xf32> -> vector<256x64xf32>
    %c0_72 = arith.constant 0 : index
    %c0_73 = arith.constant 0 : index
    %c0_74 = arith.constant 0 : index
    %59 = vector.load %arg8[%c0_72, %c0_73, %c0_74] : memref<16x16x64xf32, #tpu.memory_space<vmem>>, vector<16x16x64xf32>
    %60 = vector.shape_cast %58 : vector<256x64xf32> to vector<16x16x64xf32>
    %61 = arith.addf %59, %60 : vector<16x16x64xf32>
    %c0_75 = arith.constant 0 : index
    %c0_76 = arith.constant 0 : index
    %c0_77 = arith.constant 0 : index
    %62 = vector.load %arg8[%c0_75, %c0_76, %c0_77] : memref<16x16x64xf32, #tpu.memory_space<vmem>>, vector<16x16x64xf32>
    tpu.vector_store %arg8[%c0_75, %c0_76, %c0_77], %61 {strides = array<i32>} : memref<16x16x64xf32, #tpu.memory_space<vmem>>, vector<16x16x64xf32>,
    %c0_78 = arith.constant 0 : index
    %c2_79 = arith.constant 2 : index
    %c0_80 = arith.constant 0 : index
    %c0_81 = arith.constant 0 : index
    %63 = vector.load %arg3[%c0_78, %c2_79, %c0_80, %c0_81] : memref<1x18x18x64xbf16, #tpu.memory_space<vmem>>, vector<1x16x16x64xbf16>
    %64 = vector.shape_cast %63 : vector<1x16x16x64xbf16> to vector<16x16x64xbf16>
    %65 = vector.shape_cast %64 : vector<16x16x64xbf16> to vector<256x64xbf16>
    %c6 = arith.constant 6 : index
    %c0_82 = arith.constant 0 : index
    %c0_83 = arith.constant 0 : index
    %66 = vector.load %arg4[%c6, %c0_82, %c0_83] : memref<9x64x64xbf16, #tpu.memory_space<vmem>>, vector<1x64x64xbf16>
    %67 = vector.shape_cast %66 : vector<1x64x64xbf16> to vector<64x64xbf16>
    %cst_84 = arith.constant dense<0.000000e+00> : vector<256x64xf32>
    %68 = tpu.matmul %65, %67, %cst_84 {dimension_numbers = #tpu.dot_dimension_numbers<[1], [0], [0], [1], [0, 0, 1, 1], [], []>} : vector<256x64xbf16>, vector<64x64xbf16>, vector<256x64xf32> -> vector<256x64xf32>
    %c0_85 = arith.constant 0 : index
    %c0_86 = arith.constant 0 : index
    %c0_87 = arith.constant 0 : index
    %69 = vector.load %arg8[%c0_85, %c0_86, %c0_87] : memref<16x16x64xf32, #tpu.memory_space<vmem>>, vector<16x16x64xf32>
    %70 = vector.shape_cast %68 : vector<256x64xf32> to vector<16x16x64xf32>
    %71 = arith.addf %69, %70 : vector<16x16x64xf32>
    %c0_88 = arith.constant 0 : index
    %c0_89 = arith.constant 0 : index
    %c0_90 = arith.constant 0 : index
    %72 = vector.load %arg8[%c0_88, %c0_89, %c0_90] : memref<16x16x64xf32, #tpu.memory_space<vmem>>, vector<16x16x64xf32>
    tpu.vector_store %arg8[%c0_88, %c0_89, %c0_90], %71 {strides = array<i32>} : memref<16x16x64xf32, #tpu.memory_space<vmem>>, vector<16x16x64xf32>,
    %c0_91 = arith.constant 0 : index
    %c2_92 = arith.constant 2 : index
    %c1_93 = arith.constant 1 : index
    %c0_94 = arith.constant 0 : index
    %73 = vector.load %arg3[%c0_91, %c2_92, %c1_93, %c0_94] : memref<1x18x18x64xbf16, #tpu.memory_space<vmem>>, vector<1x16x16x64xbf16>
    %74 = vector.shape_cast %73 : vector<1x16x16x64xbf16> to vector<16x16x64xbf16>
    %75 = vector.shape_cast %74 : vector<16x16x64xbf16> to vector<256x64xbf16>
    %c7 = arith.constant 7 : index
    %c0_95 = arith.constant 0 : index
    %c0_96 = arith.constant 0 : index
    %76 = vector.load %arg4[%c7, %c0_95, %c0_96] : memref<9x64x64xbf16, #tpu.memory_space<vmem>>, vector<1x64x64xbf16>
    %77 = vector.shape_cast %76 : vector<1x64x64xbf16> to vector<64x64xbf16>
    %cst_97 = arith.constant dense<0.000000e+00> : vector<256x64xf32>
    %78 = tpu.matmul %75, %77, %cst_97 {dimension_numbers = #tpu.dot_dimension_numbers<[1], [0], [0], [1], [0, 0, 1, 1], [], []>} : vector<256x64xbf16>, vector<64x64xbf16>, vector<256x64xf32> -> vector<256x64xf32>
    %c0_98 = arith.constant 0 : index
    %c0_99 = arith.constant 0 : index
    %c0_100 = arith.constant 0 : index
    %79 = vector.load %arg8[%c0_98, %c0_99, %c0_100] : memref<16x16x64xf32, #tpu.memory_space<vmem>>, vector<16x16x64xf32>
    %80 = vector.shape_cast %78 : vector<256x64xf32> to vector<16x16x64xf32>
    %81 = arith.addf %79, %80 : vector<16x16x64xf32>
    %c0_101 = arith.constant 0 : index
    %c0_102 = arith.constant 0 : index
    %c0_103 = arith.constant 0 : index
    %82 = vector.load %arg8[%c0_101, %c0_102, %c0_103] : memref<16x16x64xf32, #tpu.memory_space<vmem>>, vector<16x16x64xf32>
    tpu.vector_store %arg8[%c0_101, %c0_102, %c0_103], %81 {strides = array<i32>} : memref<16x16x64xf32, #tpu.memory_space<vmem>>, vector<16x16x64xf32>,
    %c0_104 = arith.constant 0 : index
    %c2_105 = arith.constant 2 : index
    %c2_106 = arith.constant 2 : index
    %c0_107 = arith.constant 0 : index
    %83 = vector.load %arg3[%c0_104, %c2_105, %c2_106, %c0_107] : memref<1x18x18x64xbf16, #tpu.memory_space<vmem>>, vector<1x16x16x64xbf16>
    %84 = vector.shape_cast %83 : vector<1x16x16x64xbf16> to vector<16x16x64xbf16>
    %85 = vector.shape_cast %84 : vector<16x16x64xbf16> to vector<256x64xbf16>
    %c8 = arith.constant 8 : index
    %c0_108 = arith.constant 0 : index
    %c0_109 = arith.constant 0 : index
    %86 = vector.load %arg4[%c8, %c0_108, %c0_109] : memref<9x64x64xbf16, #tpu.memory_space<vmem>>, vector<1x64x64xbf16>
    %87 = vector.shape_cast %86 : vector<1x64x64xbf16> to vector<64x64xbf16>
    %cst_110 = arith.constant dense<0.000000e+00> : vector<256x64xf32>
    %88 = tpu.matmul %85, %87, %cst_110 {dimension_numbers = #tpu.dot_dimension_numbers<[1], [0], [0], [1], [0, 0, 1, 1], [], []>} : vector<256x64xbf16>, vector<64x64xbf16>, vector<256x64xf32> -> vector<256x64xf32>
    %c0_111 = arith.constant 0 : index
    %c0_112 = arith.constant 0 : index
    %c0_113 = arith.constant 0 : index
    %89 = vector.load %arg8[%c0_111, %c0_112, %c0_113] : memref<16x16x64xf32, #tpu.memory_space<vmem>>, vector<16x16x64xf32>
    %90 = vector.shape_cast %88 : vector<256x64xf32> to vector<16x16x64xf32>
    %91 = arith.addf %89, %90 : vector<16x16x64xf32>
    %c0_114 = arith.constant 0 : index
    %c0_115 = arith.constant 0 : index
    %c0_116 = arith.constant 0 : index
    %92 = vector.load %arg8[%c0_114, %c0_115, %c0_116] : memref<16x16x64xf32, #tpu.memory_space<vmem>>, vector<16x16x64xf32>
    tpu.vector_store %arg8[%c0_114, %c0_115, %c0_116], %91 {strides = array<i32>} : memref<16x16x64xf32, #tpu.memory_space<vmem>>, vector<16x16x64xf32>,
    %c0_i32_117 = arith.constant 0 : i32
    %93 = arith.cmpi eq, %arg2, %c0_i32_117 : i32
    %94 = arith.extui %93 : i1 to i32
    %c0_i32_118 = arith.constant 0 : i32
    %95 = arith.cmpi ne, %94, %c0_i32_118 : i32
    scf.if %95 {
      %c0_119 = arith.constant 0 : index
      %c0_120 = arith.constant 0 : index
      %c0_121 = arith.constant 0 : index
      %96 = vector.load %arg8[%c0_119, %c0_120, %c0_121] : memref<16x16x64xf32, #tpu.memory_space<vmem>>, vector<16x16x64xf32>
      %c0_122 = arith.constant 0 : index
      %c0_123 = arith.constant 0 : index
      %97 = vector.load %arg5[%c0_122, %c0_123] : memref<1x64xf32, #tpu.memory_space<vmem>>, vector<1x64xf32>
      %98 = vector.shape_cast %97 : vector<1x64xf32> to vector<1x1x64xf32>
      %99 = vector.broadcast %98 : vector<1x1x64xf32> to vector<16x16x64xf32>
      %100 = arith.mulf %96, %99 : vector<16x16x64xf32>
      %c0_124 = arith.constant 0 : index
      %c0_125 = arith.constant 0 : index
      %101 = vector.load %arg6[%c0_124, %c0_125] : memref<1x64xf32, #tpu.memory_space<vmem>>, vector<1x64xf32>
      %102 = vector.shape_cast %101 : vector<1x64xf32> to vector<1x1x64xf32>
      %103 = vector.broadcast %102 : vector<1x1x64xf32> to vector<16x16x64xf32>
      %104 = arith.addf %100, %103 : vector<16x16x64xf32>
      %cst_126 = arith.constant 0.000000e+00 : f32
      %105 = vector.broadcast %cst_126 : f32 to vector<16x16x64xf32>
      %106 = arith.maximumf %104, %105 : vector<16x16x64xf32>
      %107 = arith.truncf %106 : vector<16x16x64xf32> to vector<16x16x64xbf16>
      %c0_127 = arith.constant 0 : index
      %c0_128 = arith.constant 0 : index
      %c0_129 = arith.constant 0 : index
      %c0_130 = arith.constant 0 : index
      %108 = vector.load %arg7[%c0_127, %c0_128, %c0_129, %c0_130] : memref<1x16x16x64xbf16, #tpu.memory_space<vmem>>, vector<1x16x16x64xbf16>
      %109 = vector.shape_cast %108 : vector<1x16x16x64xbf16> to vector<16x16x64xbf16>
      %110 = vector.shape_cast %107 : vector<16x16x64xbf16> to vector<1x16x16x64xbf16>
      tpu.vector_store %arg7[%c0_127, %c0_128, %c0_129, %c0_130], %110 {strides = array<i32>} : memref<1x16x16x64xbf16, #tpu.memory_space<vmem>>, vector<1x16x16x64xbf16>,
    } else {
    }
    return
  }
  func.func @transform_0(%arg0: i32, %arg1: i32, %arg2: i32) -> (i32, i32, i32, i32) {
    %c0_i32 = arith.constant 0 : i32
    %c0_i32_0 = arith.constant 0 : i32
    %c0_i32_1 = arith.constant 0 : i32
    return %arg0, %c0_i32, %c0_i32_0, %arg2 : i32, i32, i32, i32
  }
  func.func @transform_1(%arg0: i32, %arg1: i32, %arg2: i32) -> (i32, i32, i32) {
    %c0_i32 = arith.constant 0 : i32
    %c0_i32_0 = arith.constant 0 : i32
    return %c0_i32, %arg2, %arg1 : i32, i32, i32
  }
  func.func @transform_2(%arg0: i32, %arg1: i32, %arg2: i32) -> (i32, i32) {
    %c0_i32 = arith.constant 0 : i32
    %c0_i32_0 = arith.constant 0 : i32
    return %c0_i32, %arg1 : i32, i32
  }
  func.func @transform_3(%arg0: i32, %arg1: i32, %arg2: i32) -> (i32, i32) {
    %c0_i32 = arith.constant 0 : i32
    %c0_i32_0 = arith.constant 0 : i32
    return %c0_i32, %arg1 : i32, i32
  }
  func.func @transform_4(%arg0: i32, %arg1: i32, %arg2: i32) -> (i32, i32, i32, i32) {
    %c0_i32 = arith.constant 0 : i32
    %c0_i32_0 = arith.constant 0 : i32
    %c0_i32_1 = arith.constant 0 : i32
    return %arg0, %c0_i32, %c0_i32_0, %arg1 : i32, i32, i32, i32
  }
}

module attributes {stable_mosaic.version = 11 : i64} {
  func.func @kernel(%arg0: i32, %arg1: i32, %arg2: i32, %arg3: memref<256x64xbf16, #tpu.memory_space<vmem>>, %arg4: memref<64x128xbf16, #tpu.memory_space<vmem>>, %arg5: memref<1x128xf32, #tpu.memory_space<vmem>>, %arg6: memref<1x128xf32, #tpu.memory_space<vmem>>, %arg7: memref<256x128xbf16, #tpu.memory_space<vmem>>, %arg8: memref<256x128xbf16, #tpu.memory_space<vmem>>, %arg9: memref<256x128xf32, #tpu.memory_space<vmem>>) attributes {dimension_semantics = [#tpu.dimension_semantics<parallel>, #tpu.dimension_semantics<parallel>, #tpu.dimension_semantics<arbitrary>], iteration_bounds = array<i64: 2, 1, 1>, scalar_prefetch = 0 : i64, scratch_operands = 1 : i64, tpu.core_type = #tpu.core_type<tc>, window_params = [{transform_indices = @transform_0, window_bounds = array<i64: 256, 64>}, {transform_indices = @transform_1, window_bounds = array<i64: 64, 128>}, {transform_indices = @transform_2, window_bounds = array<i64: 1, 128>}, {transform_indices = @transform_3, window_bounds = array<i64: 1, 128>}, {transform_indices = @transform_4, window_bounds = array<i64: 256, 128>}, {transform_indices = @transform_5, window_bounds = array<i64: 256, 128>}]} {
    %c0_i32 = arith.constant 0 : i32
    %0 = arith.cmpi eq, %arg2, %c0_i32 : i32
    %1 = arith.extui %0 : i1 to i32
    %c0_i32_0 = arith.constant 0 : i32
    %2 = arith.cmpi ne, %1, %c0_i32_0 : i32
    scf.if %2 {
      %cst_10 = arith.constant 0.000000e+00 : f32
      %12 = vector.broadcast %cst_10 : f32 to vector<256x128xf32>
      %c0_11 = arith.constant 0 : index
      %c0_12 = arith.constant 0 : index
      %13 = vector.load %arg9[%c0_11, %c0_12] : memref<256x128xf32, #tpu.memory_space<vmem>>, vector<256x128xf32>
      tpu.vector_store %arg9[%c0_11, %c0_12], %12 {strides = array<i32>} : memref<256x128xf32, #tpu.memory_space<vmem>>, vector<256x128xf32>,
    } else {
    }
    %c0 = arith.constant 0 : index
    %c0_1 = arith.constant 0 : index
    %3 = vector.load %arg9[%c0, %c0_1] : memref<256x128xf32, #tpu.memory_space<vmem>>, vector<256x128xf32>
    %c0_2 = arith.constant 0 : index
    %c0_3 = arith.constant 0 : index
    %4 = vector.load %arg3[%c0_2, %c0_3] : memref<256x64xbf16, #tpu.memory_space<vmem>>, vector<256x64xbf16>
    %c0_4 = arith.constant 0 : index
    %c0_5 = arith.constant 0 : index
    %5 = vector.load %arg4[%c0_4, %c0_5] : memref<64x128xbf16, #tpu.memory_space<vmem>>, vector<64x128xbf16>
    %cst = arith.constant dense<0.000000e+00> : vector<256x128xf32>
    %6 = tpu.matmul %4, %5, %cst {dimension_numbers = #tpu.dot_dimension_numbers<[1], [0], [0], [1], [0, 0, 1, 1], [], []>} : vector<256x64xbf16>, vector<64x128xbf16>, vector<256x128xf32> -> vector<256x128xf32>
    %7 = arith.addf %3, %6 : vector<256x128xf32>
    %c0_6 = arith.constant 0 : index
    %c0_7 = arith.constant 0 : index
    %8 = vector.load %arg9[%c0_6, %c0_7] : memref<256x128xf32, #tpu.memory_space<vmem>>, vector<256x128xf32>
    tpu.vector_store %arg9[%c0_6, %c0_7], %7 {strides = array<i32>} : memref<256x128xf32, #tpu.memory_space<vmem>>, vector<256x128xf32>,
    %c0_i32_8 = arith.constant 0 : i32
    %9 = arith.cmpi eq, %arg2, %c0_i32_8 : i32
    %10 = arith.extui %9 : i1 to i32
    %c0_i32_9 = arith.constant 0 : i32
    %11 = arith.cmpi ne, %10, %c0_i32_9 : i32
    scf.if %11 {
      %c0_10 = arith.constant 0 : index
      %c0_11 = arith.constant 0 : index
      %12 = vector.load %arg9[%c0_10, %c0_11] : memref<256x128xf32, #tpu.memory_space<vmem>>, vector<256x128xf32>
      %c0_12 = arith.constant 0 : index
      %c0_13 = arith.constant 0 : index
      %13 = vector.load %arg5[%c0_12, %c0_13] : memref<1x128xf32, #tpu.memory_space<vmem>>, vector<1x128xf32>
      %14 = vector.broadcast %13 : vector<1x128xf32> to vector<256x128xf32>
      %15 = arith.mulf %12, %14 : vector<256x128xf32>
      %c0_14 = arith.constant 0 : index
      %c0_15 = arith.constant 0 : index
      %16 = vector.load %arg6[%c0_14, %c0_15] : memref<1x128xf32, #tpu.memory_space<vmem>>, vector<1x128xf32>
      %17 = vector.broadcast %16 : vector<1x128xf32> to vector<256x128xf32>
      %18 = arith.addf %15, %17 : vector<256x128xf32>
      %c0_16 = arith.constant 0 : index
      %c0_17 = arith.constant 0 : index
      %19 = vector.load %arg7[%c0_16, %c0_17] : memref<256x128xbf16, #tpu.memory_space<vmem>>, vector<256x128xbf16>
      %20 = arith.extf %19 : vector<256x128xbf16> to vector<256x128xf32>
      %21 = arith.addf %18, %20 : vector<256x128xf32>
      %cst_18 = arith.constant 0.000000e+00 : f32
      %22 = vector.broadcast %cst_18 : f32 to vector<256x128xf32>
      %23 = arith.maximumf %21, %22 : vector<256x128xf32>
      %24 = arith.truncf %23 : vector<256x128xf32> to vector<256x128xbf16>
      %c0_19 = arith.constant 0 : index
      %c0_20 = arith.constant 0 : index
      %25 = vector.load %arg8[%c0_19, %c0_20] : memref<256x128xbf16, #tpu.memory_space<vmem>>, vector<256x128xbf16>
      tpu.vector_store %arg8[%c0_19, %c0_20], %24 {strides = array<i32>} : memref<256x128xbf16, #tpu.memory_space<vmem>>, vector<256x128xbf16>,
    } else {
    }
    return
  }
  func.func @transform_0(%arg0: i32, %arg1: i32, %arg2: i32) -> (i32, i32) {
    %c0_i32 = arith.constant 0 : i32
    return %arg0, %arg2 : i32, i32
  }
  func.func @transform_1(%arg0: i32, %arg1: i32, %arg2: i32) -> (i32, i32) {
    %c0_i32 = arith.constant 0 : i32
    return %arg2, %arg1 : i32, i32
  }
  func.func @transform_2(%arg0: i32, %arg1: i32, %arg2: i32) -> (i32, i32) {
    %c0_i32 = arith.constant 0 : i32
    %c0_i32_0 = arith.constant 0 : i32
    return %c0_i32, %arg1 : i32, i32
  }
  func.func @transform_3(%arg0: i32, %arg1: i32, %arg2: i32) -> (i32, i32) {
    %c0_i32 = arith.constant 0 : i32
    %c0_i32_0 = arith.constant 0 : i32
    return %c0_i32, %arg1 : i32, i32
  }
  func.func @transform_4(%arg0: i32, %arg1: i32, %arg2: i32) -> (i32, i32) {
    %c0_i32 = arith.constant 0 : i32
    return %arg0, %arg1 : i32, i32
  }
  func.func @transform_5(%arg0: i32, %arg1: i32, %arg2: i32) -> (i32, i32) {
    %c0_i32 = arith.constant 0 : i32
    return %arg0, %arg1 : i32, i32
  }
}

</mosaic_0001>

<llo_original>
// kernel: _lambda_.4
$region0: #{_lambda_.4}
  #allocation0 [shape = 'u32[]', space=smem, size = 0x4, offset = 0x4, fixed_abs, tag = 'smem constant byte address 0x4 - core index']
  #allocation1 [shape = 'u32[144,128]{1,0:T(1,128)}', space=vmem, size = 0x12000, scoped, tag = 'internal scratch']
  #allocation2 [shape = 'f32[256,64]{1,0:T(8,128)}', space=vmem, size = 0x20000, scoped, tag = 'scratch operand']
  %s0 = inlined_call_operand.vmem [shape: bf16[512,64], index: 0, kind: input, shape index: {}]
  %s1 = inlined_call_operand.vmem [shape: bf16[64,64], index: 1, kind: input, shape index: {}]
  %s2 = inlined_call_operand.vmem [shape: f32[1,64], index: 2, kind: input, shape index: {}]
  %s3 = inlined_call_operand.vmem [shape: f32[1,64], index: 3, kind: input, shape index: {}]
  %s4 = inlined_call_operand.vmem [shape: bf16[512,64], index: 4, kind: output, shape index: {}]
  %s5 = sld [smem:[#allocation0]]
  $region57: #{_lambda_.4} parent=0
    _
  %s7 = ssub.s32 1, %s5
  %s8 = scalar_select 0, %s7, %s5
  loop: start=0, step=1, limit=4
  $region2: #{_lambda_.4} parent=0 // loop_pre_header
    _
  $region3: #{_lambda_.4} parent=0 // loop_header
    %s10 = sphi 0, %s14
    %p11 = scmp.ge.s32.totalorder %s10, 4
    %s17 = sphi 0, %s36
    %s18 = sphi 0, %s32
    %s19 = sphi 0, %s28
    %s20 = sphi 0, %s17
    %s21 = sphi 0, %s18
    %s22 = sphi 0, %s19
    %s23 = sphi 0, %s20
    %s24 = sphi 0, %s21
    %s25 = sphi 0, %s22
    %s41 = sphi 0, %s43
    %s44 = sphi 0, %s41
    %s45 = sphi 0, %s44
    %s61 = sphi 0, %s45
    %s69 = sphi 0, %s71
    %s72 = sphi 0, %s69
    %s73 = sphi 0, %s72
    %s89 = sphi 0, %s73
    %s95 = sphi 0, %s97
    %s98 = sphi 0, %s95
    %s99 = sphi 0, %s98
    %s115 = sphi 0, %s99
    %s121 = sphi 0, %s123
    %s124 = sphi 0, %s121
    %s125 = sphi 0, %s124
    %s141 = sphi 0, %s125
    %s149 = sphi 0, %s151
    %s152 = sphi 0, %s149
    %s153 = sphi 0, %s152
    %s169 = sphi 0, %s153
  $region4: #{_lambda_.4} parent=0 // loop_header_branch
    %13 = sbr.rel (%p11) target = $region8
  $region5: #{_lambda_.4} parent=0 // loop_body
    %s15 = ssub.s32 %s10, 1
    %s16 = ssub.s32 %s10, 2
    %s26 = sadd.s32 1, %s19
    %p27 = scmp.ge.s32.totalorder %s26, 1
    %s28 = scalar_select %p27, 0, %s26
    %s29 = sadd.s32 1, %s18
    %s30 = scalar_select %p27, %s29, %s18
    %p31 = scmp.ge.s32.totalorder %s30, 1
    %s32 = scalar_select %p31, 0, %s30
    %s33 = sadd.s32 1, %s17
    %s34 = scalar_select %p31, %s33, %s17
    %p35 = scmp.ge.s32.totalorder %s34, 2
    %s36 = scalar_select %p35, 0, %s34
    %s37 = ssub.s32 %s17, %s36
    %s38 = ssub.s32 %s19, %s28
    %s39 = sor.u32 %s37, %s38
    %p40 = scmp.eq.s32.totalorder %s39, 0
    %s42 = sadd.s32 %s41, 1
    %s43 = scalar_select %p40, %s41, %s42
    %p46 = pneg %p40
    %p47 = scmp.eq.s32.totalorder %s10, 1
    %p48 = por %p46, %p47
    %p49 = scmp.ne.s32.totalorder %s41, %s44
    %p50 = scmp.eq.s32.totalorder %s10, 0
    %p51 = por %p49, %p50
    %p52 = scmp.ne.s32.totalorder %s41, %s44
    %p53 = scmp.eq.s32.totalorder %s15, 1
    %p54 = por %p52, %p53
    %p55 = scmp.ne.s32.totalorder %s44, %s45
    %p56 = scmp.eq.s32.totalorder %s15, 0
    %p57 = por %p55, %p56
    %p58 = scmp.ne.s32.totalorder %s44, %s45
    %p59 = scmp.eq.s32.totalorder %s16, 1
    %p60 = por %p58, %p59
    %p62 = scmp.ne.s32.totalorder %s45, %s61
    %p63 = scmp.eq.s32.totalorder %s16, 0
    %p64 = por %p62, %p63
    %s65 = ssub.s32 %s19, %s28
    %s66 = ssub.s32 %s18, %s32
    %s67 = sor.u32 %s65, %s66
    %p68 = scmp.eq.s32.totalorder %s67, 0
    %s70 = sadd.s32 %s69, 1
    %s71 = scalar_select %p68, %s69, %s70
    %p74 = pneg %p68
    %p75 = scmp.eq.s32.totalorder %s10, 1
    %p76 = por %p74, %p75
    %p77 = scmp.ne.s32.totalorder %s69, %s72
    %p78 = scmp.eq.s32.totalorder %s10, 0
    %p79 = por %p77, %p78
    %p80 = scmp.ne.s32.totalorder %s69, %s72
    %p81 = scmp.eq.s32.totalorder %s15, 1
    %p82 = por %p80, %p81
    %p83 = scmp.ne.s32.totalorder %s72, %s73
    %p84 = scmp.eq.s32.totalorder %s15, 0
    %p85 = por %p83, %p84
    %p86 = scmp.ne.s32.totalorder %s72, %s73
    %p87 = scmp.eq.s32.totalorder %s16, 1
    %p88 = por %p86, %p87
    %p90 = scmp.ne.s32.totalorder %s73, %s89
    %p91 = scmp.eq.s32.totalorder %s16, 0
    %p92 = por %p90, %p91
    %s93 = ssub.s32 %s18, %s32
    %p94 = scmp.eq.s32.totalorder %s93, 0
    %s96 = sadd.s32 %s95, 1
    %s97 = scalar_select %p94, %s95, %s96
    %p100 = pneg %p94
    %p101 = scmp.eq.s32.totalorder %s10, 1
    %p102 = por %p100, %p101
    %p103 = scmp.ne.s32.totalorder %s95, %s98
    %p104 = scmp.eq.s32.totalorder %s10, 0
    %p105 = por %p103, %p104
    %p106 = scmp.ne.s32.totalorder %s95, %s98
    %p107 = scmp.eq.s32.totalorder %s15, 1
    %p108 = por %p106, %p107
    %p109 = scmp.ne.s32.totalorder %s98, %s99
    %p110 = scmp.eq.s32.totalorder %s15, 0
    %p111 = por %p109, %p110
    %p112 = scmp.ne.s32.totalorder %s98, %s99
    %p113 = scmp.eq.s32.totalorder %s16, 1
    %p114 = por %p112, %p113
    %p116 = scmp.ne.s32.totalorder %s99, %s115
    %p117 = scmp.eq.s32.totalorder %s16, 0
    %p118 = por %p116, %p117
    %s119 = ssub.s32 %s18, %s32
    %p120 = scmp.eq.s32.totalorder %s119, 0
    %s122 = sadd.s32 %s121, 1
    %s123 = scalar_select %p120, %s121, %s122
    %p126 = pneg %p120
    %p127 = scmp.eq.s32.totalorder %s10, 1
    %p128 = por %p126, %p127
    %p129 = scmp.ne.s32.totalorder %s121, %s124
    %p130 = scmp.eq.s32.totalorder %s10, 0
    %p131 = por %p129, %p130
    %p132 = scmp.ne.s32.totalorder %s121, %s124
    %p133 = scmp.eq.s32.totalorder %s15, 1
    %p134 = por %p132, %p133
    %p135 = scmp.ne.s32.totalorder %s124, %s125
    %p136 = scmp.eq.s32.totalorder %s15, 0
    %p137 = por %p135, %p136
    %p138 = scmp.ne.s32.totalorder %s124, %s125
    %p139 = scmp.eq.s32.totalorder %s16, 1
    %p140 = por %p138, %p139
    %p142 = scmp.ne.s32.totalorder %s125, %s141
    %p143 = scmp.eq.s32.totalorder %s16, 0
    %p144 = por %p142, %p143
    %s145 = ssub.s32 %s17, %s36
    %s146 = ssub.s32 %s18, %s32
    %s147 = sor.u32 %s145, %s146
    %p148 = scmp.eq.s32.totalorder %s147, 0
    %s150 = sadd.s32 %s149, 1
    %s151 = scalar_select %p148, %s149, %s150
    %p154 = pneg %p148
    %p155 = scmp.eq.s32.totalorder %s10, 1
    %p156 = por %p154, %p155
    %p157 = scmp.ne.s32.totalorder %s149, %s152
    %p158 = scmp.eq.s32.totalorder %s10, 0
    %p159 = por %p157, %p158
    %p160 = scmp.ne.s32.totalorder %s149, %s152
    %p161 = scmp.eq.s32.totalorder %s15, 1
    %p162 = por %p160, %p161
    %p163 = scmp.ne.s32.totalorder %s152, %s153
    %p164 = scmp.eq.s32.totalorder %s15, 0
    %p165 = por %p163, %p164
    %p166 = scmp.ne.s32.totalorder %s152, %s153
    %p167 = scmp.eq.s32.totalorder %s16, 1
    %p168 = por %p166, %p167
    %p170 = scmp.ne.s32.totalorder %s153, %s169
    %p171 = scmp.eq.s32.totalorder %s16, 0
    %p172 = por %p170, %p171
    %p173 = scmp.le.s32.totalorder 1, %s10
    %p174 = scmp.lt.s32.totalorder %s10, 3
    %p175 = pnand %p173, %p174
    %p176 = pneg %p175
    // Predicated region
    $region9: #{_lambda_.4} parent=5 // pred_check
      _
    $region10: #{_lambda_.4} parent=5 // pred_check_branch
      %178 = sbr.rel (%p175) target = $region12
    $region11: #{_lambda_.4} parent=5 // pred_region
      %s179 = ssub.s32 %s10, 1
      // Predicated region
      $region13: #{_lambda_.4} parent=11 // pred_check
        %p180 = pneg %p85
      $region14: #{_lambda_.4} parent=11 // pred_check_branch
        %182 = sbr.rel (%p180) target = $region16
      $region15: #{_lambda_.4} parent=11 // pred_region
        %s183 = smul.u32 8, %s22
        %p184 = scmp.lt.s32.totalorder %s183, 7
        %s185 = scalar_select %p184, %s183, 7
        %p186 = scmp.lt.s32.totalorder %s21, 0
        %s187 = scalar_select %p186, %s21, 0
        %s188 = sadd.s32 %s187, %s185
        %s189 = smul.addr %s188, 4
        %s190 = scalar_lea.vmem %s1, %s189
        %s191 = smul.u32 8, %s22
      $region16: #{_lambda_.4} parent=11 // pred_fallthru
        _
      // Predicated region
      $region17: #{_lambda_.4} parent=11 // pred_check
        %p192 = pneg %p111
      $region18: #{_lambda_.4} parent=11 // pred_check_branch
        %194 = sbr.rel (%p192) target = $region20
      $region19: #{_lambda_.4} parent=11 // pred_region
        %p195 = scmp.lt.s32.totalorder %s21, 0
        %s196 = scalar_select %p195, %s21, 0
        %s197 = scalar_lea.vmem %s2, %s196
      $region20: #{_lambda_.4} parent=11 // pred_fallthru
        _
      // Predicated region
      $region21: #{_lambda_.4} parent=11 // pred_check
        %p198 = pneg %p137
      $region22: #{_lambda_.4} parent=11 // pred_check_branch
        %200 = sbr.rel (%p198) target = $region24
      $region23: #{_lambda_.4} parent=11 // pred_region
        %p201 = scmp.lt.s32.totalorder %s21, 0
        %s202 = scalar_select %p201, %s21, 0
        %s203 = scalar_lea.vmem %s3, %s202
      $region24: #{_lambda_.4} parent=11 // pred_fallthru
        _
    $region12: #{_lambda_.4} parent=5 // pred_fallthru
      _
    %p204 = scmp.lt.s32.totalorder %s10, 2
    // Predicated region
    $region25: #{_lambda_.4} parent=5 // pred_check
      %p205 = pneg %p204
    $region26: #{_lambda_.4} parent=5 // pred_check_branch
      %207 = sbr.rel (%p205) target = $region28
    $region27: #{_lambda_.4} parent=5 // pred_region
      // Predicated region
      $region29: #{_lambda_.4} parent=27 // pred_check
        %p208 = pneg %p51
      $region30: #{_lambda_.4} parent=27 // pred_check_branch
        %210 = sbr.rel (%p208) target = $region32
      $region31: #{_lambda_.4} parent=27 // pred_region
        %s211 = smul.u32 32, %s17
        %p212 = scmp.lt.s32.totalorder %s211, 63
        %s213 = scalar_select %p212, %s211, 63
        %p214 = scmp.lt.s32.totalorder %s19, 0
        %s215 = scalar_select %p214, %s19, 0
        %s216 = sadd.s32 %s215, %s213
        %s217 = smul.addr %s216, 4
        %s218 = scalar_lea.vmem %s0, %s217
        %s219 = smul.u32 32, %s17
      $region32: #{_lambda_.4} parent=27 // pred_fallthru
        _
    $region28: #{_lambda_.4} parent=5 // pred_fallthru
      _
    %p220 = scmp.le.s32.totalorder 1, %s10
    %p221 = scmp.lt.s32.totalorder %s10, 3
    %p222 = pnand %p220, %p221
    %p223 = pneg %p222
    // Predicated region
    $region33: #{_lambda_.4} parent=5 // pred_check
      _
    $region34: #{_lambda_.4} parent=5 // pred_check_branch
      %225 = sbr.rel (%p222) target = $region36
    $region35: #{_lambda_.4} parent=5 // pred_region
      %s226 = ssub.s32 %s10, 1
      %s227 = smul.u32 32, %s20
      %p228 = scmp.lt.s32.totalorder %s227, 63
      %s229 = scalar_select %p228, %s227, 63
      %p230 = scmp.lt.s32.totalorder %s22, 0
      %s231 = scalar_select %p230, %s22, 0
      %s232 = sadd.s32 %s231, %s229
      %s233 = smul.addr %s232, 4
      %s234 = scalar_lea.vmem %s0, %s233
      %p235 = pneg %p57
      %p236 = pneg %p54
      %s237 = smul.u32 8, %s22
      %p238 = scmp.lt.s32.totalorder %s237, 7
      %s239 = scalar_select %p238, %s237, 7
      %p240 = scmp.lt.s32.totalorder %s21, 0
      %s241 = scalar_select %p240, %s21, 0
      %s242 = sadd.s32 %s241, %s239
      %s243 = smul.addr %s242, 4
      %s244 = scalar_lea.vmem %s1, %s243
      %p245 = pneg %p85
      %p246 = pneg %p82
      %p247 = scmp.lt.s32.totalorder %s21, 0
      %s248 = scalar_select %p247, %s21, 0
      %s249 = scalar_lea.vmem %s2, %s248
      %p250 = pneg %p111
      %p251 = pneg %p108
      %p252 = scmp.lt.s32.totalorder %s21, 0
      %s253 = scalar_select %p252, %s21, 0
      %s254 = scalar_lea.vmem %s3, %s253
      %p255 = pneg %p137
      %p256 = pneg %p134
      %p257 = pneg %p165
      %p258 = pneg %p162
      %s259 = smul.u32 32, %s20
      %p260 = scmp.lt.s32.totalorder %s259, 63
      %s261 = scalar_select %p260, %s259, 63
      %p262 = scmp.lt.s32.totalorder %s21, 0
      %s263 = scalar_select %p262, %s21, 0
      %s264 = sadd.s32 %s263, %s261
      %s265 = smul.addr %s264, 4
      %s266 = scalar_lea.vmem %s4, %s265
      %s267 = smul.u32 32, %s20
      %p268 = scmp.lt.s32.totalorder %s267, 63
      %s269 = scalar_select %p268, %s267, 63
      %p270 = scmp.lt.s32.totalorder %s22, 0
      %s271 = scalar_select %p270, %s22, 0
      %s272 = sadd.s32 %s271, %s269
      %s273 = smul.addr %s272, 4
      %s274 = scalar_lea.vmem %s0, %s273
      %s275 = smul.u32 32, %s20
      %s276 = smul.u32 8, %s22
      %p277 = scmp.lt.s32.totalorder %s276, 7
      %s278 = scalar_select %p277, %s276, 7
      %p279 = scmp.lt.s32.totalorder %s21, 0
      %s280 = scalar_select %p279, %s21, 0
      %s281 = sadd.s32 %s280, %s278
      %s282 = smul.addr %s281, 4
      %s283 = scalar_lea.vmem %s1, %s282
      %s284 = smul.u32 8, %s22
      %p285 = scmp.lt.s32.totalorder %s21, 0
      %s286 = scalar_select %p285, %s21, 0
      %s287 = scalar_lea.vmem %s2, %s286
      %p288 = scmp.lt.s32.totalorder %s21, 0
      %s289 = scalar_select %p288, %s21, 0
      %s290 = scalar_lea.vmem %s3, %s289
      %s291 = smul.u32 32, %s20
      %p292 = scmp.lt.s32.totalorder %s291, 63
      %s293 = scalar_select %p292, %s291, 63
      %p294 = scmp.lt.s32.totalorder %s21, 0
      %s295 = scalar_select %p294, %s21, 0
      %s296 = sadd.s32 %s295, %s293
      %s297 = smul.addr %s296, 4
      %s298 = scalar_lea.vmem %s4, %s297
      %s299 = smul.u32 32, %s20
      %p301 = scmp.eq.s32.totalorder %s22, 0
      // Predicated region
      $region37: #{_lambda_.4} parent=35 // pred_check
        %p302 = pneg %p301
      $region38: #{_lambda_.4} parent=35 // pred_check_branch
        %304 = sbr.rel (%p302) target = $region40
      $region39: #{_lambda_.4} parent=35 // pred_region
        %vm305 = vcmask 523264
        %306 = vst.msk [vmem:[#allocation2] sm:$0xff] %vm305, 0.0
        %307 = vst.msk [vmem:[#allocation2 + $0x8] sm:$0xff] %vm305, 0.0
        %308 = vst.msk [vmem:[#allocation2 + $0x10] sm:$0xff] %vm305, 0.0
        %309 = vst.msk [vmem:[#allocation2 + $0x18] sm:$0xff] %vm305, 0.0
        %310 = vst.msk [vmem:[#allocation2 + $0x20] sm:$0xff] %vm305, 0.0
        %311 = vst.msk [vmem:[#allocation2 + $0x28] sm:$0xff] %vm305, 0.0
        %312 = vst.msk [vmem:[#allocation2 + $0x30] sm:$0xff] %vm305, 0.0
        %313 = vst.msk [vmem:[#allocation2 + $0x38] sm:$0xff] %vm305, 0.0
        %314 = vst.msk [vmem:[#allocation2 + $0x40] sm:$0xff] %vm305, 0.0
        %315 = vst.msk [vmem:[#allocation2 + $0x48] sm:$0xff] %vm305, 0.0
        %316 = vst.msk [vmem:[#allocation2 + $0x50] sm:$0xff] %vm305, 0.0
        %317 = vst.msk [vmem:[#allocation2 + $0x58] sm:$0xff] %vm305, 0.0
        %318 = vst.msk [vmem:[#allocation2 + $0x60] sm:$0xff] %vm305, 0.0
        %319 = vst.msk [vmem:[#allocation2 + $0x68] sm:$0xff] %vm305, 0.0
        %320 = vst.msk [vmem:[#allocation2 + $0x70] sm:$0xff] %vm305, 0.0
        %321 = vst.msk [vmem:[#allocation2 + $0x78] sm:$0xff] %vm305, 0.0
        %322 = vst.msk [vmem:[#allocation2 + $0x80] sm:$0xff] %vm305, 0.0
        %323 = vst.msk [vmem:[#allocation2 + $0x88] sm:$0xff] %vm305, 0.0
        %324 = vst.msk [vmem:[#allocation2 + $0x90] sm:$0xff] %vm305, 0.0
        %325 = vst.msk [vmem:[#allocation2 + $0x98] sm:$0xff] %vm305, 0.0
        %326 = vst.msk [vmem:[#allocation2 + $0xa0] sm:$0xff] %vm305, 0.0
        %327 = vst.msk [vmem:[#allocation2 + $0xa8] sm:$0xff] %vm305, 0.0
        %328 = vst.msk [vmem:[#allocation2 + $0xb0] sm:$0xff] %vm305, 0.0
        %329 = vst.msk [vmem:[#allocation2 + $0xb8] sm:$0xff] %vm305, 0.0
        %330 = vst.msk [vmem:[#allocation2 + $0xc0] sm:$0xff] %vm305, 0.0
        %331 = vst.msk [vmem:[#allocation2 + $0xc8] sm:$0xff] %vm305, 0.0
        %332 = vst.msk [vmem:[#allocation2 + $0xd0] sm:$0xff] %vm305, 0.0
        %333 = vst.msk [vmem:[#allocation2 + $0xd8] sm:$0xff] %vm305, 0.0
        %334 = vst.msk [vmem:[#allocation2 + $0xe0] sm:$0xff] %vm305, 0.0
        %335 = vst.msk [vmem:[#allocation2 + $0xe8] sm:$0xff] %vm305, 0.0
        %336 = vst.msk [vmem:[#allocation2 + $0xf0] sm:$0xff] %vm305, 0.0
        %337 = vst.msk [vmem:[#allocation2 + $0xf8] sm:$0xff] %vm305, 0.0
      $region40: #{_lambda_.4} parent=35 // pred_fallthru
        _
      %v338 = vld [vmem:[#allocation2] sm:$0xff]
      %v339 = vld [vmem:[#allocation2 + $0x8] sm:$0xff]
      %v340 = vld [vmem:[#allocation2 + $0x10] sm:$0xff]
      %v341 = vld [vmem:[#allocation2 + $0x18] sm:$0xff]
      %v342 = vld [vmem:[#allocation2 + $0x20] sm:$0xff]
      %v343 = vld [vmem:[#allocation2 + $0x28] sm:$0xff]
      %v344 = vld [vmem:[#allocation2 + $0x30] sm:$0xff]
      %v345 = vld [vmem:[#allocation2 + $0x38] sm:$0xff]
      %v346 = vld [vmem:[#allocation2 + $0x40] sm:$0xff]
      %v347 = vld [vmem:[#allocation2 + $0x48] sm:$0xff]
      %v348 = vld [vmem:[#allocation2 + $0x50] sm:$0xff]
      %v349 = vld [vmem:[#allocation2 + $0x58] sm:$0xff]
      %v350 = vld [vmem:[#allocation2 + $0x60] sm:$0xff]
      %v351 = vld [vmem:[#allocation2 + $0x68] sm:$0xff]
      %v352 = vld [vmem:[#allocation2 + $0x70] sm:$0xff]
      %v353 = vld [vmem:[#allocation2 + $0x78] sm:$0xff]
      %v354 = vld [vmem:[#allocation2 + $0x80] sm:$0xff]
      %v355 = vld [vmem:[#allocation2 + $0x88] sm:$0xff]
      %v356 = vld [vmem:[#allocation2 + $0x90] sm:$0xff]
      %v357 = vld [vmem:[#allocation2 + $0x98] sm:$0xff]
      %v358 = vld [vmem:[#allocation2 + $0xa0] sm:$0xff]
      %v359 = vld [vmem:[#allocation2 + $0xa8] sm:$0xff]
      %v360 = vld [vmem:[#allocation2 + $0xb0] sm:$0xff]
      %v361 = vld [vmem:[#allocation2 + $0xb8] sm:$0xff]
      %v362 = vld [vmem:[#allocation2 + $0xc0] sm:$0xff]
      %v363 = vld [vmem:[#allocation2 + $0xc8] sm:$0xff]
      %v364 = vld [vmem:[#allocation2 + $0xd0] sm:$0xff]
      %v365 = vld [vmem:[#allocation2 + $0xd8] sm:$0xff]
      %v366 = vld [vmem:[#allocation2 + $0xe0] sm:$0xff]
      %v367 = vld [vmem:[#allocation2 + $0xe8] sm:$0xff]
      %v368 = vld [vmem:[#allocation2 + $0xf0] sm:$0xff]
      %v369 = vld [vmem:[#allocation2 + $0xf8] sm:$0xff]
      %v370 = vld [vmem:[%s274] sm:$0xf]
      %v371 = vld [vmem:[%s274 + $0x4] sm:$0xf]
      %v372 = vld [vmem:[%s274 + $0x8] sm:$0xf]
      %v373 = vld [vmem:[%s274 + $0xc] sm:$0xf]
      %v374 = vld [vmem:[%s274 + $0x10] sm:$0xf]
      %v375 = vld [vmem:[%s274 + $0x14] sm:$0xf]
      %v376 = vld [vmem:[%s274 + $0x18] sm:$0xf]
      %v377 = vld [vmem:[%s274 + $0x1c] sm:$0xf]
      %v378 = vld [vmem:[%s274 + $0x20] sm:$0xf]
      %v379 = vld [vmem:[%s274 + $0x24] sm:$0xf]
      %v380 = vld [vmem:[%s274 + $0x28] sm:$0xf]
      %v381 = vld [vmem:[%s274 + $0x2c] sm:$0xf]
      %v382 = vld [vmem:[%s274 + $0x30] sm:$0xf]
      %v383 = vld [vmem:[%s274 + $0x34] sm:$0xf]
      %v384 = vld [vmem:[%s274 + $0x38] sm:$0xf]
      %v385 = vld [vmem:[%s274 + $0x3c] sm:$0xf]
      %v386 = vld [vmem:[%s274 + $0x40] sm:$0xf]
      %v387 = vld [vmem:[%s274 + $0x44] sm:$0xf]
      %v388 = vld [vmem:[%s274 + $0x48] sm:$0xf]
      %v389 = vld [vmem:[%s274 + $0x4c] sm:$0xf]
      %v390 = vld [vmem:[%s274 + $0x50] sm:$0xf]
      %v391 = vld [vmem:[%s274 + $0x54] sm:$0xf]
      %v392 = vld [vmem:[%s274 + $0x58] sm:$0xf]
      %v393 = vld [vmem:[%s274 + $0x5c] sm:$0xf]
      %v394 = vld [vmem:[%s274 + $0x60] sm:$0xf]
      %v395 = vld [vmem:[%s274 + $0x64] sm:$0xf]
      %v396 = vld [vmem:[%s274 + $0x68] sm:$0xf]
      %v397 = vld [vmem:[%s274 + $0x6c] sm:$0xf]
      %v398 = vld [vmem:[%s274 + $0x70] sm:$0xf]
      %v399 = vld [vmem:[%s274 + $0x74] sm:$0xf]
      %v400 = vld [vmem:[%s274 + $0x78] sm:$0xf]
      %v401 = vld [vmem:[%s274 + $0x7c] sm:$0xf]
      %v402 = vld [vmem:[%s283] sm:$0xf]
      %v403 = vld [vmem:[%s283 + $0x4] sm:$0xf]
      %v404 = vld [vmem:[%s283 + $0x8] sm:$0xf]
      %v405 = vld [vmem:[%s283 + $0xc] sm:$0xf]
      %v406 = vld [vmem:[%s283 + $0x10] sm:$0xf]
      %v407 = vld [vmem:[%s283 + $0x14] sm:$0xf]
      %v408 = vld [vmem:[%s283 + $0x18] sm:$0xf]
      %v409 = vld [vmem:[%s283 + $0x1c] sm:$0xf]
      %v442 = vunpack.c.l.b16 %v370
      %v443 = vunpack.c.l.b16 %v371
      %v444 = vunpack.c.l.b16 %v372
      %v445 = vunpack.c.l.b16 %v373
      %v446 = vunpack.c.l.b16 %v374
      %v447 = vunpack.c.l.b16 %v375
      %v448 = vunpack.c.l.b16 %v376
      %v449 = vunpack.c.l.b16 %v377
      %v450 = vunpack.c.l.b16 %v378
      %v451 = vunpack.c.l.b16 %v379
      %v452 = vunpack.c.l.b16 %v380
      %v453 = vunpack.c.l.b16 %v381
      %v454 = vunpack.c.l.b16 %v382
      %v455 = vunpack.c.l.b16 %v383
      %v456 = vunpack.c.l.b16 %v384
      %v457 = vunpack.c.l.b16 %v385
      %v458 = vunpack.c.l.b16 %v386
      %v459 = vunpack.c.l.b16 %v387
      %v460 = vunpack.c.l.b16 %v388
      %v461 = vunpack.c.l.b16 %v389
      %v462 = vunpack.c.l.b16 %v390
      %v463 = vunpack.c.l.b16 %v391
      %v464 = vunpack.c.l.b16 %v392
      %v465 = vunpack.c.l.b16 %v393
      %v466 = vunpack.c.l.b16 %v394
      %v467 = vunpack.c.l.b16 %v395
      %v468 = vunpack.c.l.b16 %v396
      %v469 = vunpack.c.l.b16 %v397
      %v470 = vunpack.c.l.b16 %v398
      %v471 = vunpack.c.l.b16 %v399
      %v472 = vunpack.c.l.b16 %v400
      %v473 = vunpack.c.l.b16 %v401
      %v474 = vpack.c.b16 %v443, %v442
      %v475 = vpack.c.b16 %v445, %v444
      %v476 = vpack.c.b16 %v447, %v446
      %v477 = vpack.c.b16 %v449, %v448
      %v478 = vpack.c.b16 %v451, %v450
      %v479 = vpack.c.b16 %v453, %v452
      %v480 = vpack.c.b16 %v455, %v454
      %v481 = vpack.c.b16 %v457, %v456
      %v482 = vpack.c.b16 %v459, %v458
      %v483 = vpack.c.b16 %v461, %v460
      %v484 = vpack.c.b16 %v463, %v462
      %v485 = vpack.c.b16 %v465, %v464
      %v486 = vpack.c.b16 %v467, %v466
      %v487 = vpack.c.b16 %v469, %v468
      %v488 = vpack.c.b16 %v471, %v470
      %v489 = vpack.c.b16 %v473, %v472
      %v498 = vunpack.c.l.b16 %v402
      %v499 = vunpack.c.l.b16 %v403
      %v500 = vunpack.c.l.b16 %v404
      %v501 = vunpack.c.l.b16 %v405
      %v502 = vunpack.c.l.b16 %v406
      %v503 = vunpack.c.l.b16 %v407
      %v504 = vunpack.c.l.b16 %v408
      %v505 = vunpack.c.l.b16 %v409
      %v506 = vpack.c.b16 %v499, %v498
      %v507 = vpack.c.b16 %v501, %v500
      %v508 = vpack.c.b16 %v503, %v502
      %v509 = vpack.c.b16 %v505, %v504
      %vm514 = vcmask 523264
      %v516 = vsel %vm514, %v474, 0
      %v519 = vsel %vm514, %v475, 0
      %v522 = vsel %vm514, %v476, 0
      %v525 = vsel %vm514, %v477, 0
      %v528 = vsel %vm514, %v478, 0
      %v531 = vsel %vm514, %v479, 0
      %v534 = vsel %vm514, %v480, 0
      %v537 = vsel %vm514, %v481, 0
      %v540 = vsel %vm514, %v482, 0
      %v543 = vsel %vm514, %v483, 0
      %v546 = vsel %vm514, %v484, 0
      %v549 = vsel %vm514, %v485, 0
      %v552 = vsel %vm514, %v486, 0
      %v555 = vsel %vm514, %v487, 0
      %v558 = vsel %vm514, %v488, 0
      %v561 = vsel %vm514, %v489, 0
      %563 = vmatprep.subr.bf16.mxu0 0
      %564 = vmatpush1.bf16.msra.mxu0 0
      %565 = vmatprep.subr.bf16.mxu0 0
      %566 = vmatpush1.bf16.msra.mxu0 0
      %567 = vmatprep.subr.bf16.mxu0 0
      %568 = vmatpush1.bf16.msra.mxu0 0
      %569 = vmatprep.subr.bf16.mxu0 0
      %570 = vmatpush1.bf16.msra.mxu0 0
      %571 = vmatprep.subr.bf16.mxu0 0
      %572 = vmatpush1.bf16.msra.mxu0 %v509
      %573 = vmatprep.subr.bf16.mxu0 0
      %574 = vmatpush1.bf16.msra.mxu0 %v508
      %575 = vmatprep.subr.bf16.mxu0 0
      %576 = vmatpush1.bf16.msra.mxu0 %v507
      %577 = vmatprep.subr.bf16.mxu0 0
      %578 = vmatpush1.bf16.msra.mxu0 %v506
      %579 = vmatprep.subr.bf16.mxu0 0
      %580 = vmatpush2.bf16.msra.mxu0 0
      %581 = vmatprep.subr.bf16.mxu0 0
      %582 = vmatpush2.bf16.msra.mxu0 0
      %583 = vmatprep.subr.bf16.mxu0 0
      %584 = vmatpush2.bf16.msra.mxu0 0
      %585 = vmatprep.subr.bf16.mxu0 0
      %586 = vmatpush2.bf16.msra.mxu0 0
      %587 = vmatprep.subr.bf16.mxu0 0
      %588 = vmatpush2.bf16.msra.mxu0 0
      %589 = vmatprep.subr.bf16.mxu0 0
      %590 = vmatpush2.bf16.msra.mxu0 0
      %591 = vmatprep.subr.bf16.mxu0 0
      %592 = vmatpush2.bf16.msra.mxu0 0
      %593 = vmatprep.subr.bf16.mxu0 0
      %594 = vmatpush2.bf16.msra.mxu0 0
      %595 = vmatprep.mubr.bf16.mxu0 0
      %596 = vmatmul.mubr.bf16.gmra.mxu0 %v516
      %v597 = vpop.f32.mrf.mxu0
      %v598 = vadd.f32 0.0, %v597
      %v599 = vpop.f32.mrf.mxu0
      %v600 = vpop.f32.mrf.mxu0
      %v601 = vadd.f32 0.0, %v600
      %v602 = vpop.f32.mrf.mxu0
      %603 = vmatprep.mubr.bf16.mxu0 0
      %604 = vmatmul.mubr.bf16.gmra.mxu0 %v519
      %v605 = vpop.f32.mrf.mxu0
      %v606 = vadd.f32 0.0, %v605
      %v607 = vpop.f32.mrf.mxu0
      %v608 = vpop.f32.mrf.mxu0
      %v609 = vadd.f32 0.0, %v608
      %v610 = vpop.f32.mrf.mxu0
      %611 = vmatprep.mubr.bf16.mxu0 0
      %612 = vmatmul.mubr.bf16.gmra.mxu0 %v522
      %v613 = vpop.f32.mrf.mxu0
      %v614 = vadd.f32 0.0, %v613
      %v615 = vpop.f32.mrf.mxu0
      %v616 = vpop.f32.mrf.mxu0
      %v617 = vadd.f32 0.0, %v616
      %v618 = vpop.f32.mrf.mxu0
      %619 = vmatprep.mubr.bf16.mxu0 0
      %620 = vmatmul.mubr.bf16.gmra.mxu0 %v525
      %v621 = vpop.f32.mrf.mxu0
      %v622 = vadd.f32 0.0, %v621
      %v623 = vpop.f32.mrf.mxu0
      %v624 = vpop.f32.mrf.mxu0
      %v625 = vadd.f32 0.0, %v624
      %v626 = vpop.f32.mrf.mxu0
      %627 = vmatprep.mubr.bf16.mxu0 0
      %628 = vmatmul.mubr.bf16.gmra.mxu0 %v528
      %v629 = vpop.f32.mrf.mxu0
      %v630 = vadd.f32 0.0, %v629
      %v631 = vpop.f32.mrf.mxu0
      %v632 = vpop.f32.mrf.mxu0
      %v633 = vadd.f32 0.0, %v632
      %v634 = vpop.f32.mrf.mxu0
      %635 = vmatprep.mubr.bf16.mxu0 0
      %636 = vmatmul.mubr.bf16.gmra.mxu0 %v531
      %v637 = vpop.f32.mrf.mxu0
      %v638 = vadd.f32 0.0, %v637
      %v639 = vpop.f32.mrf.mxu0
      %v640 = vpop.f32.mrf.mxu0
      %v641 = vadd.f32 0.0, %v640
      %v642 = vpop.f32.mrf.mxu0
      %643 = vmatprep.mubr.bf16.mxu0 0
      %644 = vmatmul.mubr.bf16.gmra.mxu0 %v534
      %v645 = vpop.f32.mrf.mxu0
      %v646 = vadd.f32 0.0, %v645
      %v647 = vpop.f32.mrf.mxu0
      %v648 = vpop.f32.mrf.mxu0
      %v649 = vadd.f32 0.0, %v648
      %v650 = vpop.f32.mrf.mxu0
      %651 = vmatprep.mubr.bf16.mxu0 0
      %652 = vmatmul.mubr.bf16.gmra.mxu0 %v537
      %v653 = vpop.f32.mrf.mxu0
      %v654 = vadd.f32 0.0, %v653
      %v655 = vpop.f32.mrf.mxu0
      %v656 = vpop.f32.mrf.mxu0
      %v657 = vadd.f32 0.0, %v656
      %v658 = vpop.f32.mrf.mxu0
      %659 = vmatprep.mubr.bf16.mxu0 0
      %660 = vmatmul.mubr.bf16.gmra.mxu0 %v540
      %v661 = vpop.f32.mrf.mxu0
      %v662 = vadd.f32 0.0, %v661
      %v663 = vpop.f32.mrf.mxu0
      %v664 = vpop.f32.mrf.mxu0
      %v665 = vadd.f32 0.0, %v664
      %v666 = vpop.f32.mrf.mxu0
      %667 = vmatprep.mubr.bf16.mxu0 0
      %668 = vmatmul.mubr.bf16.gmra.mxu0 %v543
      %v669 = vpop.f32.mrf.mxu0
      %v670 = vadd.f32 0.0, %v669
      %v671 = vpop.f32.mrf.mxu0
      %v672 = vpop.f32.mrf.mxu0
      %v673 = vadd.f32 0.0, %v672
      %v674 = vpop.f32.mrf.mxu0
      %675 = vmatprep.mubr.bf16.mxu0 0
      %676 = vmatmul.mubr.bf16.gmra.mxu0 %v546
      %v677 = vpop.f32.mrf.mxu0
      %v678 = vadd.f32 0.0, %v677
      %v679 = vpop.f32.mrf.mxu0
      %v680 = vpop.f32.mrf.mxu0
      %v681 = vadd.f32 0.0, %v680
      %v682 = vpop.f32.mrf.mxu0
      %683 = vmatprep.mubr.bf16.mxu0 0
      %684 = vmatmul.mubr.bf16.gmra.mxu0 %v549
      %v685 = vpop.f32.mrf.mxu0
      %v686 = vadd.f32 0.0, %v685
      %v687 = vpop.f32.mrf.mxu0
      %v688 = vpop.f32.mrf.mxu0
      %v689 = vadd.f32 0.0, %v688
      %v690 = vpop.f32.mrf.mxu0
      %691 = vmatprep.mubr.bf16.mxu0 0
      %692 = vmatmul.mubr.bf16.gmra.mxu0 %v552
      %v693 = vpop.f32.mrf.mxu0
      %v694 = vadd.f32 0.0, %v693
      %v695 = vpop.f32.mrf.mxu0
      %v696 = vpop.f32.mrf.mxu0
      %v697 = vadd.f32 0.0, %v696
      %v698 = vpop.f32.mrf.mxu0
      %699 = vmatprep.mubr.bf16.mxu0 0
      %700 = vmatmul.mubr.bf16.gmra.mxu0 %v555
      %v701 = vpop.f32.mrf.mxu0
      %v702 = vadd.f32 0.0, %v701
      %v703 = vpop.f32.mrf.mxu0
      %v704 = vpop.f32.mrf.mxu0
      %v705 = vadd.f32 0.0, %v704
      %v706 = vpop.f32.mrf.mxu0
      %707 = vmatprep.mubr.bf16.mxu0 0
      %708 = vmatmul.mubr.bf16.gmra.mxu0 %v558
      %v709 = vpop.f32.mrf.mxu0
      %v710 = vadd.f32 0.0, %v709
      %v711 = vpop.f32.mrf.mxu0
      %v712 = vpop.f32.mrf.mxu0
      %v713 = vadd.f32 0.0, %v712
      %v714 = vpop.f32.mrf.mxu0
      %715 = vmatprep.mubr.bf16.mxu0 0
      %716 = vmatmul.mubr.bf16.gmra.mxu0 %v561
      %v717 = vpop.f32.mrf.mxu0
      %v718 = vadd.f32 0.0, %v717
      %v719 = vpop.f32.mrf.mxu0
      %v720 = vpop.f32.mrf.mxu0
      %v721 = vadd.f32 0.0, %v720
      %v722 = vpop.f32.mrf.mxu0
      %723 = vdwg.mxu0
      %v724 = vadd.f32 %v338, %v598
      %v725 = vadd.f32 %v339, %v601
      %v726 = vadd.f32 %v340, %v606
      %v727 = vadd.f32 %v341, %v609
      %v728 = vadd.f32 %v342, %v614
      %v729 = vadd.f32 %v343, %v617
      %v730 = vadd.f32 %v344, %v622
      %v731 = vadd.f32 %v345, %v625
      %v732 = vadd.f32 %v346, %v630
      %v733 = vadd.f32 %v347, %v633
      %v734 = vadd.f32 %v348, %v638
      %v735 = vadd.f32 %v349, %v641
      %v736 = vadd.f32 %v350, %v646
      %v737 = vadd.f32 %v351, %v649
      %v738 = vadd.f32 %v352, %v654
      %v739 = vadd.f32 %v353, %v657
      %v740 = vadd.f32 %v354, %v662
      %v741 = vadd.f32 %v355, %v665
      %v742 = vadd.f32 %v356, %v670
      %v743 = vadd.f32 %v357, %v673
      %v744 = vadd.f32 %v358, %v678
      %v745 = vadd.f32 %v359, %v681
      %v746 = vadd.f32 %v360, %v686
      %v747 = vadd.f32 %v361, %v689
      %v748 = vadd.f32 %v362, %v694
      %v749 = vadd.f32 %v363, %v697
      %v750 = vadd.f32 %v364, %v702
      %v751 = vadd.f32 %v365, %v705
      %v752 = vadd.f32 %v366, %v710
      %v753 = vadd.f32 %v367, %v713
      %v754 = vadd.f32 %v368, %v718
      %v755 = vadd.f32 %v369, %v721
      %756 = vst.msk [vmem:[#allocation2] sm:$0xff] %vm514, %v724
      %757 = vst.msk [vmem:[#allocation2 + $0x8] sm:$0xff] %vm514, %v725
      %758 = vst.msk [vmem:[#allocation2 + $0x10] sm:$0xff] %vm514, %v726
      %759 = vst.msk [vmem:[#allocation2 + $0x18] sm:$0xff] %vm514, %v727
      %760 = vst.msk [vmem:[#allocation2 + $0x20] sm:$0xff] %vm514, %v728
      %761 = vst.msk [vmem:[#allocation2 + $0x28] sm:$0xff] %vm514, %v729
      %762 = vst.msk [vmem:[#allocation2 + $0x30] sm:$0xff] %vm514, %v730
      %763 = vst.msk [vmem:[#allocation2 + $0x38] sm:$0xff] %vm514, %v731
      %764 = vst.msk [vmem:[#allocation2 + $0x40] sm:$0xff] %vm514, %v732
      %765 = vst.msk [vmem:[#allocation2 + $0x48] sm:$0xff] %vm514, %v733
      %766 = vst.msk [vmem:[#allocation2 + $0x50] sm:$0xff] %vm514, %v734
      %767 = vst.msk [vmem:[#allocation2 + $0x58] sm:$0xff] %vm514, %v735
      %768 = vst.msk [vmem:[#allocation2 + $0x60] sm:$0xff] %vm514, %v736
      %769 = vst.msk [vmem:[#allocation2 + $0x68] sm:$0xff] %vm514, %v737
      %770 = vst.msk [vmem:[#allocation2 + $0x70] sm:$0xff] %vm514, %v738
      %771 = vst.msk [vmem:[#allocation2 + $0x78] sm:$0xff] %vm514, %v739
      %772 = vst.msk [vmem:[#allocation2 + $0x80] sm:$0xff] %vm514, %v740
      %773 = vst.msk [vmem:[#allocation2 + $0x88] sm:$0xff] %vm514, %v741
      %774 = vst.msk [vmem:[#allocation2 + $0x90] sm:$0xff] %vm514, %v742
      %775 = vst.msk [vmem:[#allocation2 + $0x98] sm:$0xff] %vm514, %v743
      %776 = vst.msk [vmem:[#allocation2 + $0xa0] sm:$0xff] %vm514, %v744
      %777 = vst.msk [vmem:[#allocation2 + $0xa8] sm:$0xff] %vm514, %v745
      %778 = vst.msk [vmem:[#allocation2 + $0xb0] sm:$0xff] %vm514, %v746
      %779 = vst.msk [vmem:[#allocation2 + $0xb8] sm:$0xff] %vm514, %v747
      %780 = vst.msk [vmem:[#allocation2 + $0xc0] sm:$0xff] %vm514, %v748
      %781 = vst.msk [vmem:[#allocation2 + $0xc8] sm:$0xff] %vm514, %v749
      %782 = vst.msk [vmem:[#allocation2 + $0xd0] sm:$0xff] %vm514, %v750
      %783 = vst.msk [vmem:[#allocation2 + $0xd8] sm:$0xff] %vm514, %v751
      %784 = vst.msk [vmem:[#allocation2 + $0xe0] sm:$0xff] %vm514, %v752
      %785 = vst.msk [vmem:[#allocation2 + $0xe8] sm:$0xff] %vm514, %v753
      %786 = vst.msk [vmem:[#allocation2 + $0xf0] sm:$0xff] %vm514, %v754
      %787 = vst.msk [vmem:[#allocation2 + $0xf8] sm:$0xff] %vm514, %v755
      // Predicated region
      $region41: #{_lambda_.4} parent=35 // pred_check
        %p788 = pneg %p301
      $region42: #{_lambda_.4} parent=35 // pred_check_branch
        %790 = sbr.rel (%p788) target = $region44
      $region43: #{_lambda_.4} parent=35 // pred_region
        %v791 = vld [vmem:[#allocation2] sm:$0xff]
        %v792 = vld [vmem:[#allocation2 + $0x8] sm:$0xff]
        %v793 = vld [vmem:[#allocation2 + $0x10] sm:$0xff]
        %v794 = vld [vmem:[#allocation2 + $0x18] sm:$0xff]
        %v795 = vld [vmem:[#allocation2 + $0x20] sm:$0xff]
        %v796 = vld [vmem:[#allocation2 + $0x28] sm:$0xff]
        %v797 = vld [vmem:[#allocation2 + $0x30] sm:$0xff]
        %v798 = vld [vmem:[#allocation2 + $0x38] sm:$0xff]
        %v799 = vld [vmem:[#allocation2 + $0x40] sm:$0xff]
        %v800 = vld [vmem:[#allocation2 + $0x48] sm:$0xff]
        %v801 = vld [vmem:[#allocation2 + $0x50] sm:$0xff]
        %v802 = vld [vmem:[#allocation2 + $0x58] sm:$0xff]
        %v803 = vld [vmem:[#allocation2 + $0x60] sm:$0xff]
        %v804 = vld [vmem:[#allocation2 + $0x68] sm:$0xff]
        %v805 = vld [vmem:[#allocation2 + $0x70] sm:$0xff]
        %v806 = vld [vmem:[#allocation2 + $0x78] sm:$0xff]
        %v807 = vld [vmem:[#allocation2 + $0x80] sm:$0xff]
        %v808 = vld [vmem:[#allocation2 + $0x88] sm:$0xff]
        %v809 = vld [vmem:[#allocation2 + $0x90] sm:$0xff]
        %v810 = vld [vmem:[#allocation2 + $0x98] sm:$0xff]
        %v811 = vld [vmem:[#allocation2 + $0xa0] sm:$0xff]
        %v812 = vld [vmem:[#allocation2 + $0xa8] sm:$0xff]
        %v813 = vld [vmem:[#allocation2 + $0xb0] sm:$0xff]
        %v814 = vld [vmem:[#allocation2 + $0xb8] sm:$0xff]
        %v815 = vld [vmem:[#allocation2 + $0xc0] sm:$0xff]
        %v816 = vld [vmem:[#allocation2 + $0xc8] sm:$0xff]
        %v817 = vld [vmem:[#allocation2 + $0xd0] sm:$0xff]
        %v818 = vld [vmem:[#allocation2 + $0xd8] sm:$0xff]
        %v819 = vld [vmem:[#allocation2 + $0xe0] sm:$0xff]
        %v820 = vld [vmem:[#allocation2 + $0xe8] sm:$0xff]
        %v821 = vld [vmem:[#allocation2 + $0xf0] sm:$0xff]
        %v822 = vld [vmem:[#allocation2 + $0xf8] sm:$0xff]
        %v823 = vld [vmem:[%s287] sm:$0x1]
        %v825 = vlaneseq
        %v826 = vshrl.u32 %v825, 7
        %v827 = vsub.s32 0, %v826
        %v828 = vrot.slane %v823, %v827
        %v830 = vmul.f32 %v791, %v828
        %v831 = vmul.f32 %v792, %v828
        %v832 = vmul.f32 %v793, %v828
        %v833 = vmul.f32 %v794, %v828
        %v834 = vmul.f32 %v795, %v828
        %v835 = vmul.f32 %v796, %v828
        %v836 = vmul.f32 %v797, %v828
        %v837 = vmul.f32 %v798, %v828
        %v838 = vmul.f32 %v799, %v828
        %v839 = vmul.f32 %v800, %v828
        %v840 = vmul.f32 %v801, %v828
        %v841 = vmul.f32 %v802, %v828
        %v842 = vmul.f32 %v803, %v828
        %v843 = vmul.f32 %v804, %v828
        %v844 = vmul.f32 %v805, %v828
        %v845 = vmul.f32 %v806, %v828
        %v846 = vmul.f32 %v807, %v828
        %v847 = vmul.f32 %v808, %v828
        %v848 = vmul.f32 %v809, %v828
        %v849 = vmul.f32 %v810, %v828
        %v850 = vmul.f32 %v811, %v828
        %v851 = vmul.f32 %v812, %v828
        %v852 = vmul.f32 %v813, %v828
        %v853 = vmul.f32 %v814, %v828
        %v854 = vmul.f32 %v815, %v828
        %v855 = vmul.f32 %v816, %v828
        %v856 = vmul.f32 %v817, %v828
        %v857 = vmul.f32 %v818, %v828
        %v858 = vmul.f32 %v819, %v828
        %v859 = vmul.f32 %v820, %v828
        %v860 = vmul.f32 %v821, %v828
        %v861 = vmul.f32 %v822, %v828
        %v862 = vld [vmem:[%s290] sm:$0x1]
        %v864 = vlaneseq
        %v865 = vshrl.u32 %v864, 7
        %v866 = vsub.s32 0, %v865
        %v867 = vrot.slane %v862, %v866
        %v869 = vadd.f32 %v830, %v867
        %v870 = vadd.f32 %v831, %v867
        %v871 = vadd.f32 %v832, %v867
        %v872 = vadd.f32 %v833, %v867
        %v873 = vadd.f32 %v834, %v867
        %v874 = vadd.f32 %v835, %v867
        %v875 = vadd.f32 %v836, %v867
        %v876 = vadd.f32 %v837, %v867
        %v877 = vadd.f32 %v838, %v867
        %v878 = vadd.f32 %v839, %v867
        %v879 = vadd.f32 %v840, %v867
        %v880 = vadd.f32 %v841, %v867
        %v881 = vadd.f32 %v842, %v867
        %v882 = vadd.f32 %v843, %v867
        %v883 = vadd.f32 %v844, %v867
        %v884 = vadd.f32 %v845, %v867
        %v885 = vadd.f32 %v846, %v867
        %v886 = vadd.f32 %v847, %v867
        %v887 = vadd.f32 %v848, %v867
        %v888 = vadd.f32 %v849, %v867
        %v889 = vadd.f32 %v850, %v867
        %v890 = vadd.f32 %v851, %v867
        %v891 = vadd.f32 %v852, %v867
        %v892 = vadd.f32 %v853, %v867
        %v893 = vadd.f32 %v854, %v867
        %v894 = vadd.f32 %v855, %v867
        %v895 = vadd.f32 %v856, %v867
        %v896 = vadd.f32 %v857, %v867
        %v897 = vadd.f32 %v858, %v867
        %v898 = vadd.f32 %v859, %v867
        %v899 = vadd.f32 %v860, %v867
        %v900 = vadd.f32 %v861, %v867
        %v901 = vmax.f32 %v869, 0.0
        %v902 = vmax.f32 %v870, 0.0
        %v903 = vmax.f32 %v871, 0.0
        %v904 = vmax.f32 %v872, 0.0
        %v905 = vmax.f32 %v873, 0.0
        %v906 = vmax.f32 %v874, 0.0
        %v907 = vmax.f32 %v875, 0.0
        %v908 = vmax.f32 %v876, 0.0
        %v909 = vmax.f32 %v877, 0.0
        %v910 = vmax.f32 %v878, 0.0
        %v911 = vmax.f32 %v879, 0.0
        %v912 = vmax.f32 %v880, 0.0
        %v913 = vmax.f32 %v881, 0.0
        %v914 = vmax.f32 %v882, 0.0
        %v915 = vmax.f32 %v883, 0.0
        %v916 = vmax.f32 %v884, 0.0
        %v917 = vmax.f32 %v885, 0.0
        %v918 = vmax.f32 %v886, 0.0
        %v919 = vmax.f32 %v887, 0.0
        %v920 = vmax.f32 %v888, 0.0
        %v921 = vmax.f32 %v889, 0.0
        %v922 = vmax.f32 %v890, 0.0
        %v923 = vmax.f32 %v891, 0.0
        %v924 = vmax.f32 %v892, 0.0
        %v925 = vmax.f32 %v893, 0.0
        %v926 = vmax.f32 %v894, 0.0
        %v927 = vmax.f32 %v895, 0.0
        %v928 = vmax.f32 %v896, 0.0
        %v929 = vmax.f32 %v897, 0.0
        %v930 = vmax.f32 %v898, 0.0
        %v931 = vmax.f32 %v899, 0.0
        %v932 = vmax.f32 %v900, 0.0
        %v933 = vpack.c.bf16 %v902, %v901
        %v934 = vpack.c.bf16 %v904, %v903
        %v935 = vpack.c.bf16 %v906, %v905
        %v936 = vpack.c.bf16 %v908, %v907
        %v937 = vpack.c.bf16 %v910, %v909
        %v938 = vpack.c.bf16 %v912, %v911
        %v939 = vpack.c.bf16 %v914, %v913
        %v940 = vpack.c.bf16 %v916, %v915
        %v941 = vpack.c.bf16 %v918, %v917
        %v942 = vpack.c.bf16 %v920, %v919
        %v943 = vpack.c.bf16 %v922, %v921
        %v944 = vpack.c.bf16 %v924, %v923
        %v945 = vpack.c.bf16 %v926, %v925
        %v946 = vpack.c.bf16 %v928, %v927
        %v947 = vpack.c.bf16 %v930, %v929
        %v948 = vpack.c.bf16 %v932, %v931
        %v965 = vunpack.c.l.b16 %v933
        %v966 = vunpack.c.h.b16 %v933
        %v967 = vunpack.c.l.b16 %v934
        %v968 = vunpack.c.h.b16 %v934
        %v969 = vunpack.c.l.b16 %v935
        %v970 = vunpack.c.h.b16 %v935
        %v971 = vunpack.c.l.b16 %v936
        %v972 = vunpack.c.h.b16 %v936
        %v973 = vunpack.c.l.b16 %v937
        %v974 = vunpack.c.h.b16 %v937
        %v975 = vunpack.c.l.b16 %v938
        %v976 = vunpack.c.h.b16 %v938
        %v977 = vunpack.c.l.b16 %v939
        %v978 = vunpack.c.h.b16 %v939
        %v979 = vunpack.c.l.b16 %v940
        %v980 = vunpack.c.h.b16 %v940
        %v981 = vunpack.c.l.b16 %v941
        %v982 = vunpack.c.h.b16 %v941
        %v983 = vunpack.c.l.b16 %v942
        %v984 = vunpack.c.h.b16 %v942
        %v985 = vunpack.c.l.b16 %v943
        %v986 = vunpack.c.h.b16 %v943
        %v987 = vunpack.c.l.b16 %v944
        %v988 = vunpack.c.h.b16 %v944
        %v989 = vunpack.c.l.b16 %v945
        %v990 = vunpack.c.h.b16 %v945
        %v991 = vunpack.c.l.b16 %v946
        %v992 = vunpack.c.h.b16 %v946
        %v993 = vunpack.c.l.b16 %v947
        %v994 = vunpack.c.h.b16 %v947
        %v995 = vunpack.c.l.b16 %v948
        %v996 = vunpack.c.h.b16 %v948
        %v997 = vpack.c.b16 %v965, %v965
        %v998 = vpack.c.b16 %v966, %v966
        %v999 = vpack.c.b16 %v967, %v967
        %v1000 = vpack.c.b16 %v968, %v968
        %v1001 = vpack.c.b16 %v969, %v969
        %v1002 = vpack.c.b16 %v970, %v970
        %v1003 = vpack.c.b16 %v971, %v971
        %v1004 = vpack.c.b16 %v972, %v972
        %v1005 = vpack.c.b16 %v973, %v973
        %v1006 = vpack.c.b16 %v974, %v974
        %v1007 = vpack.c.b16 %v975, %v975
        %v1008 = vpack.c.b16 %v976, %v976
        %v1009 = vpack.c.b16 %v977, %v977
        %v1010 = vpack.c.b16 %v978, %v978
        %v1011 = vpack.c.b16 %v979, %v979
        %v1012 = vpack.c.b16 %v980, %v980
        %v1013 = vpack.c.b16 %v981, %v981
        %v1014 = vpack.c.b16 %v982, %v982
        %v1015 = vpack.c.b16 %v983, %v983
        %v1016 = vpack.c.b16 %v984, %v984
        %v1017 = vpack.c.b16 %v985, %v985
        %v1018 = vpack.c.b16 %v986, %v986
        %v1019 = vpack.c.b16 %v987, %v987
        %v1020 = vpack.c.b16 %v988, %v988
        %v1021 = vpack.c.b16 %v989, %v989
        %v1022 = vpack.c.b16 %v990, %v990
        %v1023 = vpack.c.b16 %v991, %v991
        %v1024 = vpack.c.b16 %v992, %v992
        %v1025 = vpack.c.b16 %v993, %v993
        %v1026 = vpack.c.b16 %v994, %v994
        %v1027 = vpack.c.b16 %v995, %v995
        %v1028 = vpack.c.b16 %v996, %v996
        %vm1061 = vcmask 519168
        %1062 = vst.msk [vmem:[%s298] sm:$0xf] %vm1061, %v997
        %1063 = vst.msk [vmem:[%s298 + $0x4] sm:$0xf] %vm1061, %v998
        %1064 = vst.msk [vmem:[%s298 + $0x8] sm:$0xf] %vm1061, %v999
        %1065 = vst.msk [vmem:[%s298 + $0xc] sm:$0xf] %vm1061, %v1000
        %1066 = vst.msk [vmem:[%s298 + $0x10] sm:$0xf] %vm1061, %v1001
        %1067 = vst.msk [vmem:[%s298 + $0x14] sm:$0xf] %vm1061, %v1002
        %1068 = vst.msk [vmem:[%s298 + $0x18] sm:$0xf] %vm1061, %v1003
        %1069 = vst.msk [vmem:[%s298 + $0x1c] sm:$0xf] %vm1061, %v1004
        %1070 = vst.msk [vmem:[%s298 + $0x20] sm:$0xf] %vm1061, %v1005
        %1071 = vst.msk [vmem:[%s298 + $0x24] sm:$0xf] %vm1061, %v1006
        %1072 = vst.msk [vmem:[%s298 + $0x28] sm:$0xf] %vm1061, %v1007
        %1073 = vst.msk [vmem:[%s298 + $0x2c] sm:$0xf] %vm1061, %v1008
        %1074 = vst.msk [vmem:[%s298 + $0x30] sm:$0xf] %vm1061, %v1009
        %1075 = vst.msk [vmem:[%s298 + $0x34] sm:$0xf] %vm1061, %v1010
        %1076 = vst.msk [vmem:[%s298 + $0x38] sm:$0xf] %vm1061, %v1011
        %1077 = vst.msk [vmem:[%s298 + $0x3c] sm:$0xf] %vm1061, %v1012
        %1078 = vst.msk [vmem:[%s298 + $0x40] sm:$0xf] %vm1061, %v1013
        %1079 = vst.msk [vmem:[%s298 + $0x44] sm:$0xf] %vm1061, %v1014
        %1080 = vst.msk [vmem:[%s298 + $0x48] sm:$0xf] %vm1061, %v1015
        %1081 = vst.msk [vmem:[%s298 + $0x4c] sm:$0xf] %vm1061, %v1016
        %1082 = vst.msk [vmem:[%s298 + $0x50] sm:$0xf] %vm1061, %v1017
        %1083 = vst.msk [vmem:[%s298 + $0x54] sm:$0xf] %vm1061, %v1018
        %1084 = vst.msk [vmem:[%s298 + $0x58] sm:$0xf] %vm1061, %v1019
        %1085 = vst.msk [vmem:[%s298 + $0x5c] sm:$0xf] %vm1061, %v1020
        %1086 = vst.msk [vmem:[%s298 + $0x60] sm:$0xf] %vm1061, %v1021
        %1087 = vst.msk [vmem:[%s298 + $0x64] sm:$0xf] %vm1061, %v1022
        %1088 = vst.msk [vmem:[%s298 + $0x68] sm:$0xf] %vm1061, %v1023
        %1089 = vst.msk [vmem:[%s298 + $0x6c] sm:$0xf] %vm1061, %v1024
        %1090 = vst.msk [vmem:[%s298 + $0x70] sm:$0xf] %vm1061, %v1025
        %1091 = vst.msk [vmem:[%s298 + $0x74] sm:$0xf] %vm1061, %v1026
        %1092 = vst.msk [vmem:[%s298 + $0x78] sm:$0xf] %vm1061, %v1027
        %1093 = vst.msk [vmem:[%s298 + $0x7c] sm:$0xf] %vm1061, %v1028
      $region44: #{_lambda_.4} parent=35 // pred_fallthru
        _
      %s1094 = smul.u32 32, %s20
      %p1095 = scmp.lt.s32.totalorder %s1094, 63
      %s1096 = scalar_select %p1095, %s1094, 63
      %p1097 = scmp.lt.s32.totalorder %s21, 0
      %s1098 = scalar_select %p1097, %s21, 0
      %s1099 = sadd.s32 %s1098, %s1096
      %s1100 = smul.addr %s1099, 4
      %s1101 = scalar_lea.vmem %s4, %s1100
      // Predicated region
      $region45: #{_lambda_.4} parent=35 // pred_check
        %p1102 = pneg %p162
      $region46: #{_lambda_.4} parent=35 // pred_check_branch
        %1104 = sbr.rel (%p1102) target = $region48
      $region47: #{_lambda_.4} parent=35 // pred_region
        %s1105 = smul.u32 32, %s20
      $region48: #{_lambda_.4} parent=35 // pred_fallthru
        _
    $region36: #{_lambda_.4} parent=5 // pred_fallthru
      _
    %p1106 = scmp.le.s32.totalorder 2, %s10
    // Predicated region
    $region49: #{_lambda_.4} parent=5 // pred_check
      %p1107 = pneg %p1106
    $region50: #{_lambda_.4} parent=5 // pred_check_branch
      %1109 = sbr.rel (%p1107) target = $region52
    $region51: #{_lambda_.4} parent=5 // pred_region
      %s1110 = ssub.s32 %s10, 2
      // Predicated region
      $region53: #{_lambda_.4} parent=51 // pred_check
        %p1111 = pneg %p168
      $region54: #{_lambda_.4} parent=51 // pred_check_branch
        %1113 = sbr.rel (%p1111) target = $region56
      $region55: #{_lambda_.4} parent=51 // pred_region
        %s1114 = smul.u32 32, %s23
        %p1115 = scmp.lt.s32.totalorder %s1114, 63
        %s1116 = scalar_select %p1115, %s1114, 63
        %p1117 = scmp.lt.s32.totalorder %s24, 0
        %s1118 = scalar_select %p1117, %s24, 0
        %s1119 = sadd.s32 %s1118, %s1116
        %s1120 = smul.addr %s1119, 4
        %s1121 = scalar_lea.vmem %s4, %s1120
      $region56: #{_lambda_.4} parent=51 // pred_fallthru
        _
    $region52: #{_lambda_.4} parent=5 // pred_fallthru
      _
  $region6: #{_lambda_.4} parent=0 // loop_footer
    %s14 = sadd.s32 1, %s10
  $region7: #{_lambda_.4} parent=0 // loop_footer_branch
    %9 = sbr.rel target = $region3
  $region8: #{_lambda_.4} parent=0 // loop_exit
    _

// kernel: _lambda_.6
$region0: #{_lambda_.6}
  #allocation0 [shape = 'u32[]', space=smem, size = 0x4, offset = 0x4, fixed_abs, tag = 'smem constant byte address 0x4 - core index']
  #allocation1 [shape = 'u32[144,128]{1,0:T(1,128)}', space=vmem, size = 0x12000, scoped, tag = 'internal scratch']
  #allocation2 [shape = 'f32[256,128]{1,0:T(8,128)}', space=vmem, size = 0x20000, scoped, tag = 'scratch operand']
  %s0 = inlined_call_operand.vmem [shape: bf16[512,64], index: 0, kind: input, shape index: {}]
  %s1 = inlined_call_operand.vmem [shape: bf16[64,128], index: 1, kind: input, shape index: {}]
  %s2 = inlined_call_operand.vmem [shape: f32[1,128], index: 2, kind: input, shape index: {}]
  %s3 = inlined_call_operand.vmem [shape: f32[1,128], index: 3, kind: input, shape index: {}]
  %s4 = inlined_call_operand.vmem [shape: bf16[512,128], index: 4, kind: output, shape index: {}]
  %s5 = sld [smem:[#allocation0]]
  $region57: #{_lambda_.6} parent=0
    _
  %s7 = ssub.s32 1, %s5
  %s8 = scalar_select 0, %s7, %s5
  loop: start=0, step=1, limit=4
  $region2: #{_lambda_.6} parent=0 // loop_pre_header
    _
  $region3: #{_lambda_.6} parent=0 // loop_header
    %s10 = sphi 0, %s14
    %p11 = scmp.ge.s32.totalorder %s10, 4
    %s17 = sphi 0, %s36
    %s18 = sphi 0, %s32
    %s19 = sphi 0, %s28
    %s20 = sphi 0, %s17
    %s21 = sphi 0, %s18
    %s22 = sphi 0, %s19
    %s23 = sphi 0, %s20
    %s24 = sphi 0, %s21
    %s25 = sphi 0, %s22
    %s41 = sphi 0, %s43
    %s44 = sphi 0, %s41
    %s45 = sphi 0, %s44
    %s61 = sphi 0, %s45
    %s69 = sphi 0, %s71
    %s72 = sphi 0, %s69
    %s73 = sphi 0, %s72
    %s89 = sphi 0, %s73
    %s95 = sphi 0, %s97
    %s98 = sphi 0, %s95
    %s99 = sphi 0, %s98
    %s115 = sphi 0, %s99
    %s121 = sphi 0, %s123
    %s124 = sphi 0, %s121
    %s125 = sphi 0, %s124
    %s141 = sphi 0, %s125
    %s149 = sphi 0, %s151
    %s152 = sphi 0, %s149
    %s153 = sphi 0, %s152
    %s169 = sphi 0, %s153
  $region4: #{_lambda_.6} parent=0 // loop_header_branch
    %13 = sbr.rel (%p11) target = $region8
  $region5: #{_lambda_.6} parent=0 // loop_body
    %s15 = ssub.s32 %s10, 1
    %s16 = ssub.s32 %s10, 2
    %s26 = sadd.s32 1, %s19
    %p27 = scmp.ge.s32.totalorder %s26, 1
    %s28 = scalar_select %p27, 0, %s26
    %s29 = sadd.s32 1, %s18
    %s30 = scalar_select %p27, %s29, %s18
    %p31 = scmp.ge.s32.totalorder %s30, 1
    %s32 = scalar_select %p31, 0, %s30
    %s33 = sadd.s32 1, %s17
    %s34 = scalar_select %p31, %s33, %s17
    %p35 = scmp.ge.s32.totalorder %s34, 2
    %s36 = scalar_select %p35, 0, %s34
    %s37 = ssub.s32 %s17, %s36
    %s38 = ssub.s32 %s19, %s28
    %s39 = sor.u32 %s37, %s38
    %p40 = scmp.eq.s32.totalorder %s39, 0
    %s42 = sadd.s32 %s41, 1
    %s43 = scalar_select %p40, %s41, %s42
    %p46 = pneg %p40
    %p47 = scmp.eq.s32.totalorder %s10, 1
    %p48 = por %p46, %p47
    %p49 = scmp.ne.s32.totalorder %s41, %s44
    %p50 = scmp.eq.s32.totalorder %s10, 0
    %p51 = por %p49, %p50
    %p52 = scmp.ne.s32.totalorder %s41, %s44
    %p53 = scmp.eq.s32.totalorder %s15, 1
    %p54 = por %p52, %p53
    %p55 = scmp.ne.s32.totalorder %s44, %s45
    %p56 = scmp.eq.s32.totalorder %s15, 0
    %p57 = por %p55, %p56
    %p58 = scmp.ne.s32.totalorder %s44, %s45
    %p59 = scmp.eq.s32.totalorder %s16, 1
    %p60 = por %p58, %p59
    %p62 = scmp.ne.s32.totalorder %s45, %s61
    %p63 = scmp.eq.s32.totalorder %s16, 0
    %p64 = por %p62, %p63
    %s65 = ssub.s32 %s19, %s28
    %s66 = ssub.s32 %s18, %s32
    %s67 = sor.u32 %s65, %s66
    %p68 = scmp.eq.s32.totalorder %s67, 0
    %s70 = sadd.s32 %s69, 1
    %s71 = scalar_select %p68, %s69, %s70
    %p74 = pneg %p68
    %p75 = scmp.eq.s32.totalorder %s10, 1
    %p76 = por %p74, %p75
    %p77 = scmp.ne.s32.totalorder %s69, %s72
    %p78 = scmp.eq.s32.totalorder %s10, 0
    %p79 = por %p77, %p78
    %p80 = scmp.ne.s32.totalorder %s69, %s72
    %p81 = scmp.eq.s32.totalorder %s15, 1
    %p82 = por %p80, %p81
    %p83 = scmp.ne.s32.totalorder %s72, %s73
    %p84 = scmp.eq.s32.totalorder %s15, 0
    %p85 = por %p83, %p84
    %p86 = scmp.ne.s32.totalorder %s72, %s73
    %p87 = scmp.eq.s32.totalorder %s16, 1
    %p88 = por %p86, %p87
    %p90 = scmp.ne.s32.totalorder %s73, %s89
    %p91 = scmp.eq.s32.totalorder %s16, 0
    %p92 = por %p90, %p91
    %s93 = ssub.s32 %s18, %s32
    %p94 = scmp.eq.s32.totalorder %s93, 0
    %s96 = sadd.s32 %s95, 1
    %s97 = scalar_select %p94, %s95, %s96
    %p100 = pneg %p94
    %p101 = scmp.eq.s32.totalorder %s10, 1
    %p102 = por %p100, %p101
    %p103 = scmp.ne.s32.totalorder %s95, %s98
    %p104 = scmp.eq.s32.totalorder %s10, 0
    %p105 = por %p103, %p104
    %p106 = scmp.ne.s32.totalorder %s95, %s98
    %p107 = scmp.eq.s32.totalorder %s15, 1
    %p108 = por %p106, %p107
    %p109 = scmp.ne.s32.totalorder %s98, %s99
    %p110 = scmp.eq.s32.totalorder %s15, 0
    %p111 = por %p109, %p110
    %p112 = scmp.ne.s32.totalorder %s98, %s99
    %p113 = scmp.eq.s32.totalorder %s16, 1
    %p114 = por %p112, %p113
    %p116 = scmp.ne.s32.totalorder %s99, %s115
    %p117 = scmp.eq.s32.totalorder %s16, 0
    %p118 = por %p116, %p117
    %s119 = ssub.s32 %s18, %s32
    %p120 = scmp.eq.s32.totalorder %s119, 0
    %s122 = sadd.s32 %s121, 1
    %s123 = scalar_select %p120, %s121, %s122
    %p126 = pneg %p120
    %p127 = scmp.eq.s32.totalorder %s10, 1
    %p128 = por %p126, %p127
    %p129 = scmp.ne.s32.totalorder %s121, %s124
    %p130 = scmp.eq.s32.totalorder %s10, 0
    %p131 = por %p129, %p130
    %p132 = scmp.ne.s32.totalorder %s121, %s124
    %p133 = scmp.eq.s32.totalorder %s15, 1
    %p134 = por %p132, %p133
    %p135 = scmp.ne.s32.totalorder %s124, %s125
    %p136 = scmp.eq.s32.totalorder %s15, 0
    %p137 = por %p135, %p136
    %p138 = scmp.ne.s32.totalorder %s124, %s125
    %p139 = scmp.eq.s32.totalorder %s16, 1
    %p140 = por %p138, %p139
    %p142 = scmp.ne.s32.totalorder %s125, %s141
    %p143 = scmp.eq.s32.totalorder %s16, 0
    %p144 = por %p142, %p143
    %s145 = ssub.s32 %s17, %s36
    %s146 = ssub.s32 %s18, %s32
    %s147 = sor.u32 %s145, %s146
    %p148 = scmp.eq.s32.totalorder %s147, 0
    %s150 = sadd.s32 %s149, 1
    %s151 = scalar_select %p148, %s149, %s150
    %p154 = pneg %p148
    %p155 = scmp.eq.s32.totalorder %s10, 1
    %p156 = por %p154, %p155
    %p157 = scmp.ne.s32.totalorder %s149, %s152
    %p158 = scmp.eq.s32.totalorder %s10, 0
    %p159 = por %p157, %p158
    %p160 = scmp.ne.s32.totalorder %s149, %s152
    %p161 = scmp.eq.s32.totalorder %s15, 1
    %p162 = por %p160, %p161
    %p163 = scmp.ne.s32.totalorder %s152, %s153
    %p164 = scmp.eq.s32.totalorder %s15, 0
    %p165 = por %p163, %p164
    %p166 = scmp.ne.s32.totalorder %s152, %s153
    %p167 = scmp.eq.s32.totalorder %s16, 1
    %p168 = por %p166, %p167
    %p170 = scmp.ne.s32.totalorder %s153, %s169
    %p171 = scmp.eq.s32.totalorder %s16, 0
    %p172 = por %p170, %p171
    %p173 = scmp.le.s32.totalorder 1, %s10
    %p174 = scmp.lt.s32.totalorder %s10, 3
    %p175 = pnand %p173, %p174
    %p176 = pneg %p175
    // Predicated region
    $region9: #{_lambda_.6} parent=5 // pred_check
      _
    $region10: #{_lambda_.6} parent=5 // pred_check_branch
      %178 = sbr.rel (%p175) target = $region12
    $region11: #{_lambda_.6} parent=5 // pred_region
      %s179 = ssub.s32 %s10, 1
      // Predicated region
      $region13: #{_lambda_.6} parent=11 // pred_check
        %p180 = pneg %p85
      $region14: #{_lambda_.6} parent=11 // pred_check_branch
        %182 = sbr.rel (%p180) target = $region16
      $region15: #{_lambda_.6} parent=11 // pred_region
        %s183 = smul.u32 8, %s22
        %p184 = scmp.lt.s32.totalorder %s183, 7
        %s185 = scalar_select %p184, %s183, 7
        %p186 = scmp.lt.s32.totalorder %s21, 0
        %s187 = scalar_select %p186, %s21, 0
        %s188 = sadd.s32 %s187, %s185
        %s189 = smul.addr %s188, 4
        %s190 = scalar_lea.vmem %s1, %s189
        %s191 = smul.u32 8, %s22
      $region16: #{_lambda_.6} parent=11 // pred_fallthru
        _
      // Predicated region
      $region17: #{_lambda_.6} parent=11 // pred_check
        %p192 = pneg %p111
      $region18: #{_lambda_.6} parent=11 // pred_check_branch
        %194 = sbr.rel (%p192) target = $region20
      $region19: #{_lambda_.6} parent=11 // pred_region
        %p195 = scmp.lt.s32.totalorder %s21, 0
        %s196 = scalar_select %p195, %s21, 0
        %s197 = scalar_lea.vmem %s2, %s196
      $region20: #{_lambda_.6} parent=11 // pred_fallthru
        _
      // Predicated region
      $region21: #{_lambda_.6} parent=11 // pred_check
        %p198 = pneg %p137
      $region22: #{_lambda_.6} parent=11 // pred_check_branch
        %200 = sbr.rel (%p198) target = $region24
      $region23: #{_lambda_.6} parent=11 // pred_region
        %p201 = scmp.lt.s32.totalorder %s21, 0
        %s202 = scalar_select %p201, %s21, 0
        %s203 = scalar_lea.vmem %s3, %s202
      $region24: #{_lambda_.6} parent=11 // pred_fallthru
        _
    $region12: #{_lambda_.6} parent=5 // pred_fallthru
      _
    %p204 = scmp.lt.s32.totalorder %s10, 2
    // Predicated region
    $region25: #{_lambda_.6} parent=5 // pred_check
      %p205 = pneg %p204
    $region26: #{_lambda_.6} parent=5 // pred_check_branch
      %207 = sbr.rel (%p205) target = $region28
    $region27: #{_lambda_.6} parent=5 // pred_region
      // Predicated region
      $region29: #{_lambda_.6} parent=27 // pred_check
        %p208 = pneg %p51
      $region30: #{_lambda_.6} parent=27 // pred_check_branch
        %210 = sbr.rel (%p208) target = $region32
      $region31: #{_lambda_.6} parent=27 // pred_region
        %s211 = smul.u32 32, %s17
        %p212 = scmp.lt.s32.totalorder %s211, 63
        %s213 = scalar_select %p212, %s211, 63
        %p214 = scmp.lt.s32.totalorder %s19, 0
        %s215 = scalar_select %p214, %s19, 0
        %s216 = sadd.s32 %s215, %s213
        %s217 = smul.addr %s216, 4
        %s218 = scalar_lea.vmem %s0, %s217
        %s219 = smul.u32 32, %s17
      $region32: #{_lambda_.6} parent=27 // pred_fallthru
        _
    $region28: #{_lambda_.6} parent=5 // pred_fallthru
      _
    %p220 = scmp.le.s32.totalorder 1, %s10
    %p221 = scmp.lt.s32.totalorder %s10, 3
    %p222 = pnand %p220, %p221
    %p223 = pneg %p222
    // Predicated region
    $region33: #{_lambda_.6} parent=5 // pred_check
      _
    $region34: #{_lambda_.6} parent=5 // pred_check_branch
      %225 = sbr.rel (%p222) target = $region36
    $region35: #{_lambda_.6} parent=5 // pred_region
      %s226 = ssub.s32 %s10, 1
      %s227 = smul.u32 32, %s20
      %p228 = scmp.lt.s32.totalorder %s227, 63
      %s229 = scalar_select %p228, %s227, 63
      %p230 = scmp.lt.s32.totalorder %s22, 0
      %s231 = scalar_select %p230, %s22, 0
      %s232 = sadd.s32 %s231, %s229
      %s233 = smul.addr %s232, 4
      %s234 = scalar_lea.vmem %s0, %s233
      %p235 = pneg %p57
      %p236 = pneg %p54
      %s237 = smul.u32 8, %s22
      %p238 = scmp.lt.s32.totalorder %s237, 7
      %s239 = scalar_select %p238, %s237, 7
      %p240 = scmp.lt.s32.totalorder %s21, 0
      %s241 = scalar_select %p240, %s21, 0
      %s242 = sadd.s32 %s241, %s239
      %s243 = smul.addr %s242, 4
      %s244 = scalar_lea.vmem %s1, %s243
      %p245 = pneg %p85
      %p246 = pneg %p82
      %p247 = scmp.lt.s32.totalorder %s21, 0
      %s248 = scalar_select %p247, %s21, 0
      %s249 = scalar_lea.vmem %s2, %s248
      %p250 = pneg %p111
      %p251 = pneg %p108
      %p252 = scmp.lt.s32.totalorder %s21, 0
      %s253 = scalar_select %p252, %s21, 0
      %s254 = scalar_lea.vmem %s3, %s253
      %p255 = pneg %p137
      %p256 = pneg %p134
      %p257 = pneg %p165
      %p258 = pneg %p162
      %s259 = smul.u32 32, %s20
      %p260 = scmp.lt.s32.totalorder %s259, 63
      %s261 = scalar_select %p260, %s259, 63
      %p262 = scmp.lt.s32.totalorder %s21, 0
      %s263 = scalar_select %p262, %s21, 0
      %s264 = sadd.s32 %s263, %s261
      %s265 = smul.addr %s264, 4
      %s266 = scalar_lea.vmem %s4, %s265
      %s267 = smul.u32 32, %s20
      %p268 = scmp.lt.s32.totalorder %s267, 63
      %s269 = scalar_select %p268, %s267, 63
      %p270 = scmp.lt.s32.totalorder %s22, 0
      %s271 = scalar_select %p270, %s22, 0
      %s272 = sadd.s32 %s271, %s269
      %s273 = smul.addr %s272, 4
      %s274 = scalar_lea.vmem %s0, %s273
      %s275 = smul.u32 32, %s20
      %s276 = smul.u32 8, %s22
      %p277 = scmp.lt.s32.totalorder %s276, 7
      %s278 = scalar_select %p277, %s276, 7
      %p279 = scmp.lt.s32.totalorder %s21, 0
      %s280 = scalar_select %p279, %s21, 0
      %s281 = sadd.s32 %s280, %s278
      %s282 = smul.addr %s281, 4
      %s283 = scalar_lea.vmem %s1, %s282
      %s284 = smul.u32 8, %s22
      %p285 = scmp.lt.s32.totalorder %s21, 0
      %s286 = scalar_select %p285, %s21, 0
      %s287 = scalar_lea.vmem %s2, %s286
      %p288 = scmp.lt.s32.totalorder %s21, 0
      %s289 = scalar_select %p288, %s21, 0
      %s290 = scalar_lea.vmem %s3, %s289
      %s291 = smul.u32 32, %s20
      %p292 = scmp.lt.s32.totalorder %s291, 63
      %s293 = scalar_select %p292, %s291, 63
      %p294 = scmp.lt.s32.totalorder %s21, 0
      %s295 = scalar_select %p294, %s21, 0
      %s296 = sadd.s32 %s295, %s293
      %s297 = smul.addr %s296, 4
      %s298 = scalar_lea.vmem %s4, %s297
      %s299 = smul.u32 32, %s20
      %p301 = scmp.eq.s32.totalorder %s22, 0
      // Predicated region
      $region37: #{_lambda_.6} parent=35 // pred_check
        %p302 = pneg %p301
      $region38: #{_lambda_.6} parent=35 // pred_check_branch
        %304 = sbr.rel (%p302) target = $region40
      $region39: #{_lambda_.6} parent=35 // pred_region
        %305 = vst [vmem:[#allocation2] sm:$0xff] 0.0
        %306 = vst [vmem:[#allocation2 + $0x8] sm:$0xff] 0.0
        %307 = vst [vmem:[#allocation2 + $0x10] sm:$0xff] 0.0
        %308 = vst [vmem:[#allocation2 + $0x18] sm:$0xff] 0.0
        %309 = vst [vmem:[#allocation2 + $0x20] sm:$0xff] 0.0
        %310 = vst [vmem:[#allocation2 + $0x28] sm:$0xff] 0.0
        %311 = vst [vmem:[#allocation2 + $0x30] sm:$0xff] 0.0
        %312 = vst [vmem:[#allocation2 + $0x38] sm:$0xff] 0.0
        %313 = vst [vmem:[#allocation2 + $0x40] sm:$0xff] 0.0
        %314 = vst [vmem:[#allocation2 + $0x48] sm:$0xff] 0.0
        %315 = vst [vmem:[#allocation2 + $0x50] sm:$0xff] 0.0
        %316 = vst [vmem:[#allocation2 + $0x58] sm:$0xff] 0.0
        %317 = vst [vmem:[#allocation2 + $0x60] sm:$0xff] 0.0
        %318 = vst [vmem:[#allocation2 + $0x68] sm:$0xff] 0.0
        %319 = vst [vmem:[#allocation2 + $0x70] sm:$0xff] 0.0
        %320 = vst [vmem:[#allocation2 + $0x78] sm:$0xff] 0.0
        %321 = vst [vmem:[#allocation2 + $0x80] sm:$0xff] 0.0
        %322 = vst [vmem:[#allocation2 + $0x88] sm:$0xff] 0.0
        %323 = vst [vmem:[#allocation2 + $0x90] sm:$0xff] 0.0
        %324 = vst [vmem:[#allocation2 + $0x98] sm:$0xff] 0.0
        %325 = vst [vmem:[#allocation2 + $0xa0] sm:$0xff] 0.0
        %326 = vst [vmem:[#allocation2 + $0xa8] sm:$0xff] 0.0
        %327 = vst [vmem:[#allocation2 + $0xb0] sm:$0xff] 0.0
        %328 = vst [vmem:[#allocation2 + $0xb8] sm:$0xff] 0.0
        %329 = vst [vmem:[#allocation2 + $0xc0] sm:$0xff] 0.0
        %330 = vst [vmem:[#allocation2 + $0xc8] sm:$0xff] 0.0
        %331 = vst [vmem:[#allocation2 + $0xd0] sm:$0xff] 0.0
        %332 = vst [vmem:[#allocation2 + $0xd8] sm:$0xff] 0.0
        %333 = vst [vmem:[#allocation2 + $0xe0] sm:$0xff] 0.0
        %334 = vst [vmem:[#allocation2 + $0xe8] sm:$0xff] 0.0
        %335 = vst [vmem:[#allocation2 + $0xf0] sm:$0xff] 0.0
        %336 = vst [vmem:[#allocation2 + $0xf8] sm:$0xff] 0.0
      $region40: #{_lambda_.6} parent=35 // pred_fallthru
        _
      %v337 = vld [vmem:[#allocation2] sm:$0xff]
      %v338 = vld [vmem:[#allocation2 + $0x8] sm:$0xff]
      %v339 = vld [vmem:[#allocation2 + $0x10] sm:$0xff]
      %v340 = vld [vmem:[#allocation2 + $0x18] sm:$0xff]
      %v341 = vld [vmem:[#allocation2 + $0x20] sm:$0xff]
      %v342 = vld [vmem:[#allocation2 + $0x28] sm:$0xff]
      %v343 = vld [vmem:[#allocation2 + $0x30] sm:$0xff]
      %v344 = vld [vmem:[#allocation2 + $0x38] sm:$0xff]
      %v345 = vld [vmem:[#allocation2 + $0x40] sm:$0xff]
      %v346 = vld [vmem:[#allocation2 + $0x48] sm:$0xff]
      %v347 = vld [vmem:[#allocation2 + $0x50] sm:$0xff]
      %v348 = vld [vmem:[#allocation2 + $0x58] sm:$0xff]
      %v349 = vld [vmem:[#allocation2 + $0x60] sm:$0xff]
      %v350 = vld [vmem:[#allocation2 + $0x68] sm:$0xff]
      %v351 = vld [vmem:[#allocation2 + $0x70] sm:$0xff]
      %v352 = vld [vmem:[#allocation2 + $0x78] sm:$0xff]
      %v353 = vld [vmem:[#allocation2 + $0x80] sm:$0xff]
      %v354 = vld [vmem:[#allocation2 + $0x88] sm:$0xff]
      %v355 = vld [vmem:[#allocation2 + $0x90] sm:$0xff]
      %v356 = vld [vmem:[#allocation2 + $0x98] sm:$0xff]
      %v357 = vld [vmem:[#allocation2 + $0xa0] sm:$0xff]
      %v358 = vld [vmem:[#allocation2 + $0xa8] sm:$0xff]
      %v359 = vld [vmem:[#allocation2 + $0xb0] sm:$0xff]
      %v360 = vld [vmem:[#allocation2 + $0xb8] sm:$0xff]
      %v361 = vld [vmem:[#allocation2 + $0xc0] sm:$0xff]
      %v362 = vld [vmem:[#allocation2 + $0xc8] sm:$0xff]
      %v363 = vld [vmem:[#allocation2 + $0xd0] sm:$0xff]
      %v364 = vld [vmem:[#allocation2 + $0xd8] sm:$0xff]
      %v365 = vld [vmem:[#allocation2 + $0xe0] sm:$0xff]
      %v366 = vld [vmem:[#allocation2 + $0xe8] sm:$0xff]
      %v367 = vld [vmem:[#allocation2 + $0xf0] sm:$0xff]
      %v368 = vld [vmem:[#allocation2 + $0xf8] sm:$0xff]
      %v369 = vld [vmem:[%s274] sm:$0xf]
      %v370 = vld [vmem:[%s274 + $0x4] sm:$0xf]
      %v371 = vld [vmem:[%s274 + $0x8] sm:$0xf]
      %v372 = vld [vmem:[%s274 + $0xc] sm:$0xf]
      %v373 = vld [vmem:[%s274 + $0x10] sm:$0xf]
      %v374 = vld [vmem:[%s274 + $0x14] sm:$0xf]
      %v375 = vld [vmem:[%s274 + $0x18] sm:$0xf]
      %v376 = vld [vmem:[%s274 + $0x1c] sm:$0xf]
      %v377 = vld [vmem:[%s274 + $0x20] sm:$0xf]
      %v378 = vld [vmem:[%s274 + $0x24] sm:$0xf]
      %v379 = vld [vmem:[%s274 + $0x28] sm:$0xf]
      %v380 = vld [vmem:[%s274 + $0x2c] sm:$0xf]
      %v381 = vld [vmem:[%s274 + $0x30] sm:$0xf]
      %v382 = vld [vmem:[%s274 + $0x34] sm:$0xf]
      %v383 = vld [vmem:[%s274 + $0x38] sm:$0xf]
      %v384 = vld [vmem:[%s274 + $0x3c] sm:$0xf]
      %v385 = vld [vmem:[%s274 + $0x40] sm:$0xf]
      %v386 = vld [vmem:[%s274 + $0x44] sm:$0xf]
      %v387 = vld [vmem:[%s274 + $0x48] sm:$0xf]
      %v388 = vld [vmem:[%s274 + $0x4c] sm:$0xf]
      %v389 = vld [vmem:[%s274 + $0x50] sm:$0xf]
      %v390 = vld [vmem:[%s274 + $0x54] sm:$0xf]
      %v391 = vld [vmem:[%s274 + $0x58] sm:$0xf]
      %v392 = vld [vmem:[%s274 + $0x5c] sm:$0xf]
      %v393 = vld [vmem:[%s274 + $0x60] sm:$0xf]
      %v394 = vld [vmem:[%s274 + $0x64] sm:$0xf]
      %v395 = vld [vmem:[%s274 + $0x68] sm:$0xf]
      %v396 = vld [vmem:[%s274 + $0x6c] sm:$0xf]
      %v397 = vld [vmem:[%s274 + $0x70] sm:$0xf]
      %v398 = vld [vmem:[%s274 + $0x74] sm:$0xf]
      %v399 = vld [vmem:[%s274 + $0x78] sm:$0xf]
      %v400 = vld [vmem:[%s274 + $0x7c] sm:$0xf]
      %v401 = vld [vmem:[%s283] sm:$0xf]
      %v402 = vld [vmem:[%s283 + $0x4] sm:$0xf]
      %v403 = vld [vmem:[%s283 + $0x8] sm:$0xf]
      %v404 = vld [vmem:[%s283 + $0xc] sm:$0xf]
      %v405 = vld [vmem:[%s283 + $0x10] sm:$0xf]
      %v406 = vld [vmem:[%s283 + $0x14] sm:$0xf]
      %v407 = vld [vmem:[%s283 + $0x18] sm:$0xf]
      %v408 = vld [vmem:[%s283 + $0x1c] sm:$0xf]
      %v441 = vunpack.c.l.b16 %v369
      %v442 = vunpack.c.l.b16 %v370
      %v443 = vunpack.c.l.b16 %v371
      %v444 = vunpack.c.l.b16 %v372
      %v445 = vunpack.c.l.b16 %v373
      %v446 = vunpack.c.l.b16 %v374
      %v447 = vunpack.c.l.b16 %v375
      %v448 = vunpack.c.l.b16 %v376
      %v449 = vunpack.c.l.b16 %v377
      %v450 = vunpack.c.l.b16 %v378
      %v451 = vunpack.c.l.b16 %v379
      %v452 = vunpack.c.l.b16 %v380
      %v453 = vunpack.c.l.b16 %v381
      %v454 = vunpack.c.l.b16 %v382
      %v455 = vunpack.c.l.b16 %v383
      %v456 = vunpack.c.l.b16 %v384
      %v457 = vunpack.c.l.b16 %v385
      %v458 = vunpack.c.l.b16 %v386
      %v459 = vunpack.c.l.b16 %v387
      %v460 = vunpack.c.l.b16 %v388
      %v461 = vunpack.c.l.b16 %v389
      %v462 = vunpack.c.l.b16 %v390
      %v463 = vunpack.c.l.b16 %v391
      %v464 = vunpack.c.l.b16 %v392
      %v465 = vunpack.c.l.b16 %v393
      %v466 = vunpack.c.l.b16 %v394
      %v467 = vunpack.c.l.b16 %v395
      %v468 = vunpack.c.l.b16 %v396
      %v469 = vunpack.c.l.b16 %v397
      %v470 = vunpack.c.l.b16 %v398
      %v471 = vunpack.c.l.b16 %v399
      %v472 = vunpack.c.l.b16 %v400
      %v473 = vpack.c.b16 %v442, %v441
      %v474 = vpack.c.b16 %v444, %v443
      %v475 = vpack.c.b16 %v446, %v445
      %v476 = vpack.c.b16 %v448, %v447
      %v477 = vpack.c.b16 %v450, %v449
      %v478 = vpack.c.b16 %v452, %v451
      %v479 = vpack.c.b16 %v454, %v453
      %v480 = vpack.c.b16 %v456, %v455
      %v481 = vpack.c.b16 %v458, %v457
      %v482 = vpack.c.b16 %v460, %v459
      %v483 = vpack.c.b16 %v462, %v461
      %v484 = vpack.c.b16 %v464, %v463
      %v485 = vpack.c.b16 %v466, %v465
      %v486 = vpack.c.b16 %v468, %v467
      %v487 = vpack.c.b16 %v470, %v469
      %v488 = vpack.c.b16 %v472, %v471
      %v497 = vunpack.c.l.b16 %v401
      %v498 = vunpack.c.l.b16 %v402
      %v499 = vunpack.c.l.b16 %v403
      %v500 = vunpack.c.l.b16 %v404
      %v501 = vunpack.c.l.b16 %v405
      %v502 = vunpack.c.l.b16 %v406
      %v503 = vunpack.c.l.b16 %v407
      %v504 = vunpack.c.l.b16 %v408
      %v505 = vpack.c.b16 %v498, %v497
      %v506 = vpack.c.b16 %v500, %v499
      %v507 = vpack.c.b16 %v502, %v501
      %v508 = vpack.c.b16 %v504, %v503
      %vm513 = vcmask 523264
      %v515 = vsel %vm513, %v473, 0
      %v518 = vsel %vm513, %v474, 0
      %v521 = vsel %vm513, %v475, 0
      %v524 = vsel %vm513, %v476, 0
      %v527 = vsel %vm513, %v477, 0
      %v530 = vsel %vm513, %v478, 0
      %v533 = vsel %vm513, %v479, 0
      %v536 = vsel %vm513, %v480, 0
      %v539 = vsel %vm513, %v481, 0
      %v542 = vsel %vm513, %v482, 0
      %v545 = vsel %vm513, %v483, 0
      %v548 = vsel %vm513, %v484, 0
      %v551 = vsel %vm513, %v485, 0
      %v554 = vsel %vm513, %v486, 0
      %v557 = vsel %vm513, %v487, 0
      %v560 = vsel %vm513, %v488, 0
      %562 = vmatprep.subr.bf16.mxu0 0
      %563 = vmatpush1.bf16.msra.mxu0 0
      %564 = vmatprep.subr.bf16.mxu0 0
      %565 = vmatpush1.bf16.msra.mxu0 0
      %566 = vmatprep.subr.bf16.mxu0 0
      %567 = vmatpush1.bf16.msra.mxu0 0
      %568 = vmatprep.subr.bf16.mxu0 0
      %569 = vmatpush1.bf16.msra.mxu0 0
      %570 = vmatprep.subr.bf16.mxu0 0
      %571 = vmatpush1.bf16.msra.mxu0 %v508
      %572 = vmatprep.subr.bf16.mxu0 0
      %573 = vmatpush1.bf16.msra.mxu0 %v507
      %574 = vmatprep.subr.bf16.mxu0 0
      %575 = vmatpush1.bf16.msra.mxu0 %v506
      %576 = vmatprep.subr.bf16.mxu0 0
      %577 = vmatpush1.bf16.msra.mxu0 %v505
      %578 = vmatprep.subr.bf16.mxu0 0
      %579 = vmatpush2.bf16.msra.mxu0 0
      %580 = vmatprep.subr.bf16.mxu0 0
      %581 = vmatpush2.bf16.msra.mxu0 0
      %582 = vmatprep.subr.bf16.mxu0 0
      %583 = vmatpush2.bf16.msra.mxu0 0
      %584 = vmatprep.subr.bf16.mxu0 0
      %585 = vmatpush2.bf16.msra.mxu0 0
      %586 = vmatprep.subr.bf16.mxu0 0
      %587 = vmatpush2.bf16.msra.mxu0 0
      %588 = vmatprep.subr.bf16.mxu0 0
      %589 = vmatpush2.bf16.msra.mxu0 0
      %590 = vmatprep.subr.bf16.mxu0 0
      %591 = vmatpush2.bf16.msra.mxu0 0
      %592 = vmatprep.subr.bf16.mxu0 0
      %593 = vmatpush2.bf16.msra.mxu0 0
      %594 = vmatprep.mubr.bf16.mxu0 0
      %595 = vmatmul.mubr.bf16.gmra.mxu0 %v515
      %v596 = vpop.f32.mrf.mxu0
      %v597 = vadd.f32 0.0, %v596
      %v598 = vpop.f32.mrf.mxu0
      %v599 = vpop.f32.mrf.mxu0
      %v600 = vadd.f32 0.0, %v599
      %v601 = vpop.f32.mrf.mxu0
      %602 = vmatprep.mubr.bf16.mxu0 0
      %603 = vmatmul.mubr.bf16.gmra.mxu0 %v518
      %v604 = vpop.f32.mrf.mxu0
      %v605 = vadd.f32 0.0, %v604
      %v606 = vpop.f32.mrf.mxu0
      %v607 = vpop.f32.mrf.mxu0
      %v608 = vadd.f32 0.0, %v607
      %v609 = vpop.f32.mrf.mxu0
      %610 = vmatprep.mubr.bf16.mxu0 0
      %611 = vmatmul.mubr.bf16.gmra.mxu0 %v521
      %v612 = vpop.f32.mrf.mxu0
      %v613 = vadd.f32 0.0, %v612
      %v614 = vpop.f32.mrf.mxu0
      %v615 = vpop.f32.mrf.mxu0
      %v616 = vadd.f32 0.0, %v615
      %v617 = vpop.f32.mrf.mxu0
      %618 = vmatprep.mubr.bf16.mxu0 0
      %619 = vmatmul.mubr.bf16.gmra.mxu0 %v524
      %v620 = vpop.f32.mrf.mxu0
      %v621 = vadd.f32 0.0, %v620
      %v622 = vpop.f32.mrf.mxu0
      %v623 = vpop.f32.mrf.mxu0
      %v624 = vadd.f32 0.0, %v623
      %v625 = vpop.f32.mrf.mxu0
      %626 = vmatprep.mubr.bf16.mxu0 0
      %627 = vmatmul.mubr.bf16.gmra.mxu0 %v527
      %v628 = vpop.f32.mrf.mxu0
      %v629 = vadd.f32 0.0, %v628
      %v630 = vpop.f32.mrf.mxu0
      %v631 = vpop.f32.mrf.mxu0
      %v632 = vadd.f32 0.0, %v631
      %v633 = vpop.f32.mrf.mxu0
      %634 = vmatprep.mubr.bf16.mxu0 0
      %635 = vmatmul.mubr.bf16.gmra.mxu0 %v530
      %v636 = vpop.f32.mrf.mxu0
      %v637 = vadd.f32 0.0, %v636
      %v638 = vpop.f32.mrf.mxu0
      %v639 = vpop.f32.mrf.mxu0
      %v640 = vadd.f32 0.0, %v639
      %v641 = vpop.f32.mrf.mxu0
      %642 = vmatprep.mubr.bf16.mxu0 0
      %643 = vmatmul.mubr.bf16.gmra.mxu0 %v533
      %v644 = vpop.f32.mrf.mxu0
      %v645 = vadd.f32 0.0, %v644
      %v646 = vpop.f32.mrf.mxu0
      %v647 = vpop.f32.mrf.mxu0
      %v648 = vadd.f32 0.0, %v647
      %v649 = vpop.f32.mrf.mxu0
      %650 = vmatprep.mubr.bf16.mxu0 0
      %651 = vmatmul.mubr.bf16.gmra.mxu0 %v536
      %v652 = vpop.f32.mrf.mxu0
      %v653 = vadd.f32 0.0, %v652
      %v654 = vpop.f32.mrf.mxu0
      %v655 = vpop.f32.mrf.mxu0
      %v656 = vadd.f32 0.0, %v655
      %v657 = vpop.f32.mrf.mxu0
      %658 = vmatprep.mubr.bf16.mxu0 0
      %659 = vmatmul.mubr.bf16.gmra.mxu0 %v539
      %v660 = vpop.f32.mrf.mxu0
      %v661 = vadd.f32 0.0, %v660
      %v662 = vpop.f32.mrf.mxu0
      %v663 = vpop.f32.mrf.mxu0
      %v664 = vadd.f32 0.0, %v663
      %v665 = vpop.f32.mrf.mxu0
      %666 = vmatprep.mubr.bf16.mxu0 0
      %667 = vmatmul.mubr.bf16.gmra.mxu0 %v542
      %v668 = vpop.f32.mrf.mxu0
      %v669 = vadd.f32 0.0, %v668
      %v670 = vpop.f32.mrf.mxu0
      %v671 = vpop.f32.mrf.mxu0
      %v672 = vadd.f32 0.0, %v671
      %v673 = vpop.f32.mrf.mxu0
      %674 = vmatprep.mubr.bf16.mxu0 0
      %675 = vmatmul.mubr.bf16.gmra.mxu0 %v545
      %v676 = vpop.f32.mrf.mxu0
      %v677 = vadd.f32 0.0, %v676
      %v678 = vpop.f32.mrf.mxu0
      %v679 = vpop.f32.mrf.mxu0
      %v680 = vadd.f32 0.0, %v679
      %v681 = vpop.f32.mrf.mxu0
      %682 = vmatprep.mubr.bf16.mxu0 0
      %683 = vmatmul.mubr.bf16.gmra.mxu0 %v548
      %v684 = vpop.f32.mrf.mxu0
      %v685 = vadd.f32 0.0, %v684
      %v686 = vpop.f32.mrf.mxu0
      %v687 = vpop.f32.mrf.mxu0
      %v688 = vadd.f32 0.0, %v687
      %v689 = vpop.f32.mrf.mxu0
      %690 = vmatprep.mubr.bf16.mxu0 0
      %691 = vmatmul.mubr.bf16.gmra.mxu0 %v551
      %v692 = vpop.f32.mrf.mxu0
      %v693 = vadd.f32 0.0, %v692
      %v694 = vpop.f32.mrf.mxu0
      %v695 = vpop.f32.mrf.mxu0
      %v696 = vadd.f32 0.0, %v695
      %v697 = vpop.f32.mrf.mxu0
      %698 = vmatprep.mubr.bf16.mxu0 0
      %699 = vmatmul.mubr.bf16.gmra.mxu0 %v554
      %v700 = vpop.f32.mrf.mxu0
      %v701 = vadd.f32 0.0, %v700
      %v702 = vpop.f32.mrf.mxu0
      %v703 = vpop.f32.mrf.mxu0
      %v704 = vadd.f32 0.0, %v703
      %v705 = vpop.f32.mrf.mxu0
      %706 = vmatprep.mubr.bf16.mxu0 0
      %707 = vmatmul.mubr.bf16.gmra.mxu0 %v557
      %v708 = vpop.f32.mrf.mxu0
      %v709 = vadd.f32 0.0, %v708
      %v710 = vpop.f32.mrf.mxu0
      %v711 = vpop.f32.mrf.mxu0
      %v712 = vadd.f32 0.0, %v711
      %v713 = vpop.f32.mrf.mxu0
      %714 = vmatprep.mubr.bf16.mxu0 0
      %715 = vmatmul.mubr.bf16.gmra.mxu0 %v560
      %v716 = vpop.f32.mrf.mxu0
      %v717 = vadd.f32 0.0, %v716
      %v718 = vpop.f32.mrf.mxu0
      %v719 = vpop.f32.mrf.mxu0
      %v720 = vadd.f32 0.0, %v719
      %v721 = vpop.f32.mrf.mxu0
      %722 = vdwg.mxu0
      %v723 = vadd.f32 %v337, %v597
      %v724 = vadd.f32 %v338, %v600
      %v725 = vadd.f32 %v339, %v605
      %v726 = vadd.f32 %v340, %v608
      %v727 = vadd.f32 %v341, %v613
      %v728 = vadd.f32 %v342, %v616
      %v729 = vadd.f32 %v343, %v621
      %v730 = vadd.f32 %v344, %v624
      %v731 = vadd.f32 %v345, %v629
      %v732 = vadd.f32 %v346, %v632
      %v733 = vadd.f32 %v347, %v637
      %v734 = vadd.f32 %v348, %v640
      %v735 = vadd.f32 %v349, %v645
      %v736 = vadd.f32 %v350, %v648
      %v737 = vadd.f32 %v351, %v653
      %v738 = vadd.f32 %v352, %v656
      %v739 = vadd.f32 %v353, %v661
      %v740 = vadd.f32 %v354, %v664
      %v741 = vadd.f32 %v355, %v669
      %v742 = vadd.f32 %v356, %v672
      %v743 = vadd.f32 %v357, %v677
      %v744 = vadd.f32 %v358, %v680
      %v745 = vadd.f32 %v359, %v685
      %v746 = vadd.f32 %v360, %v688
      %v747 = vadd.f32 %v361, %v693
      %v748 = vadd.f32 %v362, %v696
      %v749 = vadd.f32 %v363, %v701
      %v750 = vadd.f32 %v364, %v704
      %v751 = vadd.f32 %v365, %v709
      %v752 = vadd.f32 %v366, %v712
      %v753 = vadd.f32 %v367, %v717
      %v754 = vadd.f32 %v368, %v720
      %755 = vst [vmem:[#allocation2] sm:$0xff] %v723
      %756 = vst [vmem:[#allocation2 + $0x8] sm:$0xff] %v724
      %757 = vst [vmem:[#allocation2 + $0x10] sm:$0xff] %v725
      %758 = vst [vmem:[#allocation2 + $0x18] sm:$0xff] %v726
      %759 = vst [vmem:[#allocation2 + $0x20] sm:$0xff] %v727
      %760 = vst [vmem:[#allocation2 + $0x28] sm:$0xff] %v728
      %761 = vst [vmem:[#allocation2 + $0x30] sm:$0xff] %v729
      %762 = vst [vmem:[#allocation2 + $0x38] sm:$0xff] %v730
      %763 = vst [vmem:[#allocation2 + $0x40] sm:$0xff] %v731
      %764 = vst [vmem:[#allocation2 + $0x48] sm:$0xff] %v732
      %765 = vst [vmem:[#allocation2 + $0x50] sm:$0xff] %v733
      %766 = vst [vmem:[#allocation2 + $0x58] sm:$0xff] %v734
      %767 = vst [vmem:[#allocation2 + $0x60] sm:$0xff] %v735
      %768 = vst [vmem:[#allocation2 + $0x68] sm:$0xff] %v736
      %769 = vst [vmem:[#allocation2 + $0x70] sm:$0xff] %v737
      %770 = vst [vmem:[#allocation2 + $0x78] sm:$0xff] %v738
      %771 = vst [vmem:[#allocation2 + $0x80] sm:$0xff] %v739
      %772 = vst [vmem:[#allocation2 + $0x88] sm:$0xff] %v740
      %773 = vst [vmem:[#allocation2 + $0x90] sm:$0xff] %v741
      %774 = vst [vmem:[#allocation2 + $0x98] sm:$0xff] %v742
      %775 = vst [vmem:[#allocation2 + $0xa0] sm:$0xff] %v743
      %776 = vst [vmem:[#allocation2 + $0xa8] sm:$0xff] %v744
      %777 = vst [vmem:[#allocation2 + $0xb0] sm:$0xff] %v745
      %778 = vst [vmem:[#allocation2 + $0xb8] sm:$0xff] %v746
      %779 = vst [vmem:[#allocation2 + $0xc0] sm:$0xff] %v747
      %780 = vst [vmem:[#allocation2 + $0xc8] sm:$0xff] %v748
      %781 = vst [vmem:[#allocation2 + $0xd0] sm:$0xff] %v749
      %782 = vst [vmem:[#allocation2 + $0xd8] sm:$0xff] %v750
      %783 = vst [vmem:[#allocation2 + $0xe0] sm:$0xff] %v751
      %784 = vst [vmem:[#allocation2 + $0xe8] sm:$0xff] %v752
      %785 = vst [vmem:[#allocation2 + $0xf0] sm:$0xff] %v753
      %786 = vst [vmem:[#allocation2 + $0xf8] sm:$0xff] %v754
      // Predicated region
      $region41: #{_lambda_.6} parent=35 // pred_check
        %p787 = pneg %p301
      $region42: #{_lambda_.6} parent=35 // pred_check_branch
        %789 = sbr.rel (%p787) target = $region44
      $region43: #{_lambda_.6} parent=35 // pred_region
        %v790 = vld [vmem:[#allocation2] sm:$0xff]
        %v791 = vld [vmem:[#allocation2 + $0x8] sm:$0xff]
        %v792 = vld [vmem:[#allocation2 + $0x10] sm:$0xff]
        %v793 = vld [vmem:[#allocation2 + $0x18] sm:$0xff]
        %v794 = vld [vmem:[#allocation2 + $0x20] sm:$0xff]
        %v795 = vld [vmem:[#allocation2 + $0x28] sm:$0xff]
        %v796 = vld [vmem:[#allocation2 + $0x30] sm:$0xff]
        %v797 = vld [vmem:[#allocation2 + $0x38] sm:$0xff]
        %v798 = vld [vmem:[#allocation2 + $0x40] sm:$0xff]
        %v799 = vld [vmem:[#allocation2 + $0x48] sm:$0xff]
        %v800 = vld [vmem:[#allocation2 + $0x50] sm:$0xff]
        %v801 = vld [vmem:[#allocation2 + $0x58] sm:$0xff]
        %v802 = vld [vmem:[#allocation2 + $0x60] sm:$0xff]
        %v803 = vld [vmem:[#allocation2 + $0x68] sm:$0xff]
        %v804 = vld [vmem:[#allocation2 + $0x70] sm:$0xff]
        %v805 = vld [vmem:[#allocation2 + $0x78] sm:$0xff]
        %v806 = vld [vmem:[#allocation2 + $0x80] sm:$0xff]
        %v807 = vld [vmem:[#allocation2 + $0x88] sm:$0xff]
        %v808 = vld [vmem:[#allocation2 + $0x90] sm:$0xff]
        %v809 = vld [vmem:[#allocation2 + $0x98] sm:$0xff]
        %v810 = vld [vmem:[#allocation2 + $0xa0] sm:$0xff]
        %v811 = vld [vmem:[#allocation2 + $0xa8] sm:$0xff]
        %v812 = vld [vmem:[#allocation2 + $0xb0] sm:$0xff]
        %v813 = vld [vmem:[#allocation2 + $0xb8] sm:$0xff]
        %v814 = vld [vmem:[#allocation2 + $0xc0] sm:$0xff]
        %v815 = vld [vmem:[#allocation2 + $0xc8] sm:$0xff]
        %v816 = vld [vmem:[#allocation2 + $0xd0] sm:$0xff]
        %v817 = vld [vmem:[#allocation2 + $0xd8] sm:$0xff]
        %v818 = vld [vmem:[#allocation2 + $0xe0] sm:$0xff]
        %v819 = vld [vmem:[#allocation2 + $0xe8] sm:$0xff]
        %v820 = vld [vmem:[#allocation2 + $0xf0] sm:$0xff]
        %v821 = vld [vmem:[#allocation2 + $0xf8] sm:$0xff]
        %v822 = vld [vmem:[%s287] sm:$0x1]
        %v824 = vlaneseq
        %v825 = vshrl.u32 %v824, 7
        %v826 = vsub.s32 0, %v825
        %v827 = vrot.slane %v822, %v826
        %v829 = vmul.f32 %v790, %v827
        %v830 = vmul.f32 %v791, %v827
        %v831 = vmul.f32 %v792, %v827
        %v832 = vmul.f32 %v793, %v827
        %v833 = vmul.f32 %v794, %v827
        %v834 = vmul.f32 %v795, %v827
        %v835 = vmul.f32 %v796, %v827
        %v836 = vmul.f32 %v797, %v827
        %v837 = vmul.f32 %v798, %v827
        %v838 = vmul.f32 %v799, %v827
        %v839 = vmul.f32 %v800, %v827
        %v840 = vmul.f32 %v801, %v827
        %v841 = vmul.f32 %v802, %v827
        %v842 = vmul.f32 %v803, %v827
        %v843 = vmul.f32 %v804, %v827
        %v844 = vmul.f32 %v805, %v827
        %v845 = vmul.f32 %v806, %v827
        %v846 = vmul.f32 %v807, %v827
        %v847 = vmul.f32 %v808, %v827
        %v848 = vmul.f32 %v809, %v827
        %v849 = vmul.f32 %v810, %v827
        %v850 = vmul.f32 %v811, %v827
        %v851 = vmul.f32 %v812, %v827
        %v852 = vmul.f32 %v813, %v827
        %v853 = vmul.f32 %v814, %v827
        %v854 = vmul.f32 %v815, %v827
        %v855 = vmul.f32 %v816, %v827
        %v856 = vmul.f32 %v817, %v827
        %v857 = vmul.f32 %v818, %v827
        %v858 = vmul.f32 %v819, %v827
        %v859 = vmul.f32 %v820, %v827
        %v860 = vmul.f32 %v821, %v827
        %v861 = vld [vmem:[%s290] sm:$0x1]
        %v863 = vlaneseq
        %v864 = vshrl.u32 %v863, 7
        %v865 = vsub.s32 0, %v864
        %v866 = vrot.slane %v861, %v865
        %v868 = vadd.f32 %v829, %v866
        %v869 = vadd.f32 %v830, %v866
        %v870 = vadd.f32 %v831, %v866
        %v871 = vadd.f32 %v832, %v866
        %v872 = vadd.f32 %v833, %v866
        %v873 = vadd.f32 %v834, %v866
        %v874 = vadd.f32 %v835, %v866
        %v875 = vadd.f32 %v836, %v866
        %v876 = vadd.f32 %v837, %v866
        %v877 = vadd.f32 %v838, %v866
        %v878 = vadd.f32 %v839, %v866
        %v879 = vadd.f32 %v840, %v866
        %v880 = vadd.f32 %v841, %v866
        %v881 = vadd.f32 %v842, %v866
        %v882 = vadd.f32 %v843, %v866
        %v883 = vadd.f32 %v844, %v866
        %v884 = vadd.f32 %v845, %v866
        %v885 = vadd.f32 %v846, %v866
        %v886 = vadd.f32 %v847, %v866
        %v887 = vadd.f32 %v848, %v866
        %v888 = vadd.f32 %v849, %v866
        %v889 = vadd.f32 %v850, %v866
        %v890 = vadd.f32 %v851, %v866
        %v891 = vadd.f32 %v852, %v866
        %v892 = vadd.f32 %v853, %v866
        %v893 = vadd.f32 %v854, %v866
        %v894 = vadd.f32 %v855, %v866
        %v895 = vadd.f32 %v856, %v866
        %v896 = vadd.f32 %v857, %v866
        %v897 = vadd.f32 %v858, %v866
        %v898 = vadd.f32 %v859, %v866
        %v899 = vadd.f32 %v860, %v866
        %v900 = vpack.c.bf16 %v869, %v868
        %v901 = vpack.c.bf16 %v871, %v870
        %v902 = vpack.c.bf16 %v873, %v872
        %v903 = vpack.c.bf16 %v875, %v874
        %v904 = vpack.c.bf16 %v877, %v876
        %v905 = vpack.c.bf16 %v879, %v878
        %v906 = vpack.c.bf16 %v881, %v880
        %v907 = vpack.c.bf16 %v883, %v882
        %v908 = vpack.c.bf16 %v885, %v884
        %v909 = vpack.c.bf16 %v887, %v886
        %v910 = vpack.c.bf16 %v889, %v888
        %v911 = vpack.c.bf16 %v891, %v890
        %v912 = vpack.c.bf16 %v893, %v892
        %v913 = vpack.c.bf16 %v895, %v894
        %v914 = vpack.c.bf16 %v897, %v896
        %v915 = vpack.c.bf16 %v899, %v898
        %v932 = vunpack.c.l.b16 %v900
        %v933 = vunpack.c.h.b16 %v900
        %v934 = vunpack.c.l.b16 %v901
        %v935 = vunpack.c.h.b16 %v901
        %v936 = vunpack.c.l.b16 %v902
        %v937 = vunpack.c.h.b16 %v902
        %v938 = vunpack.c.l.b16 %v903
        %v939 = vunpack.c.h.b16 %v903
        %v940 = vunpack.c.l.b16 %v904
        %v941 = vunpack.c.h.b16 %v904
        %v942 = vunpack.c.l.b16 %v905
        %v943 = vunpack.c.h.b16 %v905
        %v944 = vunpack.c.l.b16 %v906
        %v945 = vunpack.c.h.b16 %v906
        %v946 = vunpack.c.l.b16 %v907
        %v947 = vunpack.c.h.b16 %v907
        %v948 = vunpack.c.l.b16 %v908
        %v949 = vunpack.c.h.b16 %v908
        %v950 = vunpack.c.l.b16 %v909
        %v951 = vunpack.c.h.b16 %v909
        %v952 = vunpack.c.l.b16 %v910
        %v953 = vunpack.c.h.b16 %v910
        %v954 = vunpack.c.l.b16 %v911
        %v955 = vunpack.c.h.b16 %v911
        %v956 = vunpack.c.l.b16 %v912
        %v957 = vunpack.c.h.b16 %v912
        %v958 = vunpack.c.l.b16 %v913
        %v959 = vunpack.c.h.b16 %v913
        %v960 = vunpack.c.l.b16 %v914
        %v961 = vunpack.c.h.b16 %v914
        %v962 = vunpack.c.l.b16 %v915
        %v963 = vunpack.c.h.b16 %v915
        %v964 = vpack.c.b16 %v932, %v932
        %v965 = vpack.c.b16 %v933, %v933
        %v966 = vpack.c.b16 %v934, %v934
        %v967 = vpack.c.b16 %v935, %v935
        %v968 = vpack.c.b16 %v936, %v936
        %v969 = vpack.c.b16 %v937, %v937
        %v970 = vpack.c.b16 %v938, %v938
        %v971 = vpack.c.b16 %v939, %v939
        %v972 = vpack.c.b16 %v940, %v940
        %v973 = vpack.c.b16 %v941, %v941
        %v974 = vpack.c.b16 %v942, %v942
        %v975 = vpack.c.b16 %v943, %v943
        %v976 = vpack.c.b16 %v944, %v944
        %v977 = vpack.c.b16 %v945, %v945
        %v978 = vpack.c.b16 %v946, %v946
        %v979 = vpack.c.b16 %v947, %v947
        %v980 = vpack.c.b16 %v948, %v948
        %v981 = vpack.c.b16 %v949, %v949
        %v982 = vpack.c.b16 %v950, %v950
        %v983 = vpack.c.b16 %v951, %v951
        %v984 = vpack.c.b16 %v952, %v952
        %v985 = vpack.c.b16 %v953, %v953
        %v986 = vpack.c.b16 %v954, %v954
        %v987 = vpack.c.b16 %v955, %v955
        %v988 = vpack.c.b16 %v956, %v956
        %v989 = vpack.c.b16 %v957, %v957
        %v990 = vpack.c.b16 %v958, %v958
        %v991 = vpack.c.b16 %v959, %v959
        %v992 = vpack.c.b16 %v960, %v960
        %v993 = vpack.c.b16 %v961, %v961
        %v994 = vpack.c.b16 %v962, %v962
        %v995 = vpack.c.b16 %v963, %v963
        %1028 = vst [vmem:[%s298] sm:$0xf] %v964
        %1029 = vst [vmem:[%s298 + $0x4] sm:$0xf] %v965
        %1030 = vst [vmem:[%s298 + $0x8] sm:$0xf] %v966
        %1031 = vst [vmem:[%s298 + $0xc] sm:$0xf] %v967
        %1032 = vst [vmem:[%s298 + $0x10] sm:$0xf] %v968
        %1033 = vst [vmem:[%s298 + $0x14] sm:$0xf] %v969
        %1034 = vst [vmem:[%s298 + $0x18] sm:$0xf] %v970
        %1035 = vst [vmem:[%s298 + $0x1c] sm:$0xf] %v971
        %1036 = vst [vmem:[%s298 + $0x20] sm:$0xf] %v972
        %1037 = vst [vmem:[%s298 + $0x24] sm:$0xf] %v973
        %1038 = vst [vmem:[%s298 + $0x28] sm:$0xf] %v974
        %1039 = vst [vmem:[%s298 + $0x2c] sm:$0xf] %v975
        %1040 = vst [vmem:[%s298 + $0x30] sm:$0xf] %v976
        %1041 = vst [vmem:[%s298 + $0x34] sm:$0xf] %v977
        %1042 = vst [vmem:[%s298 + $0x38] sm:$0xf] %v978
        %1043 = vst [vmem:[%s298 + $0x3c] sm:$0xf] %v979
        %1044 = vst [vmem:[%s298 + $0x40] sm:$0xf] %v980
        %1045 = vst [vmem:[%s298 + $0x44] sm:$0xf] %v981
        %1046 = vst [vmem:[%s298 + $0x48] sm:$0xf] %v982
        %1047 = vst [vmem:[%s298 + $0x4c] sm:$0xf] %v983
        %1048 = vst [vmem:[%s298 + $0x50] sm:$0xf] %v984
        %1049 = vst [vmem:[%s298 + $0x54] sm:$0xf] %v985
        %1050 = vst [vmem:[%s298 + $0x58] sm:$0xf] %v986
        %1051 = vst [vmem:[%s298 + $0x5c] sm:$0xf] %v987
        %1052 = vst [vmem:[%s298 + $0x60] sm:$0xf] %v988
        %1053 = vst [vmem:[%s298 + $0x64] sm:$0xf] %v989
        %1054 = vst [vmem:[%s298 + $0x68] sm:$0xf] %v990
        %1055 = vst [vmem:[%s298 + $0x6c] sm:$0xf] %v991
        %1056 = vst [vmem:[%s298 + $0x70] sm:$0xf] %v992
        %1057 = vst [vmem:[%s298 + $0x74] sm:$0xf] %v993
        %1058 = vst [vmem:[%s298 + $0x78] sm:$0xf] %v994
        %1059 = vst [vmem:[%s298 + $0x7c] sm:$0xf] %v995
      $region44: #{_lambda_.6} parent=35 // pred_fallthru
        _
      %s1060 = smul.u32 32, %s20
      %p1061 = scmp.lt.s32.totalorder %s1060, 63
      %s1062 = scalar_select %p1061, %s1060, 63
      %p1063 = scmp.lt.s32.totalorder %s21, 0
      %s1064 = scalar_select %p1063, %s21, 0
      %s1065 = sadd.s32 %s1064, %s1062
      %s1066 = smul.addr %s1065, 4
      %s1067 = scalar_lea.vmem %s4, %s1066
      // Predicated region
      $region45: #{_lambda_.6} parent=35 // pred_check
        %p1068 = pneg %p162
      $region46: #{_lambda_.6} parent=35 // pred_check_branch
        %1070 = sbr.rel (%p1068) target = $region48
      $region47: #{_lambda_.6} parent=35 // pred_region
        %s1071 = smul.u32 32, %s20
      $region48: #{_lambda_.6} parent=35 // pred_fallthru
        _
    $region36: #{_lambda_.6} parent=5 // pred_fallthru
      _
    %p1072 = scmp.le.s32.totalorder 2, %s10
    // Predicated region
    $region49: #{_lambda_.6} parent=5 // pred_check
      %p1073 = pneg %p1072
    $region50: #{_lambda_.6} parent=5 // pred_check_branch
      %1075 = sbr.rel (%p1073) target = $region52
    $region51: #{_lambda_.6} parent=5 // pred_region
      %s1076 = ssub.s32 %s10, 2
      // Predicated region
      $region53: #{_lambda_.6} parent=51 // pred_check
        %p1077 = pneg %p168
      $region54: #{_lambda_.6} parent=51 // pred_check_branch
        %1079 = sbr.rel (%p1077) target = $region56
      $region55: #{_lambda_.6} parent=51 // pred_region
        %s1080 = smul.u32 32, %s23
        %p1081 = scmp.lt.s32.totalorder %s1080, 63
        %s1082 = scalar_select %p1081, %s1080, 63
        %p1083 = scmp.lt.s32.totalorder %s24, 0
        %s1084 = scalar_select %p1083, %s24, 0
        %s1085 = sadd.s32 %s1084, %s1082
        %s1086 = smul.addr %s1085, 4
        %s1087 = scalar_lea.vmem %s4, %s1086
      $region56: #{_lambda_.6} parent=51 // pred_fallthru
        _
    $region52: #{_lambda_.6} parent=5 // pred_fallthru
      _
  $region6: #{_lambda_.6} parent=0 // loop_footer
    %s14 = sadd.s32 1, %s10
  $region7: #{_lambda_.6} parent=0 // loop_footer_branch
    %9 = sbr.rel target = $region3
  $region8: #{_lambda_.6} parent=0 // loop_exit
    _

// kernel: _lambda_.7
$region0: #{_lambda_.7}
  #allocation0 [shape = 'u32[]', space=smem, size = 0x4, offset = 0x4, fixed_abs, tag = 'smem constant byte address 0x4 - core index']
  #allocation1 [shape = 'u32[144,128]{1,0:T(1,128)}', space=vmem, size = 0x12000, scoped, tag = 'internal scratch']
  #allocation2 [shape = 'f32[256,128]{1,0:T(8,128)}', space=vmem, size = 0x20000, scoped, tag = 'scratch operand']
  %s0 = inlined_call_operand.vmem [shape: bf16[512,64], index: 0, kind: input, shape index: {}]
  %s1 = inlined_call_operand.vmem [shape: bf16[64,128], index: 1, kind: input, shape index: {}]
  %s2 = inlined_call_operand.vmem [shape: f32[1,128], index: 2, kind: input, shape index: {}]
  %s3 = inlined_call_operand.vmem [shape: f32[1,128], index: 3, kind: input, shape index: {}]
  %s4 = inlined_call_operand.vmem [shape: bf16[512,128], index: 4, kind: input, shape index: {}]
  %s5 = inlined_call_operand.vmem [shape: bf16[512,128], index: 5, kind: output, shape index: {}]
  %s6 = sld [smem:[#allocation0]]
  $region61: #{_lambda_.7} parent=0
    _
  %s8 = ssub.s32 1, %s6
  %s9 = scalar_select 0, %s8, %s6
  loop: start=0, step=1, limit=4
  $region2: #{_lambda_.7} parent=0 // loop_pre_header
    _
  $region3: #{_lambda_.7} parent=0 // loop_header
    %s11 = sphi 0, %s15
    %p12 = scmp.ge.s32.totalorder %s11, 4
    %s18 = sphi 0, %s37
    %s19 = sphi 0, %s33
    %s20 = sphi 0, %s29
    %s21 = sphi 0, %s18
    %s22 = sphi 0, %s19
    %s23 = sphi 0, %s20
    %s24 = sphi 0, %s21
    %s25 = sphi 0, %s22
    %s26 = sphi 0, %s23
    %s42 = sphi 0, %s44
    %s45 = sphi 0, %s42
    %s46 = sphi 0, %s45
    %s62 = sphi 0, %s46
    %s70 = sphi 0, %s72
    %s73 = sphi 0, %s70
    %s74 = sphi 0, %s73
    %s90 = sphi 0, %s74
    %s96 = sphi 0, %s98
    %s99 = sphi 0, %s96
    %s100 = sphi 0, %s99
    %s116 = sphi 0, %s100
    %s122 = sphi 0, %s124
    %s125 = sphi 0, %s122
    %s126 = sphi 0, %s125
    %s142 = sphi 0, %s126
    %s150 = sphi 0, %s152
    %s153 = sphi 0, %s150
    %s154 = sphi 0, %s153
    %s170 = sphi 0, %s154
    %s178 = sphi 0, %s180
    %s181 = sphi 0, %s178
    %s182 = sphi 0, %s181
    %s198 = sphi 0, %s182
  $region4: #{_lambda_.7} parent=0 // loop_header_branch
    %14 = sbr.rel (%p12) target = $region8
  $region5: #{_lambda_.7} parent=0 // loop_body
    %s16 = ssub.s32 %s11, 1
    %s17 = ssub.s32 %s11, 2
    %s27 = sadd.s32 1, %s20
    %p28 = scmp.ge.s32.totalorder %s27, 1
    %s29 = scalar_select %p28, 0, %s27
    %s30 = sadd.s32 1, %s19
    %s31 = scalar_select %p28, %s30, %s19
    %p32 = scmp.ge.s32.totalorder %s31, 1
    %s33 = scalar_select %p32, 0, %s31
    %s34 = sadd.s32 1, %s18
    %s35 = scalar_select %p32, %s34, %s18
    %p36 = scmp.ge.s32.totalorder %s35, 2
    %s37 = scalar_select %p36, 0, %s35
    %s38 = ssub.s32 %s18, %s37
    %s39 = ssub.s32 %s20, %s29
    %s40 = sor.u32 %s38, %s39
    %p41 = scmp.eq.s32.totalorder %s40, 0
    %s43 = sadd.s32 %s42, 1
    %s44 = scalar_select %p41, %s42, %s43
    %p47 = pneg %p41
    %p48 = scmp.eq.s32.totalorder %s11, 1
    %p49 = por %p47, %p48
    %p50 = scmp.ne.s32.totalorder %s42, %s45
    %p51 = scmp.eq.s32.totalorder %s11, 0
    %p52 = por %p50, %p51
    %p53 = scmp.ne.s32.totalorder %s42, %s45
    %p54 = scmp.eq.s32.totalorder %s16, 1
    %p55 = por %p53, %p54
    %p56 = scmp.ne.s32.totalorder %s45, %s46
    %p57 = scmp.eq.s32.totalorder %s16, 0
    %p58 = por %p56, %p57
    %p59 = scmp.ne.s32.totalorder %s45, %s46
    %p60 = scmp.eq.s32.totalorder %s17, 1
    %p61 = por %p59, %p60
    %p63 = scmp.ne.s32.totalorder %s46, %s62
    %p64 = scmp.eq.s32.totalorder %s17, 0
    %p65 = por %p63, %p64
    %s66 = ssub.s32 %s20, %s29
    %s67 = ssub.s32 %s19, %s33
    %s68 = sor.u32 %s66, %s67
    %p69 = scmp.eq.s32.totalorder %s68, 0
    %s71 = sadd.s32 %s70, 1
    %s72 = scalar_select %p69, %s70, %s71
    %p75 = pneg %p69
    %p76 = scmp.eq.s32.totalorder %s11, 1
    %p77 = por %p75, %p76
    %p78 = scmp.ne.s32.totalorder %s70, %s73
    %p79 = scmp.eq.s32.totalorder %s11, 0
    %p80 = por %p78, %p79
    %p81 = scmp.ne.s32.totalorder %s70, %s73
    %p82 = scmp.eq.s32.totalorder %s16, 1
    %p83 = por %p81, %p82
    %p84 = scmp.ne.s32.totalorder %s73, %s74
    %p85 = scmp.eq.s32.totalorder %s16, 0
    %p86 = por %p84, %p85
    %p87 = scmp.ne.s32.totalorder %s73, %s74
    %p88 = scmp.eq.s32.totalorder %s17, 1
    %p89 = por %p87, %p88
    %p91 = scmp.ne.s32.totalorder %s74, %s90
    %p92 = scmp.eq.s32.totalorder %s17, 0
    %p93 = por %p91, %p92
    %s94 = ssub.s32 %s19, %s33
    %p95 = scmp.eq.s32.totalorder %s94, 0
    %s97 = sadd.s32 %s96, 1
    %s98 = scalar_select %p95, %s96, %s97
    %p101 = pneg %p95
    %p102 = scmp.eq.s32.totalorder %s11, 1
    %p103 = por %p101, %p102
    %p104 = scmp.ne.s32.totalorder %s96, %s99
    %p105 = scmp.eq.s32.totalorder %s11, 0
    %p106 = por %p104, %p105
    %p107 = scmp.ne.s32.totalorder %s96, %s99
    %p108 = scmp.eq.s32.totalorder %s16, 1
    %p109 = por %p107, %p108
    %p110 = scmp.ne.s32.totalorder %s99, %s100
    %p111 = scmp.eq.s32.totalorder %s16, 0
    %p112 = por %p110, %p111
    %p113 = scmp.ne.s32.totalorder %s99, %s100
    %p114 = scmp.eq.s32.totalorder %s17, 1
    %p115 = por %p113, %p114
    %p117 = scmp.ne.s32.totalorder %s100, %s116
    %p118 = scmp.eq.s32.totalorder %s17, 0
    %p119 = por %p117, %p118
    %s120 = ssub.s32 %s19, %s33
    %p121 = scmp.eq.s32.totalorder %s120, 0
    %s123 = sadd.s32 %s122, 1
    %s124 = scalar_select %p121, %s122, %s123
    %p127 = pneg %p121
    %p128 = scmp.eq.s32.totalorder %s11, 1
    %p129 = por %p127, %p128
    %p130 = scmp.ne.s32.totalorder %s122, %s125
    %p131 = scmp.eq.s32.totalorder %s11, 0
    %p132 = por %p130, %p131
    %p133 = scmp.ne.s32.totalorder %s122, %s125
    %p134 = scmp.eq.s32.totalorder %s16, 1
    %p135 = por %p133, %p134
    %p136 = scmp.ne.s32.totalorder %s125, %s126
    %p137 = scmp.eq.s32.totalorder %s16, 0
    %p138 = por %p136, %p137
    %p139 = scmp.ne.s32.totalorder %s125, %s126
    %p140 = scmp.eq.s32.totalorder %s17, 1
    %p141 = por %p139, %p140
    %p143 = scmp.ne.s32.totalorder %s126, %s142
    %p144 = scmp.eq.s32.totalorder %s17, 0
    %p145 = por %p143, %p144
    %s146 = ssub.s32 %s18, %s37
    %s147 = ssub.s32 %s19, %s33
    %s148 = sor.u32 %s146, %s147
    %p149 = scmp.eq.s32.totalorder %s148, 0
    %s151 = sadd.s32 %s150, 1
    %s152 = scalar_select %p149, %s150, %s151
    %p155 = pneg %p149
    %p156 = scmp.eq.s32.totalorder %s11, 1
    %p157 = por %p155, %p156
    %p158 = scmp.ne.s32.totalorder %s150, %s153
    %p159 = scmp.eq.s32.totalorder %s11, 0
    %p160 = por %p158, %p159
    %p161 = scmp.ne.s32.totalorder %s150, %s153
    %p162 = scmp.eq.s32.totalorder %s16, 1
    %p163 = por %p161, %p162
    %p164 = scmp.ne.s32.totalorder %s153, %s154
    %p165 = scmp.eq.s32.totalorder %s16, 0
    %p166 = por %p164, %p165
    %p167 = scmp.ne.s32.totalorder %s153, %s154
    %p168 = scmp.eq.s32.totalorder %s17, 1
    %p169 = por %p167, %p168
    %p171 = scmp.ne.s32.totalorder %s154, %s170
    %p172 = scmp.eq.s32.totalorder %s17, 0
    %p173 = por %p171, %p172
    %s174 = ssub.s32 %s18, %s37
    %s175 = ssub.s32 %s19, %s33
    %s176 = sor.u32 %s174, %s175
    %p177 = scmp.eq.s32.totalorder %s176, 0
    %s179 = sadd.s32 %s178, 1
    %s180 = scalar_select %p177, %s178, %s179
    %p183 = pneg %p177
    %p184 = scmp.eq.s32.totalorder %s11, 1
    %p185 = por %p183, %p184
    %p186 = scmp.ne.s32.totalorder %s178, %s181
    %p187 = scmp.eq.s32.totalorder %s11, 0
    %p188 = por %p186, %p187
    %p189 = scmp.ne.s32.totalorder %s178, %s181
    %p190 = scmp.eq.s32.totalorder %s16, 1
    %p191 = por %p189, %p190
    %p192 = scmp.ne.s32.totalorder %s181, %s182
    %p193 = scmp.eq.s32.totalorder %s16, 0
    %p194 = por %p192, %p193
    %p195 = scmp.ne.s32.totalorder %s181, %s182
    %p196 = scmp.eq.s32.totalorder %s17, 1
    %p197 = por %p195, %p196
    %p199 = scmp.ne.s32.totalorder %s182, %s198
    %p200 = scmp.eq.s32.totalorder %s17, 0
    %p201 = por %p199, %p200
    %p202 = scmp.le.s32.totalorder 1, %s11
    %p203 = scmp.lt.s32.totalorder %s11, 3
    %p204 = pnand %p202, %p203
    %p205 = pneg %p204
    // Predicated region
    $region9: #{_lambda_.7} parent=5 // pred_check
      _
    $region10: #{_lambda_.7} parent=5 // pred_check_branch
      %207 = sbr.rel (%p204) target = $region12
    $region11: #{_lambda_.7} parent=5 // pred_region
      %s208 = ssub.s32 %s11, 1
      // Predicated region
      $region13: #{_lambda_.7} parent=11 // pred_check
        %p209 = pneg %p86
      $region14: #{_lambda_.7} parent=11 // pred_check_branch
        %211 = sbr.rel (%p209) target = $region16
      $region15: #{_lambda_.7} parent=11 // pred_region
        %s212 = smul.u32 8, %s23
        %p213 = scmp.lt.s32.totalorder %s212, 7
        %s214 = scalar_select %p213, %s212, 7
        %p215 = scmp.lt.s32.totalorder %s22, 0
        %s216 = scalar_select %p215, %s22, 0
        %s217 = sadd.s32 %s216, %s214
        %s218 = smul.addr %s217, 4
        %s219 = scalar_lea.vmem %s1, %s218
        %s220 = smul.u32 8, %s23
      $region16: #{_lambda_.7} parent=11 // pred_fallthru
        _
      // Predicated region
      $region17: #{_lambda_.7} parent=11 // pred_check
        %p221 = pneg %p112
      $region18: #{_lambda_.7} parent=11 // pred_check_branch
        %223 = sbr.rel (%p221) target = $region20
      $region19: #{_lambda_.7} parent=11 // pred_region
        %p224 = scmp.lt.s32.totalorder %s22, 0
        %s225 = scalar_select %p224, %s22, 0
        %s226 = scalar_lea.vmem %s2, %s225
      $region20: #{_lambda_.7} parent=11 // pred_fallthru
        _
      // Predicated region
      $region21: #{_lambda_.7} parent=11 // pred_check
        %p227 = pneg %p138
      $region22: #{_lambda_.7} parent=11 // pred_check_branch
        %229 = sbr.rel (%p227) target = $region24
      $region23: #{_lambda_.7} parent=11 // pred_region
        %p230 = scmp.lt.s32.totalorder %s22, 0
        %s231 = scalar_select %p230, %s22, 0
        %s232 = scalar_lea.vmem %s3, %s231
      $region24: #{_lambda_.7} parent=11 // pred_fallthru
        _
    $region12: #{_lambda_.7} parent=5 // pred_fallthru
      _
    %p233 = scmp.lt.s32.totalorder %s11, 2
    // Predicated region
    $region25: #{_lambda_.7} parent=5 // pred_check
      %p234 = pneg %p233
    $region26: #{_lambda_.7} parent=5 // pred_check_branch
      %236 = sbr.rel (%p234) target = $region28
    $region27: #{_lambda_.7} parent=5 // pred_region
      // Predicated region
      $region29: #{_lambda_.7} parent=27 // pred_check
        %p237 = pneg %p52
      $region30: #{_lambda_.7} parent=27 // pred_check_branch
        %239 = sbr.rel (%p237) target = $region32
      $region31: #{_lambda_.7} parent=27 // pred_region
        %s240 = smul.u32 32, %s18
        %p241 = scmp.lt.s32.totalorder %s240, 63
        %s242 = scalar_select %p241, %s240, 63
        %p243 = scmp.lt.s32.totalorder %s20, 0
        %s244 = scalar_select %p243, %s20, 0
        %s245 = sadd.s32 %s244, %s242
        %s246 = smul.addr %s245, 4
        %s247 = scalar_lea.vmem %s0, %s246
        %s248 = smul.u32 32, %s18
      $region32: #{_lambda_.7} parent=27 // pred_fallthru
        _
      // Predicated region
      $region33: #{_lambda_.7} parent=27 // pred_check
        %p249 = pneg %p160
      $region34: #{_lambda_.7} parent=27 // pred_check_branch
        %251 = sbr.rel (%p249) target = $region36
      $region35: #{_lambda_.7} parent=27 // pred_region
        %s252 = smul.u32 32, %s18
        %p253 = scmp.lt.s32.totalorder %s252, 63
        %s254 = scalar_select %p253, %s252, 63
        %p255 = scmp.lt.s32.totalorder %s19, 0
        %s256 = scalar_select %p255, %s19, 0
        %s257 = sadd.s32 %s256, %s254
        %s258 = smul.addr %s257, 4
        %s259 = scalar_lea.vmem %s4, %s258
        %s260 = smul.u32 32, %s18
      $region36: #{_lambda_.7} parent=27 // pred_fallthru
        _
    $region28: #{_lambda_.7} parent=5 // pred_fallthru
      _
    %p261 = scmp.le.s32.totalorder 1, %s11
    %p262 = scmp.lt.s32.totalorder %s11, 3
    %p263 = pnand %p261, %p262
    %p264 = pneg %p263
    // Predicated region
    $region37: #{_lambda_.7} parent=5 // pred_check
      _
    $region38: #{_lambda_.7} parent=5 // pred_check_branch
      %266 = sbr.rel (%p263) target = $region40
    $region39: #{_lambda_.7} parent=5 // pred_region
      %s267 = ssub.s32 %s11, 1
      %s268 = smul.u32 32, %s21
      %p269 = scmp.lt.s32.totalorder %s268, 63
      %s270 = scalar_select %p269, %s268, 63
      %p271 = scmp.lt.s32.totalorder %s23, 0
      %s272 = scalar_select %p271, %s23, 0
      %s273 = sadd.s32 %s272, %s270
      %s274 = smul.addr %s273, 4
      %s275 = scalar_lea.vmem %s0, %s274
      %p276 = pneg %p58
      %p277 = pneg %p55
      %s278 = smul.u32 8, %s23
      %p279 = scmp.lt.s32.totalorder %s278, 7
      %s280 = scalar_select %p279, %s278, 7
      %p281 = scmp.lt.s32.totalorder %s22, 0
      %s282 = scalar_select %p281, %s22, 0
      %s283 = sadd.s32 %s282, %s280
      %s284 = smul.addr %s283, 4
      %s285 = scalar_lea.vmem %s1, %s284
      %p286 = pneg %p86
      %p287 = pneg %p83
      %p288 = scmp.lt.s32.totalorder %s22, 0
      %s289 = scalar_select %p288, %s22, 0
      %s290 = scalar_lea.vmem %s2, %s289
      %p291 = pneg %p112
      %p292 = pneg %p109
      %p293 = scmp.lt.s32.totalorder %s22, 0
      %s294 = scalar_select %p293, %s22, 0
      %s295 = scalar_lea.vmem %s3, %s294
      %p296 = pneg %p138
      %p297 = pneg %p135
      %s298 = smul.u32 32, %s21
      %p299 = scmp.lt.s32.totalorder %s298, 63
      %s300 = scalar_select %p299, %s298, 63
      %p301 = scmp.lt.s32.totalorder %s22, 0
      %s302 = scalar_select %p301, %s22, 0
      %s303 = sadd.s32 %s302, %s300
      %s304 = smul.addr %s303, 4
      %s305 = scalar_lea.vmem %s4, %s304
      %p306 = pneg %p166
      %p307 = pneg %p163
      %p308 = pneg %p194
      %p309 = pneg %p191
      %s310 = smul.u32 32, %s21
      %p311 = scmp.lt.s32.totalorder %s310, 63
      %s312 = scalar_select %p311, %s310, 63
      %p313 = scmp.lt.s32.totalorder %s22, 0
      %s314 = scalar_select %p313, %s22, 0
      %s315 = sadd.s32 %s314, %s312
      %s316 = smul.addr %s315, 4
      %s317 = scalar_lea.vmem %s5, %s316
      %s318 = smul.u32 32, %s21
      %p319 = scmp.lt.s32.totalorder %s318, 63
      %s320 = scalar_select %p319, %s318, 63
      %p321 = scmp.lt.s32.totalorder %s23, 0
      %s322 = scalar_select %p321, %s23, 0
      %s323 = sadd.s32 %s322, %s320
      %s324 = smul.addr %s323, 4
      %s325 = scalar_lea.vmem %s0, %s324
      %s326 = smul.u32 32, %s21
      %s327 = smul.u32 8, %s23
      %p328 = scmp.lt.s32.totalorder %s327, 7
      %s329 = scalar_select %p328, %s327, 7
      %p330 = scmp.lt.s32.totalorder %s22, 0
      %s331 = scalar_select %p330, %s22, 0
      %s332 = sadd.s32 %s331, %s329
      %s333 = smul.addr %s332, 4
      %s334 = scalar_lea.vmem %s1, %s333
      %s335 = smul.u32 8, %s23
      %p336 = scmp.lt.s32.totalorder %s22, 0
      %s337 = scalar_select %p336, %s22, 0
      %s338 = scalar_lea.vmem %s2, %s337
      %p339 = scmp.lt.s32.totalorder %s22, 0
      %s340 = scalar_select %p339, %s22, 0
      %s341 = scalar_lea.vmem %s3, %s340
      %s342 = smul.u32 32, %s21
      %p343 = scmp.lt.s32.totalorder %s342, 63
      %s344 = scalar_select %p343, %s342, 63
      %p345 = scmp.lt.s32.totalorder %s22, 0
      %s346 = scalar_select %p345, %s22, 0
      %s347 = sadd.s32 %s346, %s344
      %s348 = smul.addr %s347, 4
      %s349 = scalar_lea.vmem %s4, %s348
      %s350 = smul.u32 32, %s21
      %s351 = smul.u32 32, %s21
      %p352 = scmp.lt.s32.totalorder %s351, 63
      %s353 = scalar_select %p352, %s351, 63
      %p354 = scmp.lt.s32.totalorder %s22, 0
      %s355 = scalar_select %p354, %s22, 0
      %s356 = sadd.s32 %s355, %s353
      %s357 = smul.addr %s356, 4
      %s358 = scalar_lea.vmem %s5, %s357
      %s359 = smul.u32 32, %s21
      %p361 = scmp.eq.s32.totalorder %s23, 0
      // Predicated region
      $region41: #{_lambda_.7} parent=39 // pred_check
        %p362 = pneg %p361
      $region42: #{_lambda_.7} parent=39 // pred_check_branch
        %364 = sbr.rel (%p362) target = $region44
      $region43: #{_lambda_.7} parent=39 // pred_region
        %365 = vst [vmem:[#allocation2] sm:$0xff] 0.0
        %366 = vst [vmem:[#allocation2 + $0x8] sm:$0xff] 0.0
        %367 = vst [vmem:[#allocation2 + $0x10] sm:$0xff] 0.0
        %368 = vst [vmem:[#allocation2 + $0x18] sm:$0xff] 0.0
        %369 = vst [vmem:[#allocation2 + $0x20] sm:$0xff] 0.0
        %370 = vst [vmem:[#allocation2 + $0x28] sm:$0xff] 0.0
        %371 = vst [vmem:[#allocation2 + $0x30] sm:$0xff] 0.0
        %372 = vst [vmem:[#allocation2 + $0x38] sm:$0xff] 0.0
        %373 = vst [vmem:[#allocation2 + $0x40] sm:$0xff] 0.0
        %374 = vst [vmem:[#allocation2 + $0x48] sm:$0xff] 0.0
        %375 = vst [vmem:[#allocation2 + $0x50] sm:$0xff] 0.0
        %376 = vst [vmem:[#allocation2 + $0x58] sm:$0xff] 0.0
        %377 = vst [vmem:[#allocation2 + $0x60] sm:$0xff] 0.0
        %378 = vst [vmem:[#allocation2 + $0x68] sm:$0xff] 0.0
        %379 = vst [vmem:[#allocation2 + $0x70] sm:$0xff] 0.0
        %380 = vst [vmem:[#allocation2 + $0x78] sm:$0xff] 0.0
        %381 = vst [vmem:[#allocation2 + $0x80] sm:$0xff] 0.0
        %382 = vst [vmem:[#allocation2 + $0x88] sm:$0xff] 0.0
        %383 = vst [vmem:[#allocation2 + $0x90] sm:$0xff] 0.0
        %384 = vst [vmem:[#allocation2 + $0x98] sm:$0xff] 0.0
        %385 = vst [vmem:[#allocation2 + $0xa0] sm:$0xff] 0.0
        %386 = vst [vmem:[#allocation2 + $0xa8] sm:$0xff] 0.0
        %387 = vst [vmem:[#allocation2 + $0xb0] sm:$0xff] 0.0
        %388 = vst [vmem:[#allocation2 + $0xb8] sm:$0xff] 0.0
        %389 = vst [vmem:[#allocation2 + $0xc0] sm:$0xff] 0.0
        %390 = vst [vmem:[#allocation2 + $0xc8] sm:$0xff] 0.0
        %391 = vst [vmem:[#allocation2 + $0xd0] sm:$0xff] 0.0
        %392 = vst [vmem:[#allocation2 + $0xd8] sm:$0xff] 0.0
        %393 = vst [vmem:[#allocation2 + $0xe0] sm:$0xff] 0.0
        %394 = vst [vmem:[#allocation2 + $0xe8] sm:$0xff] 0.0
        %395 = vst [vmem:[#allocation2 + $0xf0] sm:$0xff] 0.0
        %396 = vst [vmem:[#allocation2 + $0xf8] sm:$0xff] 0.0
      $region44: #{_lambda_.7} parent=39 // pred_fallthru
        _
      %v397 = vld [vmem:[#allocation2] sm:$0xff]
      %v398 = vld [vmem:[#allocation2 + $0x8] sm:$0xff]
      %v399 = vld [vmem:[#allocation2 + $0x10] sm:$0xff]
      %v400 = vld [vmem:[#allocation2 + $0x18] sm:$0xff]
      %v401 = vld [vmem:[#allocation2 + $0x20] sm:$0xff]
      %v402 = vld [vmem:[#allocation2 + $0x28] sm:$0xff]
      %v403 = vld [vmem:[#allocation2 + $0x30] sm:$0xff]
      %v404 = vld [vmem:[#allocation2 + $0x38] sm:$0xff]
      %v405 = vld [vmem:[#allocation2 + $0x40] sm:$0xff]
      %v406 = vld [vmem:[#allocation2 + $0x48] sm:$0xff]
      %v407 = vld [vmem:[#allocation2 + $0x50] sm:$0xff]
      %v408 = vld [vmem:[#allocation2 + $0x58] sm:$0xff]
      %v409 = vld [vmem:[#allocation2 + $0x60] sm:$0xff]
      %v410 = vld [vmem:[#allocation2 + $0x68] sm:$0xff]
      %v411 = vld [vmem:[#allocation2 + $0x70] sm:$0xff]
      %v412 = vld [vmem:[#allocation2 + $0x78] sm:$0xff]
      %v413 = vld [vmem:[#allocation2 + $0x80] sm:$0xff]
      %v414 = vld [vmem:[#allocation2 + $0x88] sm:$0xff]
      %v415 = vld [vmem:[#allocation2 + $0x90] sm:$0xff]
      %v416 = vld [vmem:[#allocation2 + $0x98] sm:$0xff]
      %v417 = vld [vmem:[#allocation2 + $0xa0] sm:$0xff]
      %v418 = vld [vmem:[#allocation2 + $0xa8] sm:$0xff]
      %v419 = vld [vmem:[#allocation2 + $0xb0] sm:$0xff]
      %v420 = vld [vmem:[#allocation2 + $0xb8] sm:$0xff]
      %v421 = vld [vmem:[#allocation2 + $0xc0] sm:$0xff]
      %v422 = vld [vmem:[#allocation2 + $0xc8] sm:$0xff]
      %v423 = vld [vmem:[#allocation2 + $0xd0] sm:$0xff]
      %v424 = vld [vmem:[#allocation2 + $0xd8] sm:$0xff]
      %v425 = vld [vmem:[#allocation2 + $0xe0] sm:$0xff]
      %v426 = vld [vmem:[#allocation2 + $0xe8] sm:$0xff]
      %v427 = vld [vmem:[#allocation2 + $0xf0] sm:$0xff]
      %v428 = vld [vmem:[#allocation2 + $0xf8] sm:$0xff]
      %v429 = vld [vmem:[%s325] sm:$0xf]
      %v430 = vld [vmem:[%s325 + $0x4] sm:$0xf]
      %v431 = vld [vmem:[%s325 + $0x8] sm:$0xf]
      %v432 = vld [vmem:[%s325 + $0xc] sm:$0xf]
      %v433 = vld [vmem:[%s325 + $0x10] sm:$0xf]
      %v434 = vld [vmem:[%s325 + $0x14] sm:$0xf]
      %v435 = vld [vmem:[%s325 + $0x18] sm:$0xf]
      %v436 = vld [vmem:[%s325 + $0x1c] sm:$0xf]
      %v437 = vld [vmem:[%s325 + $0x20] sm:$0xf]
      %v438 = vld [vmem:[%s325 + $0x24] sm:$0xf]
      %v439 = vld [vmem:[%s325 + $0x28] sm:$0xf]
      %v440 = vld [vmem:[%s325 + $0x2c] sm:$0xf]
      %v441 = vld [vmem:[%s325 + $0x30] sm:$0xf]
      %v442 = vld [vmem:[%s325 + $0x34] sm:$0xf]
      %v443 = vld [vmem:[%s325 + $0x38] sm:$0xf]
      %v444 = vld [vmem:[%s325 + $0x3c] sm:$0xf]
      %v445 = vld [vmem:[%s325 + $0x40] sm:$0xf]
      %v446 = vld [vmem:[%s325 + $0x44] sm:$0xf]
      %v447 = vld [vmem:[%s325 + $0x48] sm:$0xf]
      %v448 = vld [vmem:[%s325 + $0x4c] sm:$0xf]
      %v449 = vld [vmem:[%s325 + $0x50] sm:$0xf]
      %v450 = vld [vmem:[%s325 + $0x54] sm:$0xf]
      %v451 = vld [vmem:[%s325 + $0x58] sm:$0xf]
      %v452 = vld [vmem:[%s325 + $0x5c] sm:$0xf]
      %v453 = vld [vmem:[%s325 + $0x60] sm:$0xf]
      %v454 = vld [vmem:[%s325 + $0x64] sm:$0xf]
      %v455 = vld [vmem:[%s325 + $0x68] sm:$0xf]
      %v456 = vld [vmem:[%s325 + $0x6c] sm:$0xf]
      %v457 = vld [vmem:[%s325 + $0x70] sm:$0xf]
      %v458 = vld [vmem:[%s325 + $0x74] sm:$0xf]
      %v459 = vld [vmem:[%s325 + $0x78] sm:$0xf]
      %v460 = vld [vmem:[%s325 + $0x7c] sm:$0xf]
      %v461 = vld [vmem:[%s334] sm:$0xf]
      %v462 = vld [vmem:[%s334 + $0x4] sm:$0xf]
      %v463 = vld [vmem:[%s334 + $0x8] sm:$0xf]
      %v464 = vld [vmem:[%s334 + $0xc] sm:$0xf]
      %v465 = vld [vmem:[%s334 + $0x10] sm:$0xf]
      %v466 = vld [vmem:[%s334 + $0x14] sm:$0xf]
      %v467 = vld [vmem:[%s334 + $0x18] sm:$0xf]
      %v468 = vld [vmem:[%s334 + $0x1c] sm:$0xf]
      %v501 = vunpack.c.l.b16 %v429
      %v502 = vunpack.c.l.b16 %v430
      %v503 = vunpack.c.l.b16 %v431
      %v504 = vunpack.c.l.b16 %v432
      %v505 = vunpack.c.l.b16 %v433
      %v506 = vunpack.c.l.b16 %v434
      %v507 = vunpack.c.l.b16 %v435
      %v508 = vunpack.c.l.b16 %v436
      %v509 = vunpack.c.l.b16 %v437
      %v510 = vunpack.c.l.b16 %v438
      %v511 = vunpack.c.l.b16 %v439
      %v512 = vunpack.c.l.b16 %v440
      %v513 = vunpack.c.l.b16 %v441
      %v514 = vunpack.c.l.b16 %v442
      %v515 = vunpack.c.l.b16 %v443
      %v516 = vunpack.c.l.b16 %v444
      %v517 = vunpack.c.l.b16 %v445
      %v518 = vunpack.c.l.b16 %v446
      %v519 = vunpack.c.l.b16 %v447
      %v520 = vunpack.c.l.b16 %v448
      %v521 = vunpack.c.l.b16 %v449
      %v522 = vunpack.c.l.b16 %v450
      %v523 = vunpack.c.l.b16 %v451
      %v524 = vunpack.c.l.b16 %v452
      %v525 = vunpack.c.l.b16 %v453
      %v526 = vunpack.c.l.b16 %v454
      %v527 = vunpack.c.l.b16 %v455
      %v528 = vunpack.c.l.b16 %v456
      %v529 = vunpack.c.l.b16 %v457
      %v530 = vunpack.c.l.b16 %v458
      %v531 = vunpack.c.l.b16 %v459
      %v532 = vunpack.c.l.b16 %v460
      %v533 = vpack.c.b16 %v502, %v501
      %v534 = vpack.c.b16 %v504, %v503
      %v535 = vpack.c.b16 %v506, %v505
      %v536 = vpack.c.b16 %v508, %v507
      %v537 = vpack.c.b16 %v510, %v509
      %v538 = vpack.c.b16 %v512, %v511
      %v539 = vpack.c.b16 %v514, %v513
      %v540 = vpack.c.b16 %v516, %v515
      %v541 = vpack.c.b16 %v518, %v517
      %v542 = vpack.c.b16 %v520, %v519
      %v543 = vpack.c.b16 %v522, %v521
      %v544 = vpack.c.b16 %v524, %v523
      %v545 = vpack.c.b16 %v526, %v525
      %v546 = vpack.c.b16 %v528, %v527
      %v547 = vpack.c.b16 %v530, %v529
      %v548 = vpack.c.b16 %v532, %v531
      %v557 = vunpack.c.l.b16 %v461
      %v558 = vunpack.c.l.b16 %v462
      %v559 = vunpack.c.l.b16 %v463
      %v560 = vunpack.c.l.b16 %v464
      %v561 = vunpack.c.l.b16 %v465
      %v562 = vunpack.c.l.b16 %v466
      %v563 = vunpack.c.l.b16 %v467
      %v564 = vunpack.c.l.b16 %v468
      %v565 = vpack.c.b16 %v558, %v557
      %v566 = vpack.c.b16 %v560, %v559
      %v567 = vpack.c.b16 %v562, %v561
      %v568 = vpack.c.b16 %v564, %v563
      %vm573 = vcmask 523264
      %v575 = vsel %vm573, %v533, 0
      %v578 = vsel %vm573, %v534, 0
      %v581 = vsel %vm573, %v535, 0
      %v584 = vsel %vm573, %v536, 0
      %v587 = vsel %vm573, %v537, 0
      %v590 = vsel %vm573, %v538, 0
      %v593 = vsel %vm573, %v539, 0
      %v596 = vsel %vm573, %v540, 0
      %v599 = vsel %vm573, %v541, 0
      %v602 = vsel %vm573, %v542, 0
      %v605 = vsel %vm573, %v543, 0
      %v608 = vsel %vm573, %v544, 0
      %v611 = vsel %vm573, %v545, 0
      %v614 = vsel %vm573, %v546, 0
      %v617 = vsel %vm573, %v547, 0
      %v620 = vsel %vm573, %v548, 0
      %622 = vmatprep.subr.bf16.mxu0 0
      %623 = vmatpush1.bf16.msra.mxu0 0
      %624 = vmatprep.subr.bf16.mxu0 0
      %625 = vmatpush1.bf16.msra.mxu0 0
      %626 = vmatprep.subr.bf16.mxu0 0
      %627 = vmatpush1.bf16.msra.mxu0 0
      %628 = vmatprep.subr.bf16.mxu0 0
      %629 = vmatpush1.bf16.msra.mxu0 0
      %630 = vmatprep.subr.bf16.mxu0 0
      %631 = vmatpush1.bf16.msra.mxu0 %v568
      %632 = vmatprep.subr.bf16.mxu0 0
      %633 = vmatpush1.bf16.msra.mxu0 %v567
      %634 = vmatprep.subr.bf16.mxu0 0
      %635 = vmatpush1.bf16.msra.mxu0 %v566
      %636 = vmatprep.subr.bf16.mxu0 0
      %637 = vmatpush1.bf16.msra.mxu0 %v565
      %638 = vmatprep.subr.bf16.mxu0 0
      %639 = vmatpush2.bf16.msra.mxu0 0
      %640 = vmatprep.subr.bf16.mxu0 0
      %641 = vmatpush2.bf16.msra.mxu0 0
      %642 = vmatprep.subr.bf16.mxu0 0
      %643 = vmatpush2.bf16.msra.mxu0 0
      %644 = vmatprep.subr.bf16.mxu0 0
      %645 = vmatpush2.bf16.msra.mxu0 0
      %646 = vmatprep.subr.bf16.mxu0 0
      %647 = vmatpush2.bf16.msra.mxu0 0
      %648 = vmatprep.subr.bf16.mxu0 0
      %649 = vmatpush2.bf16.msra.mxu0 0
      %650 = vmatprep.subr.bf16.mxu0 0
      %651 = vmatpush2.bf16.msra.mxu0 0
      %652 = vmatprep.subr.bf16.mxu0 0
      %653 = vmatpush2.bf16.msra.mxu0 0
      %654 = vmatprep.mubr.bf16.mxu0 0
      %655 = vmatmul.mubr.bf16.gmra.mxu0 %v575
      %v656 = vpop.f32.mrf.mxu0
      %v657 = vadd.f32 0.0, %v656
      %v658 = vpop.f32.mrf.mxu0
      %v659 = vpop.f32.mrf.mxu0
      %v660 = vadd.f32 0.0, %v659
      %v661 = vpop.f32.mrf.mxu0
      %662 = vmatprep.mubr.bf16.mxu0 0
      %663 = vmatmul.mubr.bf16.gmra.mxu0 %v578
      %v664 = vpop.f32.mrf.mxu0
      %v665 = vadd.f32 0.0, %v664
      %v666 = vpop.f32.mrf.mxu0
      %v667 = vpop.f32.mrf.mxu0
      %v668 = vadd.f32 0.0, %v667
      %v669 = vpop.f32.mrf.mxu0
      %670 = vmatprep.mubr.bf16.mxu0 0
      %671 = vmatmul.mubr.bf16.gmra.mxu0 %v581
      %v672 = vpop.f32.mrf.mxu0
      %v673 = vadd.f32 0.0, %v672
      %v674 = vpop.f32.mrf.mxu0
      %v675 = vpop.f32.mrf.mxu0
      %v676 = vadd.f32 0.0, %v675
      %v677 = vpop.f32.mrf.mxu0
      %678 = vmatprep.mubr.bf16.mxu0 0
      %679 = vmatmul.mubr.bf16.gmra.mxu0 %v584
      %v680 = vpop.f32.mrf.mxu0
      %v681 = vadd.f32 0.0, %v680
      %v682 = vpop.f32.mrf.mxu0
      %v683 = vpop.f32.mrf.mxu0
      %v684 = vadd.f32 0.0, %v683
      %v685 = vpop.f32.mrf.mxu0
      %686 = vmatprep.mubr.bf16.mxu0 0
      %687 = vmatmul.mubr.bf16.gmra.mxu0 %v587
      %v688 = vpop.f32.mrf.mxu0
      %v689 = vadd.f32 0.0, %v688
      %v690 = vpop.f32.mrf.mxu0
      %v691 = vpop.f32.mrf.mxu0
      %v692 = vadd.f32 0.0, %v691
      %v693 = vpop.f32.mrf.mxu0
      %694 = vmatprep.mubr.bf16.mxu0 0
      %695 = vmatmul.mubr.bf16.gmra.mxu0 %v590
      %v696 = vpop.f32.mrf.mxu0
      %v697 = vadd.f32 0.0, %v696
      %v698 = vpop.f32.mrf.mxu0
      %v699 = vpop.f32.mrf.mxu0
      %v700 = vadd.f32 0.0, %v699
      %v701 = vpop.f32.mrf.mxu0
      %702 = vmatprep.mubr.bf16.mxu0 0
      %703 = vmatmul.mubr.bf16.gmra.mxu0 %v593
      %v704 = vpop.f32.mrf.mxu0
      %v705 = vadd.f32 0.0, %v704
      %v706 = vpop.f32.mrf.mxu0
      %v707 = vpop.f32.mrf.mxu0
      %v708 = vadd.f32 0.0, %v707
      %v709 = vpop.f32.mrf.mxu0
      %710 = vmatprep.mubr.bf16.mxu0 0
      %711 = vmatmul.mubr.bf16.gmra.mxu0 %v596
      %v712 = vpop.f32.mrf.mxu0
      %v713 = vadd.f32 0.0, %v712
      %v714 = vpop.f32.mrf.mxu0
      %v715 = vpop.f32.mrf.mxu0
      %v716 = vadd.f32 0.0, %v715
      %v717 = vpop.f32.mrf.mxu0
      %718 = vmatprep.mubr.bf16.mxu0 0
      %719 = vmatmul.mubr.bf16.gmra.mxu0 %v599
      %v720 = vpop.f32.mrf.mxu0
      %v721 = vadd.f32 0.0, %v720
      %v722 = vpop.f32.mrf.mxu0
      %v723 = vpop.f32.mrf.mxu0
      %v724 = vadd.f32 0.0, %v723
      %v725 = vpop.f32.mrf.mxu0
      %726 = vmatprep.mubr.bf16.mxu0 0
      %727 = vmatmul.mubr.bf16.gmra.mxu0 %v602
      %v728 = vpop.f32.mrf.mxu0
      %v729 = vadd.f32 0.0, %v728
      %v730 = vpop.f32.mrf.mxu0
      %v731 = vpop.f32.mrf.mxu0
      %v732 = vadd.f32 0.0, %v731
      %v733 = vpop.f32.mrf.mxu0
      %734 = vmatprep.mubr.bf16.mxu0 0
      %735 = vmatmul.mubr.bf16.gmra.mxu0 %v605
      %v736 = vpop.f32.mrf.mxu0
      %v737 = vadd.f32 0.0, %v736
      %v738 = vpop.f32.mrf.mxu0
      %v739 = vpop.f32.mrf.mxu0
      %v740 = vadd.f32 0.0, %v739
      %v741 = vpop.f32.mrf.mxu0
      %742 = vmatprep.mubr.bf16.mxu0 0
      %743 = vmatmul.mubr.bf16.gmra.mxu0 %v608
      %v744 = vpop.f32.mrf.mxu0
      %v745 = vadd.f32 0.0, %v744
      %v746 = vpop.f32.mrf.mxu0
      %v747 = vpop.f32.mrf.mxu0
      %v748 = vadd.f32 0.0, %v747
      %v749 = vpop.f32.mrf.mxu0
      %750 = vmatprep.mubr.bf16.mxu0 0
      %751 = vmatmul.mubr.bf16.gmra.mxu0 %v611
      %v752 = vpop.f32.mrf.mxu0
      %v753 = vadd.f32 0.0, %v752
      %v754 = vpop.f32.mrf.mxu0
      %v755 = vpop.f32.mrf.mxu0
      %v756 = vadd.f32 0.0, %v755
      %v757 = vpop.f32.mrf.mxu0
      %758 = vmatprep.mubr.bf16.mxu0 0
      %759 = vmatmul.mubr.bf16.gmra.mxu0 %v614
      %v760 = vpop.f32.mrf.mxu0
      %v761 = vadd.f32 0.0, %v760
      %v762 = vpop.f32.mrf.mxu0
      %v763 = vpop.f32.mrf.mxu0
      %v764 = vadd.f32 0.0, %v763
      %v765 = vpop.f32.mrf.mxu0
      %766 = vmatprep.mubr.bf16.mxu0 0
      %767 = vmatmul.mubr.bf16.gmra.mxu0 %v617
      %v768 = vpop.f32.mrf.mxu0
      %v769 = vadd.f32 0.0, %v768
      %v770 = vpop.f32.mrf.mxu0
      %v771 = vpop.f32.mrf.mxu0
      %v772 = vadd.f32 0.0, %v771
      %v773 = vpop.f32.mrf.mxu0
      %774 = vmatprep.mubr.bf16.mxu0 0
      %775 = vmatmul.mubr.bf16.gmra.mxu0 %v620
      %v776 = vpop.f32.mrf.mxu0
      %v777 = vadd.f32 0.0, %v776
      %v778 = vpop.f32.mrf.mxu0
      %v779 = vpop.f32.mrf.mxu0
      %v780 = vadd.f32 0.0, %v779
      %v781 = vpop.f32.mrf.mxu0
      %782 = vdwg.mxu0
      %v783 = vadd.f32 %v397, %v657
      %v784 = vadd.f32 %v398, %v660
      %v785 = vadd.f32 %v399, %v665
      %v786 = vadd.f32 %v400, %v668
      %v787 = vadd.f32 %v401, %v673
      %v788 = vadd.f32 %v402, %v676
      %v789 = vadd.f32 %v403, %v681
      %v790 = vadd.f32 %v404, %v684
      %v791 = vadd.f32 %v405, %v689
      %v792 = vadd.f32 %v406, %v692
      %v793 = vadd.f32 %v407, %v697
      %v794 = vadd.f32 %v408, %v700
      %v795 = vadd.f32 %v409, %v705
      %v796 = vadd.f32 %v410, %v708
      %v797 = vadd.f32 %v411, %v713
      %v798 = vadd.f32 %v412, %v716
      %v799 = vadd.f32 %v413, %v721
      %v800 = vadd.f32 %v414, %v724
      %v801 = vadd.f32 %v415, %v729
      %v802 = vadd.f32 %v416, %v732
      %v803 = vadd.f32 %v417, %v737
      %v804 = vadd.f32 %v418, %v740
      %v805 = vadd.f32 %v419, %v745
      %v806 = vadd.f32 %v420, %v748
      %v807 = vadd.f32 %v421, %v753
      %v808 = vadd.f32 %v422, %v756
      %v809 = vadd.f32 %v423, %v761
      %v810 = vadd.f32 %v424, %v764
      %v811 = vadd.f32 %v425, %v769
      %v812 = vadd.f32 %v426, %v772
      %v813 = vadd.f32 %v427, %v777
      %v814 = vadd.f32 %v428, %v780
      %815 = vst [vmem:[#allocation2] sm:$0xff] %v783
      %816 = vst [vmem:[#allocation2 + $0x8] sm:$0xff] %v784
      %817 = vst [vmem:[#allocation2 + $0x10] sm:$0xff] %v785
      %818 = vst [vmem:[#allocation2 + $0x18] sm:$0xff] %v786
      %819 = vst [vmem:[#allocation2 + $0x20] sm:$0xff] %v787
      %820 = vst [vmem:[#allocation2 + $0x28] sm:$0xff] %v788
      %821 = vst [vmem:[#allocation2 + $0x30] sm:$0xff] %v789
      %822 = vst [vmem:[#allocation2 + $0x38] sm:$0xff] %v790
      %823 = vst [vmem:[#allocation2 + $0x40] sm:$0xff] %v791
      %824 = vst [vmem:[#allocation2 + $0x48] sm:$0xff] %v792
      %825 = vst [vmem:[#allocation2 + $0x50] sm:$0xff] %v793
      %826 = vst [vmem:[#allocation2 + $0x58] sm:$0xff] %v794
      %827 = vst [vmem:[#allocation2 + $0x60] sm:$0xff] %v795
      %828 = vst [vmem:[#allocation2 + $0x68] sm:$0xff] %v796
      %829 = vst [vmem:[#allocation2 + $0x70] sm:$0xff] %v797
      %830 = vst [vmem:[#allocation2 + $0x78] sm:$0xff] %v798
      %831 = vst [vmem:[#allocation2 + $0x80] sm:$0xff] %v799
      %832 = vst [vmem:[#allocation2 + $0x88] sm:$0xff] %v800
      %833 = vst [vmem:[#allocation2 + $0x90] sm:$0xff] %v801
      %834 = vst [vmem:[#allocation2 + $0x98] sm:$0xff] %v802
      %835 = vst [vmem:[#allocation2 + $0xa0] sm:$0xff] %v803
      %836 = vst [vmem:[#allocation2 + $0xa8] sm:$0xff] %v804
      %837 = vst [vmem:[#allocation2 + $0xb0] sm:$0xff] %v805
      %838 = vst [vmem:[#allocation2 + $0xb8] sm:$0xff] %v806
      %839 = vst [vmem:[#allocation2 + $0xc0] sm:$0xff] %v807
      %840 = vst [vmem:[#allocation2 + $0xc8] sm:$0xff] %v808
      %841 = vst [vmem:[#allocation2 + $0xd0] sm:$0xff] %v809
      %842 = vst [vmem:[#allocation2 + $0xd8] sm:$0xff] %v810
      %843 = vst [vmem:[#allocation2 + $0xe0] sm:$0xff] %v811
      %844 = vst [vmem:[#allocation2 + $0xe8] sm:$0xff] %v812
      %845 = vst [vmem:[#allocation2 + $0xf0] sm:$0xff] %v813
      %846 = vst [vmem:[#allocation2 + $0xf8] sm:$0xff] %v814
      // Predicated region
      $region45: #{_lambda_.7} parent=39 // pred_check
        %p847 = pneg %p361
      $region46: #{_lambda_.7} parent=39 // pred_check_branch
        %849 = sbr.rel (%p847) target = $region48
      $region47: #{_lambda_.7} parent=39 // pred_region
        %v850 = vld [vmem:[#allocation2] sm:$0xff]
        %v851 = vld [vmem:[#allocation2 + $0x8] sm:$0xff]
        %v852 = vld [vmem:[#allocation2 + $0x10] sm:$0xff]
        %v853 = vld [vmem:[#allocation2 + $0x18] sm:$0xff]
        %v854 = vld [vmem:[#allocation2 + $0x20] sm:$0xff]
        %v855 = vld [vmem:[#allocation2 + $0x28] sm:$0xff]
        %v856 = vld [vmem:[#allocation2 + $0x30] sm:$0xff]
        %v857 = vld [vmem:[#allocation2 + $0x38] sm:$0xff]
        %v858 = vld [vmem:[#allocation2 + $0x40] sm:$0xff]
        %v859 = vld [vmem:[#allocation2 + $0x48] sm:$0xff]
        %v860 = vld [vmem:[#allocation2 + $0x50] sm:$0xff]
        %v861 = vld [vmem:[#allocation2 + $0x58] sm:$0xff]
        %v862 = vld [vmem:[#allocation2 + $0x60] sm:$0xff]
        %v863 = vld [vmem:[#allocation2 + $0x68] sm:$0xff]
        %v864 = vld [vmem:[#allocation2 + $0x70] sm:$0xff]
        %v865 = vld [vmem:[#allocation2 + $0x78] sm:$0xff]
        %v866 = vld [vmem:[#allocation2 + $0x80] sm:$0xff]
        %v867 = vld [vmem:[#allocation2 + $0x88] sm:$0xff]
        %v868 = vld [vmem:[#allocation2 + $0x90] sm:$0xff]
        %v869 = vld [vmem:[#allocation2 + $0x98] sm:$0xff]
        %v870 = vld [vmem:[#allocation2 + $0xa0] sm:$0xff]
        %v871 = vld [vmem:[#allocation2 + $0xa8] sm:$0xff]
        %v872 = vld [vmem:[#allocation2 + $0xb0] sm:$0xff]
        %v873 = vld [vmem:[#allocation2 + $0xb8] sm:$0xff]
        %v874 = vld [vmem:[#allocation2 + $0xc0] sm:$0xff]
        %v875 = vld [vmem:[#allocation2 + $0xc8] sm:$0xff]
        %v876 = vld [vmem:[#allocation2 + $0xd0] sm:$0xff]
        %v877 = vld [vmem:[#allocation2 + $0xd8] sm:$0xff]
        %v878 = vld [vmem:[#allocation2 + $0xe0] sm:$0xff]
        %v879 = vld [vmem:[#allocation2 + $0xe8] sm:$0xff]
        %v880 = vld [vmem:[#allocation2 + $0xf0] sm:$0xff]
        %v881 = vld [vmem:[#allocation2 + $0xf8] sm:$0xff]
        %v882 = vld [vmem:[%s338] sm:$0x1]
        %v884 = vlaneseq
        %v885 = vshrl.u32 %v884, 7
        %v886 = vsub.s32 0, %v885
        %v887 = vrot.slane %v882, %v886
        %v889 = vmul.f32 %v850, %v887
        %v890 = vmul.f32 %v851, %v887
        %v891 = vmul.f32 %v852, %v887
        %v892 = vmul.f32 %v853, %v887
        %v893 = vmul.f32 %v854, %v887
        %v894 = vmul.f32 %v855, %v887
        %v895 = vmul.f32 %v856, %v887
        %v896 = vmul.f32 %v857, %v887
        %v897 = vmul.f32 %v858, %v887
        %v898 = vmul.f32 %v859, %v887
        %v899 = vmul.f32 %v860, %v887
        %v900 = vmul.f32 %v861, %v887
        %v901 = vmul.f32 %v862, %v887
        %v902 = vmul.f32 %v863, %v887
        %v903 = vmul.f32 %v864, %v887
        %v904 = vmul.f32 %v865, %v887
        %v905 = vmul.f32 %v866, %v887
        %v906 = vmul.f32 %v867, %v887
        %v907 = vmul.f32 %v868, %v887
        %v908 = vmul.f32 %v869, %v887
        %v909 = vmul.f32 %v870, %v887
        %v910 = vmul.f32 %v871, %v887
        %v911 = vmul.f32 %v872, %v887
        %v912 = vmul.f32 %v873, %v887
        %v913 = vmul.f32 %v874, %v887
        %v914 = vmul.f32 %v875, %v887
        %v915 = vmul.f32 %v876, %v887
        %v916 = vmul.f32 %v877, %v887
        %v917 = vmul.f32 %v878, %v887
        %v918 = vmul.f32 %v879, %v887
        %v919 = vmul.f32 %v880, %v887
        %v920 = vmul.f32 %v881, %v887
        %v921 = vld [vmem:[%s341] sm:$0x1]
        %v923 = vlaneseq
        %v924 = vshrl.u32 %v923, 7
        %v925 = vsub.s32 0, %v924
        %v926 = vrot.slane %v921, %v925
        %v928 = vadd.f32 %v889, %v926
        %v929 = vadd.f32 %v890, %v926
        %v930 = vadd.f32 %v891, %v926
        %v931 = vadd.f32 %v892, %v926
        %v932 = vadd.f32 %v893, %v926
        %v933 = vadd.f32 %v894, %v926
        %v934 = vadd.f32 %v895, %v926
        %v935 = vadd.f32 %v896, %v926
        %v936 = vadd.f32 %v897, %v926
        %v937 = vadd.f32 %v898, %v926
        %v938 = vadd.f32 %v899, %v926
        %v939 = vadd.f32 %v900, %v926
        %v940 = vadd.f32 %v901, %v926
        %v941 = vadd.f32 %v902, %v926
        %v942 = vadd.f32 %v903, %v926
        %v943 = vadd.f32 %v904, %v926
        %v944 = vadd.f32 %v905, %v926
        %v945 = vadd.f32 %v906, %v926
        %v946 = vadd.f32 %v907, %v926
        %v947 = vadd.f32 %v908, %v926
        %v948 = vadd.f32 %v909, %v926
        %v949 = vadd.f32 %v910, %v926
        %v950 = vadd.f32 %v911, %v926
        %v951 = vadd.f32 %v912, %v926
        %v952 = vadd.f32 %v913, %v926
        %v953 = vadd.f32 %v914, %v926
        %v954 = vadd.f32 %v915, %v926
        %v955 = vadd.f32 %v916, %v926
        %v956 = vadd.f32 %v917, %v926
        %v957 = vadd.f32 %v918, %v926
        %v958 = vadd.f32 %v919, %v926
        %v959 = vadd.f32 %v920, %v926
        %v960 = vld [vmem:[%s349] sm:$0xf]
        %v961 = vld [vmem:[%s349 + $0x4] sm:$0xf]
        %v962 = vld [vmem:[%s349 + $0x8] sm:$0xf]
        %v963 = vld [vmem:[%s349 + $0xc] sm:$0xf]
        %v964 = vld [vmem:[%s349 + $0x10] sm:$0xf]
        %v965 = vld [vmem:[%s349 + $0x14] sm:$0xf]
        %v966 = vld [vmem:[%s349 + $0x18] sm:$0xf]
        %v967 = vld [vmem:[%s349 + $0x1c] sm:$0xf]
        %v968 = vld [vmem:[%s349 + $0x20] sm:$0xf]
        %v969 = vld [vmem:[%s349 + $0x24] sm:$0xf]
        %v970 = vld [vmem:[%s349 + $0x28] sm:$0xf]
        %v971 = vld [vmem:[%s349 + $0x2c] sm:$0xf]
        %v972 = vld [vmem:[%s349 + $0x30] sm:$0xf]
        %v973 = vld [vmem:[%s349 + $0x34] sm:$0xf]
        %v974 = vld [vmem:[%s349 + $0x38] sm:$0xf]
        %v975 = vld [vmem:[%s349 + $0x3c] sm:$0xf]
        %v976 = vld [vmem:[%s349 + $0x40] sm:$0xf]
        %v977 = vld [vmem:[%s349 + $0x44] sm:$0xf]
        %v978 = vld [vmem:[%s349 + $0x48] sm:$0xf]
        %v979 = vld [vmem:[%s349 + $0x4c] sm:$0xf]
        %v980 = vld [vmem:[%s349 + $0x50] sm:$0xf]
        %v981 = vld [vmem:[%s349 + $0x54] sm:$0xf]
        %v982 = vld [vmem:[%s349 + $0x58] sm:$0xf]
        %v983 = vld [vmem:[%s349 + $0x5c] sm:$0xf]
        %v984 = vld [vmem:[%s349 + $0x60] sm:$0xf]
        %v985 = vld [vmem:[%s349 + $0x64] sm:$0xf]
        %v986 = vld [vmem:[%s349 + $0x68] sm:$0xf]
        %v987 = vld [vmem:[%s349 + $0x6c] sm:$0xf]
        %v988 = vld [vmem:[%s349 + $0x70] sm:$0xf]
        %v989 = vld [vmem:[%s349 + $0x74] sm:$0xf]
        %v990 = vld [vmem:[%s349 + $0x78] sm:$0xf]
        %v991 = vld [vmem:[%s349 + $0x7c] sm:$0xf]
        %v992 = vunpack.c.l.bf16 %v960
        %v993 = vunpack.c.l.bf16 %v961
        %v994 = vunpack.c.l.bf16 %v962
        %v995 = vunpack.c.l.bf16 %v963
        %v996 = vunpack.c.l.bf16 %v964
        %v997 = vunpack.c.l.bf16 %v965
        %v998 = vunpack.c.l.bf16 %v966
        %v999 = vunpack.c.l.bf16 %v967
        %v1000 = vunpack.c.l.bf16 %v968
        %v1001 = vunpack.c.l.bf16 %v969
        %v1002 = vunpack.c.l.bf16 %v970
        %v1003 = vunpack.c.l.bf16 %v971
        %v1004 = vunpack.c.l.bf16 %v972
        %v1005 = vunpack.c.l.bf16 %v973
        %v1006 = vunpack.c.l.bf16 %v974
        %v1007 = vunpack.c.l.bf16 %v975
        %v1008 = vunpack.c.l.bf16 %v976
        %v1009 = vunpack.c.l.bf16 %v977
        %v1010 = vunpack.c.l.bf16 %v978
        %v1011 = vunpack.c.l.bf16 %v979
        %v1012 = vunpack.c.l.bf16 %v980
        %v1013 = vunpack.c.l.bf16 %v981
        %v1014 = vunpack.c.l.bf16 %v982
        %v1015 = vunpack.c.l.bf16 %v983
        %v1016 = vunpack.c.l.bf16 %v984
        %v1017 = vunpack.c.l.bf16 %v985
        %v1018 = vunpack.c.l.bf16 %v986
        %v1019 = vunpack.c.l.bf16 %v987
        %v1020 = vunpack.c.l.bf16 %v988
        %v1021 = vunpack.c.l.bf16 %v989
        %v1022 = vunpack.c.l.bf16 %v990
        %v1023 = vunpack.c.l.bf16 %v991
        %v1024 = vadd.f32 %v928, %v992
        %v1025 = vadd.f32 %v929, %v993
        %v1026 = vadd.f32 %v930, %v994
        %v1027 = vadd.f32 %v931, %v995
        %v1028 = vadd.f32 %v932, %v996
        %v1029 = vadd.f32 %v933, %v997
        %v1030 = vadd.f32 %v934, %v998
        %v1031 = vadd.f32 %v935, %v999
        %v1032 = vadd.f32 %v936, %v1000
        %v1033 = vadd.f32 %v937, %v1001
        %v1034 = vadd.f32 %v938, %v1002
        %v1035 = vadd.f32 %v939, %v1003
        %v1036 = vadd.f32 %v940, %v1004
        %v1037 = vadd.f32 %v941, %v1005
        %v1038 = vadd.f32 %v942, %v1006
        %v1039 = vadd.f32 %v943, %v1007
        %v1040 = vadd.f32 %v944, %v1008
        %v1041 = vadd.f32 %v945, %v1009
        %v1042 = vadd.f32 %v946, %v1010
        %v1043 = vadd.f32 %v947, %v1011
        %v1044 = vadd.f32 %v948, %v1012
        %v1045 = vadd.f32 %v949, %v1013
        %v1046 = vadd.f32 %v950, %v1014
        %v1047 = vadd.f32 %v951, %v1015
        %v1048 = vadd.f32 %v952, %v1016
        %v1049 = vadd.f32 %v953, %v1017
        %v1050 = vadd.f32 %v954, %v1018
        %v1051 = vadd.f32 %v955, %v1019
        %v1052 = vadd.f32 %v956, %v1020
        %v1053 = vadd.f32 %v957, %v1021
        %v1054 = vadd.f32 %v958, %v1022
        %v1055 = vadd.f32 %v959, %v1023
        %v1056 = vmax.f32 %v1024, 0.0
        %v1057 = vmax.f32 %v1025, 0.0
        %v1058 = vmax.f32 %v1026, 0.0
        %v1059 = vmax.f32 %v1027, 0.0
        %v1060 = vmax.f32 %v1028, 0.0
        %v1061 = vmax.f32 %v1029, 0.0
        %v1062 = vmax.f32 %v1030, 0.0
        %v1063 = vmax.f32 %v1031, 0.0
        %v1064 = vmax.f32 %v1032, 0.0
        %v1065 = vmax.f32 %v1033, 0.0
        %v1066 = vmax.f32 %v1034, 0.0
        %v1067 = vmax.f32 %v1035, 0.0
        %v1068 = vmax.f32 %v1036, 0.0
        %v1069 = vmax.f32 %v1037, 0.0
        %v1070 = vmax.f32 %v1038, 0.0
        %v1071 = vmax.f32 %v1039, 0.0
        %v1072 = vmax.f32 %v1040, 0.0
        %v1073 = vmax.f32 %v1041, 0.0
        %v1074 = vmax.f32 %v1042, 0.0
        %v1075 = vmax.f32 %v1043, 0.0
        %v1076 = vmax.f32 %v1044, 0.0
        %v1077 = vmax.f32 %v1045, 0.0
        %v1078 = vmax.f32 %v1046, 0.0
        %v1079 = vmax.f32 %v1047, 0.0
        %v1080 = vmax.f32 %v1048, 0.0
        %v1081 = vmax.f32 %v1049, 0.0
        %v1082 = vmax.f32 %v1050, 0.0
        %v1083 = vmax.f32 %v1051, 0.0
        %v1084 = vmax.f32 %v1052, 0.0
        %v1085 = vmax.f32 %v1053, 0.0
        %v1086 = vmax.f32 %v1054, 0.0
        %v1087 = vmax.f32 %v1055, 0.0
        %v1088 = vpack.c.bf16 %v1057, %v1056
        %v1089 = vpack.c.bf16 %v1059, %v1058
        %v1090 = vpack.c.bf16 %v1061, %v1060
        %v1091 = vpack.c.bf16 %v1063, %v1062
        %v1092 = vpack.c.bf16 %v1065, %v1064
        %v1093 = vpack.c.bf16 %v1067, %v1066
        %v1094 = vpack.c.bf16 %v1069, %v1068
        %v1095 = vpack.c.bf16 %v1071, %v1070
        %v1096 = vpack.c.bf16 %v1073, %v1072
        %v1097 = vpack.c.bf16 %v1075, %v1074
        %v1098 = vpack.c.bf16 %v1077, %v1076
        %v1099 = vpack.c.bf16 %v1079, %v1078
        %v1100 = vpack.c.bf16 %v1081, %v1080
        %v1101 = vpack.c.bf16 %v1083, %v1082
        %v1102 = vpack.c.bf16 %v1085, %v1084
        %v1103 = vpack.c.bf16 %v1087, %v1086
        %v1120 = vunpack.c.l.b16 %v1088
        %v1121 = vunpack.c.h.b16 %v1088
        %v1122 = vunpack.c.l.b16 %v1089
        %v1123 = vunpack.c.h.b16 %v1089
        %v1124 = vunpack.c.l.b16 %v1090
        %v1125 = vunpack.c.h.b16 %v1090
        %v1126 = vunpack.c.l.b16 %v1091
        %v1127 = vunpack.c.h.b16 %v1091
        %v1128 = vunpack.c.l.b16 %v1092
        %v1129 = vunpack.c.h.b16 %v1092
        %v1130 = vunpack.c.l.b16 %v1093
        %v1131 = vunpack.c.h.b16 %v1093
        %v1132 = vunpack.c.l.b16 %v1094
        %v1133 = vunpack.c.h.b16 %v1094
        %v1134 = vunpack.c.l.b16 %v1095
        %v1135 = vunpack.c.h.b16 %v1095
        %v1136 = vunpack.c.l.b16 %v1096
        %v1137 = vunpack.c.h.b16 %v1096
        %v1138 = vunpack.c.l.b16 %v1097
        %v1139 = vunpack.c.h.b16 %v1097
        %v1140 = vunpack.c.l.b16 %v1098
        %v1141 = vunpack.c.h.b16 %v1098
        %v1142 = vunpack.c.l.b16 %v1099
        %v1143 = vunpack.c.h.b16 %v1099
        %v1144 = vunpack.c.l.b16 %v1100
        %v1145 = vunpack.c.h.b16 %v1100
        %v1146 = vunpack.c.l.b16 %v1101
        %v1147 = vunpack.c.h.b16 %v1101
        %v1148 = vunpack.c.l.b16 %v1102
        %v1149 = vunpack.c.h.b16 %v1102
        %v1150 = vunpack.c.l.b16 %v1103
        %v1151 = vunpack.c.h.b16 %v1103
        %v1152 = vpack.c.b16 %v1120, %v1120
        %v1153 = vpack.c.b16 %v1121, %v1121
        %v1154 = vpack.c.b16 %v1122, %v1122
        %v1155 = vpack.c.b16 %v1123, %v1123
        %v1156 = vpack.c.b16 %v1124, %v1124
        %v1157 = vpack.c.b16 %v1125, %v1125
        %v1158 = vpack.c.b16 %v1126, %v1126
        %v1159 = vpack.c.b16 %v1127, %v1127
        %v1160 = vpack.c.b16 %v1128, %v1128
        %v1161 = vpack.c.b16 %v1129, %v1129
        %v1162 = vpack.c.b16 %v1130, %v1130
        %v1163 = vpack.c.b16 %v1131, %v1131
        %v1164 = vpack.c.b16 %v1132, %v1132
        %v1165 = vpack.c.b16 %v1133, %v1133
        %v1166 = vpack.c.b16 %v1134, %v1134
        %v1167 = vpack.c.b16 %v1135, %v1135
        %v1168 = vpack.c.b16 %v1136, %v1136
        %v1169 = vpack.c.b16 %v1137, %v1137
        %v1170 = vpack.c.b16 %v1138, %v1138
        %v1171 = vpack.c.b16 %v1139, %v1139
        %v1172 = vpack.c.b16 %v1140, %v1140
        %v1173 = vpack.c.b16 %v1141, %v1141
        %v1174 = vpack.c.b16 %v1142, %v1142
        %v1175 = vpack.c.b16 %v1143, %v1143
        %v1176 = vpack.c.b16 %v1144, %v1144
        %v1177 = vpack.c.b16 %v1145, %v1145
        %v1178 = vpack.c.b16 %v1146, %v1146
        %v1179 = vpack.c.b16 %v1147, %v1147
        %v1180 = vpack.c.b16 %v1148, %v1148
        %v1181 = vpack.c.b16 %v1149, %v1149
        %v1182 = vpack.c.b16 %v1150, %v1150
        %v1183 = vpack.c.b16 %v1151, %v1151
        %1216 = vst [vmem:[%s358] sm:$0xf] %v1152
        %1217 = vst [vmem:[%s358 + $0x4] sm:$0xf] %v1153
        %1218 = vst [vmem:[%s358 + $0x8] sm:$0xf] %v1154
        %1219 = vst [vmem:[%s358 + $0xc] sm:$0xf] %v1155
        %1220 = vst [vmem:[%s358 + $0x10] sm:$0xf] %v1156
        %1221 = vst [vmem:[%s358 + $0x14] sm:$0xf] %v1157
        %1222 = vst [vmem:[%s358 + $0x18] sm:$0xf] %v1158
        %1223 = vst [vmem:[%s358 + $0x1c] sm:$0xf] %v1159
        %1224 = vst [vmem:[%s358 + $0x20] sm:$0xf] %v1160
        %1225 = vst [vmem:[%s358 + $0x24] sm:$0xf] %v1161
        %1226 = vst [vmem:[%s358 + $0x28] sm:$0xf] %v1162
        %1227 = vst [vmem:[%s358 + $0x2c] sm:$0xf] %v1163
        %1228 = vst [vmem:[%s358 + $0x30] sm:$0xf] %v1164
        %1229 = vst [vmem:[%s358 + $0x34] sm:$0xf] %v1165
        %1230 = vst [vmem:[%s358 + $0x38] sm:$0xf] %v1166
        %1231 = vst [vmem:[%s358 + $0x3c] sm:$0xf] %v1167
        %1232 = vst [vmem:[%s358 + $0x40] sm:$0xf] %v1168
        %1233 = vst [vmem:[%s358 + $0x44] sm:$0xf] %v1169
        %1234 = vst [vmem:[%s358 + $0x48] sm:$0xf] %v1170
        %1235 = vst [vmem:[%s358 + $0x4c] sm:$0xf] %v1171
        %1236 = vst [vmem:[%s358 + $0x50] sm:$0xf] %v1172
        %1237 = vst [vmem:[%s358 + $0x54] sm:$0xf] %v1173
        %1238 = vst [vmem:[%s358 + $0x58] sm:$0xf] %v1174
        %1239 = vst [vmem:[%s358 + $0x5c] sm:$0xf] %v1175
        %1240 = vst [vmem:[%s358 + $0x60] sm:$0xf] %v1176
        %1241 = vst [vmem:[%s358 + $0x64] sm:$0xf] %v1177
        %1242 = vst [vmem:[%s358 + $0x68] sm:$0xf] %v1178
        %1243 = vst [vmem:[%s358 + $0x6c] sm:$0xf] %v1179
        %1244 = vst [vmem:[%s358 + $0x70] sm:$0xf] %v1180
        %1245 = vst [vmem:[%s358 + $0x74] sm:$0xf] %v1181
        %1246 = vst [vmem:[%s358 + $0x78] sm:$0xf] %v1182
        %1247 = vst [vmem:[%s358 + $0x7c] sm:$0xf] %v1183
      $region48: #{_lambda_.7} parent=39 // pred_fallthru
        _
      %s1248 = smul.u32 32, %s21
      %p1249 = scmp.lt.s32.totalorder %s1248, 63
      %s1250 = scalar_select %p1249, %s1248, 63
      %p1251 = scmp.lt.s32.totalorder %s22, 0
      %s1252 = scalar_select %p1251, %s22, 0
      %s1253 = sadd.s32 %s1252, %s1250
      %s1254 = smul.addr %s1253, 4
      %s1255 = scalar_lea.vmem %s5, %s1254
      // Predicated region
      $region49: #{_lambda_.7} parent=39 // pred_check
        %p1256 = pneg %p191
      $region50: #{_lambda_.7} parent=39 // pred_check_branch
        %1258 = sbr.rel (%p1256) target = $region52
      $region51: #{_lambda_.7} parent=39 // pred_region
        %s1259 = smul.u32 32, %s21
      $region52: #{_lambda_.7} parent=39 // pred_fallthru
        _
    $region40: #{_lambda_.7} parent=5 // pred_fallthru
      _
    %p1260 = scmp.le.s32.totalorder 2, %s11
    // Predicated region
    $region53: #{_lambda_.7} parent=5 // pred_check
      %p1261 = pneg %p1260
    $region54: #{_lambda_.7} parent=5 // pred_check_branch
      %1263 = sbr.rel (%p1261) target = $region56
    $region55: #{_lambda_.7} parent=5 // pred_region
      %s1264 = ssub.s32 %s11, 2
      // Predicated region
      $region57: #{_lambda_.7} parent=55 // pred_check
        %p1265 = pneg %p197
      $region58: #{_lambda_.7} parent=55 // pred_check_branch
        %1267 = sbr.rel (%p1265) target = $region60
      $region59: #{_lambda_.7} parent=55 // pred_region
        %s1268 = smul.u32 32, %s24
        %p1269 = scmp.lt.s32.totalorder %s1268, 63
        %s1270 = scalar_select %p1269, %s1268, 63
        %p1271 = scmp.lt.s32.totalorder %s25, 0
        %s1272 = scalar_select %p1271, %s25, 0
        %s1273 = sadd.s32 %s1272, %s1270
        %s1274 = smul.addr %s1273, 4
        %s1275 = scalar_lea.vmem %s5, %s1274
      $region60: #{_lambda_.7} parent=55 // pred_fallthru
        _
    $region56: #{_lambda_.7} parent=5 // pred_fallthru
      _
  $region6: #{_lambda_.7} parent=0 // loop_footer
    %s15 = sadd.s32 1, %s11
  $region7: #{_lambda_.7} parent=0 // loop_footer_branch
    %10 = sbr.rel target = $region3
  $region8: #{_lambda_.7} parent=0 // loop_exit
    _

// kernel: _lambda_.5
$region0: #{_lambda_.5}
  #allocation0 [shape = 'u32[]', space=smem, size = 0x4, offset = 0x4, fixed_abs, tag = 'smem constant byte address 0x4 - core index']
  #allocation1 [shape = 'u32[144,128]{1,0:T(1,128)}', space=vmem, size = 0x12000, scoped, tag = 'internal scratch']
  #allocation2 [shape = 'f32[16,16,64]{2,1,0:T(8,128)}', space=vmem, size = 0x20000, scoped, tag = 'scratch operand']
  %s0 = inlined_call_operand.vmem [shape: bf16[2,18,18,64], index: 0, kind: input, shape index: {}]
  %s1 = inlined_call_operand.vmem [shape: bf16[9,64,64], index: 1, kind: input, shape index: {}]
  %s2 = inlined_call_operand.vmem [shape: f32[1,64], index: 2, kind: input, shape index: {}]
  %s3 = inlined_call_operand.vmem [shape: f32[1,64], index: 3, kind: input, shape index: {}]
  %s4 = inlined_call_operand.vmem [shape: bf16[2,16,16,64], index: 4, kind: output, shape index: {}]
  %s5 = sld [smem:[#allocation0]]
  $region57: #{_lambda_.5} parent=0
    _
  %s7 = ssub.s32 1, %s5
  %s8 = scalar_select 0, %s7, %s5
  loop: start=0, step=1, limit=4
  $region2: #{_lambda_.5} parent=0 // loop_pre_header
    _
  $region3: #{_lambda_.5} parent=0 // loop_header
    %s10 = sphi 0, %s14
    %p11 = scmp.ge.s32.totalorder %s10, 4
    %s17 = sphi 0, %s36
    %s18 = sphi 0, %s32
    %s19 = sphi 0, %s28
    %s20 = sphi 0, %s17
    %s21 = sphi 0, %s18
    %s22 = sphi 0, %s19
    %s23 = sphi 0, %s20
    %s24 = sphi 0, %s21
    %s25 = sphi 0, %s22
    %s41 = sphi 0, %s43
    %s44 = sphi 0, %s41
    %s45 = sphi 0, %s44
    %s61 = sphi 0, %s45
    %s69 = sphi 0, %s71
    %s72 = sphi 0, %s69
    %s73 = sphi 0, %s72
    %s89 = sphi 0, %s73
    %s95 = sphi 0, %s97
    %s98 = sphi 0, %s95
    %s99 = sphi 0, %s98
    %s115 = sphi 0, %s99
    %s121 = sphi 0, %s123
    %s124 = sphi 0, %s121
    %s125 = sphi 0, %s124
    %s141 = sphi 0, %s125
    %s149 = sphi 0, %s151
    %s152 = sphi 0, %s149
    %s153 = sphi 0, %s152
    %s169 = sphi 0, %s153
  $region4: #{_lambda_.5} parent=0 // loop_header_branch
    %13 = sbr.rel (%p11) target = $region8
  $region5: #{_lambda_.5} parent=0 // loop_body
    %s15 = ssub.s32 %s10, 1
    %s16 = ssub.s32 %s10, 2
    %s26 = sadd.s32 1, %s19
    %p27 = scmp.ge.s32.totalorder %s26, 1
    %s28 = scalar_select %p27, 0, %s26
    %s29 = sadd.s32 1, %s18
    %s30 = scalar_select %p27, %s29, %s18
    %p31 = scmp.ge.s32.totalorder %s30, 1
    %s32 = scalar_select %p31, 0, %s30
    %s33 = sadd.s32 1, %s17
    %s34 = scalar_select %p31, %s33, %s17
    %p35 = scmp.ge.s32.totalorder %s34, 2
    %s36 = scalar_select %p35, 0, %s34
    %s37 = ssub.s32 %s17, %s36
    %s38 = ssub.s32 %s19, %s28
    %s39 = sor.u32 %s37, %s38
    %p40 = scmp.eq.s32.totalorder %s39, 0
    %s42 = sadd.s32 %s41, 1
    %s43 = scalar_select %p40, %s41, %s42
    %p46 = pneg %p40
    %p47 = scmp.eq.s32.totalorder %s10, 1
    %p48 = por %p46, %p47
    %p49 = scmp.ne.s32.totalorder %s41, %s44
    %p50 = scmp.eq.s32.totalorder %s10, 0
    %p51 = por %p49, %p50
    %p52 = scmp.ne.s32.totalorder %s41, %s44
    %p53 = scmp.eq.s32.totalorder %s15, 1
    %p54 = por %p52, %p53
    %p55 = scmp.ne.s32.totalorder %s44, %s45
    %p56 = scmp.eq.s32.totalorder %s15, 0
    %p57 = por %p55, %p56
    %p58 = scmp.ne.s32.totalorder %s44, %s45
    %p59 = scmp.eq.s32.totalorder %s16, 1
    %p60 = por %p58, %p59
    %p62 = scmp.ne.s32.totalorder %s45, %s61
    %p63 = scmp.eq.s32.totalorder %s16, 0
    %p64 = por %p62, %p63
    %s65 = ssub.s32 %s19, %s28
    %s66 = ssub.s32 %s18, %s32
    %s67 = sor.u32 %s65, %s66
    %p68 = scmp.eq.s32.totalorder %s67, 0
    %s70 = sadd.s32 %s69, 1
    %s71 = scalar_select %p68, %s69, %s70
    %p74 = pneg %p68
    %p75 = scmp.eq.s32.totalorder %s10, 1
    %p76 = por %p74, %p75
    %p77 = scmp.ne.s32.totalorder %s69, %s72
    %p78 = scmp.eq.s32.totalorder %s10, 0
    %p79 = por %p77, %p78
    %p80 = scmp.ne.s32.totalorder %s69, %s72
    %p81 = scmp.eq.s32.totalorder %s15, 1
    %p82 = por %p80, %p81
    %p83 = scmp.ne.s32.totalorder %s72, %s73
    %p84 = scmp.eq.s32.totalorder %s15, 0
    %p85 = por %p83, %p84
    %p86 = scmp.ne.s32.totalorder %s72, %s73
    %p87 = scmp.eq.s32.totalorder %s16, 1
    %p88 = por %p86, %p87
    %p90 = scmp.ne.s32.totalorder %s73, %s89
    %p91 = scmp.eq.s32.totalorder %s16, 0
    %p92 = por %p90, %p91
    %s93 = ssub.s32 %s18, %s32
    %p94 = scmp.eq.s32.totalorder %s93, 0
    %s96 = sadd.s32 %s95, 1
    %s97 = scalar_select %p94, %s95, %s96
    %p100 = pneg %p94
    %p101 = scmp.eq.s32.totalorder %s10, 1
    %p102 = por %p100, %p101
    %p103 = scmp.ne.s32.totalorder %s95, %s98
    %p104 = scmp.eq.s32.totalorder %s10, 0
    %p105 = por %p103, %p104
    %p106 = scmp.ne.s32.totalorder %s95, %s98
    %p107 = scmp.eq.s32.totalorder %s15, 1
    %p108 = por %p106, %p107
    %p109 = scmp.ne.s32.totalorder %s98, %s99
    %p110 = scmp.eq.s32.totalorder %s15, 0
    %p111 = por %p109, %p110
    %p112 = scmp.ne.s32.totalorder %s98, %s99
    %p113 = scmp.eq.s32.totalorder %s16, 1
    %p114 = por %p112, %p113
    %p116 = scmp.ne.s32.totalorder %s99, %s115
    %p117 = scmp.eq.s32.totalorder %s16, 0
    %p118 = por %p116, %p117
    %s119 = ssub.s32 %s18, %s32
    %p120 = scmp.eq.s32.totalorder %s119, 0
    %s122 = sadd.s32 %s121, 1
    %s123 = scalar_select %p120, %s121, %s122
    %p126 = pneg %p120
    %p127 = scmp.eq.s32.totalorder %s10, 1
    %p128 = por %p126, %p127
    %p129 = scmp.ne.s32.totalorder %s121, %s124
    %p130 = scmp.eq.s32.totalorder %s10, 0
    %p131 = por %p129, %p130
    %p132 = scmp.ne.s32.totalorder %s121, %s124
    %p133 = scmp.eq.s32.totalorder %s15, 1
    %p134 = por %p132, %p133
    %p135 = scmp.ne.s32.totalorder %s124, %s125
    %p136 = scmp.eq.s32.totalorder %s15, 0
    %p137 = por %p135, %p136
    %p138 = scmp.ne.s32.totalorder %s124, %s125
    %p139 = scmp.eq.s32.totalorder %s16, 1
    %p140 = por %p138, %p139
    %p142 = scmp.ne.s32.totalorder %s125, %s141
    %p143 = scmp.eq.s32.totalorder %s16, 0
    %p144 = por %p142, %p143
    %s145 = ssub.s32 %s17, %s36
    %s146 = ssub.s32 %s18, %s32
    %s147 = sor.u32 %s145, %s146
    %p148 = scmp.eq.s32.totalorder %s147, 0
    %s150 = sadd.s32 %s149, 1
    %s151 = scalar_select %p148, %s149, %s150
    %p154 = pneg %p148
    %p155 = scmp.eq.s32.totalorder %s10, 1
    %p156 = por %p154, %p155
    %p157 = scmp.ne.s32.totalorder %s149, %s152
    %p158 = scmp.eq.s32.totalorder %s10, 0
    %p159 = por %p157, %p158
    %p160 = scmp.ne.s32.totalorder %s149, %s152
    %p161 = scmp.eq.s32.totalorder %s15, 1
    %p162 = por %p160, %p161
    %p163 = scmp.ne.s32.totalorder %s152, %s153
    %p164 = scmp.eq.s32.totalorder %s15, 0
    %p165 = por %p163, %p164
    %p166 = scmp.ne.s32.totalorder %s152, %s153
    %p167 = scmp.eq.s32.totalorder %s16, 1
    %p168 = por %p166, %p167
    %p170 = scmp.ne.s32.totalorder %s153, %s169
    %p171 = scmp.eq.s32.totalorder %s16, 0
    %p172 = por %p170, %p171
    %p173 = scmp.le.s32.totalorder 1, %s10
    %p174 = scmp.lt.s32.totalorder %s10, 3
    %p175 = pnand %p173, %p174
    %p176 = pneg %p175
    // Predicated region
    $region9: #{_lambda_.5} parent=5 // pred_check
      _
    $region10: #{_lambda_.5} parent=5 // pred_check_branch
      %178 = sbr.rel (%p175) target = $region12
    $region11: #{_lambda_.5} parent=5 // pred_region
      %s179 = ssub.s32 %s10, 1
      // Predicated region
      $region13: #{_lambda_.5} parent=11 // pred_check
        %p180 = pneg %p85
      $region14: #{_lambda_.5} parent=11 // pred_check_branch
        %182 = sbr.rel (%p180) target = $region16
      $region15: #{_lambda_.5} parent=11 // pred_region
        %s183 = smul.u32 8, %s22
        %p184 = scmp.lt.s32.totalorder %s183, 7
        %s185 = scalar_select %p184, %s183, 7
        %p186 = scmp.lt.s32.totalorder %s21, 0
        %s187 = scalar_select %p186, %s21, 0
        %s188 = sadd.s32 %s187, %s185
        %s189 = smul.addr %s188, 4
        %s190 = scalar_lea.vmem %s1, %s189
        %s191 = smul.u32 8, %s22
      $region16: #{_lambda_.5} parent=11 // pred_fallthru
        _
      // Predicated region
      $region17: #{_lambda_.5} parent=11 // pred_check
        %p192 = pneg %p111
      $region18: #{_lambda_.5} parent=11 // pred_check_branch
        %194 = sbr.rel (%p192) target = $region20
      $region19: #{_lambda_.5} parent=11 // pred_region
        %p195 = scmp.lt.s32.totalorder %s21, 0
        %s196 = scalar_select %p195, %s21, 0
        %s197 = scalar_lea.vmem %s2, %s196
      $region20: #{_lambda_.5} parent=11 // pred_fallthru
        _
      // Predicated region
      $region21: #{_lambda_.5} parent=11 // pred_check
        %p198 = pneg %p137
      $region22: #{_lambda_.5} parent=11 // pred_check_branch
        %200 = sbr.rel (%p198) target = $region24
      $region23: #{_lambda_.5} parent=11 // pred_region
        %p201 = scmp.lt.s32.totalorder %s21, 0
        %s202 = scalar_select %p201, %s21, 0
        %s203 = scalar_lea.vmem %s3, %s202
      $region24: #{_lambda_.5} parent=11 // pred_fallthru
        _
    $region12: #{_lambda_.5} parent=5 // pred_fallthru
      _
    %p204 = scmp.lt.s32.totalorder %s10, 2
    // Predicated region
    $region25: #{_lambda_.5} parent=5 // pred_check
      %p205 = pneg %p204
    $region26: #{_lambda_.5} parent=5 // pred_check_branch
      %207 = sbr.rel (%p205) target = $region28
    $region27: #{_lambda_.5} parent=5 // pred_region
      // Predicated region
      $region29: #{_lambda_.5} parent=27 // pred_check
        %p208 = pneg %p51
      $region30: #{_lambda_.5} parent=27 // pred_check_branch
        %210 = sbr.rel (%p208) target = $region32
      $region31: #{_lambda_.5} parent=27 // pred_region
        %p211 = scmp.lt.s32.totalorder %s17, 1
        %s212 = scalar_select %p211, %s17, 1
        %p213 = scmp.lt.s32.totalorder %s19, 0
        %s214 = scalar_select %p213, %s19, 0
        %s215 = smul.addr %s212, 54
        %s216 = sadd.s32 %s214, %s215
        %s217 = smul.addr %s216, 4
        %s218 = scalar_lea.vmem %s0, %s217
      $region32: #{_lambda_.5} parent=27 // pred_fallthru
        _
    $region28: #{_lambda_.5} parent=5 // pred_fallthru
      _
    %p219 = scmp.le.s32.totalorder 1, %s10
    %p220 = scmp.lt.s32.totalorder %s10, 3
    %p221 = pnand %p219, %p220
    %p222 = pneg %p221
    // Predicated region
    $region33: #{_lambda_.5} parent=5 // pred_check
      _
    $region34: #{_lambda_.5} parent=5 // pred_check_branch
      %224 = sbr.rel (%p221) target = $region36
    $region35: #{_lambda_.5} parent=5 // pred_region
      %s225 = ssub.s32 %s10, 1
      %p226 = scmp.lt.s32.totalorder %s20, 1
      %s227 = scalar_select %p226, %s20, 1
      %p228 = scmp.lt.s32.totalorder %s22, 0
      %s229 = scalar_select %p228, %s22, 0
      %s230 = smul.addr %s227, 54
      %s231 = sadd.s32 %s229, %s230
      %s232 = smul.addr %s231, 4
      %s233 = scalar_lea.vmem %s0, %s232
      %p234 = pneg %p57
      %p235 = pneg %p54
      %s236 = smul.u32 8, %s22
      %p237 = scmp.lt.s32.totalorder %s236, 7
      %s238 = scalar_select %p237, %s236, 7
      %p239 = scmp.lt.s32.totalorder %s21, 0
      %s240 = scalar_select %p239, %s21, 0
      %s241 = sadd.s32 %s240, %s238
      %s242 = smul.addr %s241, 4
      %s243 = scalar_lea.vmem %s1, %s242
      %p244 = pneg %p85
      %p245 = pneg %p82
      %p246 = scmp.lt.s32.totalorder %s21, 0
      %s247 = scalar_select %p246, %s21, 0
      %s248 = scalar_lea.vmem %s2, %s247
      %p249 = pneg %p111
      %p250 = pneg %p108
      %p251 = scmp.lt.s32.totalorder %s21, 0
      %s252 = scalar_select %p251, %s21, 0
      %s253 = scalar_lea.vmem %s3, %s252
      %p254 = pneg %p137
      %p255 = pneg %p134
      %p256 = pneg %p165
      %p257 = pneg %p162
      %p258 = scmp.lt.s32.totalorder %s20, 1
      %s259 = scalar_select %p258, %s20, 1
      %p260 = scmp.lt.s32.totalorder %s21, 0
      %s261 = scalar_select %p260, %s21, 0
      %s262 = smul.addr %s259, 32
      %s263 = sadd.s32 %s261, %s262
      %s264 = smul.addr %s263, 4
      %s265 = scalar_lea.vmem %s4, %s264
      %p266 = scmp.lt.s32.totalorder %s20, 1
      %s267 = scalar_select %p266, %s20, 1
      %p268 = scmp.lt.s32.totalorder %s22, 0
      %s269 = scalar_select %p268, %s22, 0
      %s270 = smul.addr %s267, 54
      %s271 = sadd.s32 %s269, %s270
      %s272 = smul.addr %s271, 4
      %s273 = scalar_lea.vmem %s0, %s272
      %s274 = smul.u32 8, %s22
      %p275 = scmp.lt.s32.totalorder %s274, 7
      %s276 = scalar_select %p275, %s274, 7
      %p277 = scmp.lt.s32.totalorder %s21, 0
      %s278 = scalar_select %p277, %s21, 0
      %s279 = sadd.s32 %s278, %s276
      %s280 = smul.addr %s279, 4
      %s281 = scalar_lea.vmem %s1, %s280
      %s282 = smul.u32 8, %s22
      %p283 = scmp.lt.s32.totalorder %s21, 0
      %s284 = scalar_select %p283, %s21, 0
      %s285 = scalar_lea.vmem %s2, %s284
      %p286 = scmp.lt.s32.totalorder %s21, 0
      %s287 = scalar_select %p286, %s21, 0
      %s288 = scalar_lea.vmem %s3, %s287
      %p289 = scmp.lt.s32.totalorder %s20, 1
      %s290 = scalar_select %p289, %s20, 1
      %p291 = scmp.lt.s32.totalorder %s21, 0
      %s292 = scalar_select %p291, %s21, 0
      %s293 = smul.addr %s290, 32
      %s294 = sadd.s32 %s292, %s293
      %s295 = smul.addr %s294, 4
      %s296 = scalar_lea.vmem %s4, %s295
      %p298 = scmp.eq.s32.totalorder %s22, 0
      // Predicated region
      $region37: #{_lambda_.5} parent=35 // pred_check
        %p299 = pneg %p298
      $region38: #{_lambda_.5} parent=35 // pred_check_branch
        %301 = sbr.rel (%p299) target = $region40
      $region39: #{_lambda_.5} parent=35 // pred_region
        %vm302 = vcmask 523264
        %303 = vst.msk [vmem:[#allocation2] sm:$0xff] %vm302, 0.0
        %304 = vst.msk [vmem:[#allocation2 + $0x8] sm:$0xff] %vm302, 0.0
        %305 = vst.msk [vmem:[#allocation2 + $0x10] sm:$0xff] %vm302, 0.0
        %306 = vst.msk [vmem:[#allocation2 + $0x18] sm:$0xff] %vm302, 0.0
        %307 = vst.msk [vmem:[#allocation2 + $0x20] sm:$0xff] %vm302, 0.0
        %308 = vst.msk [vmem:[#allocation2 + $0x28] sm:$0xff] %vm302, 0.0
        %309 = vst.msk [vmem:[#allocation2 + $0x30] sm:$0xff] %vm302, 0.0
        %310 = vst.msk [vmem:[#allocation2 + $0x38] sm:$0xff] %vm302, 0.0
        %311 = vst.msk [vmem:[#allocation2 + $0x40] sm:$0xff] %vm302, 0.0
        %312 = vst.msk [vmem:[#allocation2 + $0x48] sm:$0xff] %vm302, 0.0
        %313 = vst.msk [vmem:[#allocation2 + $0x50] sm:$0xff] %vm302, 0.0
        %314 = vst.msk [vmem:[#allocation2 + $0x58] sm:$0xff] %vm302, 0.0
        %315 = vst.msk [vmem:[#allocation2 + $0x60] sm:$0xff] %vm302, 0.0
        %316 = vst.msk [vmem:[#allocation2 + $0x68] sm:$0xff] %vm302, 0.0
        %317 = vst.msk [vmem:[#allocation2 + $0x70] sm:$0xff] %vm302, 0.0
        %318 = vst.msk [vmem:[#allocation2 + $0x78] sm:$0xff] %vm302, 0.0
        %319 = vst.msk [vmem:[#allocation2 + $0x80] sm:$0xff] %vm302, 0.0
        %320 = vst.msk [vmem:[#allocation2 + $0x88] sm:$0xff] %vm302, 0.0
        %321 = vst.msk [vmem:[#allocation2 + $0x90] sm:$0xff] %vm302, 0.0
        %322 = vst.msk [vmem:[#allocation2 + $0x98] sm:$0xff] %vm302, 0.0
        %323 = vst.msk [vmem:[#allocation2 + $0xa0] sm:$0xff] %vm302, 0.0
        %324 = vst.msk [vmem:[#allocation2 + $0xa8] sm:$0xff] %vm302, 0.0
        %325 = vst.msk [vmem:[#allocation2 + $0xb0] sm:$0xff] %vm302, 0.0
        %326 = vst.msk [vmem:[#allocation2 + $0xb8] sm:$0xff] %vm302, 0.0
        %327 = vst.msk [vmem:[#allocation2 + $0xc0] sm:$0xff] %vm302, 0.0
        %328 = vst.msk [vmem:[#allocation2 + $0xc8] sm:$0xff] %vm302, 0.0
        %329 = vst.msk [vmem:[#allocation2 + $0xd0] sm:$0xff] %vm302, 0.0
        %330 = vst.msk [vmem:[#allocation2 + $0xd8] sm:$0xff] %vm302, 0.0
        %331 = vst.msk [vmem:[#allocation2 + $0xe0] sm:$0xff] %vm302, 0.0
        %332 = vst.msk [vmem:[#allocation2 + $0xe8] sm:$0xff] %vm302, 0.0
        %333 = vst.msk [vmem:[#allocation2 + $0xf0] sm:$0xff] %vm302, 0.0
        %334 = vst.msk [vmem:[#allocation2 + $0xf8] sm:$0xff] %vm302, 0.0
      $region40: #{_lambda_.5} parent=35 // pred_fallthru
        _
      %v335 = vld [vmem:[%s273] sm:$0xf]
      %v336 = vld [vmem:[%s273 + $0x4] sm:$0xf]
      %v337 = vld [vmem:[%s273 + $0xc] sm:$0xf]
      %v338 = vld [vmem:[%s273 + $0x10] sm:$0xf]
      %v339 = vld [vmem:[%s273 + $0x18] sm:$0xf]
      %v340 = vld [vmem:[%s273 + $0x1c] sm:$0xf]
      %v341 = vld [vmem:[%s273 + $0x24] sm:$0xf]
      %v342 = vld [vmem:[%s273 + $0x28] sm:$0xf]
      %v343 = vld [vmem:[%s273 + $0x30] sm:$0xf]
      %v344 = vld [vmem:[%s273 + $0x34] sm:$0xf]
      %v345 = vld [vmem:[%s273 + $0x3c] sm:$0xf]
      %v346 = vld [vmem:[%s273 + $0x40] sm:$0xf]
      %v347 = vld [vmem:[%s273 + $0x48] sm:$0xf]
      %v348 = vld [vmem:[%s273 + $0x4c] sm:$0xf]
      %v349 = vld [vmem:[%s273 + $0x54] sm:$0xf]
      %v350 = vld [vmem:[%s273 + $0x58] sm:$0xf]
      %v351 = vld [vmem:[%s273 + $0x60] sm:$0xf]
      %v352 = vld [vmem:[%s273 + $0x64] sm:$0xf]
      %v353 = vld [vmem:[%s273 + $0x6c] sm:$0xf]
      %v354 = vld [vmem:[%s273 + $0x70] sm:$0xf]
      %v355 = vld [vmem:[%s273 + $0x78] sm:$0xf]
      %v356 = vld [vmem:[%s273 + $0x7c] sm:$0xf]
      %v357 = vld [vmem:[%s273 + $0x84] sm:$0xf]
      %v358 = vld [vmem:[%s273 + $0x88] sm:$0xf]
      %v359 = vld [vmem:[%s273 + $0x90] sm:$0xf]
      %v360 = vld [vmem:[%s273 + $0x94] sm:$0xf]
      %v361 = vld [vmem:[%s273 + $0x9c] sm:$0xf]
      %v362 = vld [vmem:[%s273 + $0xa0] sm:$0xf]
      %v363 = vld [vmem:[%s273 + $0xa8] sm:$0xf]
      %v364 = vld [vmem:[%s273 + $0xac] sm:$0xf]
      %v365 = vld [vmem:[%s273 + $0xb4] sm:$0xf]
      %v366 = vld [vmem:[%s273 + $0xb8] sm:$0xf]
      %v367 = vld [vmem:[%s281] sm:$0xf]
      %v368 = vld [vmem:[%s281 + $0x4] sm:$0xf]
      %v369 = vld [vmem:[%s281 + $0x8] sm:$0xf]
      %v370 = vld [vmem:[%s281 + $0xc] sm:$0xf]
      %v371 = vld [vmem:[%s281 + $0x10] sm:$0xf]
      %v372 = vld [vmem:[%s281 + $0x14] sm:$0xf]
      %v373 = vld [vmem:[%s281 + $0x18] sm:$0xf]
      %v374 = vld [vmem:[%s281 + $0x1c] sm:$0xf]
      %v407 = vunpack.c.l.b16 %v335
      %v408 = vunpack.c.l.b16 %v336
      %v409 = vunpack.c.l.b16 %v337
      %v410 = vunpack.c.l.b16 %v338
      %v411 = vunpack.c.l.b16 %v339
      %v412 = vunpack.c.l.b16 %v340
      %v413 = vunpack.c.l.b16 %v341
      %v414 = vunpack.c.l.b16 %v342
      %v415 = vunpack.c.l.b16 %v343
      %v416 = vunpack.c.l.b16 %v344
      %v417 = vunpack.c.l.b16 %v345
      %v418 = vunpack.c.l.b16 %v346
      %v419 = vunpack.c.l.b16 %v347
      %v420 = vunpack.c.l.b16 %v348
      %v421 = vunpack.c.l.b16 %v349
      %v422 = vunpack.c.l.b16 %v350
      %v423 = vunpack.c.l.b16 %v351
      %v424 = vunpack.c.l.b16 %v352
      %v425 = vunpack.c.l.b16 %v353
      %v426 = vunpack.c.l.b16 %v354
      %v427 = vunpack.c.l.b16 %v355
      %v428 = vunpack.c.l.b16 %v356
      %v429 = vunpack.c.l.b16 %v357
      %v430 = vunpack.c.l.b16 %v358
      %v431 = vunpack.c.l.b16 %v359
      %v432 = vunpack.c.l.b16 %v360
      %v433 = vunpack.c.l.b16 %v361
      %v434 = vunpack.c.l.b16 %v362
      %v435 = vunpack.c.l.b16 %v363
      %v436 = vunpack.c.l.b16 %v364
      %v437 = vunpack.c.l.b16 %v365
      %v438 = vunpack.c.l.b16 %v366
      %v439 = vpack.c.b16 %v408, %v407
      %v440 = vpack.c.b16 %v410, %v409
      %v441 = vpack.c.b16 %v412, %v411
      %v442 = vpack.c.b16 %v414, %v413
      %v443 = vpack.c.b16 %v416, %v415
      %v444 = vpack.c.b16 %v418, %v417
      %v445 = vpack.c.b16 %v420, %v419
      %v446 = vpack.c.b16 %v422, %v421
      %v447 = vpack.c.b16 %v424, %v423
      %v448 = vpack.c.b16 %v426, %v425
      %v449 = vpack.c.b16 %v428, %v427
      %v450 = vpack.c.b16 %v430, %v429
      %v451 = vpack.c.b16 %v432, %v431
      %v452 = vpack.c.b16 %v434, %v433
      %v453 = vpack.c.b16 %v436, %v435
      %v454 = vpack.c.b16 %v438, %v437
      %v463 = vunpack.c.l.b16 %v367
      %v464 = vunpack.c.l.b16 %v368
      %v465 = vunpack.c.l.b16 %v369
      %v466 = vunpack.c.l.b16 %v370
      %v467 = vunpack.c.l.b16 %v371
      %v468 = vunpack.c.l.b16 %v372
      %v469 = vunpack.c.l.b16 %v373
      %v470 = vunpack.c.l.b16 %v374
      %v471 = vpack.c.b16 %v464, %v463
      %v472 = vpack.c.b16 %v466, %v465
      %v473 = vpack.c.b16 %v468, %v467
      %v474 = vpack.c.b16 %v470, %v469
      %vm479 = vcmask 523264
      %v481 = vsel %vm479, %v439, 0
      %v484 = vsel %vm479, %v440, 0
      %v487 = vsel %vm479, %v441, 0
      %v490 = vsel %vm479, %v442, 0
      %v493 = vsel %vm479, %v443, 0
      %v496 = vsel %vm479, %v444, 0
      %v499 = vsel %vm479, %v445, 0
      %v502 = vsel %vm479, %v446, 0
      %v505 = vsel %vm479, %v447, 0
      %v508 = vsel %vm479, %v448, 0
      %v511 = vsel %vm479, %v449, 0
      %v514 = vsel %vm479, %v450, 0
      %v517 = vsel %vm479, %v451, 0
      %v520 = vsel %vm479, %v452, 0
      %v523 = vsel %vm479, %v453, 0
      %v526 = vsel %vm479, %v454, 0
      %528 = vmatprep.subr.bf16.mxu0 0
      %529 = vmatpush1.bf16.msra.mxu0 0
      %530 = vmatprep.subr.bf16.mxu0 0
      %531 = vmatpush1.bf16.msra.mxu0 0
      %532 = vmatprep.subr.bf16.mxu0 0
      %533 = vmatpush1.bf16.msra.mxu0 0
      %534 = vmatprep.subr.bf16.mxu0 0
      %535 = vmatpush1.bf16.msra.mxu0 0
      %536 = vmatprep.subr.bf16.mxu0 0
      %537 = vmatpush1.bf16.msra.mxu0 %v474
      %538 = vmatprep.subr.bf16.mxu0 0
      %539 = vmatpush1.bf16.msra.mxu0 %v473
      %540 = vmatprep.subr.bf16.mxu0 0
      %541 = vmatpush1.bf16.msra.mxu0 %v472
      %542 = vmatprep.subr.bf16.mxu0 0
      %543 = vmatpush1.bf16.msra.mxu0 %v471
      %544 = vmatprep.subr.bf16.mxu0 0
      %545 = vmatpush2.bf16.msra.mxu0 0
      %546 = vmatprep.subr.bf16.mxu0 0
      %547 = vmatpush2.bf16.msra.mxu0 0
      %548 = vmatprep.subr.bf16.mxu0 0
      %549 = vmatpush2.bf16.msra.mxu0 0
      %550 = vmatprep.subr.bf16.mxu0 0
      %551 = vmatpush2.bf16.msra.mxu0 0
      %552 = vmatprep.subr.bf16.mxu0 0
      %553 = vmatpush2.bf16.msra.mxu0 0
      %554 = vmatprep.subr.bf16.mxu0 0
      %555 = vmatpush2.bf16.msra.mxu0 0
      %556 = vmatprep.subr.bf16.mxu0 0
      %557 = vmatpush2.bf16.msra.mxu0 0
      %558 = vmatprep.subr.bf16.mxu0 0
      %559 = vmatpush2.bf16.msra.mxu0 0
      %560 = vmatprep.mubr.bf16.mxu0 0
      %561 = vmatmul.mubr.bf16.gmra.mxu0 %v481
      %v562 = vpop.f32.mrf.mxu0
      %v563 = vadd.f32 0.0, %v562
      %v564 = vpop.f32.mrf.mxu0
      %v565 = vpop.f32.mrf.mxu0
      %v566 = vadd.f32 0.0, %v565
      %v567 = vpop.f32.mrf.mxu0
      %568 = vmatprep.mubr.bf16.mxu0 0
      %569 = vmatmul.mubr.bf16.gmra.mxu0 %v484
      %v570 = vpop.f32.mrf.mxu0
      %v571 = vadd.f32 0.0, %v570
      %v572 = vpop.f32.mrf.mxu0
      %v573 = vpop.f32.mrf.mxu0
      %v574 = vadd.f32 0.0, %v573
      %v575 = vpop.f32.mrf.mxu0
      %576 = vmatprep.mubr.bf16.mxu0 0
      %577 = vmatmul.mubr.bf16.gmra.mxu0 %v487
      %v578 = vpop.f32.mrf.mxu0
      %v579 = vadd.f32 0.0, %v578
      %v580 = vpop.f32.mrf.mxu0
      %v581 = vpop.f32.mrf.mxu0
      %v582 = vadd.f32 0.0, %v581
      %v583 = vpop.f32.mrf.mxu0
      %584 = vmatprep.mubr.bf16.mxu0 0
      %585 = vmatmul.mubr.bf16.gmra.mxu0 %v490
      %v586 = vpop.f32.mrf.mxu0
      %v587 = vadd.f32 0.0, %v586
      %v588 = vpop.f32.mrf.mxu0
      %v589 = vpop.f32.mrf.mxu0
      %v590 = vadd.f32 0.0, %v589
      %v591 = vpop.f32.mrf.mxu0
      %592 = vmatprep.mubr.bf16.mxu0 0
      %593 = vmatmul.mubr.bf16.gmra.mxu0 %v493
      %v594 = vpop.f32.mrf.mxu0
      %v595 = vadd.f32 0.0, %v594
      %v596 = vpop.f32.mrf.mxu0
      %v597 = vpop.f32.mrf.mxu0
      %v598 = vadd.f32 0.0, %v597
      %v599 = vpop.f32.mrf.mxu0
      %600 = vmatprep.mubr.bf16.mxu0 0
      %601 = vmatmul.mubr.bf16.gmra.mxu0 %v496
      %v602 = vpop.f32.mrf.mxu0
      %v603 = vadd.f32 0.0, %v602
      %v604 = vpop.f32.mrf.mxu0
      %v605 = vpop.f32.mrf.mxu0
      %v606 = vadd.f32 0.0, %v605
      %v607 = vpop.f32.mrf.mxu0
      %608 = vmatprep.mubr.bf16.mxu0 0
      %609 = vmatmul.mubr.bf16.gmra.mxu0 %v499
      %v610 = vpop.f32.mrf.mxu0
      %v611 = vadd.f32 0.0, %v610
      %v612 = vpop.f32.mrf.mxu0
      %v613 = vpop.f32.mrf.mxu0
      %v614 = vadd.f32 0.0, %v613
      %v615 = vpop.f32.mrf.mxu0
      %616 = vmatprep.mubr.bf16.mxu0 0
      %617 = vmatmul.mubr.bf16.gmra.mxu0 %v502
      %v618 = vpop.f32.mrf.mxu0
      %v619 = vadd.f32 0.0, %v618
      %v620 = vpop.f32.mrf.mxu0
      %v621 = vpop.f32.mrf.mxu0
      %v622 = vadd.f32 0.0, %v621
      %v623 = vpop.f32.mrf.mxu0
      %624 = vmatprep.mubr.bf16.mxu0 0
      %625 = vmatmul.mubr.bf16.gmra.mxu0 %v505
      %v626 = vpop.f32.mrf.mxu0
      %v627 = vadd.f32 0.0, %v626
      %v628 = vpop.f32.mrf.mxu0
      %v629 = vpop.f32.mrf.mxu0
      %v630 = vadd.f32 0.0, %v629
      %v631 = vpop.f32.mrf.mxu0
      %632 = vmatprep.mubr.bf16.mxu0 0
      %633 = vmatmul.mubr.bf16.gmra.mxu0 %v508
      %v634 = vpop.f32.mrf.mxu0
      %v635 = vadd.f32 0.0, %v634
      %v636 = vpop.f32.mrf.mxu0
      %v637 = vpop.f32.mrf.mxu0
      %v638 = vadd.f32 0.0, %v637
      %v639 = vpop.f32.mrf.mxu0
      %640 = vmatprep.mubr.bf16.mxu0 0
      %641 = vmatmul.mubr.bf16.gmra.mxu0 %v511
      %v642 = vpop.f32.mrf.mxu0
      %v643 = vadd.f32 0.0, %v642
      %v644 = vpop.f32.mrf.mxu0
      %v645 = vpop.f32.mrf.mxu0
      %v646 = vadd.f32 0.0, %v645
      %v647 = vpop.f32.mrf.mxu0
      %648 = vmatprep.mubr.bf16.mxu0 0
      %649 = vmatmul.mubr.bf16.gmra.mxu0 %v514
      %v650 = vpop.f32.mrf.mxu0
      %v651 = vadd.f32 0.0, %v650
      %v652 = vpop.f32.mrf.mxu0
      %v653 = vpop.f32.mrf.mxu0
      %v654 = vadd.f32 0.0, %v653
      %v655 = vpop.f32.mrf.mxu0
      %656 = vmatprep.mubr.bf16.mxu0 0
      %657 = vmatmul.mubr.bf16.gmra.mxu0 %v517
      %v658 = vpop.f32.mrf.mxu0
      %v659 = vadd.f32 0.0, %v658
      %v660 = vpop.f32.mrf.mxu0
      %v661 = vpop.f32.mrf.mxu0
      %v662 = vadd.f32 0.0, %v661
      %v663 = vpop.f32.mrf.mxu0
      %664 = vmatprep.mubr.bf16.mxu0 0
      %665 = vmatmul.mubr.bf16.gmra.mxu0 %v520
      %v666 = vpop.f32.mrf.mxu0
      %v667 = vadd.f32 0.0, %v666
      %v668 = vpop.f32.mrf.mxu0
      %v669 = vpop.f32.mrf.mxu0
      %v670 = vadd.f32 0.0, %v669
      %v671 = vpop.f32.mrf.mxu0
      %672 = vmatprep.mubr.bf16.mxu0 0
      %673 = vmatmul.mubr.bf16.gmra.mxu0 %v523
      %v674 = vpop.f32.mrf.mxu0
      %v675 = vadd.f32 0.0, %v674
      %v676 = vpop.f32.mrf.mxu0
      %v677 = vpop.f32.mrf.mxu0
      %v678 = vadd.f32 0.0, %v677
      %v679 = vpop.f32.mrf.mxu0
      %680 = vmatprep.mubr.bf16.mxu0 0
      %681 = vmatmul.mubr.bf16.gmra.mxu0 %v526
      %v682 = vpop.f32.mrf.mxu0
      %v683 = vadd.f32 0.0, %v682
      %v684 = vpop.f32.mrf.mxu0
      %v685 = vpop.f32.mrf.mxu0
      %v686 = vadd.f32 0.0, %v685
      %v687 = vpop.f32.mrf.mxu0
      %688 = vdwg.mxu0
      %v689 = vld [vmem:[#allocation2] sm:$0xff]
      %v690 = vld [vmem:[#allocation2 + $0x8] sm:$0xff]
      %v691 = vld [vmem:[#allocation2 + $0x10] sm:$0xff]
      %v692 = vld [vmem:[#allocation2 + $0x18] sm:$0xff]
      %v693 = vld [vmem:[#allocation2 + $0x20] sm:$0xff]
      %v694 = vld [vmem:[#allocation2 + $0x28] sm:$0xff]
      %v695 = vld [vmem:[#allocation2 + $0x30] sm:$0xff]
      %v696 = vld [vmem:[#allocation2 + $0x38] sm:$0xff]
      %v697 = vld [vmem:[#allocation2 + $0x40] sm:$0xff]
      %v698 = vld [vmem:[#allocation2 + $0x48] sm:$0xff]
      %v699 = vld [vmem:[#allocation2 + $0x50] sm:$0xff]
      %v700 = vld [vmem:[#allocation2 + $0x58] sm:$0xff]
      %v701 = vld [vmem:[#allocation2 + $0x60] sm:$0xff]
      %v702 = vld [vmem:[#allocation2 + $0x68] sm:$0xff]
      %v703 = vld [vmem:[#allocation2 + $0x70] sm:$0xff]
      %v704 = vld [vmem:[#allocation2 + $0x78] sm:$0xff]
      %v705 = vld [vmem:[#allocation2 + $0x80] sm:$0xff]
      %v706 = vld [vmem:[#allocation2 + $0x88] sm:$0xff]
      %v707 = vld [vmem:[#allocation2 + $0x90] sm:$0xff]
      %v708 = vld [vmem:[#allocation2 + $0x98] sm:$0xff]
      %v709 = vld [vmem:[#allocation2 + $0xa0] sm:$0xff]
      %v710 = vld [vmem:[#allocation2 + $0xa8] sm:$0xff]
      %v711 = vld [vmem:[#allocation2 + $0xb0] sm:$0xff]
      %v712 = vld [vmem:[#allocation2 + $0xb8] sm:$0xff]
      %v713 = vld [vmem:[#allocation2 + $0xc0] sm:$0xff]
      %v714 = vld [vmem:[#allocation2 + $0xc8] sm:$0xff]
      %v715 = vld [vmem:[#allocation2 + $0xd0] sm:$0xff]
      %v716 = vld [vmem:[#allocation2 + $0xd8] sm:$0xff]
      %v717 = vld [vmem:[#allocation2 + $0xe0] sm:$0xff]
      %v718 = vld [vmem:[#allocation2 + $0xe8] sm:$0xff]
      %v719 = vld [vmem:[#allocation2 + $0xf0] sm:$0xff]
      %v720 = vld [vmem:[#allocation2 + $0xf8] sm:$0xff]
      %v721 = vadd.f32 %v689, %v563
      %v722 = vadd.f32 %v690, %v566
      %v723 = vadd.f32 %v691, %v571
      %v724 = vadd.f32 %v692, %v574
      %v725 = vadd.f32 %v693, %v579
      %v726 = vadd.f32 %v694, %v582
      %v727 = vadd.f32 %v695, %v587
      %v728 = vadd.f32 %v696, %v590
      %v729 = vadd.f32 %v697, %v595
      %v730 = vadd.f32 %v698, %v598
      %v731 = vadd.f32 %v699, %v603
      %v732 = vadd.f32 %v700, %v606
      %v733 = vadd.f32 %v701, %v611
      %v734 = vadd.f32 %v702, %v614
      %v735 = vadd.f32 %v703, %v619
      %v736 = vadd.f32 %v704, %v622
      %v737 = vadd.f32 %v705, %v627
      %v738 = vadd.f32 %v706, %v630
      %v739 = vadd.f32 %v707, %v635
      %v740 = vadd.f32 %v708, %v638
      %v741 = vadd.f32 %v709, %v643
      %v742 = vadd.f32 %v710, %v646
      %v743 = vadd.f32 %v711, %v651
      %v744 = vadd.f32 %v712, %v654
      %v745 = vadd.f32 %v713, %v659
      %v746 = vadd.f32 %v714, %v662
      %v747 = vadd.f32 %v715, %v667
      %v748 = vadd.f32 %v716, %v670
      %v749 = vadd.f32 %v717, %v675
      %v750 = vadd.f32 %v718, %v678
      %v751 = vadd.f32 %v719, %v683
      %v752 = vadd.f32 %v720, %v686
      %753 = vst.msk [vmem:[#allocation2] sm:$0xff] %vm479, %v721
      %754 = vst.msk [vmem:[#allocation2 + $0x8] sm:$0xff] %vm479, %v722
      %755 = vst.msk [vmem:[#allocation2 + $0x10] sm:$0xff] %vm479, %v723
      %756 = vst.msk [vmem:[#allocation2 + $0x18] sm:$0xff] %vm479, %v724
      %757 = vst.msk [vmem:[#allocation2 + $0x20] sm:$0xff] %vm479, %v725
      %758 = vst.msk [vmem:[#allocation2 + $0x28] sm:$0xff] %vm479, %v726
      %759 = vst.msk [vmem:[#allocation2 + $0x30] sm:$0xff] %vm479, %v727
      %760 = vst.msk [vmem:[#allocation2 + $0x38] sm:$0xff] %vm479, %v728
      %761 = vst.msk [vmem:[#allocation2 + $0x40] sm:$0xff] %vm479, %v729
      %762 = vst.msk [vmem:[#allocation2 + $0x48] sm:$0xff] %vm479, %v730
      %763 = vst.msk [vmem:[#allocation2 + $0x50] sm:$0xff] %vm479, %v731
      %764 = vst.msk [vmem:[#allocation2 + $0x58] sm:$0xff] %vm479, %v732
      %765 = vst.msk [vmem:[#allocation2 + $0x60] sm:$0xff] %vm479, %v733
      %766 = vst.msk [vmem:[#allocation2 + $0x68] sm:$0xff] %vm479, %v734
      %767 = vst.msk [vmem:[#allocation2 + $0x70] sm:$0xff] %vm479, %v735
      %768 = vst.msk [vmem:[#allocation2 + $0x78] sm:$0xff] %vm479, %v736
      %769 = vst.msk [vmem:[#allocation2 + $0x80] sm:$0xff] %vm479, %v737
      %770 = vst.msk [vmem:[#allocation2 + $0x88] sm:$0xff] %vm479, %v738
      %771 = vst.msk [vmem:[#allocation2 + $0x90] sm:$0xff] %vm479, %v739
      %772 = vst.msk [vmem:[#allocation2 + $0x98] sm:$0xff] %vm479, %v740
      %773 = vst.msk [vmem:[#allocation2 + $0xa0] sm:$0xff] %vm479, %v741
      %774 = vst.msk [vmem:[#allocation2 + $0xa8] sm:$0xff] %vm479, %v742
      %775 = vst.msk [vmem:[#allocation2 + $0xb0] sm:$0xff] %vm479, %v743
      %776 = vst.msk [vmem:[#allocation2 + $0xb8] sm:$0xff] %vm479, %v744
      %777 = vst.msk [vmem:[#allocation2 + $0xc0] sm:$0xff] %vm479, %v745
      %778 = vst.msk [vmem:[#allocation2 + $0xc8] sm:$0xff] %vm479, %v746
      %779 = vst.msk [vmem:[#allocation2 + $0xd0] sm:$0xff] %vm479, %v747
      %780 = vst.msk [vmem:[#allocation2 + $0xd8] sm:$0xff] %vm479, %v748
      %781 = vst.msk [vmem:[#allocation2 + $0xe0] sm:$0xff] %vm479, %v749
      %782 = vst.msk [vmem:[#allocation2 + $0xe8] sm:$0xff] %vm479, %v750
      %783 = vst.msk [vmem:[#allocation2 + $0xf0] sm:$0xff] %vm479, %v751
      %784 = vst.msk [vmem:[#allocation2 + $0xf8] sm:$0xff] %vm479, %v752
      %v785 = vld [vmem:[%s273] sm:$0xf]
      %v786 = vld [vmem:[%s273 + $0x4] sm:$0xf]
      %v787 = vld [vmem:[%s273 + $0x8] sm:$0x1]
      %v788 = vld [vmem:[%s273 + $0xc] sm:$0xf]
      %v789 = vld [vmem:[%s273 + $0x10] sm:$0xf]
      %v790 = vld [vmem:[%s273 + $0x14] sm:$0x1]
      %v791 = vld [vmem:[%s273 + $0x18] sm:$0xf]
      %v792 = vld [vmem:[%s273 + $0x1c] sm:$0xf]
      %v793 = vld [vmem:[%s273 + $0x20] sm:$0x1]
      %v794 = vld [vmem:[%s273 + $0x24] sm:$0xf]
      %v795 = vld [vmem:[%s273 + $0x28] sm:$0xf]
      %v796 = vld [vmem:[%s273 + $0x2c] sm:$0x1]
      %v797 = vld [vmem:[%s273 + $0x30] sm:$0xf]
      %v798 = vld [vmem:[%s273 + $0x34] sm:$0xf]
      %v799 = vld [vmem:[%s273 + $0x38] sm:$0x1]
      %v800 = vld [vmem:[%s273 + $0x3c] sm:$0xf]
      %v801 = vld [vmem:[%s273 + $0x40] sm:$0xf]
      %v802 = vld [vmem:[%s273 + $0x44] sm:$0x1]
      %v803 = vld [vmem:[%s273 + $0x48] sm:$0xf]
      %v804 = vld [vmem:[%s273 + $0x4c] sm:$0xf]
      %v805 = vld [vmem:[%s273 + $0x50] sm:$0x1]
      %v806 = vld [vmem:[%s273 + $0x54] sm:$0xf]
      %v807 = vld [vmem:[%s273 + $0x58] sm:$0xf]
      %v808 = vld [vmem:[%s273 + $0x5c] sm:$0x1]
      %v809 = vld [vmem:[%s273 + $0x60] sm:$0xf]
      %v810 = vld [vmem:[%s273 + $0x64] sm:$0xf]
      %v811 = vld [vmem:[%s273 + $0x68] sm:$0x1]
      %v812 = vld [vmem:[%s273 + $0x6c] sm:$0xf]
      %v813 = vld [vmem:[%s273 + $0x70] sm:$0xf]
      %v814 = vld [vmem:[%s273 + $0x74] sm:$0x1]
      %v815 = vld [vmem:[%s273 + $0x78] sm:$0xf]
      %v816 = vld [vmem:[%s273 + $0x7c] sm:$0xf]
      %v817 = vld [vmem:[%s273 + $0x80] sm:$0x1]
      %v818 = vld [vmem:[%s273 + $0x84] sm:$0xf]
      %v819 = vld [vmem:[%s273 + $0x88] sm:$0xf]
      %v820 = vld [vmem:[%s273 + $0x8c] sm:$0x1]
      %v821 = vld [vmem:[%s273 + $0x90] sm:$0xf]
      %v822 = vld [vmem:[%s273 + $0x94] sm:$0xf]
      %v823 = vld [vmem:[%s273 + $0x98] sm:$0x1]
      %v824 = vld [vmem:[%s273 + $0x9c] sm:$0xf]
      %v825 = vld [vmem:[%s273 + $0xa0] sm:$0xf]
      %v826 = vld [vmem:[%s273 + $0xa4] sm:$0x1]
      %v827 = vld [vmem:[%s273 + $0xa8] sm:$0xf]
      %v828 = vld [vmem:[%s273 + $0xac] sm:$0xf]
      %v829 = vld [vmem:[%s273 + $0xb0] sm:$0x1]
      %v830 = vld [vmem:[%s273 + $0xb4] sm:$0xf]
      %v831 = vld [vmem:[%s273 + $0xb8] sm:$0xf]
      %v832 = vld [vmem:[%s273 + $0xbc] sm:$0x1]
      %vm833 = vsmask.f32 3328
      %vm834 = vsmask.f32 7440
      %vm835 = vmor %vm833, %vm834
      %v837 = vshrl.u32 %v785, 16
      %v839 = vrot.slane %v837, 4
      %v840 = vshll.u32 %v785, 16
      %v842 = vrot.slane %v840, 5
      %v843 = vor.u32 %v839, %v842
      %v844 = vrot.slane %v843, 4
      %v846 = vshll.u32 %v786, 16
      %v848 = vrot.slane %v846, 5
      %v849 = vsel %vm835, %v844, %v848
      %v850 = vshrl.u32 %v786, 16
      %v852 = vrot.slane %v850, 4
      %v853 = vor.u32 %v852, %v848
      %v854 = vrot.slane %v853, 4
      %v856 = vshll.u32 %v787, 16
      %v858 = vrot.slane %v856, 5
      %v859 = vsel %vm835, %v854, %v858
      %v861 = vshrl.u32 %v788, 16
      %v863 = vrot.slane %v861, 4
      %v864 = vshll.u32 %v788, 16
      %v866 = vrot.slane %v864, 5
      %v867 = vor.u32 %v863, %v866
      %v868 = vrot.slane %v867, 4
      %v870 = vshll.u32 %v789, 16
      %v872 = vrot.slane %v870, 5
      %v873 = vsel %vm835, %v868, %v872
      %v874 = vshrl.u32 %v789, 16
      %v876 = vrot.slane %v874, 4
      %v877 = vor.u32 %v876, %v872
      %v878 = vrot.slane %v877, 4
      %v880 = vshll.u32 %v790, 16
      %v882 = vrot.slane %v880, 5
      %v883 = vsel %vm835, %v878, %v882
      %v885 = vshrl.u32 %v791, 16
      %v887 = vrot.slane %v885, 4
      %v888 = vshll.u32 %v791, 16
      %v890 = vrot.slane %v888, 5
      %v891 = vor.u32 %v887, %v890
      %v892 = vrot.slane %v891, 4
      %v894 = vshll.u32 %v792, 16
      %v896 = vrot.slane %v894, 5
      %v897 = vsel %vm835, %v892, %v896
      %v898 = vshrl.u32 %v792, 16
      %v900 = vrot.slane %v898, 4
      %v901 = vor.u32 %v900, %v896
      %v902 = vrot.slane %v901, 4
      %v904 = vshll.u32 %v793, 16
      %v906 = vrot.slane %v904, 5
      %v907 = vsel %vm835, %v902, %v906
      %v909 = vshrl.u32 %v794, 16
      %v911 = vrot.slane %v909, 4
      %v912 = vshll.u32 %v794, 16
      %v914 = vrot.slane %v912, 5
      %v915 = vor.u32 %v911, %v914
      %v916 = vrot.slane %v915, 4
      %v918 = vshll.u32 %v795, 16
      %v920 = vrot.slane %v918, 5
      %v921 = vsel %vm835, %v916, %v920
      %v922 = vshrl.u32 %v795, 16
      %v924 = vrot.slane %v922, 4
      %v925 = vor.u32 %v924, %v920
      %v926 = vrot.slane %v925, 4
      %v928 = vshll.u32 %v796, 16
      %v930 = vrot.slane %v928, 5
      %v931 = vsel %vm835, %v926, %v930
      %v933 = vshrl.u32 %v797, 16
      %v935 = vrot.slane %v933, 4
      %v936 = vshll.u32 %v797, 16
      %v938 = vrot.slane %v936, 5
      %v939 = vor.u32 %v935, %v938
      %v940 = vrot.slane %v939, 4
      %v942 = vshll.u32 %v798, 16
      %v944 = vrot.slane %v942, 5
      %v945 = vsel %vm835, %v940, %v944
      %v946 = vshrl.u32 %v798, 16
      %v948 = vrot.slane %v946, 4
      %v949 = vor.u32 %v948, %v944
      %v950 = vrot.slane %v949, 4
      %v952 = vshll.u32 %v799, 16
      %v954 = vrot.slane %v952, 5
      %v955 = vsel %vm835, %v950, %v954
      %v957 = vshrl.u32 %v800, 16
      %v959 = vrot.slane %v957, 4
      %v960 = vshll.u32 %v800, 16
      %v962 = vrot.slane %v960, 5
      %v963 = vor.u32 %v959, %v962
      %v964 = vrot.slane %v963, 4
      %v966 = vshll.u32 %v801, 16
      %v968 = vrot.slane %v966, 5
      %v969 = vsel %vm835, %v964, %v968
      %v970 = vshrl.u32 %v801, 16
      %v972 = vrot.slane %v970, 4
      %v973 = vor.u32 %v972, %v968
      %v974 = vrot.slane %v973, 4
      %v976 = vshll.u32 %v802, 16
      %v978 = vrot.slane %v976, 5
      %v979 = vsel %vm835, %v974, %v978
      %v981 = vshrl.u32 %v803, 16
      %v983 = vrot.slane %v981, 4
      %v984 = vshll.u32 %v803, 16
      %v986 = vrot.slane %v984, 5
      %v987 = vor.u32 %v983, %v986
      %v988 = vrot.slane %v987, 4
      %v990 = vshll.u32 %v804, 16
      %v992 = vrot.slane %v990, 5
      %v993 = vsel %vm835, %v988, %v992
      %v994 = vshrl.u32 %v804, 16
      %v996 = vrot.slane %v994, 4
      %v997 = vor.u32 %v996, %v992
      %v998 = vrot.slane %v997, 4
      %v1000 = vshll.u32 %v805, 16
      %v1002 = vrot.slane %v1000, 5
      %v1003 = vsel %vm835, %v998, %v1002
      %v1005 = vshrl.u32 %v806, 16
      %v1007 = vrot.slane %v1005, 4
      %v1008 = vshll.u32 %v806, 16
      %v1010 = vrot.slane %v1008, 5
      %v1011 = vor.u32 %v1007, %v1010
      %v1012 = vrot.slane %v1011, 4
      %v1014 = vshll.u32 %v807, 16
      %v1016 = vrot.slane %v1014, 5
      %v1017 = vsel %vm835, %v1012, %v1016
      %v1018 = vshrl.u32 %v807, 16
      %v1020 = vrot.slane %v1018, 4
      %v1021 = vor.u32 %v1020, %v1016
      %v1022 = vrot.slane %v1021, 4
      %v1024 = vshll.u32 %v808, 16
      %v1026 = vrot.slane %v1024, 5
      %v1027 = vsel %vm835, %v1022, %v1026
      %v1029 = vshrl.u32 %v809, 16
      %v1031 = vrot.slane %v1029, 4
      %v1032 = vshll.u32 %v809, 16
      %v1034 = vrot.slane %v1032, 5
      %v1035 = vor.u32 %v1031, %v1034
      %v1036 = vrot.slane %v1035, 4
      %v1038 = vshll.u32 %v810, 16
      %v1040 = vrot.slane %v1038, 5
      %v1041 = vsel %vm835, %v1036, %v1040
      %v1042 = vshrl.u32 %v810, 16
      %v1044 = vrot.slane %v1042, 4
      %v1045 = vor.u32 %v1044, %v1040
      %v1046 = vrot.slane %v1045, 4
      %v1048 = vshll.u32 %v811, 16
      %v1050 = vrot.slane %v1048, 5
      %v1051 = vsel %vm835, %v1046, %v1050
      %v1053 = vshrl.u32 %v812, 16
      %v1055 = vrot.slane %v1053, 4
      %v1056 = vshll.u32 %v812, 16
      %v1058 = vrot.slane %v1056, 5
      %v1059 = vor.u32 %v1055, %v1058
      %v1060 = vrot.slane %v1059, 4
      %v1062 = vshll.u32 %v813, 16
      %v1064 = vrot.slane %v1062, 5
      %v1065 = vsel %vm835, %v1060, %v1064
      %v1066 = vshrl.u32 %v813, 16
      %v1068 = vrot.slane %v1066, 4
      %v1069 = vor.u32 %v1068, %v1064
      %v1070 = vrot.slane %v1069, 4
      %v1072 = vshll.u32 %v814, 16
      %v1074 = vrot.slane %v1072, 5
      %v1075 = vsel %vm835, %v1070, %v1074
      %v1077 = vshrl.u32 %v815, 16
      %v1079 = vrot.slane %v1077, 4
      %v1080 = vshll.u32 %v815, 16
      %v1082 = vrot.slane %v1080, 5
      %v1083 = vor.u32 %v1079, %v1082
      %v1084 = vrot.slane %v1083, 4
      %v1086 = vshll.u32 %v816, 16
      %v1088 = vrot.slane %v1086, 5
      %v1089 = vsel %vm835, %v1084, %v1088
      %v1090 = vshrl.u32 %v816, 16
      %v1092 = vrot.slane %v1090, 4
      %v1093 = vor.u32 %v1092, %v1088
      %v1094 = vrot.slane %v1093, 4
      %v1096 = vshll.u32 %v817, 16
      %v1098 = vrot.slane %v1096, 5
      %v1099 = vsel %vm835, %v1094, %v1098
      %v1101 = vshrl.u32 %v818, 16
      %v1103 = vrot.slane %v1101, 4
      %v1104 = vshll.u32 %v818, 16
      %v1106 = vrot.slane %v1104, 5
      %v1107 = vor.u32 %v1103, %v1106
      %v1108 = vrot.slane %v1107, 4
      %v1110 = vshll.u32 %v819, 16
      %v1112 = vrot.slane %v1110, 5
      %v1113 = vsel %vm835, %v1108, %v1112
      %v1114 = vshrl.u32 %v819, 16
      %v1116 = vrot.slane %v1114, 4
      %v1117 = vor.u32 %v1116, %v1112
      %v1118 = vrot.slane %v1117, 4
      %v1120 = vshll.u32 %v820, 16
      %v1122 = vrot.slane %v1120, 5
      %v1123 = vsel %vm835, %v1118, %v1122
      %v1125 = vshrl.u32 %v821, 16
      %v1127 = vrot.slane %v1125, 4
      %v1128 = vshll.u32 %v821, 16
      %v1130 = vrot.slane %v1128, 5
      %v1131 = vor.u32 %v1127, %v1130
      %v1132 = vrot.slane %v1131, 4
      %v1134 = vshll.u32 %v822, 16
      %v1136 = vrot.slane %v1134, 5
      %v1137 = vsel %vm835, %v1132, %v1136
      %v1138 = vshrl.u32 %v822, 16
      %v1140 = vrot.slane %v1138, 4
      %v1141 = vor.u32 %v1140, %v1136
      %v1142 = vrot.slane %v1141, 4
      %v1144 = vshll.u32 %v823, 16
      %v1146 = vrot.slane %v1144, 5
      %v1147 = vsel %vm835, %v1142, %v1146
      %v1149 = vshrl.u32 %v824, 16
      %v1151 = vrot.slane %v1149, 4
      %v1152 = vshll.u32 %v824, 16
      %v1154 = vrot.slane %v1152, 5
      %v1155 = vor.u32 %v1151, %v1154
      %v1156 = vrot.slane %v1155, 4
      %v1158 = vshll.u32 %v825, 16
      %v1160 = vrot.slane %v1158, 5
      %v1161 = vsel %vm835, %v1156, %v1160
      %v1162 = vshrl.u32 %v825, 16
      %v1164 = vrot.slane %v1162, 4
      %v1165 = vor.u32 %v1164, %v1160
      %v1166 = vrot.slane %v1165, 4
      %v1168 = vshll.u32 %v826, 16
      %v1170 = vrot.slane %v1168, 5
      %v1171 = vsel %vm835, %v1166, %v1170
      %v1173 = vshrl.u32 %v827, 16
      %v1175 = vrot.slane %v1173, 4
      %v1176 = vshll.u32 %v827, 16
      %v1178 = vrot.slane %v1176, 5
      %v1179 = vor.u32 %v1175, %v1178
      %v1180 = vrot.slane %v1179, 4
      %v1182 = vshll.u32 %v828, 16
      %v1184 = vrot.slane %v1182, 5
      %v1185 = vsel %vm835, %v1180, %v1184
      %v1186 = vshrl.u32 %v828, 16
      %v1188 = vrot.slane %v1186, 4
      %v1189 = vor.u32 %v1188, %v1184
      %v1190 = vrot.slane %v1189, 4
      %v1192 = vshll.u32 %v829, 16
      %v1194 = vrot.slane %v1192, 5
      %v1195 = vsel %vm835, %v1190, %v1194
      %v1197 = vshrl.u32 %v830, 16
      %v1199 = vrot.slane %v1197, 4
      %v1200 = vshll.u32 %v830, 16
      %v1202 = vrot.slane %v1200, 5
      %v1203 = vor.u32 %v1199, %v1202
      %v1204 = vrot.slane %v1203, 4
      %v1206 = vshll.u32 %v831, 16
      %v1208 = vrot.slane %v1206, 5
      %v1209 = vsel %vm835, %v1204, %v1208
      %v1210 = vshrl.u32 %v831, 16
      %v1212 = vrot.slane %v1210, 4
      %v1213 = vor.u32 %v1212, %v1208
      %v1214 = vrot.slane %v1213, 4
      %v1216 = vshll.u32 %v832, 16
      %v1218 = vrot.slane %v1216, 5
      %v1219 = vsel %vm835, %v1214, %v1218
      %s1220 = scalar_lea.vmem %s281, 32
      %v1221 = vld [vmem:[%s1220] sm:$0xf]
      %v1222 = vld [vmem:[%s1220 + $0x4] sm:$0xf]
      %v1223 = vld [vmem:[%s1220 + $0x8] sm:$0xf]
      %v1224 = vld [vmem:[%s1220 + $0xc] sm:$0xf]
      %v1225 = vld [vmem:[%s1220 + $0x10] sm:$0xf]
      %v1226 = vld [vmem:[%s1220 + $0x14] sm:$0xf]
      %v1227 = vld [vmem:[%s1220 + $0x18] sm:$0xf]
      %v1228 = vld [vmem:[%s1220 + $0x1c] sm:$0xf]
      %v1229 = vunpack.c.l.b16 %v849
      %v1230 = vunpack.c.l.b16 %v859
      %v1231 = vunpack.c.l.b16 %v873
      %v1232 = vunpack.c.l.b16 %v883
      %v1233 = vunpack.c.l.b16 %v897
      %v1234 = vunpack.c.l.b16 %v907
      %v1235 = vunpack.c.l.b16 %v921
      %v1236 = vunpack.c.l.b16 %v931
      %v1237 = vunpack.c.l.b16 %v945
      %v1238 = vunpack.c.l.b16 %v955
      %v1239 = vunpack.c.l.b16 %v969
      %v1240 = vunpack.c.l.b16 %v979
      %v1241 = vunpack.c.l.b16 %v993
      %v1242 = vunpack.c.l.b16 %v1003
      %v1243 = vunpack.c.l.b16 %v1017
      %v1244 = vunpack.c.l.b16 %v1027
      %v1245 = vunpack.c.l.b16 %v1041
      %v1246 = vunpack.c.l.b16 %v1051
      %v1247 = vunpack.c.l.b16 %v1065
      %v1248 = vunpack.c.l.b16 %v1075
      %v1249 = vunpack.c.l.b16 %v1089
      %v1250 = vunpack.c.l.b16 %v1099
      %v1251 = vunpack.c.l.b16 %v1113
      %v1252 = vunpack.c.l.b16 %v1123
      %v1253 = vunpack.c.l.b16 %v1137
      %v1254 = vunpack.c.l.b16 %v1147
      %v1255 = vunpack.c.l.b16 %v1161
      %v1256 = vunpack.c.l.b16 %v1171
      %v1257 = vunpack.c.l.b16 %v1185
      %v1258 = vunpack.c.l.b16 %v1195
      %v1259 = vunpack.c.l.b16 %v1209
      %v1260 = vunpack.c.l.b16 %v1219
      %v1261 = vpack.c.b16 %v1230, %v1229
      %v1262 = vpack.c.b16 %v1232, %v1231
      %v1263 = vpack.c.b16 %v1234, %v1233
      %v1264 = vpack.c.b16 %v1236, %v1235
      %v1265 = vpack.c.b16 %v1238, %v1237
      %v1266 = vpack.c.b16 %v1240, %v1239
      %v1267 = vpack.c.b16 %v1242, %v1241
      %v1268 = vpack.c.b16 %v1244, %v1243
      %v1269 = vpack.c.b16 %v1246, %v1245
      %v1270 = vpack.c.b16 %v1248, %v1247
      %v1271 = vpack.c.b16 %v1250, %v1249
      %v1272 = vpack.c.b16 %v1252, %v1251
      %v1273 = vpack.c.b16 %v1254, %v1253
      %v1274 = vpack.c.b16 %v1256, %v1255
      %v1275 = vpack.c.b16 %v1258, %v1257
      %v1276 = vpack.c.b16 %v1260, %v1259
      %v1285 = vunpack.c.l.b16 %v1221
      %v1286 = vunpack.c.l.b16 %v1222
      %v1287 = vunpack.c.l.b16 %v1223
      %v1288 = vunpack.c.l.b16 %v1224
      %v1289 = vunpack.c.l.b16 %v1225
      %v1290 = vunpack.c.l.b16 %v1226
      %v1291 = vunpack.c.l.b16 %v1227
      %v1292 = vunpack.c.l.b16 %v1228
      %v1293 = vpack.c.b16 %v1286, %v1285
      %v1294 = vpack.c.b16 %v1288, %v1287
      %v1295 = vpack.c.b16 %v1290, %v1289
      %v1296 = vpack.c.b16 %v1292, %v1291
      %v1302 = vsel %vm479, %v1261, 0
      %v1305 = vsel %vm479, %v1262, 0
      %v1308 = vsel %vm479, %v1263, 0
      %v1311 = vsel %vm479, %v1264, 0
      %v1314 = vsel %vm479, %v1265, 0
      %v1317 = vsel %vm479, %v1266, 0
      %v1320 = vsel %vm479, %v1267, 0
      %v1323 = vsel %vm479, %v1268, 0
      %v1326 = vsel %vm479, %v1269, 0
      %v1329 = vsel %vm479, %v1270, 0
      %v1332 = vsel %vm479, %v1271, 0
      %v1335 = vsel %vm479, %v1272, 0
      %v1338 = vsel %vm479, %v1273, 0
      %v1341 = vsel %vm479, %v1274, 0
      %v1344 = vsel %vm479, %v1275, 0
      %v1347 = vsel %vm479, %v1276, 0
      %1349 = vmatprep.subr.bf16.mxu0 0
      %1350 = vmatpush1.bf16.msra.mxu0 0
      %1351 = vmatprep.subr.bf16.mxu0 0
      %1352 = vmatpush1.bf16.msra.mxu0 0
      %1353 = vmatprep.subr.bf16.mxu0 0
      %1354 = vmatpush1.bf16.msra.mxu0 0
      %1355 = vmatprep.subr.bf16.mxu0 0
      %1356 = vmatpush1.bf16.msra.mxu0 0
      %1357 = vmatprep.subr.bf16.mxu0 0
      %1358 = vmatpush1.bf16.msra.mxu0 %v1296
      %1359 = vmatprep.subr.bf16.mxu0 0
      %1360 = vmatpush1.bf16.msra.mxu0 %v1295
      %1361 = vmatprep.subr.bf16.mxu0 0
      %1362 = vmatpush1.bf16.msra.mxu0 %v1294
      %1363 = vmatprep.subr.bf16.mxu0 0
      %1364 = vmatpush1.bf16.msra.mxu0 %v1293
      %1365 = vmatprep.subr.bf16.mxu0 0
      %1366 = vmatpush2.bf16.msra.mxu0 0
      %1367 = vmatprep.subr.bf16.mxu0 0
      %1368 = vmatpush2.bf16.msra.mxu0 0
      %1369 = vmatprep.subr.bf16.mxu0 0
      %1370 = vmatpush2.bf16.msra.mxu0 0
      %1371 = vmatprep.subr.bf16.mxu0 0
      %1372 = vmatpush2.bf16.msra.mxu0 0
      %1373 = vmatprep.subr.bf16.mxu0 0
      %1374 = vmatpush2.bf16.msra.mxu0 0
      %1375 = vmatprep.subr.bf16.mxu0 0
      %1376 = vmatpush2.bf16.msra.mxu0 0
      %1377 = vmatprep.subr.bf16.mxu0 0
      %1378 = vmatpush2.bf16.msra.mxu0 0
      %1379 = vmatprep.subr.bf16.mxu0 0
      %1380 = vmatpush2.bf16.msra.mxu0 0
      %1381 = vmatprep.mubr.bf16.mxu0 0
      %1382 = vmatmul.mubr.bf16.gmra.mxu0 %v1302
      %v1383 = vpop.f32.mrf.mxu0
      %v1384 = vadd.f32 0.0, %v1383
      %v1385 = vpop.f32.mrf.mxu0
      %v1386 = vpop.f32.mrf.mxu0
      %v1387 = vadd.f32 0.0, %v1386
      %v1388 = vpop.f32.mrf.mxu0
      %1389 = vmatprep.mubr.bf16.mxu0 0
      %1390 = vmatmul.mubr.bf16.gmra.mxu0 %v1305
      %v1391 = vpop.f32.mrf.mxu0
      %v1392 = vadd.f32 0.0, %v1391
      %v1393 = vpop.f32.mrf.mxu0
      %v1394 = vpop.f32.mrf.mxu0
      %v1395 = vadd.f32 0.0, %v1394
      %v1396 = vpop.f32.mrf.mxu0
      %1397 = vmatprep.mubr.bf16.mxu0 0
      %1398 = vmatmul.mubr.bf16.gmra.mxu0 %v1308
      %v1399 = vpop.f32.mrf.mxu0
      %v1400 = vadd.f32 0.0, %v1399
      %v1401 = vpop.f32.mrf.mxu0
      %v1402 = vpop.f32.mrf.mxu0
      %v1403 = vadd.f32 0.0, %v1402
      %v1404 = vpop.f32.mrf.mxu0
      %1405 = vmatprep.mubr.bf16.mxu0 0
      %1406 = vmatmul.mubr.bf16.gmra.mxu0 %v1311
      %v1407 = vpop.f32.mrf.mxu0
      %v1408 = vadd.f32 0.0, %v1407
      %v1409 = vpop.f32.mrf.mxu0
      %v1410 = vpop.f32.mrf.mxu0
      %v1411 = vadd.f32 0.0, %v1410
      %v1412 = vpop.f32.mrf.mxu0
      %1413 = vmatprep.mubr.bf16.mxu0 0
      %1414 = vmatmul.mubr.bf16.gmra.mxu0 %v1314
      %v1415 = vpop.f32.mrf.mxu0
      %v1416 = vadd.f32 0.0, %v1415
      %v1417 = vpop.f32.mrf.mxu0
      %v1418 = vpop.f32.mrf.mxu0
      %v1419 = vadd.f32 0.0, %v1418
      %v1420 = vpop.f32.mrf.mxu0
      %1421 = vmatprep.mubr.bf16.mxu0 0
      %1422 = vmatmul.mubr.bf16.gmra.mxu0 %v1317
      %v1423 = vpop.f32.mrf.mxu0
      %v1424 = vadd.f32 0.0, %v1423
      %v1425 = vpop.f32.mrf.mxu0
      %v1426 = vpop.f32.mrf.mxu0
      %v1427 = vadd.f32 0.0, %v1426
      %v1428 = vpop.f32.mrf.mxu0
      %1429 = vmatprep.mubr.bf16.mxu0 0
      %1430 = vmatmul.mubr.bf16.gmra.mxu0 %v1320
      %v1431 = vpop.f32.mrf.mxu0
      %v1432 = vadd.f32 0.0, %v1431
      %v1433 = vpop.f32.mrf.mxu0
      %v1434 = vpop.f32.mrf.mxu0
      %v1435 = vadd.f32 0.0, %v1434
      %v1436 = vpop.f32.mrf.mxu0
      %1437 = vmatprep.mubr.bf16.mxu0 0
      %1438 = vmatmul.mubr.bf16.gmra.mxu0 %v1323
      %v1439 = vpop.f32.mrf.mxu0
      %v1440 = vadd.f32 0.0, %v1439
      %v1441 = vpop.f32.mrf.mxu0
      %v1442 = vpop.f32.mrf.mxu0
      %v1443 = vadd.f32 0.0, %v1442
      %v1444 = vpop.f32.mrf.mxu0
      %1445 = vmatprep.mubr.bf16.mxu0 0
      %1446 = vmatmul.mubr.bf16.gmra.mxu0 %v1326
      %v1447 = vpop.f32.mrf.mxu0
      %v1448 = vadd.f32 0.0, %v1447
      %v1449 = vpop.f32.mrf.mxu0
      %v1450 = vpop.f32.mrf.mxu0
      %v1451 = vadd.f32 0.0, %v1450
      %v1452 = vpop.f32.mrf.mxu0
      %1453 = vmatprep.mubr.bf16.mxu0 0
      %1454 = vmatmul.mubr.bf16.gmra.mxu0 %v1329
      %v1455 = vpop.f32.mrf.mxu0
      %v1456 = vadd.f32 0.0, %v1455
      %v1457 = vpop.f32.mrf.mxu0
      %v1458 = vpop.f32.mrf.mxu0
      %v1459 = vadd.f32 0.0, %v1458
      %v1460 = vpop.f32.mrf.mxu0
      %1461 = vmatprep.mubr.bf16.mxu0 0
      %1462 = vmatmul.mubr.bf16.gmra.mxu0 %v1332
      %v1463 = vpop.f32.mrf.mxu0
      %v1464 = vadd.f32 0.0, %v1463
      %v1465 = vpop.f32.mrf.mxu0
      %v1466 = vpop.f32.mrf.mxu0
      %v1467 = vadd.f32 0.0, %v1466
      %v1468 = vpop.f32.mrf.mxu0
      %1469 = vmatprep.mubr.bf16.mxu0 0
      %1470 = vmatmul.mubr.bf16.gmra.mxu0 %v1335
      %v1471 = vpop.f32.mrf.mxu0
      %v1472 = vadd.f32 0.0, %v1471
      %v1473 = vpop.f32.mrf.mxu0
      %v1474 = vpop.f32.mrf.mxu0
      %v1475 = vadd.f32 0.0, %v1474
      %v1476 = vpop.f32.mrf.mxu0
      %1477 = vmatprep.mubr.bf16.mxu0 0
      %1478 = vmatmul.mubr.bf16.gmra.mxu0 %v1338
      %v1479 = vpop.f32.mrf.mxu0
      %v1480 = vadd.f32 0.0, %v1479
      %v1481 = vpop.f32.mrf.mxu0
      %v1482 = vpop.f32.mrf.mxu0
      %v1483 = vadd.f32 0.0, %v1482
      %v1484 = vpop.f32.mrf.mxu0
      %1485 = vmatprep.mubr.bf16.mxu0 0
      %1486 = vmatmul.mubr.bf16.gmra.mxu0 %v1341
      %v1487 = vpop.f32.mrf.mxu0
      %v1488 = vadd.f32 0.0, %v1487
      %v1489 = vpop.f32.mrf.mxu0
      %v1490 = vpop.f32.mrf.mxu0
      %v1491 = vadd.f32 0.0, %v1490
      %v1492 = vpop.f32.mrf.mxu0
      %1493 = vmatprep.mubr.bf16.mxu0 0
      %1494 = vmatmul.mubr.bf16.gmra.mxu0 %v1344
      %v1495 = vpop.f32.mrf.mxu0
      %v1496 = vadd.f32 0.0, %v1495
      %v1497 = vpop.f32.mrf.mxu0
      %v1498 = vpop.f32.mrf.mxu0
      %v1499 = vadd.f32 0.0, %v1498
      %v1500 = vpop.f32.mrf.mxu0
      %1501 = vmatprep.mubr.bf16.mxu0 0
      %1502 = vmatmul.mubr.bf16.gmra.mxu0 %v1347
      %v1503 = vpop.f32.mrf.mxu0
      %v1504 = vadd.f32 0.0, %v1503
      %v1505 = vpop.f32.mrf.mxu0
      %v1506 = vpop.f32.mrf.mxu0
      %v1507 = vadd.f32 0.0, %v1506
      %v1508 = vpop.f32.mrf.mxu0
      %1509 = vdwg.mxu0
      %v1510 = vld [vmem:[#allocation2] sm:$0xff]
      %v1511 = vld [vmem:[#allocation2 + $0x8] sm:$0xff]
      %v1512 = vld [vmem:[#allocation2 + $0x10] sm:$0xff]
      %v1513 = vld [vmem:[#allocation2 + $0x18] sm:$0xff]
      %v1514 = vld [vmem:[#allocation2 + $0x20] sm:$0xff]
      %v1515 = vld [vmem:[#allocation2 + $0x28] sm:$0xff]
      %v1516 = vld [vmem:[#allocation2 + $0x30] sm:$0xff]
      %v1517 = vld [vmem:[#allocation2 + $0x38] sm:$0xff]
      %v1518 = vld [vmem:[#allocation2 + $0x40] sm:$0xff]
      %v1519 = vld [vmem:[#allocation2 + $0x48] sm:$0xff]
      %v1520 = vld [vmem:[#allocation2 + $0x50] sm:$0xff]
      %v1521 = vld [vmem:[#allocation2 + $0x58] sm:$0xff]
      %v1522 = vld [vmem:[#allocation2 + $0x60] sm:$0xff]
      %v1523 = vld [vmem:[#allocation2 + $0x68] sm:$0xff]
      %v1524 = vld [vmem:[#allocation2 + $0x70] sm:$0xff]
      %v1525 = vld [vmem:[#allocation2 + $0x78] sm:$0xff]
      %v1526 = vld [vmem:[#allocation2 + $0x80] sm:$0xff]
      %v1527 = vld [vmem:[#allocation2 + $0x88] sm:$0xff]
      %v1528 = vld [vmem:[#allocation2 + $0x90] sm:$0xff]
      %v1529 = vld [vmem:[#allocation2 + $0x98] sm:$0xff]
      %v1530 = vld [vmem:[#allocation2 + $0xa0] sm:$0xff]
      %v1531 = vld [vmem:[#allocation2 + $0xa8] sm:$0xff]
      %v1532 = vld [vmem:[#allocation2 + $0xb0] sm:$0xff]
      %v1533 = vld [vmem:[#allocation2 + $0xb8] sm:$0xff]
      %v1534 = vld [vmem:[#allocation2 + $0xc0] sm:$0xff]
      %v1535 = vld [vmem:[#allocation2 + $0xc8] sm:$0xff]
      %v1536 = vld [vmem:[#allocation2 + $0xd0] sm:$0xff]
      %v1537 = vld [vmem:[#allocation2 + $0xd8] sm:$0xff]
      %v1538 = vld [vmem:[#allocation2 + $0xe0] sm:$0xff]
      %v1539 = vld [vmem:[#allocation2 + $0xe8] sm:$0xff]
      %v1540 = vld [vmem:[#allocation2 + $0xf0] sm:$0xff]
      %v1541 = vld [vmem:[#allocation2 + $0xf8] sm:$0xff]
      %v1542 = vadd.f32 %v1510, %v1384
      %v1543 = vadd.f32 %v1511, %v1387
      %v1544 = vadd.f32 %v1512, %v1392
      %v1545 = vadd.f32 %v1513, %v1395
      %v1546 = vadd.f32 %v1514, %v1400
      %v1547 = vadd.f32 %v1515, %v1403
      %v1548 = vadd.f32 %v1516, %v1408
      %v1549 = vadd.f32 %v1517, %v1411
      %v1550 = vadd.f32 %v1518, %v1416
      %v1551 = vadd.f32 %v1519, %v1419
      %v1552 = vadd.f32 %v1520, %v1424
      %v1553 = vadd.f32 %v1521, %v1427
      %v1554 = vadd.f32 %v1522, %v1432
      %v1555 = vadd.f32 %v1523, %v1435
      %v1556 = vadd.f32 %v1524, %v1440
      %v1557 = vadd.f32 %v1525, %v1443
      %v1558 = vadd.f32 %v1526, %v1448
      %v1559 = vadd.f32 %v1527, %v1451
      %v1560 = vadd.f32 %v1528, %v1456
      %v1561 = vadd.f32 %v1529, %v1459
      %v1562 = vadd.f32 %v1530, %v1464
      %v1563 = vadd.f32 %v1531, %v1467
      %v1564 = vadd.f32 %v1532, %v1472
      %v1565 = vadd.f32 %v1533, %v1475
      %v1566 = vadd.f32 %v1534, %v1480
      %v1567 = vadd.f32 %v1535, %v1483
      %v1568 = vadd.f32 %v1536, %v1488
      %v1569 = vadd.f32 %v1537, %v1491
      %v1570 = vadd.f32 %v1538, %v1496
      %v1571 = vadd.f32 %v1539, %v1499
      %v1572 = vadd.f32 %v1540, %v1504
      %v1573 = vadd.f32 %v1541, %v1507
      %1574 = vst.msk [vmem:[#allocation2] sm:$0xff] %vm479, %v1542
      %1575 = vst.msk [vmem:[#allocation2 + $0x8] sm:$0xff] %vm479, %v1543
      %1576 = vst.msk [vmem:[#allocation2 + $0x10] sm:$0xff] %vm479, %v1544
      %1577 = vst.msk [vmem:[#allocation2 + $0x18] sm:$0xff] %vm479, %v1545
      %1578 = vst.msk [vmem:[#allocation2 + $0x20] sm:$0xff] %vm479, %v1546
      %1579 = vst.msk [vmem:[#allocation2 + $0x28] sm:$0xff] %vm479, %v1547
      %1580 = vst.msk [vmem:[#allocation2 + $0x30] sm:$0xff] %vm479, %v1548
      %1581 = vst.msk [vmem:[#allocation2 + $0x38] sm:$0xff] %vm479, %v1549
      %1582 = vst.msk [vmem:[#allocation2 + $0x40] sm:$0xff] %vm479, %v1550
      %1583 = vst.msk [vmem:[#allocation2 + $0x48] sm:$0xff] %vm479, %v1551
      %1584 = vst.msk [vmem:[#allocation2 + $0x50] sm:$0xff] %vm479, %v1552
      %1585 = vst.msk [vmem:[#allocation2 + $0x58] sm:$0xff] %vm479, %v1553
      %1586 = vst.msk [vmem:[#allocation2 + $0x60] sm:$0xff] %vm479, %v1554
      %1587 = vst.msk [vmem:[#allocation2 + $0x68] sm:$0xff] %vm479, %v1555
      %1588 = vst.msk [vmem:[#allocation2 + $0x70] sm:$0xff] %vm479, %v1556
      %1589 = vst.msk [vmem:[#allocation2 + $0x78] sm:$0xff] %vm479, %v1557
      %1590 = vst.msk [vmem:[#allocation2 + $0x80] sm:$0xff] %vm479, %v1558
      %1591 = vst.msk [vmem:[#allocation2 + $0x88] sm:$0xff] %vm479, %v1559
      %1592 = vst.msk [vmem:[#allocation2 + $0x90] sm:$0xff] %vm479, %v1560
      %1593 = vst.msk [vmem:[#allocation2 + $0x98] sm:$0xff] %vm479, %v1561
      %1594 = vst.msk [vmem:[#allocation2 + $0xa0] sm:$0xff] %vm479, %v1562
      %1595 = vst.msk [vmem:[#allocation2 + $0xa8] sm:$0xff] %vm479, %v1563
      %1596 = vst.msk [vmem:[#allocation2 + $0xb0] sm:$0xff] %vm479, %v1564
      %1597 = vst.msk [vmem:[#allocation2 + $0xb8] sm:$0xff] %vm479, %v1565
      %1598 = vst.msk [vmem:[#allocation2 + $0xc0] sm:$0xff] %vm479, %v1566
      %1599 = vst.msk [vmem:[#allocation2 + $0xc8] sm:$0xff] %vm479, %v1567
      %1600 = vst.msk [vmem:[#allocation2 + $0xd0] sm:$0xff] %vm479, %v1568
      %1601 = vst.msk [vmem:[#allocation2 + $0xd8] sm:$0xff] %vm479, %v1569
      %1602 = vst.msk [vmem:[#allocation2 + $0xe0] sm:$0xff] %vm479, %v1570
      %1603 = vst.msk [vmem:[#allocation2 + $0xe8] sm:$0xff] %vm479, %v1571
      %1604 = vst.msk [vmem:[#allocation2 + $0xf0] sm:$0xff] %vm479, %v1572
      %1605 = vst.msk [vmem:[#allocation2 + $0xf8] sm:$0xff] %vm479, %v1573
      %v1606 = vld [vmem:[%s273] sm:$0xe]
      %v1607 = vld [vmem:[%s273 + $0x4] sm:$0xf]
      %v1608 = vld [vmem:[%s273 + $0x8] sm:$0x1]
      %v1609 = vld [vmem:[%s273 + $0xc] sm:$0xe]
      %v1610 = vld [vmem:[%s273 + $0x10] sm:$0xf]
      %v1611 = vld [vmem:[%s273 + $0x14] sm:$0x1]
      %v1612 = vld [vmem:[%s273 + $0x18] sm:$0xe]
      %v1613 = vld [vmem:[%s273 + $0x1c] sm:$0xf]
      %v1614 = vld [vmem:[%s273 + $0x20] sm:$0x1]
      %v1615 = vld [vmem:[%s273 + $0x24] sm:$0xe]
      %v1616 = vld [vmem:[%s273 + $0x28] sm:$0xf]
      %v1617 = vld [vmem:[%s273 + $0x2c] sm:$0x1]
      %v1618 = vld [vmem:[%s273 + $0x30] sm:$0xe]
      %v1619 = vld [vmem:[%s273 + $0x34] sm:$0xf]
      %v1620 = vld [vmem:[%s273 + $0x38] sm:$0x1]
      %v1621 = vld [vmem:[%s273 + $0x3c] sm:$0xe]
      %v1622 = vld [vmem:[%s273 + $0x40] sm:$0xf]
      %v1623 = vld [vmem:[%s273 + $0x44] sm:$0x1]
      %v1624 = vld [vmem:[%s273 + $0x48] sm:$0xe]
      %v1625 = vld [vmem:[%s273 + $0x4c] sm:$0xf]
      %v1626 = vld [vmem:[%s273 + $0x50] sm:$0x1]
      %v1627 = vld [vmem:[%s273 + $0x54] sm:$0xe]
      %v1628 = vld [vmem:[%s273 + $0x58] sm:$0xf]
      %v1629 = vld [vmem:[%s273 + $0x5c] sm:$0x1]
      %v1630 = vld [vmem:[%s273 + $0x60] sm:$0xe]
      %v1631 = vld [vmem:[%s273 + $0x64] sm:$0xf]
      %v1632 = vld [vmem:[%s273 + $0x68] sm:$0x1]
      %v1633 = vld [vmem:[%s273 + $0x6c] sm:$0xe]
      %v1634 = vld [vmem:[%s273 + $0x70] sm:$0xf]
      %v1635 = vld [vmem:[%s273 + $0x74] sm:$0x1]
      %v1636 = vld [vmem:[%s273 + $0x78] sm:$0xe]
      %v1637 = vld [vmem:[%s273 + $0x7c] sm:$0xf]
      %v1638 = vld [vmem:[%s273 + $0x80] sm:$0x1]
      %v1639 = vld [vmem:[%s273 + $0x84] sm:$0xe]
      %v1640 = vld [vmem:[%s273 + $0x88] sm:$0xf]
      %v1641 = vld [vmem:[%s273 + $0x8c] sm:$0x1]
      %v1642 = vld [vmem:[%s273 + $0x90] sm:$0xe]
      %v1643 = vld [vmem:[%s273 + $0x94] sm:$0xf]
      %v1644 = vld [vmem:[%s273 + $0x98] sm:$0x1]
      %v1645 = vld [vmem:[%s273 + $0x9c] sm:$0xe]
      %v1646 = vld [vmem:[%s273 + $0xa0] sm:$0xf]
      %v1647 = vld [vmem:[%s273 + $0xa4] sm:$0x1]
      %v1648 = vld [vmem:[%s273 + $0xa8] sm:$0xe]
      %v1649 = vld [vmem:[%s273 + $0xac] sm:$0xf]
      %v1650 = vld [vmem:[%s273 + $0xb0] sm:$0x1]
      %v1651 = vld [vmem:[%s273 + $0xb4] sm:$0xe]
      %v1652 = vld [vmem:[%s273 + $0xb8] sm:$0xf]
      %v1653 = vld [vmem:[%s273 + $0xbc] sm:$0x1]
      %vm1702 = vcmask 1042432
      %vm1703 = vcmask 1046532
      %vm1704 = vmor %vm1702, %vm1703
      %v1705 = vrot.slane %v1606, 5
      %v1706 = vrot.slane %v1705, 4
      %v1707 = vrot.slane %v1607, 5
      %v1708 = vsel %vm1704, %v1706, %v1707
      %v1709 = vrot.slane %v1707, 4
      %v1710 = vrot.slane %v1608, 5
      %v1711 = vsel %vm1704, %v1709, %v1710
      %v1712 = vrot.slane %v1609, 5
      %v1713 = vrot.slane %v1712, 4
      %v1714 = vrot.slane %v1610, 5
      %v1715 = vsel %vm1704, %v1713, %v1714
      %v1716 = vrot.slane %v1714, 4
      %v1717 = vrot.slane %v1611, 5
      %v1718 = vsel %vm1704, %v1716, %v1717
      %v1719 = vrot.slane %v1612, 5
      %v1720 = vrot.slane %v1719, 4
      %v1721 = vrot.slane %v1613, 5
      %v1722 = vsel %vm1704, %v1720, %v1721
      %v1723 = vrot.slane %v1721, 4
      %v1724 = vrot.slane %v1614, 5
      %v1725 = vsel %vm1704, %v1723, %v1724
      %v1726 = vrot.slane %v1615, 5
      %v1727 = vrot.slane %v1726, 4
      %v1728 = vrot.slane %v1616, 5
      %v1729 = vsel %vm1704, %v1727, %v1728
      %v1730 = vrot.slane %v1728, 4
      %v1731 = vrot.slane %v1617, 5
      %v1732 = vsel %vm1704, %v1730, %v1731
      %v1733 = vrot.slane %v1618, 5
      %v1734 = vrot.slane %v1733, 4
      %v1735 = vrot.slane %v1619, 5
      %v1736 = vsel %vm1704, %v1734, %v1735
      %v1737 = vrot.slane %v1735, 4
      %v1738 = vrot.slane %v1620, 5
      %v1739 = vsel %vm1704, %v1737, %v1738
      %v1740 = vrot.slane %v1621, 5
      %v1741 = vrot.slane %v1740, 4
      %v1742 = vrot.slane %v1622, 5
      %v1743 = vsel %vm1704, %v1741, %v1742
      %v1744 = vrot.slane %v1742, 4
      %v1745 = vrot.slane %v1623, 5
      %v1746 = vsel %vm1704, %v1744, %v1745
      %v1747 = vrot.slane %v1624, 5
      %v1748 = vrot.slane %v1747, 4
      %v1749 = vrot.slane %v1625, 5
      %v1750 = vsel %vm1704, %v1748, %v1749
      %v1751 = vrot.slane %v1749, 4
      %v1752 = vrot.slane %v1626, 5
      %v1753 = vsel %vm1704, %v1751, %v1752
      %v1754 = vrot.slane %v1627, 5
      %v1755 = vrot.slane %v1754, 4
      %v1756 = vrot.slane %v1628, 5
      %v1757 = vsel %vm1704, %v1755, %v1756
      %v1758 = vrot.slane %v1756, 4
      %v1759 = vrot.slane %v1629, 5
      %v1760 = vsel %vm1704, %v1758, %v1759
      %v1761 = vrot.slane %v1630, 5
      %v1762 = vrot.slane %v1761, 4
      %v1763 = vrot.slane %v1631, 5
      %v1764 = vsel %vm1704, %v1762, %v1763
      %v1765 = vrot.slane %v1763, 4
      %v1766 = vrot.slane %v1632, 5
      %v1767 = vsel %vm1704, %v1765, %v1766
      %v1768 = vrot.slane %v1633, 5
      %v1769 = vrot.slane %v1768, 4
      %v1770 = vrot.slane %v1634, 5
      %v1771 = vsel %vm1704, %v1769, %v1770
      %v1772 = vrot.slane %v1770, 4
      %v1773 = vrot.slane %v1635, 5
      %v1774 = vsel %vm1704, %v1772, %v1773
      %v1775 = vrot.slane %v1636, 5
      %v1776 = vrot.slane %v1775, 4
      %v1777 = vrot.slane %v1637, 5
      %v1778 = vsel %vm1704, %v1776, %v1777
      %v1779 = vrot.slane %v1777, 4
      %v1780 = vrot.slane %v1638, 5
      %v1781 = vsel %vm1704, %v1779, %v1780
      %v1782 = vrot.slane %v1639, 5
      %v1783 = vrot.slane %v1782, 4
      %v1784 = vrot.slane %v1640, 5
      %v1785 = vsel %vm1704, %v1783, %v1784
      %v1786 = vrot.slane %v1784, 4
      %v1787 = vrot.slane %v1641, 5
      %v1788 = vsel %vm1704, %v1786, %v1787
      %v1789 = vrot.slane %v1642, 5
      %v1790 = vrot.slane %v1789, 4
      %v1791 = vrot.slane %v1643, 5
      %v1792 = vsel %vm1704, %v1790, %v1791
      %v1793 = vrot.slane %v1791, 4
      %v1794 = vrot.slane %v1644, 5
      %v1795 = vsel %vm1704, %v1793, %v1794
      %v1796 = vrot.slane %v1645, 5
      %v1797 = vrot.slane %v1796, 4
      %v1798 = vrot.slane %v1646, 5
      %v1799 = vsel %vm1704, %v1797, %v1798
      %v1800 = vrot.slane %v1798, 4
      %v1801 = vrot.slane %v1647, 5
      %v1802 = vsel %vm1704, %v1800, %v1801
      %v1803 = vrot.slane %v1648, 5
      %v1804 = vrot.slane %v1803, 4
      %v1805 = vrot.slane %v1649, 5
      %v1806 = vsel %vm1704, %v1804, %v1805
      %v1807 = vrot.slane %v1805, 4
      %v1808 = vrot.slane %v1650, 5
      %v1809 = vsel %vm1704, %v1807, %v1808
      %v1810 = vrot.slane %v1651, 5
      %v1811 = vrot.slane %v1810, 4
      %v1812 = vrot.slane %v1652, 5
      %v1813 = vsel %vm1704, %v1811, %v1812
      %v1814 = vrot.slane %v1812, 4
      %v1815 = vrot.slane %v1653, 5
      %v1816 = vsel %vm1704, %v1814, %v1815
      %s1817 = scalar_lea.vmem %s281, 64
      %v1818 = vld [vmem:[%s1817] sm:$0xf]
      %v1819 = vld [vmem:[%s1817 + $0x4] sm:$0xf]
      %v1820 = vld [vmem:[%s1817 + $0x8] sm:$0xf]
      %v1821 = vld [vmem:[%s1817 + $0xc] sm:$0xf]
      %v1822 = vld [vmem:[%s1817 + $0x10] sm:$0xf]
      %v1823 = vld [vmem:[%s1817 + $0x14] sm:$0xf]
      %v1824 = vld [vmem:[%s1817 + $0x18] sm:$0xf]
      %v1825 = vld [vmem:[%s1817 + $0x1c] sm:$0xf]
      %v1826 = vunpack.c.l.b16 %v1708
      %v1827 = vunpack.c.l.b16 %v1711
      %v1828 = vunpack.c.l.b16 %v1715
      %v1829 = vunpack.c.l.b16 %v1718
      %v1830 = vunpack.c.l.b16 %v1722
      %v1831 = vunpack.c.l.b16 %v1725
      %v1832 = vunpack.c.l.b16 %v1729
      %v1833 = vunpack.c.l.b16 %v1732
      %v1834 = vunpack.c.l.b16 %v1736
      %v1835 = vunpack.c.l.b16 %v1739
      %v1836 = vunpack.c.l.b16 %v1743
      %v1837 = vunpack.c.l.b16 %v1746
      %v1838 = vunpack.c.l.b16 %v1750
      %v1839 = vunpack.c.l.b16 %v1753
      %v1840 = vunpack.c.l.b16 %v1757
      %v1841 = vunpack.c.l.b16 %v1760
      %v1842 = vunpack.c.l.b16 %v1764
      %v1843 = vunpack.c.l.b16 %v1767
      %v1844 = vunpack.c.l.b16 %v1771
      %v1845 = vunpack.c.l.b16 %v1774
      %v1846 = vunpack.c.l.b16 %v1778
      %v1847 = vunpack.c.l.b16 %v1781
      %v1848 = vunpack.c.l.b16 %v1785
      %v1849 = vunpack.c.l.b16 %v1788
      %v1850 = vunpack.c.l.b16 %v1792
      %v1851 = vunpack.c.l.b16 %v1795
      %v1852 = vunpack.c.l.b16 %v1799
      %v1853 = vunpack.c.l.b16 %v1802
      %v1854 = vunpack.c.l.b16 %v1806
      %v1855 = vunpack.c.l.b16 %v1809
      %v1856 = vunpack.c.l.b16 %v1813
      %v1857 = vunpack.c.l.b16 %v1816
      %v1858 = vpack.c.b16 %v1827, %v1826
      %v1859 = vpack.c.b16 %v1829, %v1828
      %v1860 = vpack.c.b16 %v1831, %v1830
      %v1861 = vpack.c.b16 %v1833, %v1832
      %v1862 = vpack.c.b16 %v1835, %v1834
      %v1863 = vpack.c.b16 %v1837, %v1836
      %v1864 = vpack.c.b16 %v1839, %v1838
      %v1865 = vpack.c.b16 %v1841, %v1840
      %v1866 = vpack.c.b16 %v1843, %v1842
      %v1867 = vpack.c.b16 %v1845, %v1844
      %v1868 = vpack.c.b16 %v1847, %v1846
      %v1869 = vpack.c.b16 %v1849, %v1848
      %v1870 = vpack.c.b16 %v1851, %v1850
      %v1871 = vpack.c.b16 %v1853, %v1852
      %v1872 = vpack.c.b16 %v1855, %v1854
      %v1873 = vpack.c.b16 %v1857, %v1856
      %v1882 = vunpack.c.l.b16 %v1818
      %v1883 = vunpack.c.l.b16 %v1819
      %v1884 = vunpack.c.l.b16 %v1820
      %v1885 = vunpack.c.l.b16 %v1821
      %v1886 = vunpack.c.l.b16 %v1822
      %v1887 = vunpack.c.l.b16 %v1823
      %v1888 = vunpack.c.l.b16 %v1824
      %v1889 = vunpack.c.l.b16 %v1825
      %v1890 = vpack.c.b16 %v1883, %v1882
      %v1891 = vpack.c.b16 %v1885, %v1884
      %v1892 = vpack.c.b16 %v1887, %v1886
      %v1893 = vpack.c.b16 %v1889, %v1888
      %v1899 = vsel %vm479, %v1858, 0
      %v1902 = vsel %vm479, %v1859, 0
      %v1905 = vsel %vm479, %v1860, 0
      %v1908 = vsel %vm479, %v1861, 0
      %v1911 = vsel %vm479, %v1862, 0
      %v1914 = vsel %vm479, %v1863, 0
      %v1917 = vsel %vm479, %v1864, 0
      %v1920 = vsel %vm479, %v1865, 0
      %v1923 = vsel %vm479, %v1866, 0
      %v1926 = vsel %vm479, %v1867, 0
      %v1929 = vsel %vm479, %v1868, 0
      %v1932 = vsel %vm479, %v1869, 0
      %v1935 = vsel %vm479, %v1870, 0
      %v1938 = vsel %vm479, %v1871, 0
      %v1941 = vsel %vm479, %v1872, 0
      %v1944 = vsel %vm479, %v1873, 0
      %1946 = vmatprep.subr.bf16.mxu0 0
      %1947 = vmatpush1.bf16.msra.mxu0 0
      %1948 = vmatprep.subr.bf16.mxu0 0
      %1949 = vmatpush1.bf16.msra.mxu0 0
      %1950 = vmatprep.subr.bf16.mxu0 0
      %1951 = vmatpush1.bf16.msra.mxu0 0
      %1952 = vmatprep.subr.bf16.mxu0 0
      %1953 = vmatpush1.bf16.msra.mxu0 0
      %1954 = vmatprep.subr.bf16.mxu0 0
      %1955 = vmatpush1.bf16.msra.mxu0 %v1893
      %1956 = vmatprep.subr.bf16.mxu0 0
      %1957 = vmatpush1.bf16.msra.mxu0 %v1892
      %1958 = vmatprep.subr.bf16.mxu0 0
      %1959 = vmatpush1.bf16.msra.mxu0 %v1891
      %1960 = vmatprep.subr.bf16.mxu0 0
      %1961 = vmatpush1.bf16.msra.mxu0 %v1890
      %1962 = vmatprep.subr.bf16.mxu0 0
      %1963 = vmatpush2.bf16.msra.mxu0 0
      %1964 = vmatprep.subr.bf16.mxu0 0
      %1965 = vmatpush2.bf16.msra.mxu0 0
      %1966 = vmatprep.subr.bf16.mxu0 0
      %1967 = vmatpush2.bf16.msra.mxu0 0
      %1968 = vmatprep.subr.bf16.mxu0 0
      %1969 = vmatpush2.bf16.msra.mxu0 0
      %1970 = vmatprep.subr.bf16.mxu0 0
      %1971 = vmatpush2.bf16.msra.mxu0 0
      %1972 = vmatprep.subr.bf16.mxu0 0
      %1973 = vmatpush2.bf16.msra.mxu0 0
      %1974 = vmatprep.subr.bf16.mxu0 0
      %1975 = vmatpush2.bf16.msra.mxu0 0
      %1976 = vmatprep.subr.bf16.mxu0 0
      %1977 = vmatpush2.bf16.msra.mxu0 0
      %1978 = vmatprep.mubr.bf16.mxu0 0
      %1979 = vmatmul.mubr.bf16.gmra.mxu0 %v1899
      %v1980 = vpop.f32.mrf.mxu0
      %v1981 = vadd.f32 0.0, %v1980
      %v1982 = vpop.f32.mrf.mxu0
      %v1983 = vpop.f32.mrf.mxu0
      %v1984 = vadd.f32 0.0, %v1983
      %v1985 = vpop.f32.mrf.mxu0
      %1986 = vmatprep.mubr.bf16.mxu0 0
      %1987 = vmatmul.mubr.bf16.gmra.mxu0 %v1902
      %v1988 = vpop.f32.mrf.mxu0
      %v1989 = vadd.f32 0.0, %v1988
      %v1990 = vpop.f32.mrf.mxu0
      %v1991 = vpop.f32.mrf.mxu0
      %v1992 = vadd.f32 0.0, %v1991
      %v1993 = vpop.f32.mrf.mxu0
      %1994 = vmatprep.mubr.bf16.mxu0 0
      %1995 = vmatmul.mubr.bf16.gmra.mxu0 %v1905
      %v1996 = vpop.f32.mrf.mxu0
      %v1997 = vadd.f32 0.0, %v1996
      %v1998 = vpop.f32.mrf.mxu0
      %v1999 = vpop.f32.mrf.mxu0
      %v2000 = vadd.f32 0.0, %v1999
      %v2001 = vpop.f32.mrf.mxu0
      %2002 = vmatprep.mubr.bf16.mxu0 0
      %2003 = vmatmul.mubr.bf16.gmra.mxu0 %v1908
      %v2004 = vpop.f32.mrf.mxu0
      %v2005 = vadd.f32 0.0, %v2004
      %v2006 = vpop.f32.mrf.mxu0
      %v2007 = vpop.f32.mrf.mxu0
      %v2008 = vadd.f32 0.0, %v2007
      %v2009 = vpop.f32.mrf.mxu0
      %2010 = vmatprep.mubr.bf16.mxu0 0
      %2011 = vmatmul.mubr.bf16.gmra.mxu0 %v1911
      %v2012 = vpop.f32.mrf.mxu0
      %v2013 = vadd.f32 0.0, %v2012
      %v2014 = vpop.f32.mrf.mxu0
      %v2015 = vpop.f32.mrf.mxu0
      %v2016 = vadd.f32 0.0, %v2015
      %v2017 = vpop.f32.mrf.mxu0
      %2018 = vmatprep.mubr.bf16.mxu0 0
      %2019 = vmatmul.mubr.bf16.gmra.mxu0 %v1914
      %v2020 = vpop.f32.mrf.mxu0
      %v2021 = vadd.f32 0.0, %v2020
      %v2022 = vpop.f32.mrf.mxu0
      %v2023 = vpop.f32.mrf.mxu0
      %v2024 = vadd.f32 0.0, %v2023
      %v2025 = vpop.f32.mrf.mxu0
      %2026 = vmatprep.mubr.bf16.mxu0 0
      %2027 = vmatmul.mubr.bf16.gmra.mxu0 %v1917
      %v2028 = vpop.f32.mrf.mxu0
      %v2029 = vadd.f32 0.0, %v2028
      %v2030 = vpop.f32.mrf.mxu0
      %v2031 = vpop.f32.mrf.mxu0
      %v2032 = vadd.f32 0.0, %v2031
      %v2033 = vpop.f32.mrf.mxu0
      %2034 = vmatprep.mubr.bf16.mxu0 0
      %2035 = vmatmul.mubr.bf16.gmra.mxu0 %v1920
      %v2036 = vpop.f32.mrf.mxu0
      %v2037 = vadd.f32 0.0, %v2036
      %v2038 = vpop.f32.mrf.mxu0
      %v2039 = vpop.f32.mrf.mxu0
      %v2040 = vadd.f32 0.0, %v2039
      %v2041 = vpop.f32.mrf.mxu0
      %2042 = vmatprep.mubr.bf16.mxu0 0
      %2043 = vmatmul.mubr.bf16.gmra.mxu0 %v1923
      %v2044 = vpop.f32.mrf.mxu0
      %v2045 = vadd.f32 0.0, %v2044
      %v2046 = vpop.f32.mrf.mxu0
      %v2047 = vpop.f32.mrf.mxu0
      %v2048 = vadd.f32 0.0, %v2047
      %v2049 = vpop.f32.mrf.mxu0
      %2050 = vmatprep.mubr.bf16.mxu0 0
      %2051 = vmatmul.mubr.bf16.gmra.mxu0 %v1926
      %v2052 = vpop.f32.mrf.mxu0
      %v2053 = vadd.f32 0.0, %v2052
      %v2054 = vpop.f32.mrf.mxu0
      %v2055 = vpop.f32.mrf.mxu0
      %v2056 = vadd.f32 0.0, %v2055
      %v2057 = vpop.f32.mrf.mxu0
      %2058 = vmatprep.mubr.bf16.mxu0 0
      %2059 = vmatmul.mubr.bf16.gmra.mxu0 %v1929
      %v2060 = vpop.f32.mrf.mxu0
      %v2061 = vadd.f32 0.0, %v2060
      %v2062 = vpop.f32.mrf.mxu0
      %v2063 = vpop.f32.mrf.mxu0
      %v2064 = vadd.f32 0.0, %v2063
      %v2065 = vpop.f32.mrf.mxu0
      %2066 = vmatprep.mubr.bf16.mxu0 0
      %2067 = vmatmul.mubr.bf16.gmra.mxu0 %v1932
      %v2068 = vpop.f32.mrf.mxu0
      %v2069 = vadd.f32 0.0, %v2068
      %v2070 = vpop.f32.mrf.mxu0
      %v2071 = vpop.f32.mrf.mxu0
      %v2072 = vadd.f32 0.0, %v2071
      %v2073 = vpop.f32.mrf.mxu0
      %2074 = vmatprep.mubr.bf16.mxu0 0
      %2075 = vmatmul.mubr.bf16.gmra.mxu0 %v1935
      %v2076 = vpop.f32.mrf.mxu0
      %v2077 = vadd.f32 0.0, %v2076
      %v2078 = vpop.f32.mrf.mxu0
      %v2079 = vpop.f32.mrf.mxu0
      %v2080 = vadd.f32 0.0, %v2079
      %v2081 = vpop.f32.mrf.mxu0
      %2082 = vmatprep.mubr.bf16.mxu0 0
      %2083 = vmatmul.mubr.bf16.gmra.mxu0 %v1938
      %v2084 = vpop.f32.mrf.mxu0
      %v2085 = vadd.f32 0.0, %v2084
      %v2086 = vpop.f32.mrf.mxu0
      %v2087 = vpop.f32.mrf.mxu0
      %v2088 = vadd.f32 0.0, %v2087
      %v2089 = vpop.f32.mrf.mxu0
      %2090 = vmatprep.mubr.bf16.mxu0 0
      %2091 = vmatmul.mubr.bf16.gmra.mxu0 %v1941
      %v2092 = vpop.f32.mrf.mxu0
      %v2093 = vadd.f32 0.0, %v2092
      %v2094 = vpop.f32.mrf.mxu0
      %v2095 = vpop.f32.mrf.mxu0
      %v2096 = vadd.f32 0.0, %v2095
      %v2097 = vpop.f32.mrf.mxu0
      %2098 = vmatprep.mubr.bf16.mxu0 0
      %2099 = vmatmul.mubr.bf16.gmra.mxu0 %v1944
      %v2100 = vpop.f32.mrf.mxu0
      %v2101 = vadd.f32 0.0, %v2100
      %v2102 = vpop.f32.mrf.mxu0
      %v2103 = vpop.f32.mrf.mxu0
      %v2104 = vadd.f32 0.0, %v2103
      %v2105 = vpop.f32.mrf.mxu0
      %2106 = vdwg.mxu0
      %v2107 = vld [vmem:[#allocation2] sm:$0xff]
      %v2108 = vld [vmem:[#allocation2 + $0x8] sm:$0xff]
      %v2109 = vld [vmem:[#allocation2 + $0x10] sm:$0xff]
      %v2110 = vld [vmem:[#allocation2 + $0x18] sm:$0xff]
      %v2111 = vld [vmem:[#allocation2 + $0x20] sm:$0xff]
      %v2112 = vld [vmem:[#allocation2 + $0x28] sm:$0xff]
      %v2113 = vld [vmem:[#allocation2 + $0x30] sm:$0xff]
      %v2114 = vld [vmem:[#allocation2 + $0x38] sm:$0xff]
      %v2115 = vld [vmem:[#allocation2 + $0x40] sm:$0xff]
      %v2116 = vld [vmem:[#allocation2 + $0x48] sm:$0xff]
      %v2117 = vld [vmem:[#allocation2 + $0x50] sm:$0xff]
      %v2118 = vld [vmem:[#allocation2 + $0x58] sm:$0xff]
      %v2119 = vld [vmem:[#allocation2 + $0x60] sm:$0xff]
      %v2120 = vld [vmem:[#allocation2 + $0x68] sm:$0xff]
      %v2121 = vld [vmem:[#allocation2 + $0x70] sm:$0xff]
      %v2122 = vld [vmem:[#allocation2 + $0x78] sm:$0xff]
      %v2123 = vld [vmem:[#allocation2 + $0x80] sm:$0xff]
      %v2124 = vld [vmem:[#allocation2 + $0x88] sm:$0xff]
      %v2125 = vld [vmem:[#allocation2 + $0x90] sm:$0xff]
      %v2126 = vld [vmem:[#allocation2 + $0x98] sm:$0xff]
      %v2127 = vld [vmem:[#allocation2 + $0xa0] sm:$0xff]
      %v2128 = vld [vmem:[#allocation2 + $0xa8] sm:$0xff]
      %v2129 = vld [vmem:[#allocation2 + $0xb0] sm:$0xff]
      %v2130 = vld [vmem:[#allocation2 + $0xb8] sm:$0xff]
      %v2131 = vld [vmem:[#allocation2 + $0xc0] sm:$0xff]
      %v2132 = vld [vmem:[#allocation2 + $0xc8] sm:$0xff]
      %v2133 = vld [vmem:[#allocation2 + $0xd0] sm:$0xff]
      %v2134 = vld [vmem:[#allocation2 + $0xd8] sm:$0xff]
      %v2135 = vld [vmem:[#allocation2 + $0xe0] sm:$0xff]
      %v2136 = vld [vmem:[#allocation2 + $0xe8] sm:$0xff]
      %v2137 = vld [vmem:[#allocation2 + $0xf0] sm:$0xff]
      %v2138 = vld [vmem:[#allocation2 + $0xf8] sm:$0xff]
      %v2139 = vadd.f32 %v2107, %v1981
      %v2140 = vadd.f32 %v2108, %v1984
      %v2141 = vadd.f32 %v2109, %v1989
      %v2142 = vadd.f32 %v2110, %v1992
      %v2143 = vadd.f32 %v2111, %v1997
      %v2144 = vadd.f32 %v2112, %v2000
      %v2145 = vadd.f32 %v2113, %v2005
      %v2146 = vadd.f32 %v2114, %v2008
      %v2147 = vadd.f32 %v2115, %v2013
      %v2148 = vadd.f32 %v2116, %v2016
      %v2149 = vadd.f32 %v2117, %v2021
      %v2150 = vadd.f32 %v2118, %v2024
      %v2151 = vadd.f32 %v2119, %v2029
      %v2152 = vadd.f32 %v2120, %v2032
      %v2153 = vadd.f32 %v2121, %v2037
      %v2154 = vadd.f32 %v2122, %v2040
      %v2155 = vadd.f32 %v2123, %v2045
      %v2156 = vadd.f32 %v2124, %v2048
      %v2157 = vadd.f32 %v2125, %v2053
      %v2158 = vadd.f32 %v2126, %v2056
      %v2159 = vadd.f32 %v2127, %v2061
      %v2160 = vadd.f32 %v2128, %v2064
      %v2161 = vadd.f32 %v2129, %v2069
      %v2162 = vadd.f32 %v2130, %v2072
      %v2163 = vadd.f32 %v2131, %v2077
      %v2164 = vadd.f32 %v2132, %v2080
      %v2165 = vadd.f32 %v2133, %v2085
      %v2166 = vadd.f32 %v2134, %v2088
      %v2167 = vadd.f32 %v2135, %v2093
      %v2168 = vadd.f32 %v2136, %v2096
      %v2169 = vadd.f32 %v2137, %v2101
      %v2170 = vadd.f32 %v2138, %v2104
      %2171 = vst.msk [vmem:[#allocation2] sm:$0xff] %vm479, %v2139
      %2172 = vst.msk [vmem:[#allocation2 + $0x8] sm:$0xff] %vm479, %v2140
      %2173 = vst.msk [vmem:[#allocation2 + $0x10] sm:$0xff] %vm479, %v2141
      %2174 = vst.msk [vmem:[#allocation2 + $0x18] sm:$0xff] %vm479, %v2142
      %2175 = vst.msk [vmem:[#allocation2 + $0x20] sm:$0xff] %vm479, %v2143
      %2176 = vst.msk [vmem:[#allocation2 + $0x28] sm:$0xff] %vm479, %v2144
      %2177 = vst.msk [vmem:[#allocation2 + $0x30] sm:$0xff] %vm479, %v2145
      %2178 = vst.msk [vmem:[#allocation2 + $0x38] sm:$0xff] %vm479, %v2146
      %2179 = vst.msk [vmem:[#allocation2 + $0x40] sm:$0xff] %vm479, %v2147
      %2180 = vst.msk [vmem:[#allocation2 + $0x48] sm:$0xff] %vm479, %v2148
      %2181 = vst.msk [vmem:[#allocation2 + $0x50] sm:$0xff] %vm479, %v2149
      %2182 = vst.msk [vmem:[#allocation2 + $0x58] sm:$0xff] %vm479, %v2150
      %2183 = vst.msk [vmem:[#allocation2 + $0x60] sm:$0xff] %vm479, %v2151
      %2184 = vst.msk [vmem:[#allocation2 + $0x68] sm:$0xff] %vm479, %v2152
      %2185 = vst.msk [vmem:[#allocation2 + $0x70] sm:$0xff] %vm479, %v2153
      %2186 = vst.msk [vmem:[#allocation2 + $0x78] sm:$0xff] %vm479, %v2154
      %2187 = vst.msk [vmem:[#allocation2 + $0x80] sm:$0xff] %vm479, %v2155
      %2188 = vst.msk [vmem:[#allocation2 + $0x88] sm:$0xff] %vm479, %v2156
      %2189 = vst.msk [vmem:[#allocation2 + $0x90] sm:$0xff] %vm479, %v2157
      %2190 = vst.msk [vmem:[#allocation2 + $0x98] sm:$0xff] %vm479, %v2158
      %2191 = vst.msk [vmem:[#allocation2 + $0xa0] sm:$0xff] %vm479, %v2159
      %2192 = vst.msk [vmem:[#allocation2 + $0xa8] sm:$0xff] %vm479, %v2160
      %2193 = vst.msk [vmem:[#allocation2 + $0xb0] sm:$0xff] %vm479, %v2161
      %2194 = vst.msk [vmem:[#allocation2 + $0xb8] sm:$0xff] %vm479, %v2162
      %2195 = vst.msk [vmem:[#allocation2 + $0xc0] sm:$0xff] %vm479, %v2163
      %2196 = vst.msk [vmem:[#allocation2 + $0xc8] sm:$0xff] %vm479, %v2164
      %2197 = vst.msk [vmem:[#allocation2 + $0xd0] sm:$0xff] %vm479, %v2165
      %2198 = vst.msk [vmem:[#allocation2 + $0xd8] sm:$0xff] %vm479, %v2166
      %2199 = vst.msk [vmem:[#allocation2 + $0xe0] sm:$0xff] %vm479, %v2167
      %2200 = vst.msk [vmem:[#allocation2 + $0xe8] sm:$0xff] %vm479, %v2168
      %2201 = vst.msk [vmem:[#allocation2 + $0xf0] sm:$0xff] %vm479, %v2169
      %2202 = vst.msk [vmem:[#allocation2 + $0xf8] sm:$0xff] %vm479, %v2170
      %s2203 = scalar_lea.vmem %s273, 12
      %v2204 = vld [vmem:[%s2203] sm:$0xf]
      %v2205 = vld [vmem:[%s2203 + $0x4] sm:$0xf]
      %v2206 = vld [vmem:[%s2203 + $0xc] sm:$0xf]
      %v2207 = vld [vmem:[%s2203 + $0x10] sm:$0xf]
      %v2208 = vld [vmem:[%s2203 + $0x18] sm:$0xf]
      %v2209 = vld [vmem:[%s2203 + $0x1c] sm:$0xf]
      %v2210 = vld [vmem:[%s2203 + $0x24] sm:$0xf]
      %v2211 = vld [vmem:[%s2203 + $0x28] sm:$0xf]
      %v2212 = vld [vmem:[%s2203 + $0x30] sm:$0xf]
      %v2213 = vld [vmem:[%s2203 + $0x34] sm:$0xf]
      %v2214 = vld [vmem:[%s2203 + $0x3c] sm:$0xf]
      %v2215 = vld [vmem:[%s2203 + $0x40] sm:$0xf]
      %v2216 = vld [vmem:[%s2203 + $0x48] sm:$0xf]
      %v2217 = vld [vmem:[%s2203 + $0x4c] sm:$0xf]
      %v2218 = vld [vmem:[%s2203 + $0x54] sm:$0xf]
      %v2219 = vld [vmem:[%s2203 + $0x58] sm:$0xf]
      %v2220 = vld [vmem:[%s2203 + $0x60] sm:$0xf]
      %v2221 = vld [vmem:[%s2203 + $0x64] sm:$0xf]
      %v2222 = vld [vmem:[%s2203 + $0x6c] sm:$0xf]
      %v2223 = vld [vmem:[%s2203 + $0x70] sm:$0xf]
      %v2224 = vld [vmem:[%s2203 + $0x78] sm:$0xf]
      %v2225 = vld [vmem:[%s2203 + $0x7c] sm:$0xf]
      %v2226 = vld [vmem:[%s2203 + $0x84] sm:$0xf]
      %v2227 = vld [vmem:[%s2203 + $0x88] sm:$0xf]
      %v2228 = vld [vmem:[%s2203 + $0x90] sm:$0xf]
      %v2229 = vld [vmem:[%s2203 + $0x94] sm:$0xf]
      %v2230 = vld [vmem:[%s2203 + $0x9c] sm:$0xf]
      %v2231 = vld [vmem:[%s2203 + $0xa0] sm:$0xf]
      %v2232 = vld [vmem:[%s2203 + $0xa8] sm:$0xf]
      %v2233 = vld [vmem:[%s2203 + $0xac] sm:$0xf]
      %v2234 = vld [vmem:[%s2203 + $0xb4] sm:$0xf]
      %v2235 = vld [vmem:[%s2203 + $0xb8] sm:$0xf]
      %s2236 = scalar_lea.vmem %s281, 96
      %v2237 = vld [vmem:[%s2236] sm:$0xf]
      %v2238 = vld [vmem:[%s2236 + $0x4] sm:$0xf]
      %v2239 = vld [vmem:[%s2236 + $0x8] sm:$0xf]
      %v2240 = vld [vmem:[%s2236 + $0xc] sm:$0xf]
      %v2241 = vld [vmem:[%s2236 + $0x10] sm:$0xf]
      %v2242 = vld [vmem:[%s2236 + $0x14] sm:$0xf]
      %v2243 = vld [vmem:[%s2236 + $0x18] sm:$0xf]
      %v2244 = vld [vmem:[%s2236 + $0x1c] sm:$0xf]
      %v2277 = vunpack.c.l.b16 %v2204
      %v2278 = vunpack.c.l.b16 %v2205
      %v2279 = vunpack.c.l.b16 %v2206
      %v2280 = vunpack.c.l.b16 %v2207
      %v2281 = vunpack.c.l.b16 %v2208
      %v2282 = vunpack.c.l.b16 %v2209
      %v2283 = vunpack.c.l.b16 %v2210
      %v2284 = vunpack.c.l.b16 %v2211
      %v2285 = vunpack.c.l.b16 %v2212
      %v2286 = vunpack.c.l.b16 %v2213
      %v2287 = vunpack.c.l.b16 %v2214
      %v2288 = vunpack.c.l.b16 %v2215
      %v2289 = vunpack.c.l.b16 %v2216
      %v2290 = vunpack.c.l.b16 %v2217
      %v2291 = vunpack.c.l.b16 %v2218
      %v2292 = vunpack.c.l.b16 %v2219
      %v2293 = vunpack.c.l.b16 %v2220
      %v2294 = vunpack.c.l.b16 %v2221
      %v2295 = vunpack.c.l.b16 %v2222
      %v2296 = vunpack.c.l.b16 %v2223
      %v2297 = vunpack.c.l.b16 %v2224
      %v2298 = vunpack.c.l.b16 %v2225
      %v2299 = vunpack.c.l.b16 %v2226
      %v2300 = vunpack.c.l.b16 %v2227
      %v2301 = vunpack.c.l.b16 %v2228
      %v2302 = vunpack.c.l.b16 %v2229
      %v2303 = vunpack.c.l.b16 %v2230
      %v2304 = vunpack.c.l.b16 %v2231
      %v2305 = vunpack.c.l.b16 %v2232
      %v2306 = vunpack.c.l.b16 %v2233
      %v2307 = vunpack.c.l.b16 %v2234
      %v2308 = vunpack.c.l.b16 %v2235
      %v2309 = vpack.c.b16 %v2278, %v2277
      %v2310 = vpack.c.b16 %v2280, %v2279
      %v2311 = vpack.c.b16 %v2282, %v2281
      %v2312 = vpack.c.b16 %v2284, %v2283
      %v2313 = vpack.c.b16 %v2286, %v2285
      %v2314 = vpack.c.b16 %v2288, %v2287
      %v2315 = vpack.c.b16 %v2290, %v2289
      %v2316 = vpack.c.b16 %v2292, %v2291
      %v2317 = vpack.c.b16 %v2294, %v2293
      %v2318 = vpack.c.b16 %v2296, %v2295
      %v2319 = vpack.c.b16 %v2298, %v2297
      %v2320 = vpack.c.b16 %v2300, %v2299
      %v2321 = vpack.c.b16 %v2302, %v2301
      %v2322 = vpack.c.b16 %v2304, %v2303
      %v2323 = vpack.c.b16 %v2306, %v2305
      %v2324 = vpack.c.b16 %v2308, %v2307
      %v2333 = vunpack.c.l.b16 %v2237
      %v2334 = vunpack.c.l.b16 %v2238
      %v2335 = vunpack.c.l.b16 %v2239
      %v2336 = vunpack.c.l.b16 %v2240
      %v2337 = vunpack.c.l.b16 %v2241
      %v2338 = vunpack.c.l.b16 %v2242
      %v2339 = vunpack.c.l.b16 %v2243
      %v2340 = vunpack.c.l.b16 %v2244
      %v2341 = vpack.c.b16 %v2334, %v2333
      %v2342 = vpack.c.b16 %v2336, %v2335
      %v2343 = vpack.c.b16 %v2338, %v2337
      %v2344 = vpack.c.b16 %v2340, %v2339
      %v2350 = vsel %vm479, %v2309, 0
      %v2353 = vsel %vm479, %v2310, 0
      %v2356 = vsel %vm479, %v2311, 0
      %v2359 = vsel %vm479, %v2312, 0
      %v2362 = vsel %vm479, %v2313, 0
      %v2365 = vsel %vm479, %v2314, 0
      %v2368 = vsel %vm479, %v2315, 0
      %v2371 = vsel %vm479, %v2316, 0
      %v2374 = vsel %vm479, %v2317, 0
      %v2377 = vsel %vm479, %v2318, 0
      %v2380 = vsel %vm479, %v2319, 0
      %v2383 = vsel %vm479, %v2320, 0
      %v2386 = vsel %vm479, %v2321, 0
      %v2389 = vsel %vm479, %v2322, 0
      %v2392 = vsel %vm479, %v2323, 0
      %v2395 = vsel %vm479, %v2324, 0
      %2397 = vmatprep.subr.bf16.mxu0 0
      %2398 = vmatpush1.bf16.msra.mxu0 0
      %2399 = vmatprep.subr.bf16.mxu0 0
      %2400 = vmatpush1.bf16.msra.mxu0 0
      %2401 = vmatprep.subr.bf16.mxu0 0
      %2402 = vmatpush1.bf16.msra.mxu0 0
      %2403 = vmatprep.subr.bf16.mxu0 0
      %2404 = vmatpush1.bf16.msra.mxu0 0
      %2405 = vmatprep.subr.bf16.mxu0 0
      %2406 = vmatpush1.bf16.msra.mxu0 %v2344
      %2407 = vmatprep.subr.bf16.mxu0 0
      %2408 = vmatpush1.bf16.msra.mxu0 %v2343
      %2409 = vmatprep.subr.bf16.mxu0 0
      %2410 = vmatpush1.bf16.msra.mxu0 %v2342
      %2411 = vmatprep.subr.bf16.mxu0 0
      %2412 = vmatpush1.bf16.msra.mxu0 %v2341
      %2413 = vmatprep.subr.bf16.mxu0 0
      %2414 = vmatpush2.bf16.msra.mxu0 0
      %2415 = vmatprep.subr.bf16.mxu0 0
      %2416 = vmatpush2.bf16.msra.mxu0 0
      %2417 = vmatprep.subr.bf16.mxu0 0
      %2418 = vmatpush2.bf16.msra.mxu0 0
      %2419 = vmatprep.subr.bf16.mxu0 0
      %2420 = vmatpush2.bf16.msra.mxu0 0
      %2421 = vmatprep.subr.bf16.mxu0 0
      %2422 = vmatpush2.bf16.msra.mxu0 0
      %2423 = vmatprep.subr.bf16.mxu0 0
      %2424 = vmatpush2.bf16.msra.mxu0 0
      %2425 = vmatprep.subr.bf16.mxu0 0
      %2426 = vmatpush2.bf16.msra.mxu0 0
      %2427 = vmatprep.subr.bf16.mxu0 0
      %2428 = vmatpush2.bf16.msra.mxu0 0
      %2429 = vmatprep.mubr.bf16.mxu0 0
      %2430 = vmatmul.mubr.bf16.gmra.mxu0 %v2350
      %v2431 = vpop.f32.mrf.mxu0
      %v2432 = vadd.f32 0.0, %v2431
      %v2433 = vpop.f32.mrf.mxu0
      %v2434 = vpop.f32.mrf.mxu0
      %v2435 = vadd.f32 0.0, %v2434
      %v2436 = vpop.f32.mrf.mxu0
      %2437 = vmatprep.mubr.bf16.mxu0 0
      %2438 = vmatmul.mubr.bf16.gmra.mxu0 %v2353
      %v2439 = vpop.f32.mrf.mxu0
      %v2440 = vadd.f32 0.0, %v2439
      %v2441 = vpop.f32.mrf.mxu0
      %v2442 = vpop.f32.mrf.mxu0
      %v2443 = vadd.f32 0.0, %v2442
      %v2444 = vpop.f32.mrf.mxu0
      %2445 = vmatprep.mubr.bf16.mxu0 0
      %2446 = vmatmul.mubr.bf16.gmra.mxu0 %v2356
      %v2447 = vpop.f32.mrf.mxu0
      %v2448 = vadd.f32 0.0, %v2447
      %v2449 = vpop.f32.mrf.mxu0
      %v2450 = vpop.f32.mrf.mxu0
      %v2451 = vadd.f32 0.0, %v2450
      %v2452 = vpop.f32.mrf.mxu0
      %2453 = vmatprep.mubr.bf16.mxu0 0
      %2454 = vmatmul.mubr.bf16.gmra.mxu0 %v2359
      %v2455 = vpop.f32.mrf.mxu0
      %v2456 = vadd.f32 0.0, %v2455
      %v2457 = vpop.f32.mrf.mxu0
      %v2458 = vpop.f32.mrf.mxu0
      %v2459 = vadd.f32 0.0, %v2458
      %v2460 = vpop.f32.mrf.mxu0
      %2461 = vmatprep.mubr.bf16.mxu0 0
      %2462 = vmatmul.mubr.bf16.gmra.mxu0 %v2362
      %v2463 = vpop.f32.mrf.mxu0
      %v2464 = vadd.f32 0.0, %v2463
      %v2465 = vpop.f32.mrf.mxu0
      %v2466 = vpop.f32.mrf.mxu0
      %v2467 = vadd.f32 0.0, %v2466
      %v2468 = vpop.f32.mrf.mxu0
      %2469 = vmatprep.mubr.bf16.mxu0 0
      %2470 = vmatmul.mubr.bf16.gmra.mxu0 %v2365
      %v2471 = vpop.f32.mrf.mxu0
      %v2472 = vadd.f32 0.0, %v2471
      %v2473 = vpop.f32.mrf.mxu0
      %v2474 = vpop.f32.mrf.mxu0
      %v2475 = vadd.f32 0.0, %v2474
      %v2476 = vpop.f32.mrf.mxu0
      %2477 = vmatprep.mubr.bf16.mxu0 0
      %2478 = vmatmul.mubr.bf16.gmra.mxu0 %v2368
      %v2479 = vpop.f32.mrf.mxu0
      %v2480 = vadd.f32 0.0, %v2479
      %v2481 = vpop.f32.mrf.mxu0
      %v2482 = vpop.f32.mrf.mxu0
      %v2483 = vadd.f32 0.0, %v2482
      %v2484 = vpop.f32.mrf.mxu0
      %2485 = vmatprep.mubr.bf16.mxu0 0
      %2486 = vmatmul.mubr.bf16.gmra.mxu0 %v2371
      %v2487 = vpop.f32.mrf.mxu0
      %v2488 = vadd.f32 0.0, %v2487
      %v2489 = vpop.f32.mrf.mxu0
      %v2490 = vpop.f32.mrf.mxu0
      %v2491 = vadd.f32 0.0, %v2490
      %v2492 = vpop.f32.mrf.mxu0
      %2493 = vmatprep.mubr.bf16.mxu0 0
      %2494 = vmatmul.mubr.bf16.gmra.mxu0 %v2374
      %v2495 = vpop.f32.mrf.mxu0
      %v2496 = vadd.f32 0.0, %v2495
      %v2497 = vpop.f32.mrf.mxu0
      %v2498 = vpop.f32.mrf.mxu0
      %v2499 = vadd.f32 0.0, %v2498
      %v2500 = vpop.f32.mrf.mxu0
      %2501 = vmatprep.mubr.bf16.mxu0 0
      %2502 = vmatmul.mubr.bf16.gmra.mxu0 %v2377
      %v2503 = vpop.f32.mrf.mxu0
      %v2504 = vadd.f32 0.0, %v2503
      %v2505 = vpop.f32.mrf.mxu0
      %v2506 = vpop.f32.mrf.mxu0
      %v2507 = vadd.f32 0.0, %v2506
      %v2508 = vpop.f32.mrf.mxu0
      %2509 = vmatprep.mubr.bf16.mxu0 0
      %2510 = vmatmul.mubr.bf16.gmra.mxu0 %v2380
      %v2511 = vpop.f32.mrf.mxu0
      %v2512 = vadd.f32 0.0, %v2511
      %v2513 = vpop.f32.mrf.mxu0
      %v2514 = vpop.f32.mrf.mxu0
      %v2515 = vadd.f32 0.0, %v2514
      %v2516 = vpop.f32.mrf.mxu0
      %2517 = vmatprep.mubr.bf16.mxu0 0
      %2518 = vmatmul.mubr.bf16.gmra.mxu0 %v2383
      %v2519 = vpop.f32.mrf.mxu0
      %v2520 = vadd.f32 0.0, %v2519
      %v2521 = vpop.f32.mrf.mxu0
      %v2522 = vpop.f32.mrf.mxu0
      %v2523 = vadd.f32 0.0, %v2522
      %v2524 = vpop.f32.mrf.mxu0
      %2525 = vmatprep.mubr.bf16.mxu0 0
      %2526 = vmatmul.mubr.bf16.gmra.mxu0 %v2386
      %v2527 = vpop.f32.mrf.mxu0
      %v2528 = vadd.f32 0.0, %v2527
      %v2529 = vpop.f32.mrf.mxu0
      %v2530 = vpop.f32.mrf.mxu0
      %v2531 = vadd.f32 0.0, %v2530
      %v2532 = vpop.f32.mrf.mxu0
      %2533 = vmatprep.mubr.bf16.mxu0 0
      %2534 = vmatmul.mubr.bf16.gmra.mxu0 %v2389
      %v2535 = vpop.f32.mrf.mxu0
      %v2536 = vadd.f32 0.0, %v2535
      %v2537 = vpop.f32.mrf.mxu0
      %v2538 = vpop.f32.mrf.mxu0
      %v2539 = vadd.f32 0.0, %v2538
      %v2540 = vpop.f32.mrf.mxu0
      %2541 = vmatprep.mubr.bf16.mxu0 0
      %2542 = vmatmul.mubr.bf16.gmra.mxu0 %v2392
      %v2543 = vpop.f32.mrf.mxu0
      %v2544 = vadd.f32 0.0, %v2543
      %v2545 = vpop.f32.mrf.mxu0
      %v2546 = vpop.f32.mrf.mxu0
      %v2547 = vadd.f32 0.0, %v2546
      %v2548 = vpop.f32.mrf.mxu0
      %2549 = vmatprep.mubr.bf16.mxu0 0
      %2550 = vmatmul.mubr.bf16.gmra.mxu0 %v2395
      %v2551 = vpop.f32.mrf.mxu0
      %v2552 = vadd.f32 0.0, %v2551
      %v2553 = vpop.f32.mrf.mxu0
      %v2554 = vpop.f32.mrf.mxu0
      %v2555 = vadd.f32 0.0, %v2554
      %v2556 = vpop.f32.mrf.mxu0
      %2557 = vdwg.mxu0
      %v2558 = vld [vmem:[#allocation2] sm:$0xff]
      %v2559 = vld [vmem:[#allocation2 + $0x8] sm:$0xff]
      %v2560 = vld [vmem:[#allocation2 + $0x10] sm:$0xff]
      %v2561 = vld [vmem:[#allocation2 + $0x18] sm:$0xff]
      %v2562 = vld [vmem:[#allocation2 + $0x20] sm:$0xff]
      %v2563 = vld [vmem:[#allocation2 + $0x28] sm:$0xff]
      %v2564 = vld [vmem:[#allocation2 + $0x30] sm:$0xff]
      %v2565 = vld [vmem:[#allocation2 + $0x38] sm:$0xff]
      %v2566 = vld [vmem:[#allocation2 + $0x40] sm:$0xff]
      %v2567 = vld [vmem:[#allocation2 + $0x48] sm:$0xff]
      %v2568 = vld [vmem:[#allocation2 + $0x50] sm:$0xff]
      %v2569 = vld [vmem:[#allocation2 + $0x58] sm:$0xff]
      %v2570 = vld [vmem:[#allocation2 + $0x60] sm:$0xff]
      %v2571 = vld [vmem:[#allocation2 + $0x68] sm:$0xff]
      %v2572 = vld [vmem:[#allocation2 + $0x70] sm:$0xff]
      %v2573 = vld [vmem:[#allocation2 + $0x78] sm:$0xff]
      %v2574 = vld [vmem:[#allocation2 + $0x80] sm:$0xff]
      %v2575 = vld [vmem:[#allocation2 + $0x88] sm:$0xff]
      %v2576 = vld [vmem:[#allocation2 + $0x90] sm:$0xff]
      %v2577 = vld [vmem:[#allocation2 + $0x98] sm:$0xff]
      %v2578 = vld [vmem:[#allocation2 + $0xa0] sm:$0xff]
      %v2579 = vld [vmem:[#allocation2 + $0xa8] sm:$0xff]
      %v2580 = vld [vmem:[#allocation2 + $0xb0] sm:$0xff]
      %v2581 = vld [vmem:[#allocation2 + $0xb8] sm:$0xff]
      %v2582 = vld [vmem:[#allocation2 + $0xc0] sm:$0xff]
      %v2583 = vld [vmem:[#allocation2 + $0xc8] sm:$0xff]
      %v2584 = vld [vmem:[#allocation2 + $0xd0] sm:$0xff]
      %v2585 = vld [vmem:[#allocation2 + $0xd8] sm:$0xff]
      %v2586 = vld [vmem:[#allocation2 + $0xe0] sm:$0xff]
      %v2587 = vld [vmem:[#allocation2 + $0xe8] sm:$0xff]
      %v2588 = vld [vmem:[#allocation2 + $0xf0] sm:$0xff]
      %v2589 = vld [vmem:[#allocation2 + $0xf8] sm:$0xff]
      %v2590 = vadd.f32 %v2558, %v2432
      %v2591 = vadd.f32 %v2559, %v2435
      %v2592 = vadd.f32 %v2560, %v2440
      %v2593 = vadd.f32 %v2561, %v2443
      %v2594 = vadd.f32 %v2562, %v2448
      %v2595 = vadd.f32 %v2563, %v2451
      %v2596 = vadd.f32 %v2564, %v2456
      %v2597 = vadd.f32 %v2565, %v2459
      %v2598 = vadd.f32 %v2566, %v2464
      %v2599 = vadd.f32 %v2567, %v2467
      %v2600 = vadd.f32 %v2568, %v2472
      %v2601 = vadd.f32 %v2569, %v2475
      %v2602 = vadd.f32 %v2570, %v2480
      %v2603 = vadd.f32 %v2571, %v2483
      %v2604 = vadd.f32 %v2572, %v2488
      %v2605 = vadd.f32 %v2573, %v2491
      %v2606 = vadd.f32 %v2574, %v2496
      %v2607 = vadd.f32 %v2575, %v2499
      %v2608 = vadd.f32 %v2576, %v2504
      %v2609 = vadd.f32 %v2577, %v2507
      %v2610 = vadd.f32 %v2578, %v2512
      %v2611 = vadd.f32 %v2579, %v2515
      %v2612 = vadd.f32 %v2580, %v2520
      %v2613 = vadd.f32 %v2581, %v2523
      %v2614 = vadd.f32 %v2582, %v2528
      %v2615 = vadd.f32 %v2583, %v2531
      %v2616 = vadd.f32 %v2584, %v2536
      %v2617 = vadd.f32 %v2585, %v2539
      %v2618 = vadd.f32 %v2586, %v2544
      %v2619 = vadd.f32 %v2587, %v2547
      %v2620 = vadd.f32 %v2588, %v2552
      %v2621 = vadd.f32 %v2589, %v2555
      %2622 = vst.msk [vmem:[#allocation2] sm:$0xff] %vm479, %v2590
      %2623 = vst.msk [vmem:[#allocation2 + $0x8] sm:$0xff] %vm479, %v2591
      %2624 = vst.msk [vmem:[#allocation2 + $0x10] sm:$0xff] %vm479, %v2592
      %2625 = vst.msk [vmem:[#allocation2 + $0x18] sm:$0xff] %vm479, %v2593
      %2626 = vst.msk [vmem:[#allocation2 + $0x20] sm:$0xff] %vm479, %v2594
      %2627 = vst.msk [vmem:[#allocation2 + $0x28] sm:$0xff] %vm479, %v2595
      %2628 = vst.msk [vmem:[#allocation2 + $0x30] sm:$0xff] %vm479, %v2596
      %2629 = vst.msk [vmem:[#allocation2 + $0x38] sm:$0xff] %vm479, %v2597
      %2630 = vst.msk [vmem:[#allocation2 + $0x40] sm:$0xff] %vm479, %v2598
      %2631 = vst.msk [vmem:[#allocation2 + $0x48] sm:$0xff] %vm479, %v2599
      %2632 = vst.msk [vmem:[#allocation2 + $0x50] sm:$0xff] %vm479, %v2600
      %2633 = vst.msk [vmem:[#allocation2 + $0x58] sm:$0xff] %vm479, %v2601
      %2634 = vst.msk [vmem:[#allocation2 + $0x60] sm:$0xff] %vm479, %v2602
      %2635 = vst.msk [vmem:[#allocation2 + $0x68] sm:$0xff] %vm479, %v2603
      %2636 = vst.msk [vmem:[#allocation2 + $0x70] sm:$0xff] %vm479, %v2604
      %2637 = vst.msk [vmem:[#allocation2 + $0x78] sm:$0xff] %vm479, %v2605
      %2638 = vst.msk [vmem:[#allocation2 + $0x80] sm:$0xff] %vm479, %v2606
      %2639 = vst.msk [vmem:[#allocation2 + $0x88] sm:$0xff] %vm479, %v2607
      %2640 = vst.msk [vmem:[#allocation2 + $0x90] sm:$0xff] %vm479, %v2608
      %2641 = vst.msk [vmem:[#allocation2 + $0x98] sm:$0xff] %vm479, %v2609
      %2642 = vst.msk [vmem:[#allocation2 + $0xa0] sm:$0xff] %vm479, %v2610
      %2643 = vst.msk [vmem:[#allocation2 + $0xa8] sm:$0xff] %vm479, %v2611
      %2644 = vst.msk [vmem:[#allocation2 + $0xb0] sm:$0xff] %vm479, %v2612
      %2645 = vst.msk [vmem:[#allocation2 + $0xb8] sm:$0xff] %vm479, %v2613
      %2646 = vst.msk [vmem:[#allocation2 + $0xc0] sm:$0xff] %vm479, %v2614
      %2647 = vst.msk [vmem:[#allocation2 + $0xc8] sm:$0xff] %vm479, %v2615
      %2648 = vst.msk [vmem:[#allocation2 + $0xd0] sm:$0xff] %vm479, %v2616
      %2649 = vst.msk [vmem:[#allocation2 + $0xd8] sm:$0xff] %vm479, %v2617
      %2650 = vst.msk [vmem:[#allocation2 + $0xe0] sm:$0xff] %vm479, %v2618
      %2651 = vst.msk [vmem:[#allocation2 + $0xe8] sm:$0xff] %vm479, %v2619
      %2652 = vst.msk [vmem:[#allocation2 + $0xf0] sm:$0xff] %vm479, %v2620
      %2653 = vst.msk [vmem:[#allocation2 + $0xf8] sm:$0xff] %vm479, %v2621
      %v2654 = vld [vmem:[%s2203] sm:$0xf]
      %v2655 = vld [vmem:[%s2203 + $0x4] sm:$0xf]
      %v2656 = vld [vmem:[%s2203 + $0x8] sm:$0x1]
      %v2657 = vld [vmem:[%s2203 + $0xc] sm:$0xf]
      %v2658 = vld [vmem:[%s2203 + $0x10] sm:$0xf]
      %v2659 = vld [vmem:[%s2203 + $0x14] sm:$0x1]
      %v2660 = vld [vmem:[%s2203 + $0x18] sm:$0xf]
      %v2661 = vld [vmem:[%s2203 + $0x1c] sm:$0xf]
      %v2662 = vld [vmem:[%s2203 + $0x20] sm:$0x1]
      %v2663 = vld [vmem:[%s2203 + $0x24] sm:$0xf]
      %v2664 = vld [vmem:[%s2203 + $0x28] sm:$0xf]
      %v2665 = vld [vmem:[%s2203 + $0x2c] sm:$0x1]
      %v2666 = vld [vmem:[%s2203 + $0x30] sm:$0xf]
      %v2667 = vld [vmem:[%s2203 + $0x34] sm:$0xf]
      %v2668 = vld [vmem:[%s2203 + $0x38] sm:$0x1]
      %v2669 = vld [vmem:[%s2203 + $0x3c] sm:$0xf]
      %v2670 = vld [vmem:[%s2203 + $0x40] sm:$0xf]
      %v2671 = vld [vmem:[%s2203 + $0x44] sm:$0x1]
      %v2672 = vld [vmem:[%s2203 + $0x48] sm:$0xf]
      %v2673 = vld [vmem:[%s2203 + $0x4c] sm:$0xf]
      %v2674 = vld [vmem:[%s2203 + $0x50] sm:$0x1]
      %v2675 = vld [vmem:[%s2203 + $0x54] sm:$0xf]
      %v2676 = vld [vmem:[%s2203 + $0x58] sm:$0xf]
      %v2677 = vld [vmem:[%s2203 + $0x5c] sm:$0x1]
      %v2678 = vld [vmem:[%s2203 + $0x60] sm:$0xf]
      %v2679 = vld [vmem:[%s2203 + $0x64] sm:$0xf]
      %v2680 = vld [vmem:[%s2203 + $0x68] sm:$0x1]
      %v2681 = vld [vmem:[%s2203 + $0x6c] sm:$0xf]
      %v2682 = vld [vmem:[%s2203 + $0x70] sm:$0xf]
      %v2683 = vld [vmem:[%s2203 + $0x74] sm:$0x1]
      %v2684 = vld [vmem:[%s2203 + $0x78] sm:$0xf]
      %v2685 = vld [vmem:[%s2203 + $0x7c] sm:$0xf]
      %v2686 = vld [vmem:[%s2203 + $0x80] sm:$0x1]
      %v2687 = vld [vmem:[%s2203 + $0x84] sm:$0xf]
      %v2688 = vld [vmem:[%s2203 + $0x88] sm:$0xf]
      %v2689 = vld [vmem:[%s2203 + $0x8c] sm:$0x1]
      %v2690 = vld [vmem:[%s2203 + $0x90] sm:$0xf]
      %v2691 = vld [vmem:[%s2203 + $0x94] sm:$0xf]
      %v2692 = vld [vmem:[%s2203 + $0x98] sm:$0x1]
      %v2693 = vld [vmem:[%s2203 + $0x9c] sm:$0xf]
      %v2694 = vld [vmem:[%s2203 + $0xa0] sm:$0xf]
      %v2695 = vld [vmem:[%s2203 + $0xa4] sm:$0x1]
      %v2696 = vld [vmem:[%s2203 + $0xa8] sm:$0xf]
      %v2697 = vld [vmem:[%s2203 + $0xac] sm:$0xf]
      %v2698 = vld [vmem:[%s2203 + $0xb0] sm:$0x1]
      %v2699 = vld [vmem:[%s2203 + $0xb4] sm:$0xf]
      %v2700 = vld [vmem:[%s2203 + $0xb8] sm:$0xf]
      %v2701 = vld [vmem:[%s2203 + $0xbc] sm:$0x1]
      %v2703 = vshrl.u32 %v2654, 16
      %v2705 = vrot.slane %v2703, 4
      %v2706 = vshll.u32 %v2654, 16
      %v2708 = vrot.slane %v2706, 5
      %v2709 = vor.u32 %v2705, %v2708
      %v2710 = vrot.slane %v2709, 4
      %v2712 = vshll.u32 %v2655, 16
      %v2714 = vrot.slane %v2712, 5
      %v2715 = vsel %vm835, %v2710, %v2714
      %v2716 = vshrl.u32 %v2655, 16
      %v2718 = vrot.slane %v2716, 4
      %v2719 = vor.u32 %v2718, %v2714
      %v2720 = vrot.slane %v2719, 4
      %v2722 = vshll.u32 %v2656, 16
      %v2724 = vrot.slane %v2722, 5
      %v2725 = vsel %vm835, %v2720, %v2724
      %v2727 = vshrl.u32 %v2657, 16
      %v2729 = vrot.slane %v2727, 4
      %v2730 = vshll.u32 %v2657, 16
      %v2732 = vrot.slane %v2730, 5
      %v2733 = vor.u32 %v2729, %v2732
      %v2734 = vrot.slane %v2733, 4
      %v2736 = vshll.u32 %v2658, 16
      %v2738 = vrot.slane %v2736, 5
      %v2739 = vsel %vm835, %v2734, %v2738
      %v2740 = vshrl.u32 %v2658, 16
      %v2742 = vrot.slane %v2740, 4
      %v2743 = vor.u32 %v2742, %v2738
      %v2744 = vrot.slane %v2743, 4
      %v2746 = vshll.u32 %v2659, 16
      %v2748 = vrot.slane %v2746, 5
      %v2749 = vsel %vm835, %v2744, %v2748
      %v2751 = vshrl.u32 %v2660, 16
      %v2753 = vrot.slane %v2751, 4
      %v2754 = vshll.u32 %v2660, 16
      %v2756 = vrot.slane %v2754, 5
      %v2757 = vor.u32 %v2753, %v2756
      %v2758 = vrot.slane %v2757, 4
      %v2760 = vshll.u32 %v2661, 16
      %v2762 = vrot.slane %v2760, 5
      %v2763 = vsel %vm835, %v2758, %v2762
      %v2764 = vshrl.u32 %v2661, 16
      %v2766 = vrot.slane %v2764, 4
      %v2767 = vor.u32 %v2766, %v2762
      %v2768 = vrot.slane %v2767, 4
      %v2770 = vshll.u32 %v2662, 16
      %v2772 = vrot.slane %v2770, 5
      %v2773 = vsel %vm835, %v2768, %v2772
      %v2775 = vshrl.u32 %v2663, 16
      %v2777 = vrot.slane %v2775, 4
      %v2778 = vshll.u32 %v2663, 16
      %v2780 = vrot.slane %v2778, 5
      %v2781 = vor.u32 %v2777, %v2780
      %v2782 = vrot.slane %v2781, 4
      %v2784 = vshll.u32 %v2664, 16
      %v2786 = vrot.slane %v2784, 5
      %v2787 = vsel %vm835, %v2782, %v2786
      %v2788 = vshrl.u32 %v2664, 16
      %v2790 = vrot.slane %v2788, 4
      %v2791 = vor.u32 %v2790, %v2786
      %v2792 = vrot.slane %v2791, 4
      %v2794 = vshll.u32 %v2665, 16
      %v2796 = vrot.slane %v2794, 5
      %v2797 = vsel %vm835, %v2792, %v2796
      %v2799 = vshrl.u32 %v2666, 16
      %v2801 = vrot.slane %v2799, 4
      %v2802 = vshll.u32 %v2666, 16
      %v2804 = vrot.slane %v2802, 5
      %v2805 = vor.u32 %v2801, %v2804
      %v2806 = vrot.slane %v2805, 4
      %v2808 = vshll.u32 %v2667, 16
      %v2810 = vrot.slane %v2808, 5
      %v2811 = vsel %vm835, %v2806, %v2810
      %v2812 = vshrl.u32 %v2667, 16
      %v2814 = vrot.slane %v2812, 4
      %v2815 = vor.u32 %v2814, %v2810
      %v2816 = vrot.slane %v2815, 4
      %v2818 = vshll.u32 %v2668, 16
      %v2820 = vrot.slane %v2818, 5
      %v2821 = vsel %vm835, %v2816, %v2820
      %v2823 = vshrl.u32 %v2669, 16
      %v2825 = vrot.slane %v2823, 4
      %v2826 = vshll.u32 %v2669, 16
      %v2828 = vrot.slane %v2826, 5
      %v2829 = vor.u32 %v2825, %v2828
      %v2830 = vrot.slane %v2829, 4
      %v2832 = vshll.u32 %v2670, 16
      %v2834 = vrot.slane %v2832, 5
      %v2835 = vsel %vm835, %v2830, %v2834
      %v2836 = vshrl.u32 %v2670, 16
      %v2838 = vrot.slane %v2836, 4
      %v2839 = vor.u32 %v2838, %v2834
      %v2840 = vrot.slane %v2839, 4
      %v2842 = vshll.u32 %v2671, 16
      %v2844 = vrot.slane %v2842, 5
      %v2845 = vsel %vm835, %v2840, %v2844
      %v2847 = vshrl.u32 %v2672, 16
      %v2849 = vrot.slane %v2847, 4
      %v2850 = vshll.u32 %v2672, 16
      %v2852 = vrot.slane %v2850, 5
      %v2853 = vor.u32 %v2849, %v2852
      %v2854 = vrot.slane %v2853, 4
      %v2856 = vshll.u32 %v2673, 16
      %v2858 = vrot.slane %v2856, 5
      %v2859 = vsel %vm835, %v2854, %v2858
      %v2860 = vshrl.u32 %v2673, 16
      %v2862 = vrot.slane %v2860, 4
      %v2863 = vor.u32 %v2862, %v2858
      %v2864 = vrot.slane %v2863, 4
      %v2866 = vshll.u32 %v2674, 16
      %v2868 = vrot.slane %v2866, 5
      %v2869 = vsel %vm835, %v2864, %v2868
      %v2871 = vshrl.u32 %v2675, 16
      %v2873 = vrot.slane %v2871, 4
      %v2874 = vshll.u32 %v2675, 16
      %v2876 = vrot.slane %v2874, 5
      %v2877 = vor.u32 %v2873, %v2876
      %v2878 = vrot.slane %v2877, 4
      %v2880 = vshll.u32 %v2676, 16
      %v2882 = vrot.slane %v2880, 5
      %v2883 = vsel %vm835, %v2878, %v2882
      %v2884 = vshrl.u32 %v2676, 16
      %v2886 = vrot.slane %v2884, 4
      %v2887 = vor.u32 %v2886, %v2882
      %v2888 = vrot.slane %v2887, 4
      %v2890 = vshll.u32 %v2677, 16
      %v2892 = vrot.slane %v2890, 5
      %v2893 = vsel %vm835, %v2888, %v2892
      %v2895 = vshrl.u32 %v2678, 16
      %v2897 = vrot.slane %v2895, 4
      %v2898 = vshll.u32 %v2678, 16
      %v2900 = vrot.slane %v2898, 5
      %v2901 = vor.u32 %v2897, %v2900
      %v2902 = vrot.slane %v2901, 4
      %v2904 = vshll.u32 %v2679, 16
      %v2906 = vrot.slane %v2904, 5
      %v2907 = vsel %vm835, %v2902, %v2906
      %v2908 = vshrl.u32 %v2679, 16
      %v2910 = vrot.slane %v2908, 4
      %v2911 = vor.u32 %v2910, %v2906
      %v2912 = vrot.slane %v2911, 4
      %v2914 = vshll.u32 %v2680, 16
      %v2916 = vrot.slane %v2914, 5
      %v2917 = vsel %vm835, %v2912, %v2916
      %v2919 = vshrl.u32 %v2681, 16
      %v2921 = vrot.slane %v2919, 4
      %v2922 = vshll.u32 %v2681, 16
      %v2924 = vrot.slane %v2922, 5
      %v2925 = vor.u32 %v2921, %v2924
      %v2926 = vrot.slane %v2925, 4
      %v2928 = vshll.u32 %v2682, 16
      %v2930 = vrot.slane %v2928, 5
      %v2931 = vsel %vm835, %v2926, %v2930
      %v2932 = vshrl.u32 %v2682, 16
      %v2934 = vrot.slane %v2932, 4
      %v2935 = vor.u32 %v2934, %v2930
      %v2936 = vrot.slane %v2935, 4
      %v2938 = vshll.u32 %v2683, 16
      %v2940 = vrot.slane %v2938, 5
      %v2941 = vsel %vm835, %v2936, %v2940
      %v2943 = vshrl.u32 %v2684, 16
      %v2945 = vrot.slane %v2943, 4
      %v2946 = vshll.u32 %v2684, 16
      %v2948 = vrot.slane %v2946, 5
      %v2949 = vor.u32 %v2945, %v2948
      %v2950 = vrot.slane %v2949, 4
      %v2952 = vshll.u32 %v2685, 16
      %v2954 = vrot.slane %v2952, 5
      %v2955 = vsel %vm835, %v2950, %v2954
      %v2956 = vshrl.u32 %v2685, 16
      %v2958 = vrot.slane %v2956, 4
      %v2959 = vor.u32 %v2958, %v2954
      %v2960 = vrot.slane %v2959, 4
      %v2962 = vshll.u32 %v2686, 16
      %v2964 = vrot.slane %v2962, 5
      %v2965 = vsel %vm835, %v2960, %v2964
      %v2967 = vshrl.u32 %v2687, 16
      %v2969 = vrot.slane %v2967, 4
      %v2970 = vshll.u32 %v2687, 16
      %v2972 = vrot.slane %v2970, 5
      %v2973 = vor.u32 %v2969, %v2972
      %v2974 = vrot.slane %v2973, 4
      %v2976 = vshll.u32 %v2688, 16
      %v2978 = vrot.slane %v2976, 5
      %v2979 = vsel %vm835, %v2974, %v2978
      %v2980 = vshrl.u32 %v2688, 16
      %v2982 = vrot.slane %v2980, 4
      %v2983 = vor.u32 %v2982, %v2978
      %v2984 = vrot.slane %v2983, 4
      %v2986 = vshll.u32 %v2689, 16
      %v2988 = vrot.slane %v2986, 5
      %v2989 = vsel %vm835, %v2984, %v2988
      %v2991 = vshrl.u32 %v2690, 16
      %v2993 = vrot.slane %v2991, 4
      %v2994 = vshll.u32 %v2690, 16
      %v2996 = vrot.slane %v2994, 5
      %v2997 = vor.u32 %v2993, %v2996
      %v2998 = vrot.slane %v2997, 4
      %v3000 = vshll.u32 %v2691, 16
      %v3002 = vrot.slane %v3000, 5
      %v3003 = vsel %vm835, %v2998, %v3002
      %v3004 = vshrl.u32 %v2691, 16
      %v3006 = vrot.slane %v3004, 4
      %v3007 = vor.u32 %v3006, %v3002
      %v3008 = vrot.slane %v3007, 4
      %v3010 = vshll.u32 %v2692, 16
      %v3012 = vrot.slane %v3010, 5
      %v3013 = vsel %vm835, %v3008, %v3012
      %v3015 = vshrl.u32 %v2693, 16
      %v3017 = vrot.slane %v3015, 4
      %v3018 = vshll.u32 %v2693, 16
      %v3020 = vrot.slane %v3018, 5
      %v3021 = vor.u32 %v3017, %v3020
      %v3022 = vrot.slane %v3021, 4
      %v3024 = vshll.u32 %v2694, 16
      %v3026 = vrot.slane %v3024, 5
      %v3027 = vsel %vm835, %v3022, %v3026
      %v3028 = vshrl.u32 %v2694, 16
      %v3030 = vrot.slane %v3028, 4
      %v3031 = vor.u32 %v3030, %v3026
      %v3032 = vrot.slane %v3031, 4
      %v3034 = vshll.u32 %v2695, 16
      %v3036 = vrot.slane %v3034, 5
      %v3037 = vsel %vm835, %v3032, %v3036
      %v3039 = vshrl.u32 %v2696, 16
      %v3041 = vrot.slane %v3039, 4
      %v3042 = vshll.u32 %v2696, 16
      %v3044 = vrot.slane %v3042, 5
      %v3045 = vor.u32 %v3041, %v3044
      %v3046 = vrot.slane %v3045, 4
      %v3048 = vshll.u32 %v2697, 16
      %v3050 = vrot.slane %v3048, 5
      %v3051 = vsel %vm835, %v3046, %v3050
      %v3052 = vshrl.u32 %v2697, 16
      %v3054 = vrot.slane %v3052, 4
      %v3055 = vor.u32 %v3054, %v3050
      %v3056 = vrot.slane %v3055, 4
      %v3058 = vshll.u32 %v2698, 16
      %v3060 = vrot.slane %v3058, 5
      %v3061 = vsel %vm835, %v3056, %v3060
      %v3063 = vshrl.u32 %v2699, 16
      %v3065 = vrot.slane %v3063, 4
      %v3066 = vshll.u32 %v2699, 16
      %v3068 = vrot.slane %v3066, 5
      %v3069 = vor.u32 %v3065, %v3068
      %v3070 = vrot.slane %v3069, 4
      %v3072 = vshll.u32 %v2700, 16
      %v3074 = vrot.slane %v3072, 5
      %v3075 = vsel %vm835, %v3070, %v3074
      %v3076 = vshrl.u32 %v2700, 16
      %v3078 = vrot.slane %v3076, 4
      %v3079 = vor.u32 %v3078, %v3074
      %v3080 = vrot.slane %v3079, 4
      %v3082 = vshll.u32 %v2701, 16
      %v3084 = vrot.slane %v3082, 5
      %v3085 = vsel %vm835, %v3080, %v3084
      %s3086 = scalar_lea.vmem %s281, 128
      %v3087 = vld [vmem:[%s3086] sm:$0xf]
      %v3088 = vld [vmem:[%s3086 + $0x4] sm:$0xf]
      %v3089 = vld [vmem:[%s3086 + $0x8] sm:$0xf]
      %v3090 = vld [vmem:[%s3086 + $0xc] sm:$0xf]
      %v3091 = vld [vmem:[%s3086 + $0x10] sm:$0xf]
      %v3092 = vld [vmem:[%s3086 + $0x14] sm:$0xf]
      %v3093 = vld [vmem:[%s3086 + $0x18] sm:$0xf]
      %v3094 = vld [vmem:[%s3086 + $0x1c] sm:$0xf]
      %v3095 = vunpack.c.l.b16 %v2715
      %v3096 = vunpack.c.l.b16 %v2725
      %v3097 = vunpack.c.l.b16 %v2739
      %v3098 = vunpack.c.l.b16 %v2749
      %v3099 = vunpack.c.l.b16 %v2763
      %v3100 = vunpack.c.l.b16 %v2773
      %v3101 = vunpack.c.l.b16 %v2787
      %v3102 = vunpack.c.l.b16 %v2797
      %v3103 = vunpack.c.l.b16 %v2811
      %v3104 = vunpack.c.l.b16 %v2821
      %v3105 = vunpack.c.l.b16 %v2835
      %v3106 = vunpack.c.l.b16 %v2845
      %v3107 = vunpack.c.l.b16 %v2859
      %v3108 = vunpack.c.l.b16 %v2869
      %v3109 = vunpack.c.l.b16 %v2883
      %v3110 = vunpack.c.l.b16 %v2893
      %v3111 = vunpack.c.l.b16 %v2907
      %v3112 = vunpack.c.l.b16 %v2917
      %v3113 = vunpack.c.l.b16 %v2931
      %v3114 = vunpack.c.l.b16 %v2941
      %v3115 = vunpack.c.l.b16 %v2955
      %v3116 = vunpack.c.l.b16 %v2965
      %v3117 = vunpack.c.l.b16 %v2979
      %v3118 = vunpack.c.l.b16 %v2989
      %v3119 = vunpack.c.l.b16 %v3003
      %v3120 = vunpack.c.l.b16 %v3013
      %v3121 = vunpack.c.l.b16 %v3027
      %v3122 = vunpack.c.l.b16 %v3037
      %v3123 = vunpack.c.l.b16 %v3051
      %v3124 = vunpack.c.l.b16 %v3061
      %v3125 = vunpack.c.l.b16 %v3075
      %v3126 = vunpack.c.l.b16 %v3085
      %v3127 = vpack.c.b16 %v3096, %v3095
      %v3128 = vpack.c.b16 %v3098, %v3097
      %v3129 = vpack.c.b16 %v3100, %v3099
      %v3130 = vpack.c.b16 %v3102, %v3101
      %v3131 = vpack.c.b16 %v3104, %v3103
      %v3132 = vpack.c.b16 %v3106, %v3105
      %v3133 = vpack.c.b16 %v3108, %v3107
      %v3134 = vpack.c.b16 %v3110, %v3109
      %v3135 = vpack.c.b16 %v3112, %v3111
      %v3136 = vpack.c.b16 %v3114, %v3113
      %v3137 = vpack.c.b16 %v3116, %v3115
      %v3138 = vpack.c.b16 %v3118, %v3117
      %v3139 = vpack.c.b16 %v3120, %v3119
      %v3140 = vpack.c.b16 %v3122, %v3121
      %v3141 = vpack.c.b16 %v3124, %v3123
      %v3142 = vpack.c.b16 %v3126, %v3125
      %v3151 = vunpack.c.l.b16 %v3087
      %v3152 = vunpack.c.l.b16 %v3088
      %v3153 = vunpack.c.l.b16 %v3089
      %v3154 = vunpack.c.l.b16 %v3090
      %v3155 = vunpack.c.l.b16 %v3091
      %v3156 = vunpack.c.l.b16 %v3092
      %v3157 = vunpack.c.l.b16 %v3093
      %v3158 = vunpack.c.l.b16 %v3094
      %v3159 = vpack.c.b16 %v3152, %v3151
      %v3160 = vpack.c.b16 %v3154, %v3153
      %v3161 = vpack.c.b16 %v3156, %v3155
      %v3162 = vpack.c.b16 %v3158, %v3157
      %v3168 = vsel %vm479, %v3127, 0
      %v3171 = vsel %vm479, %v3128, 0
      %v3174 = vsel %vm479, %v3129, 0
      %v3177 = vsel %vm479, %v3130, 0
      %v3180 = vsel %vm479, %v3131, 0
      %v3183 = vsel %vm479, %v3132, 0
      %v3186 = vsel %vm479, %v3133, 0
      %v3189 = vsel %vm479, %v3134, 0
      %v3192 = vsel %vm479, %v3135, 0
      %v3195 = vsel %vm479, %v3136, 0
      %v3198 = vsel %vm479, %v3137, 0
      %v3201 = vsel %vm479, %v3138, 0
      %v3204 = vsel %vm479, %v3139, 0
      %v3207 = vsel %vm479, %v3140, 0
      %v3210 = vsel %vm479, %v3141, 0
      %v3213 = vsel %vm479, %v3142, 0
      %3215 = vmatprep.subr.bf16.mxu0 0
      %3216 = vmatpush1.bf16.msra.mxu0 0
      %3217 = vmatprep.subr.bf16.mxu0 0
      %3218 = vmatpush1.bf16.msra.mxu0 0
      %3219 = vmatprep.subr.bf16.mxu0 0
      %3220 = vmatpush1.bf16.msra.mxu0 0
      %3221 = vmatprep.subr.bf16.mxu0 0
      %3222 = vmatpush1.bf16.msra.mxu0 0
      %3223 = vmatprep.subr.bf16.mxu0 0
      %3224 = vmatpush1.bf16.msra.mxu0 %v3162
      %3225 = vmatprep.subr.bf16.mxu0 0
      %3226 = vmatpush1.bf16.msra.mxu0 %v3161
      %3227 = vmatprep.subr.bf16.mxu0 0
      %3228 = vmatpush1.bf16.msra.mxu0 %v3160
      %3229 = vmatprep.subr.bf16.mxu0 0
      %3230 = vmatpush1.bf16.msra.mxu0 %v3159
      %3231 = vmatprep.subr.bf16.mxu0 0
      %3232 = vmatpush2.bf16.msra.mxu0 0
      %3233 = vmatprep.subr.bf16.mxu0 0
      %3234 = vmatpush2.bf16.msra.mxu0 0
      %3235 = vmatprep.subr.bf16.mxu0 0
      %3236 = vmatpush2.bf16.msra.mxu0 0
      %3237 = vmatprep.subr.bf16.mxu0 0
      %3238 = vmatpush2.bf16.msra.mxu0 0
      %3239 = vmatprep.subr.bf16.mxu0 0
      %3240 = vmatpush2.bf16.msra.mxu0 0
      %3241 = vmatprep.subr.bf16.mxu0 0
      %3242 = vmatpush2.bf16.msra.mxu0 0
      %3243 = vmatprep.subr.bf16.mxu0 0
      %3244 = vmatpush2.bf16.msra.mxu0 0
      %3245 = vmatprep.subr.bf16.mxu0 0
      %3246 = vmatpush2.bf16.msra.mxu0 0
      %3247 = vmatprep.mubr.bf16.mxu0 0
      %3248 = vmatmul.mubr.bf16.gmra.mxu0 %v3168
      %v3249 = vpop.f32.mrf.mxu0
      %v3250 = vadd.f32 0.0, %v3249
      %v3251 = vpop.f32.mrf.mxu0
      %v3252 = vpop.f32.mrf.mxu0
      %v3253 = vadd.f32 0.0, %v3252
      %v3254 = vpop.f32.mrf.mxu0
      %3255 = vmatprep.mubr.bf16.mxu0 0
      %3256 = vmatmul.mubr.bf16.gmra.mxu0 %v3171
      %v3257 = vpop.f32.mrf.mxu0
      %v3258 = vadd.f32 0.0, %v3257
      %v3259 = vpop.f32.mrf.mxu0
      %v3260 = vpop.f32.mrf.mxu0
      %v3261 = vadd.f32 0.0, %v3260
      %v3262 = vpop.f32.mrf.mxu0
      %3263 = vmatprep.mubr.bf16.mxu0 0
      %3264 = vmatmul.mubr.bf16.gmra.mxu0 %v3174
      %v3265 = vpop.f32.mrf.mxu0
      %v3266 = vadd.f32 0.0, %v3265
      %v3267 = vpop.f32.mrf.mxu0
      %v3268 = vpop.f32.mrf.mxu0
      %v3269 = vadd.f32 0.0, %v3268
      %v3270 = vpop.f32.mrf.mxu0
      %3271 = vmatprep.mubr.bf16.mxu0 0
      %3272 = vmatmul.mubr.bf16.gmra.mxu0 %v3177
      %v3273 = vpop.f32.mrf.mxu0
      %v3274 = vadd.f32 0.0, %v3273
      %v3275 = vpop.f32.mrf.mxu0
      %v3276 = vpop.f32.mrf.mxu0
      %v3277 = vadd.f32 0.0, %v3276
      %v3278 = vpop.f32.mrf.mxu0
      %3279 = vmatprep.mubr.bf16.mxu0 0
      %3280 = vmatmul.mubr.bf16.gmra.mxu0 %v3180
      %v3281 = vpop.f32.mrf.mxu0
      %v3282 = vadd.f32 0.0, %v3281
      %v3283 = vpop.f32.mrf.mxu0
      %v3284 = vpop.f32.mrf.mxu0
      %v3285 = vadd.f32 0.0, %v3284
      %v3286 = vpop.f32.mrf.mxu0
      %3287 = vmatprep.mubr.bf16.mxu0 0
      %3288 = vmatmul.mubr.bf16.gmra.mxu0 %v3183
      %v3289 = vpop.f32.mrf.mxu0
      %v3290 = vadd.f32 0.0, %v3289
      %v3291 = vpop.f32.mrf.mxu0
      %v3292 = vpop.f32.mrf.mxu0
      %v3293 = vadd.f32 0.0, %v3292
      %v3294 = vpop.f32.mrf.mxu0
      %3295 = vmatprep.mubr.bf16.mxu0 0
      %3296 = vmatmul.mubr.bf16.gmra.mxu0 %v3186
      %v3297 = vpop.f32.mrf.mxu0
      %v3298 = vadd.f32 0.0, %v3297
      %v3299 = vpop.f32.mrf.mxu0
      %v3300 = vpop.f32.mrf.mxu0
      %v3301 = vadd.f32 0.0, %v3300
      %v3302 = vpop.f32.mrf.mxu0
      %3303 = vmatprep.mubr.bf16.mxu0 0
      %3304 = vmatmul.mubr.bf16.gmra.mxu0 %v3189
      %v3305 = vpop.f32.mrf.mxu0
      %v3306 = vadd.f32 0.0, %v3305
      %v3307 = vpop.f32.mrf.mxu0
      %v3308 = vpop.f32.mrf.mxu0
      %v3309 = vadd.f32 0.0, %v3308
      %v3310 = vpop.f32.mrf.mxu0
      %3311 = vmatprep.mubr.bf16.mxu0 0
      %3312 = vmatmul.mubr.bf16.gmra.mxu0 %v3192
      %v3313 = vpop.f32.mrf.mxu0
      %v3314 = vadd.f32 0.0, %v3313
      %v3315 = vpop.f32.mrf.mxu0
      %v3316 = vpop.f32.mrf.mxu0
      %v3317 = vadd.f32 0.0, %v3316
      %v3318 = vpop.f32.mrf.mxu0
      %3319 = vmatprep.mubr.bf16.mxu0 0
      %3320 = vmatmul.mubr.bf16.gmra.mxu0 %v3195
      %v3321 = vpop.f32.mrf.mxu0
      %v3322 = vadd.f32 0.0, %v3321
      %v3323 = vpop.f32.mrf.mxu0
      %v3324 = vpop.f32.mrf.mxu0
      %v3325 = vadd.f32 0.0, %v3324
      %v3326 = vpop.f32.mrf.mxu0
      %3327 = vmatprep.mubr.bf16.mxu0 0
      %3328 = vmatmul.mubr.bf16.gmra.mxu0 %v3198
      %v3329 = vpop.f32.mrf.mxu0
      %v3330 = vadd.f32 0.0, %v3329
      %v3331 = vpop.f32.mrf.mxu0
      %v3332 = vpop.f32.mrf.mxu0
      %v3333 = vadd.f32 0.0, %v3332
      %v3334 = vpop.f32.mrf.mxu0
      %3335 = vmatprep.mubr.bf16.mxu0 0
      %3336 = vmatmul.mubr.bf16.gmra.mxu0 %v3201
      %v3337 = vpop.f32.mrf.mxu0
      %v3338 = vadd.f32 0.0, %v3337
      %v3339 = vpop.f32.mrf.mxu0
      %v3340 = vpop.f32.mrf.mxu0
      %v3341 = vadd.f32 0.0, %v3340
      %v3342 = vpop.f32.mrf.mxu0
      %3343 = vmatprep.mubr.bf16.mxu0 0
      %3344 = vmatmul.mubr.bf16.gmra.mxu0 %v3204
      %v3345 = vpop.f32.mrf.mxu0
      %v3346 = vadd.f32 0.0, %v3345
      %v3347 = vpop.f32.mrf.mxu0
      %v3348 = vpop.f32.mrf.mxu0
      %v3349 = vadd.f32 0.0, %v3348
      %v3350 = vpop.f32.mrf.mxu0
      %3351 = vmatprep.mubr.bf16.mxu0 0
      %3352 = vmatmul.mubr.bf16.gmra.mxu0 %v3207
      %v3353 = vpop.f32.mrf.mxu0
      %v3354 = vadd.f32 0.0, %v3353
      %v3355 = vpop.f32.mrf.mxu0
      %v3356 = vpop.f32.mrf.mxu0
      %v3357 = vadd.f32 0.0, %v3356
      %v3358 = vpop.f32.mrf.mxu0
      %3359 = vmatprep.mubr.bf16.mxu0 0
      %3360 = vmatmul.mubr.bf16.gmra.mxu0 %v3210
      %v3361 = vpop.f32.mrf.mxu0
      %v3362 = vadd.f32 0.0, %v3361
      %v3363 = vpop.f32.mrf.mxu0
      %v3364 = vpop.f32.mrf.mxu0
      %v3365 = vadd.f32 0.0, %v3364
      %v3366 = vpop.f32.mrf.mxu0
      %3367 = vmatprep.mubr.bf16.mxu0 0
      %3368 = vmatmul.mubr.bf16.gmra.mxu0 %v3213
      %v3369 = vpop.f32.mrf.mxu0
      %v3370 = vadd.f32 0.0, %v3369
      %v3371 = vpop.f32.mrf.mxu0
      %v3372 = vpop.f32.mrf.mxu0
      %v3373 = vadd.f32 0.0, %v3372
      %v3374 = vpop.f32.mrf.mxu0
      %3375 = vdwg.mxu0
      %v3376 = vld [vmem:[#allocation2] sm:$0xff]
      %v3377 = vld [vmem:[#allocation2 + $0x8] sm:$0xff]
      %v3378 = vld [vmem:[#allocation2 + $0x10] sm:$0xff]
      %v3379 = vld [vmem:[#allocation2 + $0x18] sm:$0xff]
      %v3380 = vld [vmem:[#allocation2 + $0x20] sm:$0xff]
      %v3381 = vld [vmem:[#allocation2 + $0x28] sm:$0xff]
      %v3382 = vld [vmem:[#allocation2 + $0x30] sm:$0xff]
      %v3383 = vld [vmem:[#allocation2 + $0x38] sm:$0xff]
      %v3384 = vld [vmem:[#allocation2 + $0x40] sm:$0xff]
      %v3385 = vld [vmem:[#allocation2 + $0x48] sm:$0xff]
      %v3386 = vld [vmem:[#allocation2 + $0x50] sm:$0xff]
      %v3387 = vld [vmem:[#allocation2 + $0x58] sm:$0xff]
      %v3388 = vld [vmem:[#allocation2 + $0x60] sm:$0xff]
      %v3389 = vld [vmem:[#allocation2 + $0x68] sm:$0xff]
      %v3390 = vld [vmem:[#allocation2 + $0x70] sm:$0xff]
      %v3391 = vld [vmem:[#allocation2 + $0x78] sm:$0xff]
      %v3392 = vld [vmem:[#allocation2 + $0x80] sm:$0xff]
      %v3393 = vld [vmem:[#allocation2 + $0x88] sm:$0xff]
      %v3394 = vld [vmem:[#allocation2 + $0x90] sm:$0xff]
      %v3395 = vld [vmem:[#allocation2 + $0x98] sm:$0xff]
      %v3396 = vld [vmem:[#allocation2 + $0xa0] sm:$0xff]
      %v3397 = vld [vmem:[#allocation2 + $0xa8] sm:$0xff]
      %v3398 = vld [vmem:[#allocation2 + $0xb0] sm:$0xff]
      %v3399 = vld [vmem:[#allocation2 + $0xb8] sm:$0xff]
      %v3400 = vld [vmem:[#allocation2 + $0xc0] sm:$0xff]
      %v3401 = vld [vmem:[#allocation2 + $0xc8] sm:$0xff]
      %v3402 = vld [vmem:[#allocation2 + $0xd0] sm:$0xff]
      %v3403 = vld [vmem:[#allocation2 + $0xd8] sm:$0xff]
      %v3404 = vld [vmem:[#allocation2 + $0xe0] sm:$0xff]
      %v3405 = vld [vmem:[#allocation2 + $0xe8] sm:$0xff]
      %v3406 = vld [vmem:[#allocation2 + $0xf0] sm:$0xff]
      %v3407 = vld [vmem:[#allocation2 + $0xf8] sm:$0xff]
      %v3408 = vadd.f32 %v3376, %v3250
      %v3409 = vadd.f32 %v3377, %v3253
      %v3410 = vadd.f32 %v3378, %v3258
      %v3411 = vadd.f32 %v3379, %v3261
      %v3412 = vadd.f32 %v3380, %v3266
      %v3413 = vadd.f32 %v3381, %v3269
      %v3414 = vadd.f32 %v3382, %v3274
      %v3415 = vadd.f32 %v3383, %v3277
      %v3416 = vadd.f32 %v3384, %v3282
      %v3417 = vadd.f32 %v3385, %v3285
      %v3418 = vadd.f32 %v3386, %v3290
      %v3419 = vadd.f32 %v3387, %v3293
      %v3420 = vadd.f32 %v3388, %v3298
      %v3421 = vadd.f32 %v3389, %v3301
      %v3422 = vadd.f32 %v3390, %v3306
      %v3423 = vadd.f32 %v3391, %v3309
      %v3424 = vadd.f32 %v3392, %v3314
      %v3425 = vadd.f32 %v3393, %v3317
      %v3426 = vadd.f32 %v3394, %v3322
      %v3427 = vadd.f32 %v3395, %v3325
      %v3428 = vadd.f32 %v3396, %v3330
      %v3429 = vadd.f32 %v3397, %v3333
      %v3430 = vadd.f32 %v3398, %v3338
      %v3431 = vadd.f32 %v3399, %v3341
      %v3432 = vadd.f32 %v3400, %v3346
      %v3433 = vadd.f32 %v3401, %v3349
      %v3434 = vadd.f32 %v3402, %v3354
      %v3435 = vadd.f32 %v3403, %v3357
      %v3436 = vadd.f32 %v3404, %v3362
      %v3437 = vadd.f32 %v3405, %v3365
      %v3438 = vadd.f32 %v3406, %v3370
      %v3439 = vadd.f32 %v3407, %v3373
      %3440 = vst.msk [vmem:[#allocation2] sm:$0xff] %vm479, %v3408
      %3441 = vst.msk [vmem:[#allocation2 + $0x8] sm:$0xff] %vm479, %v3409
      %3442 = vst.msk [vmem:[#allocation2 + $0x10] sm:$0xff] %vm479, %v3410
      %3443 = vst.msk [vmem:[#allocation2 + $0x18] sm:$0xff] %vm479, %v3411
      %3444 = vst.msk [vmem:[#allocation2 + $0x20] sm:$0xff] %vm479, %v3412
      %3445 = vst.msk [vmem:[#allocation2 + $0x28] sm:$0xff] %vm479, %v3413
      %3446 = vst.msk [vmem:[#allocation2 + $0x30] sm:$0xff] %vm479, %v3414
      %3447 = vst.msk [vmem:[#allocation2 + $0x38] sm:$0xff] %vm479, %v3415
      %3448 = vst.msk [vmem:[#allocation2 + $0x40] sm:$0xff] %vm479, %v3416
      %3449 = vst.msk [vmem:[#allocation2 + $0x48] sm:$0xff] %vm479, %v3417
      %3450 = vst.msk [vmem:[#allocation2 + $0x50] sm:$0xff] %vm479, %v3418
      %3451 = vst.msk [vmem:[#allocation2 + $0x58] sm:$0xff] %vm479, %v3419
      %3452 = vst.msk [vmem:[#allocation2 + $0x60] sm:$0xff] %vm479, %v3420
      %3453 = vst.msk [vmem:[#allocation2 + $0x68] sm:$0xff] %vm479, %v3421
      %3454 = vst.msk [vmem:[#allocation2 + $0x70] sm:$0xff] %vm479, %v3422
      %3455 = vst.msk [vmem:[#allocation2 + $0x78] sm:$0xff] %vm479, %v3423
      %3456 = vst.msk [vmem:[#allocation2 + $0x80] sm:$0xff] %vm479, %v3424
      %3457 = vst.msk [vmem:[#allocation2 + $0x88] sm:$0xff] %vm479, %v3425
      %3458 = vst.msk [vmem:[#allocation2 + $0x90] sm:$0xff] %vm479, %v3426
      %3459 = vst.msk [vmem:[#allocation2 + $0x98] sm:$0xff] %vm479, %v3427
      %3460 = vst.msk [vmem:[#allocation2 + $0xa0] sm:$0xff] %vm479, %v3428
      %3461 = vst.msk [vmem:[#allocation2 + $0xa8] sm:$0xff] %vm479, %v3429
      %3462 = vst.msk [vmem:[#allocation2 + $0xb0] sm:$0xff] %vm479, %v3430
      %3463 = vst.msk [vmem:[#allocation2 + $0xb8] sm:$0xff] %vm479, %v3431
      %3464 = vst.msk [vmem:[#allocation2 + $0xc0] sm:$0xff] %vm479, %v3432
      %3465 = vst.msk [vmem:[#allocation2 + $0xc8] sm:$0xff] %vm479, %v3433
      %3466 = vst.msk [vmem:[#allocation2 + $0xd0] sm:$0xff] %vm479, %v3434
      %3467 = vst.msk [vmem:[#allocation2 + $0xd8] sm:$0xff] %vm479, %v3435
      %3468 = vst.msk [vmem:[#allocation2 + $0xe0] sm:$0xff] %vm479, %v3436
      %3469 = vst.msk [vmem:[#allocation2 + $0xe8] sm:$0xff] %vm479, %v3437
      %3470 = vst.msk [vmem:[#allocation2 + $0xf0] sm:$0xff] %vm479, %v3438
      %3471 = vst.msk [vmem:[#allocation2 + $0xf8] sm:$0xff] %vm479, %v3439
      %v3472 = vld [vmem:[%s2203] sm:$0xe]
      %v3473 = vld [vmem:[%s2203 + $0x4] sm:$0xf]
      %v3474 = vld [vmem:[%s2203 + $0x8] sm:$0x1]
      %v3475 = vld [vmem:[%s2203 + $0xc] sm:$0xe]
      %v3476 = vld [vmem:[%s2203 + $0x10] sm:$0xf]
      %v3477 = vld [vmem:[%s2203 + $0x14] sm:$0x1]
      %v3478 = vld [vmem:[%s2203 + $0x18] sm:$0xe]
      %v3479 = vld [vmem:[%s2203 + $0x1c] sm:$0xf]
      %v3480 = vld [vmem:[%s2203 + $0x20] sm:$0x1]
      %v3481 = vld [vmem:[%s2203 + $0x24] sm:$0xe]
      %v3482 = vld [vmem:[%s2203 + $0x28] sm:$0xf]
      %v3483 = vld [vmem:[%s2203 + $0x2c] sm:$0x1]
      %v3484 = vld [vmem:[%s2203 + $0x30] sm:$0xe]
      %v3485 = vld [vmem:[%s2203 + $0x34] sm:$0xf]
      %v3486 = vld [vmem:[%s2203 + $0x38] sm:$0x1]
      %v3487 = vld [vmem:[%s2203 + $0x3c] sm:$0xe]
      %v3488 = vld [vmem:[%s2203 + $0x40] sm:$0xf]
      %v3489 = vld [vmem:[%s2203 + $0x44] sm:$0x1]
      %v3490 = vld [vmem:[%s2203 + $0x48] sm:$0xe]
      %v3491 = vld [vmem:[%s2203 + $0x4c] sm:$0xf]
      %v3492 = vld [vmem:[%s2203 + $0x50] sm:$0x1]
      %v3493 = vld [vmem:[%s2203 + $0x54] sm:$0xe]
      %v3494 = vld [vmem:[%s2203 + $0x58] sm:$0xf]
      %v3495 = vld [vmem:[%s2203 + $0x5c] sm:$0x1]
      %v3496 = vld [vmem:[%s2203 + $0x60] sm:$0xe]
      %v3497 = vld [vmem:[%s2203 + $0x64] sm:$0xf]
      %v3498 = vld [vmem:[%s2203 + $0x68] sm:$0x1]
      %v3499 = vld [vmem:[%s2203 + $0x6c] sm:$0xe]
      %v3500 = vld [vmem:[%s2203 + $0x70] sm:$0xf]
      %v3501 = vld [vmem:[%s2203 + $0x74] sm:$0x1]
      %v3502 = vld [vmem:[%s2203 + $0x78] sm:$0xe]
      %v3503 = vld [vmem:[%s2203 + $0x7c] sm:$0xf]
      %v3504 = vld [vmem:[%s2203 + $0x80] sm:$0x1]
      %v3505 = vld [vmem:[%s2203 + $0x84] sm:$0xe]
      %v3506 = vld [vmem:[%s2203 + $0x88] sm:$0xf]
      %v3507 = vld [vmem:[%s2203 + $0x8c] sm:$0x1]
      %v3508 = vld [vmem:[%s2203 + $0x90] sm:$0xe]
      %v3509 = vld [vmem:[%s2203 + $0x94] sm:$0xf]
      %v3510 = vld [vmem:[%s2203 + $0x98] sm:$0x1]
      %v3511 = vld [vmem:[%s2203 + $0x9c] sm:$0xe]
      %v3512 = vld [vmem:[%s2203 + $0xa0] sm:$0xf]
      %v3513 = vld [vmem:[%s2203 + $0xa4] sm:$0x1]
      %v3514 = vld [vmem:[%s2203 + $0xa8] sm:$0xe]
      %v3515 = vld [vmem:[%s2203 + $0xac] sm:$0xf]
      %v3516 = vld [vmem:[%s2203 + $0xb0] sm:$0x1]
      %v3517 = vld [vmem:[%s2203 + $0xb4] sm:$0xe]
      %v3518 = vld [vmem:[%s2203 + $0xb8] sm:$0xf]
      %v3519 = vld [vmem:[%s2203 + $0xbc] sm:$0x1]
      %v3568 = vrot.slane %v3472, 5
      %v3569 = vrot.slane %v3568, 4
      %v3570 = vrot.slane %v3473, 5
      %v3571 = vsel %vm1704, %v3569, %v3570
      %v3572 = vrot.slane %v3570, 4
      %v3573 = vrot.slane %v3474, 5
      %v3574 = vsel %vm1704, %v3572, %v3573
      %v3575 = vrot.slane %v3475, 5
      %v3576 = vrot.slane %v3575, 4
      %v3577 = vrot.slane %v3476, 5
      %v3578 = vsel %vm1704, %v3576, %v3577
      %v3579 = vrot.slane %v3577, 4
      %v3580 = vrot.slane %v3477, 5
      %v3581 = vsel %vm1704, %v3579, %v3580
      %v3582 = vrot.slane %v3478, 5
      %v3583 = vrot.slane %v3582, 4
      %v3584 = vrot.slane %v3479, 5
      %v3585 = vsel %vm1704, %v3583, %v3584
      %v3586 = vrot.slane %v3584, 4
      %v3587 = vrot.slane %v3480, 5
      %v3588 = vsel %vm1704, %v3586, %v3587
      %v3589 = vrot.slane %v3481, 5
      %v3590 = vrot.slane %v3589, 4
      %v3591 = vrot.slane %v3482, 5
      %v3592 = vsel %vm1704, %v3590, %v3591
      %v3593 = vrot.slane %v3591, 4
      %v3594 = vrot.slane %v3483, 5
      %v3595 = vsel %vm1704, %v3593, %v3594
      %v3596 = vrot.slane %v3484, 5
      %v3597 = vrot.slane %v3596, 4
      %v3598 = vrot.slane %v3485, 5
      %v3599 = vsel %vm1704, %v3597, %v3598
      %v3600 = vrot.slane %v3598, 4
      %v3601 = vrot.slane %v3486, 5
      %v3602 = vsel %vm1704, %v3600, %v3601
      %v3603 = vrot.slane %v3487, 5
      %v3604 = vrot.slane %v3603, 4
      %v3605 = vrot.slane %v3488, 5
      %v3606 = vsel %vm1704, %v3604, %v3605
      %v3607 = vrot.slane %v3605, 4
      %v3608 = vrot.slane %v3489, 5
      %v3609 = vsel %vm1704, %v3607, %v3608
      %v3610 = vrot.slane %v3490, 5
      %v3611 = vrot.slane %v3610, 4
      %v3612 = vrot.slane %v3491, 5
      %v3613 = vsel %vm1704, %v3611, %v3612
      %v3614 = vrot.slane %v3612, 4
      %v3615 = vrot.slane %v3492, 5
      %v3616 = vsel %vm1704, %v3614, %v3615
      %v3617 = vrot.slane %v3493, 5
      %v3618 = vrot.slane %v3617, 4
      %v3619 = vrot.slane %v3494, 5
      %v3620 = vsel %vm1704, %v3618, %v3619
      %v3621 = vrot.slane %v3619, 4
      %v3622 = vrot.slane %v3495, 5
      %v3623 = vsel %vm1704, %v3621, %v3622
      %v3624 = vrot.slane %v3496, 5
      %v3625 = vrot.slane %v3624, 4
      %v3626 = vrot.slane %v3497, 5
      %v3627 = vsel %vm1704, %v3625, %v3626
      %v3628 = vrot.slane %v3626, 4
      %v3629 = vrot.slane %v3498, 5
      %v3630 = vsel %vm1704, %v3628, %v3629
      %v3631 = vrot.slane %v3499, 5
      %v3632 = vrot.slane %v3631, 4
      %v3633 = vrot.slane %v3500, 5
      %v3634 = vsel %vm1704, %v3632, %v3633
      %v3635 = vrot.slane %v3633, 4
      %v3636 = vrot.slane %v3501, 5
      %v3637 = vsel %vm1704, %v3635, %v3636
      %v3638 = vrot.slane %v3502, 5
      %v3639 = vrot.slane %v3638, 4
      %v3640 = vrot.slane %v3503, 5
      %v3641 = vsel %vm1704, %v3639, %v3640
      %v3642 = vrot.slane %v3640, 4
      %v3643 = vrot.slane %v3504, 5
      %v3644 = vsel %vm1704, %v3642, %v3643
      %v3645 = vrot.slane %v3505, 5
      %v3646 = vrot.slane %v3645, 4
      %v3647 = vrot.slane %v3506, 5
      %v3648 = vsel %vm1704, %v3646, %v3647
      %v3649 = vrot.slane %v3647, 4
      %v3650 = vrot.slane %v3507, 5
      %v3651 = vsel %vm1704, %v3649, %v3650
      %v3652 = vrot.slane %v3508, 5
      %v3653 = vrot.slane %v3652, 4
      %v3654 = vrot.slane %v3509, 5
      %v3655 = vsel %vm1704, %v3653, %v3654
      %v3656 = vrot.slane %v3654, 4
      %v3657 = vrot.slane %v3510, 5
      %v3658 = vsel %vm1704, %v3656, %v3657
      %v3659 = vrot.slane %v3511, 5
      %v3660 = vrot.slane %v3659, 4
      %v3661 = vrot.slane %v3512, 5
      %v3662 = vsel %vm1704, %v3660, %v3661
      %v3663 = vrot.slane %v3661, 4
      %v3664 = vrot.slane %v3513, 5
      %v3665 = vsel %vm1704, %v3663, %v3664
      %v3666 = vrot.slane %v3514, 5
      %v3667 = vrot.slane %v3666, 4
      %v3668 = vrot.slane %v3515, 5
      %v3669 = vsel %vm1704, %v3667, %v3668
      %v3670 = vrot.slane %v3668, 4
      %v3671 = vrot.slane %v3516, 5
      %v3672 = vsel %vm1704, %v3670, %v3671
      %v3673 = vrot.slane %v3517, 5
      %v3674 = vrot.slane %v3673, 4
      %v3675 = vrot.slane %v3518, 5
      %v3676 = vsel %vm1704, %v3674, %v3675
      %v3677 = vrot.slane %v3675, 4
      %v3678 = vrot.slane %v3519, 5
      %v3679 = vsel %vm1704, %v3677, %v3678
      %s3680 = scalar_lea.vmem %s281, 160
      %v3681 = vld [vmem:[%s3680] sm:$0xf]
      %v3682 = vld [vmem:[%s3680 + $0x4] sm:$0xf]
      %v3683 = vld [vmem:[%s3680 + $0x8] sm:$0xf]
      %v3684 = vld [vmem:[%s3680 + $0xc] sm:$0xf]
      %v3685 = vld [vmem:[%s3680 + $0x10] sm:$0xf]
      %v3686 = vld [vmem:[%s3680 + $0x14] sm:$0xf]
      %v3687 = vld [vmem:[%s3680 + $0x18] sm:$0xf]
      %v3688 = vld [vmem:[%s3680 + $0x1c] sm:$0xf]
      %v3689 = vunpack.c.l.b16 %v3571
      %v3690 = vunpack.c.l.b16 %v3574
      %v3691 = vunpack.c.l.b16 %v3578
      %v3692 = vunpack.c.l.b16 %v3581
      %v3693 = vunpack.c.l.b16 %v3585
      %v3694 = vunpack.c.l.b16 %v3588
      %v3695 = vunpack.c.l.b16 %v3592
      %v3696 = vunpack.c.l.b16 %v3595
      %v3697 = vunpack.c.l.b16 %v3599
      %v3698 = vunpack.c.l.b16 %v3602
      %v3699 = vunpack.c.l.b16 %v3606
      %v3700 = vunpack.c.l.b16 %v3609
      %v3701 = vunpack.c.l.b16 %v3613
      %v3702 = vunpack.c.l.b16 %v3616
      %v3703 = vunpack.c.l.b16 %v3620
      %v3704 = vunpack.c.l.b16 %v3623
      %v3705 = vunpack.c.l.b16 %v3627
      %v3706 = vunpack.c.l.b16 %v3630
      %v3707 = vunpack.c.l.b16 %v3634
      %v3708 = vunpack.c.l.b16 %v3637
      %v3709 = vunpack.c.l.b16 %v3641
      %v3710 = vunpack.c.l.b16 %v3644
      %v3711 = vunpack.c.l.b16 %v3648
      %v3712 = vunpack.c.l.b16 %v3651
      %v3713 = vunpack.c.l.b16 %v3655
      %v3714 = vunpack.c.l.b16 %v3658
      %v3715 = vunpack.c.l.b16 %v3662
      %v3716 = vunpack.c.l.b16 %v3665
      %v3717 = vunpack.c.l.b16 %v3669
      %v3718 = vunpack.c.l.b16 %v3672
      %v3719 = vunpack.c.l.b16 %v3676
      %v3720 = vunpack.c.l.b16 %v3679
      %v3721 = vpack.c.b16 %v3690, %v3689
      %v3722 = vpack.c.b16 %v3692, %v3691
      %v3723 = vpack.c.b16 %v3694, %v3693
      %v3724 = vpack.c.b16 %v3696, %v3695
      %v3725 = vpack.c.b16 %v3698, %v3697
      %v3726 = vpack.c.b16 %v3700, %v3699
      %v3727 = vpack.c.b16 %v3702, %v3701
      %v3728 = vpack.c.b16 %v3704, %v3703
      %v3729 = vpack.c.b16 %v3706, %v3705
      %v3730 = vpack.c.b16 %v3708, %v3707
      %v3731 = vpack.c.b16 %v3710, %v3709
      %v3732 = vpack.c.b16 %v3712, %v3711
      %v3733 = vpack.c.b16 %v3714, %v3713
      %v3734 = vpack.c.b16 %v3716, %v3715
      %v3735 = vpack.c.b16 %v3718, %v3717
      %v3736 = vpack.c.b16 %v3720, %v3719
      %v3745 = vunpack.c.l.b16 %v3681
      %v3746 = vunpack.c.l.b16 %v3682
      %v3747 = vunpack.c.l.b16 %v3683
      %v3748 = vunpack.c.l.b16 %v3684
      %v3749 = vunpack.c.l.b16 %v3685
      %v3750 = vunpack.c.l.b16 %v3686
      %v3751 = vunpack.c.l.b16 %v3687
      %v3752 = vunpack.c.l.b16 %v3688
      %v3753 = vpack.c.b16 %v3746, %v3745
      %v3754 = vpack.c.b16 %v3748, %v3747
      %v3755 = vpack.c.b16 %v3750, %v3749
      %v3756 = vpack.c.b16 %v3752, %v3751
      %v3762 = vsel %vm479, %v3721, 0
      %v3765 = vsel %vm479, %v3722, 0
      %v3768 = vsel %vm479, %v3723, 0
      %v3771 = vsel %vm479, %v3724, 0
      %v3774 = vsel %vm479, %v3725, 0
      %v3777 = vsel %vm479, %v3726, 0
      %v3780 = vsel %vm479, %v3727, 0
      %v3783 = vsel %vm479, %v3728, 0
      %v3786 = vsel %vm479, %v3729, 0
      %v3789 = vsel %vm479, %v3730, 0
      %v3792 = vsel %vm479, %v3731, 0
      %v3795 = vsel %vm479, %v3732, 0
      %v3798 = vsel %vm479, %v3733, 0
      %v3801 = vsel %vm479, %v3734, 0
      %v3804 = vsel %vm479, %v3735, 0
      %v3807 = vsel %vm479, %v3736, 0
      %3809 = vmatprep.subr.bf16.mxu0 0
      %3810 = vmatpush1.bf16.msra.mxu0 0
      %3811 = vmatprep.subr.bf16.mxu0 0
      %3812 = vmatpush1.bf16.msra.mxu0 0
      %3813 = vmatprep.subr.bf16.mxu0 0
      %3814 = vmatpush1.bf16.msra.mxu0 0
      %3815 = vmatprep.subr.bf16.mxu0 0
      %3816 = vmatpush1.bf16.msra.mxu0 0
      %3817 = vmatprep.subr.bf16.mxu0 0
      %3818 = vmatpush1.bf16.msra.mxu0 %v3756
      %3819 = vmatprep.subr.bf16.mxu0 0
      %3820 = vmatpush1.bf16.msra.mxu0 %v3755
      %3821 = vmatprep.subr.bf16.mxu0 0
      %3822 = vmatpush1.bf16.msra.mxu0 %v3754
      %3823 = vmatprep.subr.bf16.mxu0 0
      %3824 = vmatpush1.bf16.msra.mxu0 %v3753
      %3825 = vmatprep.subr.bf16.mxu0 0
      %3826 = vmatpush2.bf16.msra.mxu0 0
      %3827 = vmatprep.subr.bf16.mxu0 0
      %3828 = vmatpush2.bf16.msra.mxu0 0
      %3829 = vmatprep.subr.bf16.mxu0 0
      %3830 = vmatpush2.bf16.msra.mxu0 0
      %3831 = vmatprep.subr.bf16.mxu0 0
      %3832 = vmatpush2.bf16.msra.mxu0 0
      %3833 = vmatprep.subr.bf16.mxu0 0
      %3834 = vmatpush2.bf16.msra.mxu0 0
      %3835 = vmatprep.subr.bf16.mxu0 0
      %3836 = vmatpush2.bf16.msra.mxu0 0
      %3837 = vmatprep.subr.bf16.mxu0 0
      %3838 = vmatpush2.bf16.msra.mxu0 0
      %3839 = vmatprep.subr.bf16.mxu0 0
      %3840 = vmatpush2.bf16.msra.mxu0 0
      %3841 = vmatprep.mubr.bf16.mxu0 0
      %3842 = vmatmul.mubr.bf16.gmra.mxu0 %v3762
      %v3843 = vpop.f32.mrf.mxu0
      %v3844 = vadd.f32 0.0, %v3843
      %v3845 = vpop.f32.mrf.mxu0
      %v3846 = vpop.f32.mrf.mxu0
      %v3847 = vadd.f32 0.0, %v3846
      %v3848 = vpop.f32.mrf.mxu0
      %3849 = vmatprep.mubr.bf16.mxu0 0
      %3850 = vmatmul.mubr.bf16.gmra.mxu0 %v3765
      %v3851 = vpop.f32.mrf.mxu0
      %v3852 = vadd.f32 0.0, %v3851
      %v3853 = vpop.f32.mrf.mxu0
      %v3854 = vpop.f32.mrf.mxu0
      %v3855 = vadd.f32 0.0, %v3854
      %v3856 = vpop.f32.mrf.mxu0
      %3857 = vmatprep.mubr.bf16.mxu0 0
      %3858 = vmatmul.mubr.bf16.gmra.mxu0 %v3768
      %v3859 = vpop.f32.mrf.mxu0
      %v3860 = vadd.f32 0.0, %v3859
      %v3861 = vpop.f32.mrf.mxu0
      %v3862 = vpop.f32.mrf.mxu0
      %v3863 = vadd.f32 0.0, %v3862
      %v3864 = vpop.f32.mrf.mxu0
      %3865 = vmatprep.mubr.bf16.mxu0 0
      %3866 = vmatmul.mubr.bf16.gmra.mxu0 %v3771
      %v3867 = vpop.f32.mrf.mxu0
      %v3868 = vadd.f32 0.0, %v3867
      %v3869 = vpop.f32.mrf.mxu0
      %v3870 = vpop.f32.mrf.mxu0
      %v3871 = vadd.f32 0.0, %v3870
      %v3872 = vpop.f32.mrf.mxu0
      %3873 = vmatprep.mubr.bf16.mxu0 0
      %3874 = vmatmul.mubr.bf16.gmra.mxu0 %v3774
      %v3875 = vpop.f32.mrf.mxu0
      %v3876 = vadd.f32 0.0, %v3875
      %v3877 = vpop.f32.mrf.mxu0
      %v3878 = vpop.f32.mrf.mxu0
      %v3879 = vadd.f32 0.0, %v3878
      %v3880 = vpop.f32.mrf.mxu0
      %3881 = vmatprep.mubr.bf16.mxu0 0
      %3882 = vmatmul.mubr.bf16.gmra.mxu0 %v3777
      %v3883 = vpop.f32.mrf.mxu0
      %v3884 = vadd.f32 0.0, %v3883
      %v3885 = vpop.f32.mrf.mxu0
      %v3886 = vpop.f32.mrf.mxu0
      %v3887 = vadd.f32 0.0, %v3886
      %v3888 = vpop.f32.mrf.mxu0
      %3889 = vmatprep.mubr.bf16.mxu0 0
      %3890 = vmatmul.mubr.bf16.gmra.mxu0 %v3780
      %v3891 = vpop.f32.mrf.mxu0
      %v3892 = vadd.f32 0.0, %v3891
      %v3893 = vpop.f32.mrf.mxu0
      %v3894 = vpop.f32.mrf.mxu0
      %v3895 = vadd.f32 0.0, %v3894
      %v3896 = vpop.f32.mrf.mxu0
      %3897 = vmatprep.mubr.bf16.mxu0 0
      %3898 = vmatmul.mubr.bf16.gmra.mxu0 %v3783
      %v3899 = vpop.f32.mrf.mxu0
      %v3900 = vadd.f32 0.0, %v3899
      %v3901 = vpop.f32.mrf.mxu0
      %v3902 = vpop.f32.mrf.mxu0
      %v3903 = vadd.f32 0.0, %v3902
      %v3904 = vpop.f32.mrf.mxu0
      %3905 = vmatprep.mubr.bf16.mxu0 0
      %3906 = vmatmul.mubr.bf16.gmra.mxu0 %v3786
      %v3907 = vpop.f32.mrf.mxu0
      %v3908 = vadd.f32 0.0, %v3907
      %v3909 = vpop.f32.mrf.mxu0
      %v3910 = vpop.f32.mrf.mxu0
      %v3911 = vadd.f32 0.0, %v3910
      %v3912 = vpop.f32.mrf.mxu0
      %3913 = vmatprep.mubr.bf16.mxu0 0
      %3914 = vmatmul.mubr.bf16.gmra.mxu0 %v3789
      %v3915 = vpop.f32.mrf.mxu0
      %v3916 = vadd.f32 0.0, %v3915
      %v3917 = vpop.f32.mrf.mxu0
      %v3918 = vpop.f32.mrf.mxu0
      %v3919 = vadd.f32 0.0, %v3918
      %v3920 = vpop.f32.mrf.mxu0
      %3921 = vmatprep.mubr.bf16.mxu0 0
      %3922 = vmatmul.mubr.bf16.gmra.mxu0 %v3792
      %v3923 = vpop.f32.mrf.mxu0
      %v3924 = vadd.f32 0.0, %v3923
      %v3925 = vpop.f32.mrf.mxu0
      %v3926 = vpop.f32.mrf.mxu0
      %v3927 = vadd.f32 0.0, %v3926
      %v3928 = vpop.f32.mrf.mxu0
      %3929 = vmatprep.mubr.bf16.mxu0 0
      %3930 = vmatmul.mubr.bf16.gmra.mxu0 %v3795
      %v3931 = vpop.f32.mrf.mxu0
      %v3932 = vadd.f32 0.0, %v3931
      %v3933 = vpop.f32.mrf.mxu0
      %v3934 = vpop.f32.mrf.mxu0
      %v3935 = vadd.f32 0.0, %v3934
      %v3936 = vpop.f32.mrf.mxu0
      %3937 = vmatprep.mubr.bf16.mxu0 0
      %3938 = vmatmul.mubr.bf16.gmra.mxu0 %v3798
      %v3939 = vpop.f32.mrf.mxu0
      %v3940 = vadd.f32 0.0, %v3939
      %v3941 = vpop.f32.mrf.mxu0
      %v3942 = vpop.f32.mrf.mxu0
      %v3943 = vadd.f32 0.0, %v3942
      %v3944 = vpop.f32.mrf.mxu0
      %3945 = vmatprep.mubr.bf16.mxu0 0
      %3946 = vmatmul.mubr.bf16.gmra.mxu0 %v3801
      %v3947 = vpop.f32.mrf.mxu0
      %v3948 = vadd.f32 0.0, %v3947
      %v3949 = vpop.f32.mrf.mxu0
      %v3950 = vpop.f32.mrf.mxu0
      %v3951 = vadd.f32 0.0, %v3950
      %v3952 = vpop.f32.mrf.mxu0
      %3953 = vmatprep.mubr.bf16.mxu0 0
      %3954 = vmatmul.mubr.bf16.gmra.mxu0 %v3804
      %v3955 = vpop.f32.mrf.mxu0
      %v3956 = vadd.f32 0.0, %v3955
      %v3957 = vpop.f32.mrf.mxu0
      %v3958 = vpop.f32.mrf.mxu0
      %v3959 = vadd.f32 0.0, %v3958
      %v3960 = vpop.f32.mrf.mxu0
      %3961 = vmatprep.mubr.bf16.mxu0 0
      %3962 = vmatmul.mubr.bf16.gmra.mxu0 %v3807
      %v3963 = vpop.f32.mrf.mxu0
      %v3964 = vadd.f32 0.0, %v3963
      %v3965 = vpop.f32.mrf.mxu0
      %v3966 = vpop.f32.mrf.mxu0
      %v3967 = vadd.f32 0.0, %v3966
      %v3968 = vpop.f32.mrf.mxu0
      %3969 = vdwg.mxu0
      %v3970 = vld [vmem:[#allocation2] sm:$0xff]
      %v3971 = vld [vmem:[#allocation2 + $0x8] sm:$0xff]
      %v3972 = vld [vmem:[#allocation2 + $0x10] sm:$0xff]
      %v3973 = vld [vmem:[#allocation2 + $0x18] sm:$0xff]
      %v3974 = vld [vmem:[#allocation2 + $0x20] sm:$0xff]
      %v3975 = vld [vmem:[#allocation2 + $0x28] sm:$0xff]
      %v3976 = vld [vmem:[#allocation2 + $0x30] sm:$0xff]
      %v3977 = vld [vmem:[#allocation2 + $0x38] sm:$0xff]
      %v3978 = vld [vmem:[#allocation2 + $0x40] sm:$0xff]
      %v3979 = vld [vmem:[#allocation2 + $0x48] sm:$0xff]
      %v3980 = vld [vmem:[#allocation2 + $0x50] sm:$0xff]
      %v3981 = vld [vmem:[#allocation2 + $0x58] sm:$0xff]
      %v3982 = vld [vmem:[#allocation2 + $0x60] sm:$0xff]
      %v3983 = vld [vmem:[#allocation2 + $0x68] sm:$0xff]
      %v3984 = vld [vmem:[#allocation2 + $0x70] sm:$0xff]
      %v3985 = vld [vmem:[#allocation2 + $0x78] sm:$0xff]
      %v3986 = vld [vmem:[#allocation2 + $0x80] sm:$0xff]
      %v3987 = vld [vmem:[#allocation2 + $0x88] sm:$0xff]
      %v3988 = vld [vmem:[#allocation2 + $0x90] sm:$0xff]
      %v3989 = vld [vmem:[#allocation2 + $0x98] sm:$0xff]
      %v3990 = vld [vmem:[#allocation2 + $0xa0] sm:$0xff]
      %v3991 = vld [vmem:[#allocation2 + $0xa8] sm:$0xff]
      %v3992 = vld [vmem:[#allocation2 + $0xb0] sm:$0xff]
      %v3993 = vld [vmem:[#allocation2 + $0xb8] sm:$0xff]
      %v3994 = vld [vmem:[#allocation2 + $0xc0] sm:$0xff]
      %v3995 = vld [vmem:[#allocation2 + $0xc8] sm:$0xff]
      %v3996 = vld [vmem:[#allocation2 + $0xd0] sm:$0xff]
      %v3997 = vld [vmem:[#allocation2 + $0xd8] sm:$0xff]
      %v3998 = vld [vmem:[#allocation2 + $0xe0] sm:$0xff]
      %v3999 = vld [vmem:[#allocation2 + $0xe8] sm:$0xff]
      %v4000 = vld [vmem:[#allocation2 + $0xf0] sm:$0xff]
      %v4001 = vld [vmem:[#allocation2 + $0xf8] sm:$0xff]
      %v4002 = vadd.f32 %v3970, %v3844
      %v4003 = vadd.f32 %v3971, %v3847
      %v4004 = vadd.f32 %v3972, %v3852
      %v4005 = vadd.f32 %v3973, %v3855
      %v4006 = vadd.f32 %v3974, %v3860
      %v4007 = vadd.f32 %v3975, %v3863
      %v4008 = vadd.f32 %v3976, %v3868
      %v4009 = vadd.f32 %v3977, %v3871
      %v4010 = vadd.f32 %v3978, %v3876
      %v4011 = vadd.f32 %v3979, %v3879
      %v4012 = vadd.f32 %v3980, %v3884
      %v4013 = vadd.f32 %v3981, %v3887
      %v4014 = vadd.f32 %v3982, %v3892
      %v4015 = vadd.f32 %v3983, %v3895
      %v4016 = vadd.f32 %v3984, %v3900
      %v4017 = vadd.f32 %v3985, %v3903
      %v4018 = vadd.f32 %v3986, %v3908
      %v4019 = vadd.f32 %v3987, %v3911
      %v4020 = vadd.f32 %v3988, %v3916
      %v4021 = vadd.f32 %v3989, %v3919
      %v4022 = vadd.f32 %v3990, %v3924
      %v4023 = vadd.f32 %v3991, %v3927
      %v4024 = vadd.f32 %v3992, %v3932
      %v4025 = vadd.f32 %v3993, %v3935
      %v4026 = vadd.f32 %v3994, %v3940
      %v4027 = vadd.f32 %v3995, %v3943
      %v4028 = vadd.f32 %v3996, %v3948
      %v4029 = vadd.f32 %v3997, %v3951
      %v4030 = vadd.f32 %v3998, %v3956
      %v4031 = vadd.f32 %v3999, %v3959
      %v4032 = vadd.f32 %v4000, %v3964
      %v4033 = vadd.f32 %v4001, %v3967
      %4034 = vst.msk [vmem:[#allocation2] sm:$0xff] %vm479, %v4002
      %4035 = vst.msk [vmem:[#allocation2 + $0x8] sm:$0xff] %vm479, %v4003
      %4036 = vst.msk [vmem:[#allocation2 + $0x10] sm:$0xff] %vm479, %v4004
      %4037 = vst.msk [vmem:[#allocation2 + $0x18] sm:$0xff] %vm479, %v4005
      %4038 = vst.msk [vmem:[#allocation2 + $0x20] sm:$0xff] %vm479, %v4006
      %4039 = vst.msk [vmem:[#allocation2 + $0x28] sm:$0xff] %vm479, %v4007
      %4040 = vst.msk [vmem:[#allocation2 + $0x30] sm:$0xff] %vm479, %v4008
      %4041 = vst.msk [vmem:[#allocation2 + $0x38] sm:$0xff] %vm479, %v4009
      %4042 = vst.msk [vmem:[#allocation2 + $0x40] sm:$0xff] %vm479, %v4010
      %4043 = vst.msk [vmem:[#allocation2 + $0x48] sm:$0xff] %vm479, %v4011
      %4044 = vst.msk [vmem:[#allocation2 + $0x50] sm:$0xff] %vm479, %v4012
      %4045 = vst.msk [vmem:[#allocation2 + $0x58] sm:$0xff] %vm479, %v4013
      %4046 = vst.msk [vmem:[#allocation2 + $0x60] sm:$0xff] %vm479, %v4014
      %4047 = vst.msk [vmem:[#allocation2 + $0x68] sm:$0xff] %vm479, %v4015
      %4048 = vst.msk [vmem:[#allocation2 + $0x70] sm:$0xff] %vm479, %v4016
      %4049 = vst.msk [vmem:[#allocation2 + $0x78] sm:$0xff] %vm479, %v4017
      %4050 = vst.msk [vmem:[#allocation2 + $0x80] sm:$0xff] %vm479, %v4018
      %4051 = vst.msk [vmem:[#allocation2 + $0x88] sm:$0xff] %vm479, %v4019
      %4052 = vst.msk [vmem:[#allocation2 + $0x90] sm:$0xff] %vm479, %v4020
      %4053 = vst.msk [vmem:[#allocation2 + $0x98] sm:$0xff] %vm479, %v4021
      %4054 = vst.msk [vmem:[#allocation2 + $0xa0] sm:$0xff] %vm479, %v4022
      %4055 = vst.msk [vmem:[#allocation2 + $0xa8] sm:$0xff] %vm479, %v4023
      %4056 = vst.msk [vmem:[#allocation2 + $0xb0] sm:$0xff] %vm479, %v4024
      %4057 = vst.msk [vmem:[#allocation2 + $0xb8] sm:$0xff] %vm479, %v4025
      %4058 = vst.msk [vmem:[#allocation2 + $0xc0] sm:$0xff] %vm479, %v4026
      %4059 = vst.msk [vmem:[#allocation2 + $0xc8] sm:$0xff] %vm479, %v4027
      %4060 = vst.msk [vmem:[#allocation2 + $0xd0] sm:$0xff] %vm479, %v4028
      %4061 = vst.msk [vmem:[#allocation2 + $0xd8] sm:$0xff] %vm479, %v4029
      %4062 = vst.msk [vmem:[#allocation2 + $0xe0] sm:$0xff] %vm479, %v4030
      %4063 = vst.msk [vmem:[#allocation2 + $0xe8] sm:$0xff] %vm479, %v4031
      %4064 = vst.msk [vmem:[#allocation2 + $0xf0] sm:$0xff] %vm479, %v4032
      %4065 = vst.msk [vmem:[#allocation2 + $0xf8] sm:$0xff] %vm479, %v4033
      %s4066 = scalar_lea.vmem %s273, 24
      %v4067 = vld [vmem:[%s4066] sm:$0xf]
      %v4068 = vld [vmem:[%s4066 + $0x4] sm:$0xf]
      %v4069 = vld [vmem:[%s4066 + $0xc] sm:$0xf]
      %v4070 = vld [vmem:[%s4066 + $0x10] sm:$0xf]
      %v4071 = vld [vmem:[%s4066 + $0x18] sm:$0xf]
      %v4072 = vld [vmem:[%s4066 + $0x1c] sm:$0xf]
      %v4073 = vld [vmem:[%s4066 + $0x24] sm:$0xf]
      %v4074 = vld [vmem:[%s4066 + $0x28] sm:$0xf]
      %v4075 = vld [vmem:[%s4066 + $0x30] sm:$0xf]
      %v4076 = vld [vmem:[%s4066 + $0x34] sm:$0xf]
      %v4077 = vld [vmem:[%s4066 + $0x3c] sm:$0xf]
      %v4078 = vld [vmem:[%s4066 + $0x40] sm:$0xf]
      %v4079 = vld [vmem:[%s4066 + $0x48] sm:$0xf]
      %v4080 = vld [vmem:[%s4066 + $0x4c] sm:$0xf]
      %v4081 = vld [vmem:[%s4066 + $0x54] sm:$0xf]
      %v4082 = vld [vmem:[%s4066 + $0x58] sm:$0xf]
      %v4083 = vld [vmem:[%s4066 + $0x60] sm:$0xf]
      %v4084 = vld [vmem:[%s4066 + $0x64] sm:$0xf]
      %v4085 = vld [vmem:[%s4066 + $0x6c] sm:$0xf]
      %v4086 = vld [vmem:[%s4066 + $0x70] sm:$0xf]
      %v4087 = vld [vmem:[%s4066 + $0x78] sm:$0xf]
      %v4088 = vld [vmem:[%s4066 + $0x7c] sm:$0xf]
      %v4089 = vld [vmem:[%s4066 + $0x84] sm:$0xf]
      %v4090 = vld [vmem:[%s4066 + $0x88] sm:$0xf]
      %v4091 = vld [vmem:[%s4066 + $0x90] sm:$0xf]
      %v4092 = vld [vmem:[%s4066 + $0x94] sm:$0xf]
      %v4093 = vld [vmem:[%s4066 + $0x9c] sm:$0xf]
      %v4094 = vld [vmem:[%s4066 + $0xa0] sm:$0xf]
      %v4095 = vld [vmem:[%s4066 + $0xa8] sm:$0xf]
      %v4096 = vld [vmem:[%s4066 + $0xac] sm:$0xf]
      %v4097 = vld [vmem:[%s4066 + $0xb4] sm:$0xf]
      %v4098 = vld [vmem:[%s4066 + $0xb8] sm:$0xf]
      %s4099 = scalar_lea.vmem %s281, 192
      %v4100 = vld [vmem:[%s4099] sm:$0xf]
      %v4101 = vld [vmem:[%s4099 + $0x4] sm:$0xf]
      %v4102 = vld [vmem:[%s4099 + $0x8] sm:$0xf]
      %v4103 = vld [vmem:[%s4099 + $0xc] sm:$0xf]
      %v4104 = vld [vmem:[%s4099 + $0x10] sm:$0xf]
      %v4105 = vld [vmem:[%s4099 + $0x14] sm:$0xf]
      %v4106 = vld [vmem:[%s4099 + $0x18] sm:$0xf]
      %v4107 = vld [vmem:[%s4099 + $0x1c] sm:$0xf]
      %v4140 = vunpack.c.l.b16 %v4067
      %v4141 = vunpack.c.l.b16 %v4068
      %v4142 = vunpack.c.l.b16 %v4069
      %v4143 = vunpack.c.l.b16 %v4070
      %v4144 = vunpack.c.l.b16 %v4071
      %v4145 = vunpack.c.l.b16 %v4072
      %v4146 = vunpack.c.l.b16 %v4073
      %v4147 = vunpack.c.l.b16 %v4074
      %v4148 = vunpack.c.l.b16 %v4075
      %v4149 = vunpack.c.l.b16 %v4076
      %v4150 = vunpack.c.l.b16 %v4077
      %v4151 = vunpack.c.l.b16 %v4078
      %v4152 = vunpack.c.l.b16 %v4079
      %v4153 = vunpack.c.l.b16 %v4080
      %v4154 = vunpack.c.l.b16 %v4081
      %v4155 = vunpack.c.l.b16 %v4082
      %v4156 = vunpack.c.l.b16 %v4083
      %v4157 = vunpack.c.l.b16 %v4084
      %v4158 = vunpack.c.l.b16 %v4085
      %v4159 = vunpack.c.l.b16 %v4086
      %v4160 = vunpack.c.l.b16 %v4087
      %v4161 = vunpack.c.l.b16 %v4088
      %v4162 = vunpack.c.l.b16 %v4089
      %v4163 = vunpack.c.l.b16 %v4090
      %v4164 = vunpack.c.l.b16 %v4091
      %v4165 = vunpack.c.l.b16 %v4092
      %v4166 = vunpack.c.l.b16 %v4093
      %v4167 = vunpack.c.l.b16 %v4094
      %v4168 = vunpack.c.l.b16 %v4095
      %v4169 = vunpack.c.l.b16 %v4096
      %v4170 = vunpack.c.l.b16 %v4097
      %v4171 = vunpack.c.l.b16 %v4098
      %v4172 = vpack.c.b16 %v4141, %v4140
      %v4173 = vpack.c.b16 %v4143, %v4142
      %v4174 = vpack.c.b16 %v4145, %v4144
      %v4175 = vpack.c.b16 %v4147, %v4146
      %v4176 = vpack.c.b16 %v4149, %v4148
      %v4177 = vpack.c.b16 %v4151, %v4150
      %v4178 = vpack.c.b16 %v4153, %v4152
      %v4179 = vpack.c.b16 %v4155, %v4154
      %v4180 = vpack.c.b16 %v4157, %v4156
      %v4181 = vpack.c.b16 %v4159, %v4158
      %v4182 = vpack.c.b16 %v4161, %v4160
      %v4183 = vpack.c.b16 %v4163, %v4162
      %v4184 = vpack.c.b16 %v4165, %v4164
      %v4185 = vpack.c.b16 %v4167, %v4166
      %v4186 = vpack.c.b16 %v4169, %v4168
      %v4187 = vpack.c.b16 %v4171, %v4170
      %v4196 = vunpack.c.l.b16 %v4100
      %v4197 = vunpack.c.l.b16 %v4101
      %v4198 = vunpack.c.l.b16 %v4102
      %v4199 = vunpack.c.l.b16 %v4103
      %v4200 = vunpack.c.l.b16 %v4104
      %v4201 = vunpack.c.l.b16 %v4105
      %v4202 = vunpack.c.l.b16 %v4106
      %v4203 = vunpack.c.l.b16 %v4107
      %v4204 = vpack.c.b16 %v4197, %v4196
      %v4205 = vpack.c.b16 %v4199, %v4198
      %v4206 = vpack.c.b16 %v4201, %v4200
      %v4207 = vpack.c.b16 %v4203, %v4202
      %v4213 = vsel %vm479, %v4172, 0
      %v4216 = vsel %vm479, %v4173, 0
      %v4219 = vsel %vm479, %v4174, 0
      %v4222 = vsel %vm479, %v4175, 0
      %v4225 = vsel %vm479, %v4176, 0
      %v4228 = vsel %vm479, %v4177, 0
      %v4231 = vsel %vm479, %v4178, 0
      %v4234 = vsel %vm479, %v4179, 0
      %v4237 = vsel %vm479, %v4180, 0
      %v4240 = vsel %vm479, %v4181, 0
      %v4243 = vsel %vm479, %v4182, 0
      %v4246 = vsel %vm479, %v4183, 0
      %v4249 = vsel %vm479, %v4184, 0
      %v4252 = vsel %vm479, %v4185, 0
      %v4255 = vsel %vm479, %v4186, 0
      %v4258 = vsel %vm479, %v4187, 0
      %4260 = vmatprep.subr.bf16.mxu0 0
      %4261 = vmatpush1.bf16.msra.mxu0 0
      %4262 = vmatprep.subr.bf16.mxu0 0
      %4263 = vmatpush1.bf16.msra.mxu0 0
      %4264 = vmatprep.subr.bf16.mxu0 0
      %4265 = vmatpush1.bf16.msra.mxu0 0
      %4266 = vmatprep.subr.bf16.mxu0 0
      %4267 = vmatpush1.bf16.msra.mxu0 0
      %4268 = vmatprep.subr.bf16.mxu0 0
      %4269 = vmatpush1.bf16.msra.mxu0 %v4207
      %4270 = vmatprep.subr.bf16.mxu0 0
      %4271 = vmatpush1.bf16.msra.mxu0 %v4206
      %4272 = vmatprep.subr.bf16.mxu0 0
      %4273 = vmatpush1.bf16.msra.mxu0 %v4205
      %4274 = vmatprep.subr.bf16.mxu0 0
      %4275 = vmatpush1.bf16.msra.mxu0 %v4204
      %4276 = vmatprep.subr.bf16.mxu0 0
      %4277 = vmatpush2.bf16.msra.mxu0 0
      %4278 = vmatprep.subr.bf16.mxu0 0
      %4279 = vmatpush2.bf16.msra.mxu0 0
      %4280 = vmatprep.subr.bf16.mxu0 0
      %4281 = vmatpush2.bf16.msra.mxu0 0
      %4282 = vmatprep.subr.bf16.mxu0 0
      %4283 = vmatpush2.bf16.msra.mxu0 0
      %4284 = vmatprep.subr.bf16.mxu0 0
      %4285 = vmatpush2.bf16.msra.mxu0 0
      %4286 = vmatprep.subr.bf16.mxu0 0
      %4287 = vmatpush2.bf16.msra.mxu0 0
      %4288 = vmatprep.subr.bf16.mxu0 0
      %4289 = vmatpush2.bf16.msra.mxu0 0
      %4290 = vmatprep.subr.bf16.mxu0 0
      %4291 = vmatpush2.bf16.msra.mxu0 0
      %4292 = vmatprep.mubr.bf16.mxu0 0
      %4293 = vmatmul.mubr.bf16.gmra.mxu0 %v4213
      %v4294 = vpop.f32.mrf.mxu0
      %v4295 = vadd.f32 0.0, %v4294
      %v4296 = vpop.f32.mrf.mxu0
      %v4297 = vpop.f32.mrf.mxu0
      %v4298 = vadd.f32 0.0, %v4297
      %v4299 = vpop.f32.mrf.mxu0
      %4300 = vmatprep.mubr.bf16.mxu0 0
      %4301 = vmatmul.mubr.bf16.gmra.mxu0 %v4216
      %v4302 = vpop.f32.mrf.mxu0
      %v4303 = vadd.f32 0.0, %v4302
      %v4304 = vpop.f32.mrf.mxu0
      %v4305 = vpop.f32.mrf.mxu0
      %v4306 = vadd.f32 0.0, %v4305
      %v4307 = vpop.f32.mrf.mxu0
      %4308 = vmatprep.mubr.bf16.mxu0 0
      %4309 = vmatmul.mubr.bf16.gmra.mxu0 %v4219
      %v4310 = vpop.f32.mrf.mxu0
      %v4311 = vadd.f32 0.0, %v4310
      %v4312 = vpop.f32.mrf.mxu0
      %v4313 = vpop.f32.mrf.mxu0
      %v4314 = vadd.f32 0.0, %v4313
      %v4315 = vpop.f32.mrf.mxu0
      %4316 = vmatprep.mubr.bf16.mxu0 0
      %4317 = vmatmul.mubr.bf16.gmra.mxu0 %v4222
      %v4318 = vpop.f32.mrf.mxu0
      %v4319 = vadd.f32 0.0, %v4318
      %v4320 = vpop.f32.mrf.mxu0
      %v4321 = vpop.f32.mrf.mxu0
      %v4322 = vadd.f32 0.0, %v4321
      %v4323 = vpop.f32.mrf.mxu0
      %4324 = vmatprep.mubr.bf16.mxu0 0
      %4325 = vmatmul.mubr.bf16.gmra.mxu0 %v4225
      %v4326 = vpop.f32.mrf.mxu0
      %v4327 = vadd.f32 0.0, %v4326
      %v4328 = vpop.f32.mrf.mxu0
      %v4329 = vpop.f32.mrf.mxu0
      %v4330 = vadd.f32 0.0, %v4329
      %v4331 = vpop.f32.mrf.mxu0
      %4332 = vmatprep.mubr.bf16.mxu0 0
      %4333 = vmatmul.mubr.bf16.gmra.mxu0 %v4228
      %v4334 = vpop.f32.mrf.mxu0
      %v4335 = vadd.f32 0.0, %v4334
      %v4336 = vpop.f32.mrf.mxu0
      %v4337 = vpop.f32.mrf.mxu0
      %v4338 = vadd.f32 0.0, %v4337
      %v4339 = vpop.f32.mrf.mxu0
      %4340 = vmatprep.mubr.bf16.mxu0 0
      %4341 = vmatmul.mubr.bf16.gmra.mxu0 %v4231
      %v4342 = vpop.f32.mrf.mxu0
      %v4343 = vadd.f32 0.0, %v4342
      %v4344 = vpop.f32.mrf.mxu0
      %v4345 = vpop.f32.mrf.mxu0
      %v4346 = vadd.f32 0.0, %v4345
      %v4347 = vpop.f32.mrf.mxu0
      %4348 = vmatprep.mubr.bf16.mxu0 0
      %4349 = vmatmul.mubr.bf16.gmra.mxu0 %v4234
      %v4350 = vpop.f32.mrf.mxu0
      %v4351 = vadd.f32 0.0, %v4350
      %v4352 = vpop.f32.mrf.mxu0
      %v4353 = vpop.f32.mrf.mxu0
      %v4354 = vadd.f32 0.0, %v4353
      %v4355 = vpop.f32.mrf.mxu0
      %4356 = vmatprep.mubr.bf16.mxu0 0
      %4357 = vmatmul.mubr.bf16.gmra.mxu0 %v4237
      %v4358 = vpop.f32.mrf.mxu0
      %v4359 = vadd.f32 0.0, %v4358
      %v4360 = vpop.f32.mrf.mxu0
      %v4361 = vpop.f32.mrf.mxu0
      %v4362 = vadd.f32 0.0, %v4361
      %v4363 = vpop.f32.mrf.mxu0
      %4364 = vmatprep.mubr.bf16.mxu0 0
      %4365 = vmatmul.mubr.bf16.gmra.mxu0 %v4240
      %v4366 = vpop.f32.mrf.mxu0
      %v4367 = vadd.f32 0.0, %v4366
      %v4368 = vpop.f32.mrf.mxu0
      %v4369 = vpop.f32.mrf.mxu0
      %v4370 = vadd.f32 0.0, %v4369
      %v4371 = vpop.f32.mrf.mxu0
      %4372 = vmatprep.mubr.bf16.mxu0 0
      %4373 = vmatmul.mubr.bf16.gmra.mxu0 %v4243
      %v4374 = vpop.f32.mrf.mxu0
      %v4375 = vadd.f32 0.0, %v4374
      %v4376 = vpop.f32.mrf.mxu0
      %v4377 = vpop.f32.mrf.mxu0
      %v4378 = vadd.f32 0.0, %v4377
      %v4379 = vpop.f32.mrf.mxu0
      %4380 = vmatprep.mubr.bf16.mxu0 0
      %4381 = vmatmul.mubr.bf16.gmra.mxu0 %v4246
      %v4382 = vpop.f32.mrf.mxu0
      %v4383 = vadd.f32 0.0, %v4382
      %v4384 = vpop.f32.mrf.mxu0
      %v4385 = vpop.f32.mrf.mxu0
      %v4386 = vadd.f32 0.0, %v4385
      %v4387 = vpop.f32.mrf.mxu0
      %4388 = vmatprep.mubr.bf16.mxu0 0
      %4389 = vmatmul.mubr.bf16.gmra.mxu0 %v4249
      %v4390 = vpop.f32.mrf.mxu0
      %v4391 = vadd.f32 0.0, %v4390
      %v4392 = vpop.f32.mrf.mxu0
      %v4393 = vpop.f32.mrf.mxu0
      %v4394 = vadd.f32 0.0, %v4393
      %v4395 = vpop.f32.mrf.mxu0
      %4396 = vmatprep.mubr.bf16.mxu0 0
      %4397 = vmatmul.mubr.bf16.gmra.mxu0 %v4252
      %v4398 = vpop.f32.mrf.mxu0
      %v4399 = vadd.f32 0.0, %v4398
      %v4400 = vpop.f32.mrf.mxu0
      %v4401 = vpop.f32.mrf.mxu0
      %v4402 = vadd.f32 0.0, %v4401
      %v4403 = vpop.f32.mrf.mxu0
      %4404 = vmatprep.mubr.bf16.mxu0 0
      %4405 = vmatmul.mubr.bf16.gmra.mxu0 %v4255
      %v4406 = vpop.f32.mrf.mxu0
      %v4407 = vadd.f32 0.0, %v4406
      %v4408 = vpop.f32.mrf.mxu0
      %v4409 = vpop.f32.mrf.mxu0
      %v4410 = vadd.f32 0.0, %v4409
      %v4411 = vpop.f32.mrf.mxu0
      %4412 = vmatprep.mubr.bf16.mxu0 0
      %4413 = vmatmul.mubr.bf16.gmra.mxu0 %v4258
      %v4414 = vpop.f32.mrf.mxu0
      %v4415 = vadd.f32 0.0, %v4414
      %v4416 = vpop.f32.mrf.mxu0
      %v4417 = vpop.f32.mrf.mxu0
      %v4418 = vadd.f32 0.0, %v4417
      %v4419 = vpop.f32.mrf.mxu0
      %4420 = vdwg.mxu0
      %v4421 = vld [vmem:[#allocation2] sm:$0xff]
      %v4422 = vld [vmem:[#allocation2 + $0x8] sm:$0xff]
      %v4423 = vld [vmem:[#allocation2 + $0x10] sm:$0xff]
      %v4424 = vld [vmem:[#allocation2 + $0x18] sm:$0xff]
      %v4425 = vld [vmem:[#allocation2 + $0x20] sm:$0xff]
      %v4426 = vld [vmem:[#allocation2 + $0x28] sm:$0xff]
      %v4427 = vld [vmem:[#allocation2 + $0x30] sm:$0xff]
      %v4428 = vld [vmem:[#allocation2 + $0x38] sm:$0xff]
      %v4429 = vld [vmem:[#allocation2 + $0x40] sm:$0xff]
      %v4430 = vld [vmem:[#allocation2 + $0x48] sm:$0xff]
      %v4431 = vld [vmem:[#allocation2 + $0x50] sm:$0xff]
      %v4432 = vld [vmem:[#allocation2 + $0x58] sm:$0xff]
      %v4433 = vld [vmem:[#allocation2 + $0x60] sm:$0xff]
      %v4434 = vld [vmem:[#allocation2 + $0x68] sm:$0xff]
      %v4435 = vld [vmem:[#allocation2 + $0x70] sm:$0xff]
      %v4436 = vld [vmem:[#allocation2 + $0x78] sm:$0xff]
      %v4437 = vld [vmem:[#allocation2 + $0x80] sm:$0xff]
      %v4438 = vld [vmem:[#allocation2 + $0x88] sm:$0xff]
      %v4439 = vld [vmem:[#allocation2 + $0x90] sm:$0xff]
      %v4440 = vld [vmem:[#allocation2 + $0x98] sm:$0xff]
      %v4441 = vld [vmem:[#allocation2 + $0xa0] sm:$0xff]
      %v4442 = vld [vmem:[#allocation2 + $0xa8] sm:$0xff]
      %v4443 = vld [vmem:[#allocation2 + $0xb0] sm:$0xff]
      %v4444 = vld [vmem:[#allocation2 + $0xb8] sm:$0xff]
      %v4445 = vld [vmem:[#allocation2 + $0xc0] sm:$0xff]
      %v4446 = vld [vmem:[#allocation2 + $0xc8] sm:$0xff]
      %v4447 = vld [vmem:[#allocation2 + $0xd0] sm:$0xff]
      %v4448 = vld [vmem:[#allocation2 + $0xd8] sm:$0xff]
      %v4449 = vld [vmem:[#allocation2 + $0xe0] sm:$0xff]
      %v4450 = vld [vmem:[#allocation2 + $0xe8] sm:$0xff]
      %v4451 = vld [vmem:[#allocation2 + $0xf0] sm:$0xff]
      %v4452 = vld [vmem:[#allocation2 + $0xf8] sm:$0xff]
      %v4453 = vadd.f32 %v4421, %v4295
      %v4454 = vadd.f32 %v4422, %v4298
      %v4455 = vadd.f32 %v4423, %v4303
      %v4456 = vadd.f32 %v4424, %v4306
      %v4457 = vadd.f32 %v4425, %v4311
      %v4458 = vadd.f32 %v4426, %v4314
      %v4459 = vadd.f32 %v4427, %v4319
      %v4460 = vadd.f32 %v4428, %v4322
      %v4461 = vadd.f32 %v4429, %v4327
      %v4462 = vadd.f32 %v4430, %v4330
      %v4463 = vadd.f32 %v4431, %v4335
      %v4464 = vadd.f32 %v4432, %v4338
      %v4465 = vadd.f32 %v4433, %v4343
      %v4466 = vadd.f32 %v4434, %v4346
      %v4467 = vadd.f32 %v4435, %v4351
      %v4468 = vadd.f32 %v4436, %v4354
      %v4469 = vadd.f32 %v4437, %v4359
      %v4470 = vadd.f32 %v4438, %v4362
      %v4471 = vadd.f32 %v4439, %v4367
      %v4472 = vadd.f32 %v4440, %v4370
      %v4473 = vadd.f32 %v4441, %v4375
      %v4474 = vadd.f32 %v4442, %v4378
      %v4475 = vadd.f32 %v4443, %v4383
      %v4476 = vadd.f32 %v4444, %v4386
      %v4477 = vadd.f32 %v4445, %v4391
      %v4478 = vadd.f32 %v4446, %v4394
      %v4479 = vadd.f32 %v4447, %v4399
      %v4480 = vadd.f32 %v4448, %v4402
      %v4481 = vadd.f32 %v4449, %v4407
      %v4482 = vadd.f32 %v4450, %v4410
      %v4483 = vadd.f32 %v4451, %v4415
      %v4484 = vadd.f32 %v4452, %v4418
      %4485 = vst.msk [vmem:[#allocation2] sm:$0xff] %vm479, %v4453
      %4486 = vst.msk [vmem:[#allocation2 + $0x8] sm:$0xff] %vm479, %v4454
      %4487 = vst.msk [vmem:[#allocation2 + $0x10] sm:$0xff] %vm479, %v4455
      %4488 = vst.msk [vmem:[#allocation2 + $0x18] sm:$0xff] %vm479, %v4456
      %4489 = vst.msk [vmem:[#allocation2 + $0x20] sm:$0xff] %vm479, %v4457
      %4490 = vst.msk [vmem:[#allocation2 + $0x28] sm:$0xff] %vm479, %v4458
      %4491 = vst.msk [vmem:[#allocation2 + $0x30] sm:$0xff] %vm479, %v4459
      %4492 = vst.msk [vmem:[#allocation2 + $0x38] sm:$0xff] %vm479, %v4460
      %4493 = vst.msk [vmem:[#allocation2 + $0x40] sm:$0xff] %vm479, %v4461
      %4494 = vst.msk [vmem:[#allocation2 + $0x48] sm:$0xff] %vm479, %v4462
      %4495 = vst.msk [vmem:[#allocation2 + $0x50] sm:$0xff] %vm479, %v4463
      %4496 = vst.msk [vmem:[#allocation2 + $0x58] sm:$0xff] %vm479, %v4464
      %4497 = vst.msk [vmem:[#allocation2 + $0x60] sm:$0xff] %vm479, %v4465
      %4498 = vst.msk [vmem:[#allocation2 + $0x68] sm:$0xff] %vm479, %v4466
      %4499 = vst.msk [vmem:[#allocation2 + $0x70] sm:$0xff] %vm479, %v4467
      %4500 = vst.msk [vmem:[#allocation2 + $0x78] sm:$0xff] %vm479, %v4468
      %4501 = vst.msk [vmem:[#allocation2 + $0x80] sm:$0xff] %vm479, %v4469
      %4502 = vst.msk [vmem:[#allocation2 + $0x88] sm:$0xff] %vm479, %v4470
      %4503 = vst.msk [vmem:[#allocation2 + $0x90] sm:$0xff] %vm479, %v4471
      %4504 = vst.msk [vmem:[#allocation2 + $0x98] sm:$0xff] %vm479, %v4472
      %4505 = vst.msk [vmem:[#allocation2 + $0xa0] sm:$0xff] %vm479, %v4473
      %4506 = vst.msk [vmem:[#allocation2 + $0xa8] sm:$0xff] %vm479, %v4474
      %4507 = vst.msk [vmem:[#allocation2 + $0xb0] sm:$0xff] %vm479, %v4475
      %4508 = vst.msk [vmem:[#allocation2 + $0xb8] sm:$0xff] %vm479, %v4476
      %4509 = vst.msk [vmem:[#allocation2 + $0xc0] sm:$0xff] %vm479, %v4477
      %4510 = vst.msk [vmem:[#allocation2 + $0xc8] sm:$0xff] %vm479, %v4478
      %4511 = vst.msk [vmem:[#allocation2 + $0xd0] sm:$0xff] %vm479, %v4479
      %4512 = vst.msk [vmem:[#allocation2 + $0xd8] sm:$0xff] %vm479, %v4480
      %4513 = vst.msk [vmem:[#allocation2 + $0xe0] sm:$0xff] %vm479, %v4481
      %4514 = vst.msk [vmem:[#allocation2 + $0xe8] sm:$0xff] %vm479, %v4482
      %4515 = vst.msk [vmem:[#allocation2 + $0xf0] sm:$0xff] %vm479, %v4483
      %4516 = vst.msk [vmem:[#allocation2 + $0xf8] sm:$0xff] %vm479, %v4484
      %v4517 = vld [vmem:[%s4066] sm:$0xf]
      %v4518 = vld [vmem:[%s4066 + $0x4] sm:$0xf]
      %v4519 = vld [vmem:[%s4066 + $0x8] sm:$0x1]
      %v4520 = vld [vmem:[%s4066 + $0xc] sm:$0xf]
      %v4521 = vld [vmem:[%s4066 + $0x10] sm:$0xf]
      %v4522 = vld [vmem:[%s4066 + $0x14] sm:$0x1]
      %v4523 = vld [vmem:[%s4066 + $0x18] sm:$0xf]
      %v4524 = vld [vmem:[%s4066 + $0x1c] sm:$0xf]
      %v4525 = vld [vmem:[%s4066 + $0x20] sm:$0x1]
      %v4526 = vld [vmem:[%s4066 + $0x24] sm:$0xf]
      %v4527 = vld [vmem:[%s4066 + $0x28] sm:$0xf]
      %v4528 = vld [vmem:[%s4066 + $0x2c] sm:$0x1]
      %v4529 = vld [vmem:[%s4066 + $0x30] sm:$0xf]
      %v4530 = vld [vmem:[%s4066 + $0x34] sm:$0xf]
      %v4531 = vld [vmem:[%s4066 + $0x38] sm:$0x1]
      %v4532 = vld [vmem:[%s4066 + $0x3c] sm:$0xf]
      %v4533 = vld [vmem:[%s4066 + $0x40] sm:$0xf]
      %v4534 = vld [vmem:[%s4066 + $0x44] sm:$0x1]
      %v4535 = vld [vmem:[%s4066 + $0x48] sm:$0xf]
      %v4536 = vld [vmem:[%s4066 + $0x4c] sm:$0xf]
      %v4537 = vld [vmem:[%s4066 + $0x50] sm:$0x1]
      %v4538 = vld [vmem:[%s4066 + $0x54] sm:$0xf]
      %v4539 = vld [vmem:[%s4066 + $0x58] sm:$0xf]
      %v4540 = vld [vmem:[%s4066 + $0x5c] sm:$0x1]
      %v4541 = vld [vmem:[%s4066 + $0x60] sm:$0xf]
      %v4542 = vld [vmem:[%s4066 + $0x64] sm:$0xf]
      %v4543 = vld [vmem:[%s4066 + $0x68] sm:$0x1]
      %v4544 = vld [vmem:[%s4066 + $0x6c] sm:$0xf]
      %v4545 = vld [vmem:[%s4066 + $0x70] sm:$0xf]
      %v4546 = vld [vmem:[%s4066 + $0x74] sm:$0x1]
      %v4547 = vld [vmem:[%s4066 + $0x78] sm:$0xf]
      %v4548 = vld [vmem:[%s4066 + $0x7c] sm:$0xf]
      %v4549 = vld [vmem:[%s4066 + $0x80] sm:$0x1]
      %v4550 = vld [vmem:[%s4066 + $0x84] sm:$0xf]
      %v4551 = vld [vmem:[%s4066 + $0x88] sm:$0xf]
      %v4552 = vld [vmem:[%s4066 + $0x8c] sm:$0x1]
      %v4553 = vld [vmem:[%s4066 + $0x90] sm:$0xf]
      %v4554 = vld [vmem:[%s4066 + $0x94] sm:$0xf]
      %v4555 = vld [vmem:[%s4066 + $0x98] sm:$0x1]
      %v4556 = vld [vmem:[%s4066 + $0x9c] sm:$0xf]
      %v4557 = vld [vmem:[%s4066 + $0xa0] sm:$0xf]
      %v4558 = vld [vmem:[%s4066 + $0xa4] sm:$0x1]
      %v4559 = vld [vmem:[%s4066 + $0xa8] sm:$0xf]
      %v4560 = vld [vmem:[%s4066 + $0xac] sm:$0xf]
      %v4561 = vld [vmem:[%s4066 + $0xb0] sm:$0x1]
      %v4562 = vld [vmem:[%s4066 + $0xb4] sm:$0xf]
      %v4563 = vld [vmem:[%s4066 + $0xb8] sm:$0xf]
      %v4564 = vld [vmem:[%s4066 + $0xbc] sm:$0x1]
      %v4566 = vshrl.u32 %v4517, 16
      %v4568 = vrot.slane %v4566, 4
      %v4569 = vshll.u32 %v4517, 16
      %v4571 = vrot.slane %v4569, 5
      %v4572 = vor.u32 %v4568, %v4571
      %v4573 = vrot.slane %v4572, 4
      %v4575 = vshll.u32 %v4518, 16
      %v4577 = vrot.slane %v4575, 5
      %v4578 = vsel %vm835, %v4573, %v4577
      %v4579 = vshrl.u32 %v4518, 16
      %v4581 = vrot.slane %v4579, 4
      %v4582 = vor.u32 %v4581, %v4577
      %v4583 = vrot.slane %v4582, 4
      %v4585 = vshll.u32 %v4519, 16
      %v4587 = vrot.slane %v4585, 5
      %v4588 = vsel %vm835, %v4583, %v4587
      %v4590 = vshrl.u32 %v4520, 16
      %v4592 = vrot.slane %v4590, 4
      %v4593 = vshll.u32 %v4520, 16
      %v4595 = vrot.slane %v4593, 5
      %v4596 = vor.u32 %v4592, %v4595
      %v4597 = vrot.slane %v4596, 4
      %v4599 = vshll.u32 %v4521, 16
      %v4601 = vrot.slane %v4599, 5
      %v4602 = vsel %vm835, %v4597, %v4601
      %v4603 = vshrl.u32 %v4521, 16
      %v4605 = vrot.slane %v4603, 4
      %v4606 = vor.u32 %v4605, %v4601
      %v4607 = vrot.slane %v4606, 4
      %v4609 = vshll.u32 %v4522, 16
      %v4611 = vrot.slane %v4609, 5
      %v4612 = vsel %vm835, %v4607, %v4611
      %v4614 = vshrl.u32 %v4523, 16
      %v4616 = vrot.slane %v4614, 4
      %v4617 = vshll.u32 %v4523, 16
      %v4619 = vrot.slane %v4617, 5
      %v4620 = vor.u32 %v4616, %v4619
      %v4621 = vrot.slane %v4620, 4
      %v4623 = vshll.u32 %v4524, 16
      %v4625 = vrot.slane %v4623, 5
      %v4626 = vsel %vm835, %v4621, %v4625
      %v4627 = vshrl.u32 %v4524, 16
      %v4629 = vrot.slane %v4627, 4
      %v4630 = vor.u32 %v4629, %v4625
      %v4631 = vrot.slane %v4630, 4
      %v4633 = vshll.u32 %v4525, 16
      %v4635 = vrot.slane %v4633, 5
      %v4636 = vsel %vm835, %v4631, %v4635
      %v4638 = vshrl.u32 %v4526, 16
      %v4640 = vrot.slane %v4638, 4
      %v4641 = vshll.u32 %v4526, 16
      %v4643 = vrot.slane %v4641, 5
      %v4644 = vor.u32 %v4640, %v4643
      %v4645 = vrot.slane %v4644, 4
      %v4647 = vshll.u32 %v4527, 16
      %v4649 = vrot.slane %v4647, 5
      %v4650 = vsel %vm835, %v4645, %v4649
      %v4651 = vshrl.u32 %v4527, 16
      %v4653 = vrot.slane %v4651, 4
      %v4654 = vor.u32 %v4653, %v4649
      %v4655 = vrot.slane %v4654, 4
      %v4657 = vshll.u32 %v4528, 16
      %v4659 = vrot.slane %v4657, 5
      %v4660 = vsel %vm835, %v4655, %v4659
      %v4662 = vshrl.u32 %v4529, 16
      %v4664 = vrot.slane %v4662, 4
      %v4665 = vshll.u32 %v4529, 16
      %v4667 = vrot.slane %v4665, 5
      %v4668 = vor.u32 %v4664, %v4667
      %v4669 = vrot.slane %v4668, 4
      %v4671 = vshll.u32 %v4530, 16
      %v4673 = vrot.slane %v4671, 5
      %v4674 = vsel %vm835, %v4669, %v4673
      %v4675 = vshrl.u32 %v4530, 16
      %v4677 = vrot.slane %v4675, 4
      %v4678 = vor.u32 %v4677, %v4673
      %v4679 = vrot.slane %v4678, 4
      %v4681 = vshll.u32 %v4531, 16
      %v4683 = vrot.slane %v4681, 5
      %v4684 = vsel %vm835, %v4679, %v4683
      %v4686 = vshrl.u32 %v4532, 16
      %v4688 = vrot.slane %v4686, 4
      %v4689 = vshll.u32 %v4532, 16
      %v4691 = vrot.slane %v4689, 5
      %v4692 = vor.u32 %v4688, %v4691
      %v4693 = vrot.slane %v4692, 4
      %v4695 = vshll.u32 %v4533, 16
      %v4697 = vrot.slane %v4695, 5
      %v4698 = vsel %vm835, %v4693, %v4697
      %v4699 = vshrl.u32 %v4533, 16
      %v4701 = vrot.slane %v4699, 4
      %v4702 = vor.u32 %v4701, %v4697
      %v4703 = vrot.slane %v4702, 4
      %v4705 = vshll.u32 %v4534, 16
      %v4707 = vrot.slane %v4705, 5
      %v4708 = vsel %vm835, %v4703, %v4707
      %v4710 = vshrl.u32 %v4535, 16
      %v4712 = vrot.slane %v4710, 4
      %v4713 = vshll.u32 %v4535, 16
      %v4715 = vrot.slane %v4713, 5
      %v4716 = vor.u32 %v4712, %v4715
      %v4717 = vrot.slane %v4716, 4
      %v4719 = vshll.u32 %v4536, 16
      %v4721 = vrot.slane %v4719, 5
      %v4722 = vsel %vm835, %v4717, %v4721
      %v4723 = vshrl.u32 %v4536, 16
      %v4725 = vrot.slane %v4723, 4
      %v4726 = vor.u32 %v4725, %v4721
      %v4727 = vrot.slane %v4726, 4
      %v4729 = vshll.u32 %v4537, 16
      %v4731 = vrot.slane %v4729, 5
      %v4732 = vsel %vm835, %v4727, %v4731
      %v4734 = vshrl.u32 %v4538, 16
      %v4736 = vrot.slane %v4734, 4
      %v4737 = vshll.u32 %v4538, 16
      %v4739 = vrot.slane %v4737, 5
      %v4740 = vor.u32 %v4736, %v4739
      %v4741 = vrot.slane %v4740, 4
      %v4743 = vshll.u32 %v4539, 16
      %v4745 = vrot.slane %v4743, 5
      %v4746 = vsel %vm835, %v4741, %v4745
      %v4747 = vshrl.u32 %v4539, 16
      %v4749 = vrot.slane %v4747, 4
      %v4750 = vor.u32 %v4749, %v4745
      %v4751 = vrot.slane %v4750, 4
      %v4753 = vshll.u32 %v4540, 16
      %v4755 = vrot.slane %v4753, 5
      %v4756 = vsel %vm835, %v4751, %v4755
      %v4758 = vshrl.u32 %v4541, 16
      %v4760 = vrot.slane %v4758, 4
      %v4761 = vshll.u32 %v4541, 16
      %v4763 = vrot.slane %v4761, 5
      %v4764 = vor.u32 %v4760, %v4763
      %v4765 = vrot.slane %v4764, 4
      %v4767 = vshll.u32 %v4542, 16
      %v4769 = vrot.slane %v4767, 5
      %v4770 = vsel %vm835, %v4765, %v4769
      %v4771 = vshrl.u32 %v4542, 16
      %v4773 = vrot.slane %v4771, 4
      %v4774 = vor.u32 %v4773, %v4769
      %v4775 = vrot.slane %v4774, 4
      %v4777 = vshll.u32 %v4543, 16
      %v4779 = vrot.slane %v4777, 5
      %v4780 = vsel %vm835, %v4775, %v4779
      %v4782 = vshrl.u32 %v4544, 16
      %v4784 = vrot.slane %v4782, 4
      %v4785 = vshll.u32 %v4544, 16
      %v4787 = vrot.slane %v4785, 5
      %v4788 = vor.u32 %v4784, %v4787
      %v4789 = vrot.slane %v4788, 4
      %v4791 = vshll.u32 %v4545, 16
      %v4793 = vrot.slane %v4791, 5
      %v4794 = vsel %vm835, %v4789, %v4793
      %v4795 = vshrl.u32 %v4545, 16
      %v4797 = vrot.slane %v4795, 4
      %v4798 = vor.u32 %v4797, %v4793
      %v4799 = vrot.slane %v4798, 4
      %v4801 = vshll.u32 %v4546, 16
      %v4803 = vrot.slane %v4801, 5
      %v4804 = vsel %vm835, %v4799, %v4803
      %v4806 = vshrl.u32 %v4547, 16
      %v4808 = vrot.slane %v4806, 4
      %v4809 = vshll.u32 %v4547, 16
      %v4811 = vrot.slane %v4809, 5
      %v4812 = vor.u32 %v4808, %v4811
      %v4813 = vrot.slane %v4812, 4
      %v4815 = vshll.u32 %v4548, 16
      %v4817 = vrot.slane %v4815, 5
      %v4818 = vsel %vm835, %v4813, %v4817
      %v4819 = vshrl.u32 %v4548, 16
      %v4821 = vrot.slane %v4819, 4
      %v4822 = vor.u32 %v4821, %v4817
      %v4823 = vrot.slane %v4822, 4
      %v4825 = vshll.u32 %v4549, 16
      %v4827 = vrot.slane %v4825, 5
      %v4828 = vsel %vm835, %v4823, %v4827
      %v4830 = vshrl.u32 %v4550, 16
      %v4832 = vrot.slane %v4830, 4
      %v4833 = vshll.u32 %v4550, 16
      %v4835 = vrot.slane %v4833, 5
      %v4836 = vor.u32 %v4832, %v4835
      %v4837 = vrot.slane %v4836, 4
      %v4839 = vshll.u32 %v4551, 16
      %v4841 = vrot.slane %v4839, 5
      %v4842 = vsel %vm835, %v4837, %v4841
      %v4843 = vshrl.u32 %v4551, 16
      %v4845 = vrot.slane %v4843, 4
      %v4846 = vor.u32 %v4845, %v4841
      %v4847 = vrot.slane %v4846, 4
      %v4849 = vshll.u32 %v4552, 16
      %v4851 = vrot.slane %v4849, 5
      %v4852 = vsel %vm835, %v4847, %v4851
      %v4854 = vshrl.u32 %v4553, 16
      %v4856 = vrot.slane %v4854, 4
      %v4857 = vshll.u32 %v4553, 16
      %v4859 = vrot.slane %v4857, 5
      %v4860 = vor.u32 %v4856, %v4859
      %v4861 = vrot.slane %v4860, 4
      %v4863 = vshll.u32 %v4554, 16
      %v4865 = vrot.slane %v4863, 5
      %v4866 = vsel %vm835, %v4861, %v4865
      %v4867 = vshrl.u32 %v4554, 16
      %v4869 = vrot.slane %v4867, 4
      %v4870 = vor.u32 %v4869, %v4865
      %v4871 = vrot.slane %v4870, 4
      %v4873 = vshll.u32 %v4555, 16
      %v4875 = vrot.slane %v4873, 5
      %v4876 = vsel %vm835, %v4871, %v4875
      %v4878 = vshrl.u32 %v4556, 16
      %v4880 = vrot.slane %v4878, 4
      %v4881 = vshll.u32 %v4556, 16
      %v4883 = vrot.slane %v4881, 5
      %v4884 = vor.u32 %v4880, %v4883
      %v4885 = vrot.slane %v4884, 4
      %v4887 = vshll.u32 %v4557, 16
      %v4889 = vrot.slane %v4887, 5
      %v4890 = vsel %vm835, %v4885, %v4889
      %v4891 = vshrl.u32 %v4557, 16
      %v4893 = vrot.slane %v4891, 4
      %v4894 = vor.u32 %v4893, %v4889
      %v4895 = vrot.slane %v4894, 4
      %v4897 = vshll.u32 %v4558, 16
      %v4899 = vrot.slane %v4897, 5
      %v4900 = vsel %vm835, %v4895, %v4899
      %v4902 = vshrl.u32 %v4559, 16
      %v4904 = vrot.slane %v4902, 4
      %v4905 = vshll.u32 %v4559, 16
      %v4907 = vrot.slane %v4905, 5
      %v4908 = vor.u32 %v4904, %v4907
      %v4909 = vrot.slane %v4908, 4
      %v4911 = vshll.u32 %v4560, 16
      %v4913 = vrot.slane %v4911, 5
      %v4914 = vsel %vm835, %v4909, %v4913
      %v4915 = vshrl.u32 %v4560, 16
      %v4917 = vrot.slane %v4915, 4
      %v4918 = vor.u32 %v4917, %v4913
      %v4919 = vrot.slane %v4918, 4
      %v4921 = vshll.u32 %v4561, 16
      %v4923 = vrot.slane %v4921, 5
      %v4924 = vsel %vm835, %v4919, %v4923
      %v4926 = vshrl.u32 %v4562, 16
      %v4928 = vrot.slane %v4926, 4
      %v4929 = vshll.u32 %v4562, 16
      %v4931 = vrot.slane %v4929, 5
      %v4932 = vor.u32 %v4928, %v4931
      %v4933 = vrot.slane %v4932, 4
      %v4935 = vshll.u32 %v4563, 16
      %v4937 = vrot.slane %v4935, 5
      %v4938 = vsel %vm835, %v4933, %v4937
      %v4939 = vshrl.u32 %v4563, 16
      %v4941 = vrot.slane %v4939, 4
      %v4942 = vor.u32 %v4941, %v4937
      %v4943 = vrot.slane %v4942, 4
      %v4945 = vshll.u32 %v4564, 16
      %v4947 = vrot.slane %v4945, 5
      %v4948 = vsel %vm835, %v4943, %v4947
      %s4949 = scalar_lea.vmem %s281, 224
      %v4950 = vld [vmem:[%s4949] sm:$0xf]
      %v4951 = vld [vmem:[%s4949 + $0x4] sm:$0xf]
      %v4952 = vld [vmem:[%s4949 + $0x8] sm:$0xf]
      %v4953 = vld [vmem:[%s4949 + $0xc] sm:$0xf]
      %v4954 = vld [vmem:[%s4949 + $0x10] sm:$0xf]
      %v4955 = vld [vmem:[%s4949 + $0x14] sm:$0xf]
      %v4956 = vld [vmem:[%s4949 + $0x18] sm:$0xf]
      %v4957 = vld [vmem:[%s4949 + $0x1c] sm:$0xf]
      %v4958 = vunpack.c.l.b16 %v4578
      %v4959 = vunpack.c.l.b16 %v4588
      %v4960 = vunpack.c.l.b16 %v4602
      %v4961 = vunpack.c.l.b16 %v4612
      %v4962 = vunpack.c.l.b16 %v4626
      %v4963 = vunpack.c.l.b16 %v4636
      %v4964 = vunpack.c.l.b16 %v4650
      %v4965 = vunpack.c.l.b16 %v4660
      %v4966 = vunpack.c.l.b16 %v4674
      %v4967 = vunpack.c.l.b16 %v4684
      %v4968 = vunpack.c.l.b16 %v4698
      %v4969 = vunpack.c.l.b16 %v4708
      %v4970 = vunpack.c.l.b16 %v4722
      %v4971 = vunpack.c.l.b16 %v4732
      %v4972 = vunpack.c.l.b16 %v4746
      %v4973 = vunpack.c.l.b16 %v4756
      %v4974 = vunpack.c.l.b16 %v4770
      %v4975 = vunpack.c.l.b16 %v4780
      %v4976 = vunpack.c.l.b16 %v4794
      %v4977 = vunpack.c.l.b16 %v4804
      %v4978 = vunpack.c.l.b16 %v4818
      %v4979 = vunpack.c.l.b16 %v4828
      %v4980 = vunpack.c.l.b16 %v4842
      %v4981 = vunpack.c.l.b16 %v4852
      %v4982 = vunpack.c.l.b16 %v4866
      %v4983 = vunpack.c.l.b16 %v4876
      %v4984 = vunpack.c.l.b16 %v4890
      %v4985 = vunpack.c.l.b16 %v4900
      %v4986 = vunpack.c.l.b16 %v4914
      %v4987 = vunpack.c.l.b16 %v4924
      %v4988 = vunpack.c.l.b16 %v4938
      %v4989 = vunpack.c.l.b16 %v4948
      %v4990 = vpack.c.b16 %v4959, %v4958
      %v4991 = vpack.c.b16 %v4961, %v4960
      %v4992 = vpack.c.b16 %v4963, %v4962
      %v4993 = vpack.c.b16 %v4965, %v4964
      %v4994 = vpack.c.b16 %v4967, %v4966
      %v4995 = vpack.c.b16 %v4969, %v4968
      %v4996 = vpack.c.b16 %v4971, %v4970
      %v4997 = vpack.c.b16 %v4973, %v4972
      %v4998 = vpack.c.b16 %v4975, %v4974
      %v4999 = vpack.c.b16 %v4977, %v4976
      %v5000 = vpack.c.b16 %v4979, %v4978
      %v5001 = vpack.c.b16 %v4981, %v4980
      %v5002 = vpack.c.b16 %v4983, %v4982
      %v5003 = vpack.c.b16 %v4985, %v4984
      %v5004 = vpack.c.b16 %v4987, %v4986
      %v5005 = vpack.c.b16 %v4989, %v4988
      %v5014 = vunpack.c.l.b16 %v4950
      %v5015 = vunpack.c.l.b16 %v4951
      %v5016 = vunpack.c.l.b16 %v4952
      %v5017 = vunpack.c.l.b16 %v4953
      %v5018 = vunpack.c.l.b16 %v4954
      %v5019 = vunpack.c.l.b16 %v4955
      %v5020 = vunpack.c.l.b16 %v4956
      %v5021 = vunpack.c.l.b16 %v4957
      %v5022 = vpack.c.b16 %v5015, %v5014
      %v5023 = vpack.c.b16 %v5017, %v5016
      %v5024 = vpack.c.b16 %v5019, %v5018
      %v5025 = vpack.c.b16 %v5021, %v5020
      %v5031 = vsel %vm479, %v4990, 0
      %v5034 = vsel %vm479, %v4991, 0
      %v5037 = vsel %vm479, %v4992, 0
      %v5040 = vsel %vm479, %v4993, 0
      %v5043 = vsel %vm479, %v4994, 0
      %v5046 = vsel %vm479, %v4995, 0
      %v5049 = vsel %vm479, %v4996, 0
      %v5052 = vsel %vm479, %v4997, 0
      %v5055 = vsel %vm479, %v4998, 0
      %v5058 = vsel %vm479, %v4999, 0
      %v5061 = vsel %vm479, %v5000, 0
      %v5064 = vsel %vm479, %v5001, 0
      %v5067 = vsel %vm479, %v5002, 0
      %v5070 = vsel %vm479, %v5003, 0
      %v5073 = vsel %vm479, %v5004, 0
      %v5076 = vsel %vm479, %v5005, 0
      %5078 = vmatprep.subr.bf16.mxu0 0
      %5079 = vmatpush1.bf16.msra.mxu0 0
      %5080 = vmatprep.subr.bf16.mxu0 0
      %5081 = vmatpush1.bf16.msra.mxu0 0
      %5082 = vmatprep.subr.bf16.mxu0 0
      %5083 = vmatpush1.bf16.msra.mxu0 0
      %5084 = vmatprep.subr.bf16.mxu0 0
      %5085 = vmatpush1.bf16.msra.mxu0 0
      %5086 = vmatprep.subr.bf16.mxu0 0
      %5087 = vmatpush1.bf16.msra.mxu0 %v5025
      %5088 = vmatprep.subr.bf16.mxu0 0
      %5089 = vmatpush1.bf16.msra.mxu0 %v5024
      %5090 = vmatprep.subr.bf16.mxu0 0
      %5091 = vmatpush1.bf16.msra.mxu0 %v5023
      %5092 = vmatprep.subr.bf16.mxu0 0
      %5093 = vmatpush1.bf16.msra.mxu0 %v5022
      %5094 = vmatprep.subr.bf16.mxu0 0
      %5095 = vmatpush2.bf16.msra.mxu0 0
      %5096 = vmatprep.subr.bf16.mxu0 0
      %5097 = vmatpush2.bf16.msra.mxu0 0
      %5098 = vmatprep.subr.bf16.mxu0 0
      %5099 = vmatpush2.bf16.msra.mxu0 0
      %5100 = vmatprep.subr.bf16.mxu0 0
      %5101 = vmatpush2.bf16.msra.mxu0 0
      %5102 = vmatprep.subr.bf16.mxu0 0
      %5103 = vmatpush2.bf16.msra.mxu0 0
      %5104 = vmatprep.subr.bf16.mxu0 0
      %5105 = vmatpush2.bf16.msra.mxu0 0
      %5106 = vmatprep.subr.bf16.mxu0 0
      %5107 = vmatpush2.bf16.msra.mxu0 0
      %5108 = vmatprep.subr.bf16.mxu0 0
      %5109 = vmatpush2.bf16.msra.mxu0 0
      %5110 = vmatprep.mubr.bf16.mxu0 0
      %5111 = vmatmul.mubr.bf16.gmra.mxu0 %v5031
      %v5112 = vpop.f32.mrf.mxu0
      %v5113 = vadd.f32 0.0, %v5112
      %v5114 = vpop.f32.mrf.mxu0
      %v5115 = vpop.f32.mrf.mxu0
      %v5116 = vadd.f32 0.0, %v5115
      %v5117 = vpop.f32.mrf.mxu0
      %5118 = vmatprep.mubr.bf16.mxu0 0
      %5119 = vmatmul.mubr.bf16.gmra.mxu0 %v5034
      %v5120 = vpop.f32.mrf.mxu0
      %v5121 = vadd.f32 0.0, %v5120
      %v5122 = vpop.f32.mrf.mxu0
      %v5123 = vpop.f32.mrf.mxu0
      %v5124 = vadd.f32 0.0, %v5123
      %v5125 = vpop.f32.mrf.mxu0
      %5126 = vmatprep.mubr.bf16.mxu0 0
      %5127 = vmatmul.mubr.bf16.gmra.mxu0 %v5037
      %v5128 = vpop.f32.mrf.mxu0
      %v5129 = vadd.f32 0.0, %v5128
      %v5130 = vpop.f32.mrf.mxu0
      %v5131 = vpop.f32.mrf.mxu0
      %v5132 = vadd.f32 0.0, %v5131
      %v5133 = vpop.f32.mrf.mxu0
      %5134 = vmatprep.mubr.bf16.mxu0 0
      %5135 = vmatmul.mubr.bf16.gmra.mxu0 %v5040
      %v5136 = vpop.f32.mrf.mxu0
      %v5137 = vadd.f32 0.0, %v5136
      %v5138 = vpop.f32.mrf.mxu0
      %v5139 = vpop.f32.mrf.mxu0
      %v5140 = vadd.f32 0.0, %v5139
      %v5141 = vpop.f32.mrf.mxu0
      %5142 = vmatprep.mubr.bf16.mxu0 0
      %5143 = vmatmul.mubr.bf16.gmra.mxu0 %v5043
      %v5144 = vpop.f32.mrf.mxu0
      %v5145 = vadd.f32 0.0, %v5144
      %v5146 = vpop.f32.mrf.mxu0
      %v5147 = vpop.f32.mrf.mxu0
      %v5148 = vadd.f32 0.0, %v5147
      %v5149 = vpop.f32.mrf.mxu0
      %5150 = vmatprep.mubr.bf16.mxu0 0
      %5151 = vmatmul.mubr.bf16.gmra.mxu0 %v5046
      %v5152 = vpop.f32.mrf.mxu0
      %v5153 = vadd.f32 0.0, %v5152
      %v5154 = vpop.f32.mrf.mxu0
      %v5155 = vpop.f32.mrf.mxu0
      %v5156 = vadd.f32 0.0, %v5155
      %v5157 = vpop.f32.mrf.mxu0
      %5158 = vmatprep.mubr.bf16.mxu0 0
      %5159 = vmatmul.mubr.bf16.gmra.mxu0 %v5049
      %v5160 = vpop.f32.mrf.mxu0
      %v5161 = vadd.f32 0.0, %v5160
      %v5162 = vpop.f32.mrf.mxu0
      %v5163 = vpop.f32.mrf.mxu0
      %v5164 = vadd.f32 0.0, %v5163
      %v5165 = vpop.f32.mrf.mxu0
      %5166 = vmatprep.mubr.bf16.mxu0 0
      %5167 = vmatmul.mubr.bf16.gmra.mxu0 %v5052
      %v5168 = vpop.f32.mrf.mxu0
      %v5169 = vadd.f32 0.0, %v5168
      %v5170 = vpop.f32.mrf.mxu0
      %v5171 = vpop.f32.mrf.mxu0
      %v5172 = vadd.f32 0.0, %v5171
      %v5173 = vpop.f32.mrf.mxu0
      %5174 = vmatprep.mubr.bf16.mxu0 0
      %5175 = vmatmul.mubr.bf16.gmra.mxu0 %v5055
      %v5176 = vpop.f32.mrf.mxu0
      %v5177 = vadd.f32 0.0, %v5176
      %v5178 = vpop.f32.mrf.mxu0
      %v5179 = vpop.f32.mrf.mxu0
      %v5180 = vadd.f32 0.0, %v5179
      %v5181 = vpop.f32.mrf.mxu0
      %5182 = vmatprep.mubr.bf16.mxu0 0
      %5183 = vmatmul.mubr.bf16.gmra.mxu0 %v5058
      %v5184 = vpop.f32.mrf.mxu0
      %v5185 = vadd.f32 0.0, %v5184
      %v5186 = vpop.f32.mrf.mxu0
      %v5187 = vpop.f32.mrf.mxu0
      %v5188 = vadd.f32 0.0, %v5187
      %v5189 = vpop.f32.mrf.mxu0
      %5190 = vmatprep.mubr.bf16.mxu0 0
      %5191 = vmatmul.mubr.bf16.gmra.mxu0 %v5061
      %v5192 = vpop.f32.mrf.mxu0
      %v5193 = vadd.f32 0.0, %v5192
      %v5194 = vpop.f32.mrf.mxu0
      %v5195 = vpop.f32.mrf.mxu0
      %v5196 = vadd.f32 0.0, %v5195
      %v5197 = vpop.f32.mrf.mxu0
      %5198 = vmatprep.mubr.bf16.mxu0 0
      %5199 = vmatmul.mubr.bf16.gmra.mxu0 %v5064
      %v5200 = vpop.f32.mrf.mxu0
      %v5201 = vadd.f32 0.0, %v5200
      %v5202 = vpop.f32.mrf.mxu0
      %v5203 = vpop.f32.mrf.mxu0
      %v5204 = vadd.f32 0.0, %v5203
      %v5205 = vpop.f32.mrf.mxu0
      %5206 = vmatprep.mubr.bf16.mxu0 0
      %5207 = vmatmul.mubr.bf16.gmra.mxu0 %v5067
      %v5208 = vpop.f32.mrf.mxu0
      %v5209 = vadd.f32 0.0, %v5208
      %v5210 = vpop.f32.mrf.mxu0
      %v5211 = vpop.f32.mrf.mxu0
      %v5212 = vadd.f32 0.0, %v5211
      %v5213 = vpop.f32.mrf.mxu0
      %5214 = vmatprep.mubr.bf16.mxu0 0
      %5215 = vmatmul.mubr.bf16.gmra.mxu0 %v5070
      %v5216 = vpop.f32.mrf.mxu0
      %v5217 = vadd.f32 0.0, %v5216
      %v5218 = vpop.f32.mrf.mxu0
      %v5219 = vpop.f32.mrf.mxu0
      %v5220 = vadd.f32 0.0, %v5219
      %v5221 = vpop.f32.mrf.mxu0
      %5222 = vmatprep.mubr.bf16.mxu0 0
      %5223 = vmatmul.mubr.bf16.gmra.mxu0 %v5073
      %v5224 = vpop.f32.mrf.mxu0
      %v5225 = vadd.f32 0.0, %v5224
      %v5226 = vpop.f32.mrf.mxu0
      %v5227 = vpop.f32.mrf.mxu0
      %v5228 = vadd.f32 0.0, %v5227
      %v5229 = vpop.f32.mrf.mxu0
      %5230 = vmatprep.mubr.bf16.mxu0 0
      %5231 = vmatmul.mubr.bf16.gmra.mxu0 %v5076
      %v5232 = vpop.f32.mrf.mxu0
      %v5233 = vadd.f32 0.0, %v5232
      %v5234 = vpop.f32.mrf.mxu0
      %v5235 = vpop.f32.mrf.mxu0
      %v5236 = vadd.f32 0.0, %v5235
      %v5237 = vpop.f32.mrf.mxu0
      %5238 = vdwg.mxu0
      %v5239 = vld [vmem:[#allocation2] sm:$0xff]
      %v5240 = vld [vmem:[#allocation2 + $0x8] sm:$0xff]
      %v5241 = vld [vmem:[#allocation2 + $0x10] sm:$0xff]
      %v5242 = vld [vmem:[#allocation2 + $0x18] sm:$0xff]
      %v5243 = vld [vmem:[#allocation2 + $0x20] sm:$0xff]
      %v5244 = vld [vmem:[#allocation2 + $0x28] sm:$0xff]
      %v5245 = vld [vmem:[#allocation2 + $0x30] sm:$0xff]
      %v5246 = vld [vmem:[#allocation2 + $0x38] sm:$0xff]
      %v5247 = vld [vmem:[#allocation2 + $0x40] sm:$0xff]
      %v5248 = vld [vmem:[#allocation2 + $0x48] sm:$0xff]
      %v5249 = vld [vmem:[#allocation2 + $0x50] sm:$0xff]
      %v5250 = vld [vmem:[#allocation2 + $0x58] sm:$0xff]
      %v5251 = vld [vmem:[#allocation2 + $0x60] sm:$0xff]
      %v5252 = vld [vmem:[#allocation2 + $0x68] sm:$0xff]
      %v5253 = vld [vmem:[#allocation2 + $0x70] sm:$0xff]
      %v5254 = vld [vmem:[#allocation2 + $0x78] sm:$0xff]
      %v5255 = vld [vmem:[#allocation2 + $0x80] sm:$0xff]
      %v5256 = vld [vmem:[#allocation2 + $0x88] sm:$0xff]
      %v5257 = vld [vmem:[#allocation2 + $0x90] sm:$0xff]
      %v5258 = vld [vmem:[#allocation2 + $0x98] sm:$0xff]
      %v5259 = vld [vmem:[#allocation2 + $0xa0] sm:$0xff]
      %v5260 = vld [vmem:[#allocation2 + $0xa8] sm:$0xff]
      %v5261 = vld [vmem:[#allocation2 + $0xb0] sm:$0xff]
      %v5262 = vld [vmem:[#allocation2 + $0xb8] sm:$0xff]
      %v5263 = vld [vmem:[#allocation2 + $0xc0] sm:$0xff]
      %v5264 = vld [vmem:[#allocation2 + $0xc8] sm:$0xff]
      %v5265 = vld [vmem:[#allocation2 + $0xd0] sm:$0xff]
      %v5266 = vld [vmem:[#allocation2 + $0xd8] sm:$0xff]
      %v5267 = vld [vmem:[#allocation2 + $0xe0] sm:$0xff]
      %v5268 = vld [vmem:[#allocation2 + $0xe8] sm:$0xff]
      %v5269 = vld [vmem:[#allocation2 + $0xf0] sm:$0xff]
      %v5270 = vld [vmem:[#allocation2 + $0xf8] sm:$0xff]
      %v5271 = vadd.f32 %v5239, %v5113
      %v5272 = vadd.f32 %v5240, %v5116
      %v5273 = vadd.f32 %v5241, %v5121
      %v5274 = vadd.f32 %v5242, %v5124
      %v5275 = vadd.f32 %v5243, %v5129
      %v5276 = vadd.f32 %v5244, %v5132
      %v5277 = vadd.f32 %v5245, %v5137
      %v5278 = vadd.f32 %v5246, %v5140
      %v5279 = vadd.f32 %v5247, %v5145
      %v5280 = vadd.f32 %v5248, %v5148
      %v5281 = vadd.f32 %v5249, %v5153
      %v5282 = vadd.f32 %v5250, %v5156
      %v5283 = vadd.f32 %v5251, %v5161
      %v5284 = vadd.f32 %v5252, %v5164
      %v5285 = vadd.f32 %v5253, %v5169
      %v5286 = vadd.f32 %v5254, %v5172
      %v5287 = vadd.f32 %v5255, %v5177
      %v5288 = vadd.f32 %v5256, %v5180
      %v5289 = vadd.f32 %v5257, %v5185
      %v5290 = vadd.f32 %v5258, %v5188
      %v5291 = vadd.f32 %v5259, %v5193
      %v5292 = vadd.f32 %v5260, %v5196
      %v5293 = vadd.f32 %v5261, %v5201
      %v5294 = vadd.f32 %v5262, %v5204
      %v5295 = vadd.f32 %v5263, %v5209
      %v5296 = vadd.f32 %v5264, %v5212
      %v5297 = vadd.f32 %v5265, %v5217
      %v5298 = vadd.f32 %v5266, %v5220
      %v5299 = vadd.f32 %v5267, %v5225
      %v5300 = vadd.f32 %v5268, %v5228
      %v5301 = vadd.f32 %v5269, %v5233
      %v5302 = vadd.f32 %v5270, %v5236
      %5303 = vst.msk [vmem:[#allocation2] sm:$0xff] %vm479, %v5271
      %5304 = vst.msk [vmem:[#allocation2 + $0x8] sm:$0xff] %vm479, %v5272
      %5305 = vst.msk [vmem:[#allocation2 + $0x10] sm:$0xff] %vm479, %v5273
      %5306 = vst.msk [vmem:[#allocation2 + $0x18] sm:$0xff] %vm479, %v5274
      %5307 = vst.msk [vmem:[#allocation2 + $0x20] sm:$0xff] %vm479, %v5275
      %5308 = vst.msk [vmem:[#allocation2 + $0x28] sm:$0xff] %vm479, %v5276
      %5309 = vst.msk [vmem:[#allocation2 + $0x30] sm:$0xff] %vm479, %v5277
      %5310 = vst.msk [vmem:[#allocation2 + $0x38] sm:$0xff] %vm479, %v5278
      %5311 = vst.msk [vmem:[#allocation2 + $0x40] sm:$0xff] %vm479, %v5279
      %5312 = vst.msk [vmem:[#allocation2 + $0x48] sm:$0xff] %vm479, %v5280
      %5313 = vst.msk [vmem:[#allocation2 + $0x50] sm:$0xff] %vm479, %v5281
      %5314 = vst.msk [vmem:[#allocation2 + $0x58] sm:$0xff] %vm479, %v5282
      %5315 = vst.msk [vmem:[#allocation2 + $0x60] sm:$0xff] %vm479, %v5283
      %5316 = vst.msk [vmem:[#allocation2 + $0x68] sm:$0xff] %vm479, %v5284
      %5317 = vst.msk [vmem:[#allocation2 + $0x70] sm:$0xff] %vm479, %v5285
      %5318 = vst.msk [vmem:[#allocation2 + $0x78] sm:$0xff] %vm479, %v5286
      %5319 = vst.msk [vmem:[#allocation2 + $0x80] sm:$0xff] %vm479, %v5287
      %5320 = vst.msk [vmem:[#allocation2 + $0x88] sm:$0xff] %vm479, %v5288
      %5321 = vst.msk [vmem:[#allocation2 + $0x90] sm:$0xff] %vm479, %v5289
      %5322 = vst.msk [vmem:[#allocation2 + $0x98] sm:$0xff] %vm479, %v5290
      %5323 = vst.msk [vmem:[#allocation2 + $0xa0] sm:$0xff] %vm479, %v5291
      %5324 = vst.msk [vmem:[#allocation2 + $0xa8] sm:$0xff] %vm479, %v5292
      %5325 = vst.msk [vmem:[#allocation2 + $0xb0] sm:$0xff] %vm479, %v5293
      %5326 = vst.msk [vmem:[#allocation2 + $0xb8] sm:$0xff] %vm479, %v5294
      %5327 = vst.msk [vmem:[#allocation2 + $0xc0] sm:$0xff] %vm479, %v5295
      %5328 = vst.msk [vmem:[#allocation2 + $0xc8] sm:$0xff] %vm479, %v5296
      %5329 = vst.msk [vmem:[#allocation2 + $0xd0] sm:$0xff] %vm479, %v5297
      %5330 = vst.msk [vmem:[#allocation2 + $0xd8] sm:$0xff] %vm479, %v5298
      %5331 = vst.msk [vmem:[#allocation2 + $0xe0] sm:$0xff] %vm479, %v5299
      %5332 = vst.msk [vmem:[#allocation2 + $0xe8] sm:$0xff] %vm479, %v5300
      %5333 = vst.msk [vmem:[#allocation2 + $0xf0] sm:$0xff] %vm479, %v5301
      %5334 = vst.msk [vmem:[#allocation2 + $0xf8] sm:$0xff] %vm479, %v5302
      %v5335 = vld [vmem:[%s4066] sm:$0xe]
      %v5336 = vld [vmem:[%s4066 + $0x4] sm:$0xf]
      %v5337 = vld [vmem:[%s4066 + $0x8] sm:$0x1]
      %v5338 = vld [vmem:[%s4066 + $0xc] sm:$0xe]
      %v5339 = vld [vmem:[%s4066 + $0x10] sm:$0xf]
      %v5340 = vld [vmem:[%s4066 + $0x14] sm:$0x1]
      %v5341 = vld [vmem:[%s4066 + $0x18] sm:$0xe]
      %v5342 = vld [vmem:[%s4066 + $0x1c] sm:$0xf]
      %v5343 = vld [vmem:[%s4066 + $0x20] sm:$0x1]
      %v5344 = vld [vmem:[%s4066 + $0x24] sm:$0xe]
      %v5345 = vld [vmem:[%s4066 + $0x28] sm:$0xf]
      %v5346 = vld [vmem:[%s4066 + $0x2c] sm:$0x1]
      %v5347 = vld [vmem:[%s4066 + $0x30] sm:$0xe]
      %v5348 = vld [vmem:[%s4066 + $0x34] sm:$0xf]
      %v5349 = vld [vmem:[%s4066 + $0x38] sm:$0x1]
      %v5350 = vld [vmem:[%s4066 + $0x3c] sm:$0xe]
      %v5351 = vld [vmem:[%s4066 + $0x40] sm:$0xf]
      %v5352 = vld [vmem:[%s4066 + $0x44] sm:$0x1]
      %v5353 = vld [vmem:[%s4066 + $0x48] sm:$0xe]
      %v5354 = vld [vmem:[%s4066 + $0x4c] sm:$0xf]
      %v5355 = vld [vmem:[%s4066 + $0x50] sm:$0x1]
      %v5356 = vld [vmem:[%s4066 + $0x54] sm:$0xe]
      %v5357 = vld [vmem:[%s4066 + $0x58] sm:$0xf]
      %v5358 = vld [vmem:[%s4066 + $0x5c] sm:$0x1]
      %v5359 = vld [vmem:[%s4066 + $0x60] sm:$0xe]
      %v5360 = vld [vmem:[%s4066 + $0x64] sm:$0xf]
      %v5361 = vld [vmem:[%s4066 + $0x68] sm:$0x1]
      %v5362 = vld [vmem:[%s4066 + $0x6c] sm:$0xe]
      %v5363 = vld [vmem:[%s4066 + $0x70] sm:$0xf]
      %v5364 = vld [vmem:[%s4066 + $0x74] sm:$0x1]
      %v5365 = vld [vmem:[%s4066 + $0x78] sm:$0xe]
      %v5366 = vld [vmem:[%s4066 + $0x7c] sm:$0xf]
      %v5367 = vld [vmem:[%s4066 + $0x80] sm:$0x1]
      %v5368 = vld [vmem:[%s4066 + $0x84] sm:$0xe]
      %v5369 = vld [vmem:[%s4066 + $0x88] sm:$0xf]
      %v5370 = vld [vmem:[%s4066 + $0x8c] sm:$0x1]
      %v5371 = vld [vmem:[%s4066 + $0x90] sm:$0xe]
      %v5372 = vld [vmem:[%s4066 + $0x94] sm:$0xf]
      %v5373 = vld [vmem:[%s4066 + $0x98] sm:$0x1]
      %v5374 = vld [vmem:[%s4066 + $0x9c] sm:$0xe]
      %v5375 = vld [vmem:[%s4066 + $0xa0] sm:$0xf]
      %v5376 = vld [vmem:[%s4066 + $0xa4] sm:$0x1]
      %v5377 = vld [vmem:[%s4066 + $0xa8] sm:$0xe]
      %v5378 = vld [vmem:[%s4066 + $0xac] sm:$0xf]
      %v5379 = vld [vmem:[%s4066 + $0xb0] sm:$0x1]
      %v5380 = vld [vmem:[%s4066 + $0xb4] sm:$0xe]
      %v5381 = vld [vmem:[%s4066 + $0xb8] sm:$0xf]
      %v5382 = vld [vmem:[%s4066 + $0xbc] sm:$0x1]
      %v5431 = vrot.slane %v5335, 5
      %v5432 = vrot.slane %v5431, 4
      %v5433 = vrot.slane %v5336, 5
      %v5434 = vsel %vm1704, %v5432, %v5433
      %v5435 = vrot.slane %v5433, 4
      %v5436 = vrot.slane %v5337, 5
      %v5437 = vsel %vm1704, %v5435, %v5436
      %v5438 = vrot.slane %v5338, 5
      %v5439 = vrot.slane %v5438, 4
      %v5440 = vrot.slane %v5339, 5
      %v5441 = vsel %vm1704, %v5439, %v5440
      %v5442 = vrot.slane %v5440, 4
      %v5443 = vrot.slane %v5340, 5
      %v5444 = vsel %vm1704, %v5442, %v5443
      %v5445 = vrot.slane %v5341, 5
      %v5446 = vrot.slane %v5445, 4
      %v5447 = vrot.slane %v5342, 5
      %v5448 = vsel %vm1704, %v5446, %v5447
      %v5449 = vrot.slane %v5447, 4
      %v5450 = vrot.slane %v5343, 5
      %v5451 = vsel %vm1704, %v5449, %v5450
      %v5452 = vrot.slane %v5344, 5
      %v5453 = vrot.slane %v5452, 4
      %v5454 = vrot.slane %v5345, 5
      %v5455 = vsel %vm1704, %v5453, %v5454
      %v5456 = vrot.slane %v5454, 4
      %v5457 = vrot.slane %v5346, 5
      %v5458 = vsel %vm1704, %v5456, %v5457
      %v5459 = vrot.slane %v5347, 5
      %v5460 = vrot.slane %v5459, 4
      %v5461 = vrot.slane %v5348, 5
      %v5462 = vsel %vm1704, %v5460, %v5461
      %v5463 = vrot.slane %v5461, 4
      %v5464 = vrot.slane %v5349, 5
      %v5465 = vsel %vm1704, %v5463, %v5464
      %v5466 = vrot.slane %v5350, 5
      %v5467 = vrot.slane %v5466, 4
      %v5468 = vrot.slane %v5351, 5
      %v5469 = vsel %vm1704, %v5467, %v5468
      %v5470 = vrot.slane %v5468, 4
      %v5471 = vrot.slane %v5352, 5
      %v5472 = vsel %vm1704, %v5470, %v5471
      %v5473 = vrot.slane %v5353, 5
      %v5474 = vrot.slane %v5473, 4
      %v5475 = vrot.slane %v5354, 5
      %v5476 = vsel %vm1704, %v5474, %v5475
      %v5477 = vrot.slane %v5475, 4
      %v5478 = vrot.slane %v5355, 5
      %v5479 = vsel %vm1704, %v5477, %v5478
      %v5480 = vrot.slane %v5356, 5
      %v5481 = vrot.slane %v5480, 4
      %v5482 = vrot.slane %v5357, 5
      %v5483 = vsel %vm1704, %v5481, %v5482
      %v5484 = vrot.slane %v5482, 4
      %v5485 = vrot.slane %v5358, 5
      %v5486 = vsel %vm1704, %v5484, %v5485
      %v5487 = vrot.slane %v5359, 5
      %v5488 = vrot.slane %v5487, 4
      %v5489 = vrot.slane %v5360, 5
      %v5490 = vsel %vm1704, %v5488, %v5489
      %v5491 = vrot.slane %v5489, 4
      %v5492 = vrot.slane %v5361, 5
      %v5493 = vsel %vm1704, %v5491, %v5492
      %v5494 = vrot.slane %v5362, 5
      %v5495 = vrot.slane %v5494, 4
      %v5496 = vrot.slane %v5363, 5
      %v5497 = vsel %vm1704, %v5495, %v5496
      %v5498 = vrot.slane %v5496, 4
      %v5499 = vrot.slane %v5364, 5
      %v5500 = vsel %vm1704, %v5498, %v5499
      %v5501 = vrot.slane %v5365, 5
      %v5502 = vrot.slane %v5501, 4
      %v5503 = vrot.slane %v5366, 5
      %v5504 = vsel %vm1704, %v5502, %v5503
      %v5505 = vrot.slane %v5503, 4
      %v5506 = vrot.slane %v5367, 5
      %v5507 = vsel %vm1704, %v5505, %v5506
      %v5508 = vrot.slane %v5368, 5
      %v5509 = vrot.slane %v5508, 4
      %v5510 = vrot.slane %v5369, 5
      %v5511 = vsel %vm1704, %v5509, %v5510
      %v5512 = vrot.slane %v5510, 4
      %v5513 = vrot.slane %v5370, 5
      %v5514 = vsel %vm1704, %v5512, %v5513
      %v5515 = vrot.slane %v5371, 5
      %v5516 = vrot.slane %v5515, 4
      %v5517 = vrot.slane %v5372, 5
      %v5518 = vsel %vm1704, %v5516, %v5517
      %v5519 = vrot.slane %v5517, 4
      %v5520 = vrot.slane %v5373, 5
      %v5521 = vsel %vm1704, %v5519, %v5520
      %v5522 = vrot.slane %v5374, 5
      %v5523 = vrot.slane %v5522, 4
      %v5524 = vrot.slane %v5375, 5
      %v5525 = vsel %vm1704, %v5523, %v5524
      %v5526 = vrot.slane %v5524, 4
      %v5527 = vrot.slane %v5376, 5
      %v5528 = vsel %vm1704, %v5526, %v5527
      %v5529 = vrot.slane %v5377, 5
      %v5530 = vrot.slane %v5529, 4
      %v5531 = vrot.slane %v5378, 5
      %v5532 = vsel %vm1704, %v5530, %v5531
      %v5533 = vrot.slane %v5531, 4
      %v5534 = vrot.slane %v5379, 5
      %v5535 = vsel %vm1704, %v5533, %v5534
      %v5536 = vrot.slane %v5380, 5
      %v5537 = vrot.slane %v5536, 4
      %v5538 = vrot.slane %v5381, 5
      %v5539 = vsel %vm1704, %v5537, %v5538
      %v5540 = vrot.slane %v5538, 4
      %v5541 = vrot.slane %v5382, 5
      %v5542 = vsel %vm1704, %v5540, %v5541
      %s5543 = scalar_lea.vmem %s281, 256
      %v5544 = vld [vmem:[%s5543] sm:$0xf]
      %v5545 = vld [vmem:[%s5543 + $0x4] sm:$0xf]
      %v5546 = vld [vmem:[%s5543 + $0x8] sm:$0xf]
      %v5547 = vld [vmem:[%s5543 + $0xc] sm:$0xf]
      %v5548 = vld [vmem:[%s5543 + $0x10] sm:$0xf]
      %v5549 = vld [vmem:[%s5543 + $0x14] sm:$0xf]
      %v5550 = vld [vmem:[%s5543 + $0x18] sm:$0xf]
      %v5551 = vld [vmem:[%s5543 + $0x1c] sm:$0xf]
      %v5552 = vunpack.c.l.b16 %v5434
      %v5553 = vunpack.c.l.b16 %v5437
      %v5554 = vunpack.c.l.b16 %v5441
      %v5555 = vunpack.c.l.b16 %v5444
      %v5556 = vunpack.c.l.b16 %v5448
      %v5557 = vunpack.c.l.b16 %v5451
      %v5558 = vunpack.c.l.b16 %v5455
      %v5559 = vunpack.c.l.b16 %v5458
      %v5560 = vunpack.c.l.b16 %v5462
      %v5561 = vunpack.c.l.b16 %v5465
      %v5562 = vunpack.c.l.b16 %v5469
      %v5563 = vunpack.c.l.b16 %v5472
      %v5564 = vunpack.c.l.b16 %v5476
      %v5565 = vunpack.c.l.b16 %v5479
      %v5566 = vunpack.c.l.b16 %v5483
      %v5567 = vunpack.c.l.b16 %v5486
      %v5568 = vunpack.c.l.b16 %v5490
      %v5569 = vunpack.c.l.b16 %v5493
      %v5570 = vunpack.c.l.b16 %v5497
      %v5571 = vunpack.c.l.b16 %v5500
      %v5572 = vunpack.c.l.b16 %v5504
      %v5573 = vunpack.c.l.b16 %v5507
      %v5574 = vunpack.c.l.b16 %v5511
      %v5575 = vunpack.c.l.b16 %v5514
      %v5576 = vunpack.c.l.b16 %v5518
      %v5577 = vunpack.c.l.b16 %v5521
      %v5578 = vunpack.c.l.b16 %v5525
      %v5579 = vunpack.c.l.b16 %v5528
      %v5580 = vunpack.c.l.b16 %v5532
      %v5581 = vunpack.c.l.b16 %v5535
      %v5582 = vunpack.c.l.b16 %v5539
      %v5583 = vunpack.c.l.b16 %v5542
      %v5584 = vpack.c.b16 %v5553, %v5552
      %v5585 = vpack.c.b16 %v5555, %v5554
      %v5586 = vpack.c.b16 %v5557, %v5556
      %v5587 = vpack.c.b16 %v5559, %v5558
      %v5588 = vpack.c.b16 %v5561, %v5560
      %v5589 = vpack.c.b16 %v5563, %v5562
      %v5590 = vpack.c.b16 %v5565, %v5564
      %v5591 = vpack.c.b16 %v5567, %v5566
      %v5592 = vpack.c.b16 %v5569, %v5568
      %v5593 = vpack.c.b16 %v5571, %v5570
      %v5594 = vpack.c.b16 %v5573, %v5572
      %v5595 = vpack.c.b16 %v5575, %v5574
      %v5596 = vpack.c.b16 %v5577, %v5576
      %v5597 = vpack.c.b16 %v5579, %v5578
      %v5598 = vpack.c.b16 %v5581, %v5580
      %v5599 = vpack.c.b16 %v5583, %v5582
      %v5608 = vunpack.c.l.b16 %v5544
      %v5609 = vunpack.c.l.b16 %v5545
      %v5610 = vunpack.c.l.b16 %v5546
      %v5611 = vunpack.c.l.b16 %v5547
      %v5612 = vunpack.c.l.b16 %v5548
      %v5613 = vunpack.c.l.b16 %v5549
      %v5614 = vunpack.c.l.b16 %v5550
      %v5615 = vunpack.c.l.b16 %v5551
      %v5616 = vpack.c.b16 %v5609, %v5608
      %v5617 = vpack.c.b16 %v5611, %v5610
      %v5618 = vpack.c.b16 %v5613, %v5612
      %v5619 = vpack.c.b16 %v5615, %v5614
      %v5625 = vsel %vm479, %v5584, 0
      %v5628 = vsel %vm479, %v5585, 0
      %v5631 = vsel %vm479, %v5586, 0
      %v5634 = vsel %vm479, %v5587, 0
      %v5637 = vsel %vm479, %v5588, 0
      %v5640 = vsel %vm479, %v5589, 0
      %v5643 = vsel %vm479, %v5590, 0
      %v5646 = vsel %vm479, %v5591, 0
      %v5649 = vsel %vm479, %v5592, 0
      %v5652 = vsel %vm479, %v5593, 0
      %v5655 = vsel %vm479, %v5594, 0
      %v5658 = vsel %vm479, %v5595, 0
      %v5661 = vsel %vm479, %v5596, 0
      %v5664 = vsel %vm479, %v5597, 0
      %v5667 = vsel %vm479, %v5598, 0
      %v5670 = vsel %vm479, %v5599, 0
      %5672 = vmatprep.subr.bf16.mxu0 0
      %5673 = vmatpush1.bf16.msra.mxu0 0
      %5674 = vmatprep.subr.bf16.mxu0 0
      %5675 = vmatpush1.bf16.msra.mxu0 0
      %5676 = vmatprep.subr.bf16.mxu0 0
      %5677 = vmatpush1.bf16.msra.mxu0 0
      %5678 = vmatprep.subr.bf16.mxu0 0
      %5679 = vmatpush1.bf16.msra.mxu0 0
      %5680 = vmatprep.subr.bf16.mxu0 0
      %5681 = vmatpush1.bf16.msra.mxu0 %v5619
      %5682 = vmatprep.subr.bf16.mxu0 0
      %5683 = vmatpush1.bf16.msra.mxu0 %v5618
      %5684 = vmatprep.subr.bf16.mxu0 0
      %5685 = vmatpush1.bf16.msra.mxu0 %v5617
      %5686 = vmatprep.subr.bf16.mxu0 0
      %5687 = vmatpush1.bf16.msra.mxu0 %v5616
      %5688 = vmatprep.subr.bf16.mxu0 0
      %5689 = vmatpush2.bf16.msra.mxu0 0
      %5690 = vmatprep.subr.bf16.mxu0 0
      %5691 = vmatpush2.bf16.msra.mxu0 0
      %5692 = vmatprep.subr.bf16.mxu0 0
      %5693 = vmatpush2.bf16.msra.mxu0 0
      %5694 = vmatprep.subr.bf16.mxu0 0
      %5695 = vmatpush2.bf16.msra.mxu0 0
      %5696 = vmatprep.subr.bf16.mxu0 0
      %5697 = vmatpush2.bf16.msra.mxu0 0
      %5698 = vmatprep.subr.bf16.mxu0 0
      %5699 = vmatpush2.bf16.msra.mxu0 0
      %5700 = vmatprep.subr.bf16.mxu0 0
      %5701 = vmatpush2.bf16.msra.mxu0 0
      %5702 = vmatprep.subr.bf16.mxu0 0
      %5703 = vmatpush2.bf16.msra.mxu0 0
      %5704 = vmatprep.mubr.bf16.mxu0 0
      %5705 = vmatmul.mubr.bf16.gmra.mxu0 %v5625
      %v5706 = vpop.f32.mrf.mxu0
      %v5707 = vadd.f32 0.0, %v5706
      %v5708 = vpop.f32.mrf.mxu0
      %v5709 = vpop.f32.mrf.mxu0
      %v5710 = vadd.f32 0.0, %v5709
      %v5711 = vpop.f32.mrf.mxu0
      %5712 = vmatprep.mubr.bf16.mxu0 0
      %5713 = vmatmul.mubr.bf16.gmra.mxu0 %v5628
      %v5714 = vpop.f32.mrf.mxu0
      %v5715 = vadd.f32 0.0, %v5714
      %v5716 = vpop.f32.mrf.mxu0
      %v5717 = vpop.f32.mrf.mxu0
      %v5718 = vadd.f32 0.0, %v5717
      %v5719 = vpop.f32.mrf.mxu0
      %5720 = vmatprep.mubr.bf16.mxu0 0
      %5721 = vmatmul.mubr.bf16.gmra.mxu0 %v5631
      %v5722 = vpop.f32.mrf.mxu0
      %v5723 = vadd.f32 0.0, %v5722
      %v5724 = vpop.f32.mrf.mxu0
      %v5725 = vpop.f32.mrf.mxu0
      %v5726 = vadd.f32 0.0, %v5725
      %v5727 = vpop.f32.mrf.mxu0
      %5728 = vmatprep.mubr.bf16.mxu0 0
      %5729 = vmatmul.mubr.bf16.gmra.mxu0 %v5634
      %v5730 = vpop.f32.mrf.mxu0
      %v5731 = vadd.f32 0.0, %v5730
      %v5732 = vpop.f32.mrf.mxu0
      %v5733 = vpop.f32.mrf.mxu0
      %v5734 = vadd.f32 0.0, %v5733
      %v5735 = vpop.f32.mrf.mxu0
      %5736 = vmatprep.mubr.bf16.mxu0 0
      %5737 = vmatmul.mubr.bf16.gmra.mxu0 %v5637
      %v5738 = vpop.f32.mrf.mxu0
      %v5739 = vadd.f32 0.0, %v5738
      %v5740 = vpop.f32.mrf.mxu0
      %v5741 = vpop.f32.mrf.mxu0
      %v5742 = vadd.f32 0.0, %v5741
      %v5743 = vpop.f32.mrf.mxu0
      %5744 = vmatprep.mubr.bf16.mxu0 0
      %5745 = vmatmul.mubr.bf16.gmra.mxu0 %v5640
      %v5746 = vpop.f32.mrf.mxu0
      %v5747 = vadd.f32 0.0, %v5746
      %v5748 = vpop.f32.mrf.mxu0
      %v5749 = vpop.f32.mrf.mxu0
      %v5750 = vadd.f32 0.0, %v5749
      %v5751 = vpop.f32.mrf.mxu0
      %5752 = vmatprep.mubr.bf16.mxu0 0
      %5753 = vmatmul.mubr.bf16.gmra.mxu0 %v5643
      %v5754 = vpop.f32.mrf.mxu0
      %v5755 = vadd.f32 0.0, %v5754
      %v5756 = vpop.f32.mrf.mxu0
      %v5757 = vpop.f32.mrf.mxu0
      %v5758 = vadd.f32 0.0, %v5757
      %v5759 = vpop.f32.mrf.mxu0
      %5760 = vmatprep.mubr.bf16.mxu0 0
      %5761 = vmatmul.mubr.bf16.gmra.mxu0 %v5646
      %v5762 = vpop.f32.mrf.mxu0
      %v5763 = vadd.f32 0.0, %v5762
      %v5764 = vpop.f32.mrf.mxu0
      %v5765 = vpop.f32.mrf.mxu0
      %v5766 = vadd.f32 0.0, %v5765
      %v5767 = vpop.f32.mrf.mxu0
      %5768 = vmatprep.mubr.bf16.mxu0 0
      %5769 = vmatmul.mubr.bf16.gmra.mxu0 %v5649
      %v5770 = vpop.f32.mrf.mxu0
      %v5771 = vadd.f32 0.0, %v5770
      %v5772 = vpop.f32.mrf.mxu0
      %v5773 = vpop.f32.mrf.mxu0
      %v5774 = vadd.f32 0.0, %v5773
      %v5775 = vpop.f32.mrf.mxu0
      %5776 = vmatprep.mubr.bf16.mxu0 0
      %5777 = vmatmul.mubr.bf16.gmra.mxu0 %v5652
      %v5778 = vpop.f32.mrf.mxu0
      %v5779 = vadd.f32 0.0, %v5778
      %v5780 = vpop.f32.mrf.mxu0
      %v5781 = vpop.f32.mrf.mxu0
      %v5782 = vadd.f32 0.0, %v5781
      %v5783 = vpop.f32.mrf.mxu0
      %5784 = vmatprep.mubr.bf16.mxu0 0
      %5785 = vmatmul.mubr.bf16.gmra.mxu0 %v5655
      %v5786 = vpop.f32.mrf.mxu0
      %v5787 = vadd.f32 0.0, %v5786
      %v5788 = vpop.f32.mrf.mxu0
      %v5789 = vpop.f32.mrf.mxu0
      %v5790 = vadd.f32 0.0, %v5789
      %v5791 = vpop.f32.mrf.mxu0
      %5792 = vmatprep.mubr.bf16.mxu0 0
      %5793 = vmatmul.mubr.bf16.gmra.mxu0 %v5658
      %v5794 = vpop.f32.mrf.mxu0
      %v5795 = vadd.f32 0.0, %v5794
      %v5796 = vpop.f32.mrf.mxu0
      %v5797 = vpop.f32.mrf.mxu0
      %v5798 = vadd.f32 0.0, %v5797
      %v5799 = vpop.f32.mrf.mxu0
      %5800 = vmatprep.mubr.bf16.mxu0 0
      %5801 = vmatmul.mubr.bf16.gmra.mxu0 %v5661
      %v5802 = vpop.f32.mrf.mxu0
      %v5803 = vadd.f32 0.0, %v5802
      %v5804 = vpop.f32.mrf.mxu0
      %v5805 = vpop.f32.mrf.mxu0
      %v5806 = vadd.f32 0.0, %v5805
      %v5807 = vpop.f32.mrf.mxu0
      %5808 = vmatprep.mubr.bf16.mxu0 0
      %5809 = vmatmul.mubr.bf16.gmra.mxu0 %v5664
      %v5810 = vpop.f32.mrf.mxu0
      %v5811 = vadd.f32 0.0, %v5810
      %v5812 = vpop.f32.mrf.mxu0
      %v5813 = vpop.f32.mrf.mxu0
      %v5814 = vadd.f32 0.0, %v5813
      %v5815 = vpop.f32.mrf.mxu0
      %5816 = vmatprep.mubr.bf16.mxu0 0
      %5817 = vmatmul.mubr.bf16.gmra.mxu0 %v5667
      %v5818 = vpop.f32.mrf.mxu0
      %v5819 = vadd.f32 0.0, %v5818
      %v5820 = vpop.f32.mrf.mxu0
      %v5821 = vpop.f32.mrf.mxu0
      %v5822 = vadd.f32 0.0, %v5821
      %v5823 = vpop.f32.mrf.mxu0
      %5824 = vmatprep.mubr.bf16.mxu0 0
      %5825 = vmatmul.mubr.bf16.gmra.mxu0 %v5670
      %v5826 = vpop.f32.mrf.mxu0
      %v5827 = vadd.f32 0.0, %v5826
      %v5828 = vpop.f32.mrf.mxu0
      %v5829 = vpop.f32.mrf.mxu0
      %v5830 = vadd.f32 0.0, %v5829
      %v5831 = vpop.f32.mrf.mxu0
      %5832 = vdwg.mxu0
      %v5833 = vld [vmem:[#allocation2] sm:$0xff]
      %v5834 = vld [vmem:[#allocation2 + $0x8] sm:$0xff]
      %v5835 = vld [vmem:[#allocation2 + $0x10] sm:$0xff]
      %v5836 = vld [vmem:[#allocation2 + $0x18] sm:$0xff]
      %v5837 = vld [vmem:[#allocation2 + $0x20] sm:$0xff]
      %v5838 = vld [vmem:[#allocation2 + $0x28] sm:$0xff]
      %v5839 = vld [vmem:[#allocation2 + $0x30] sm:$0xff]
      %v5840 = vld [vmem:[#allocation2 + $0x38] sm:$0xff]
      %v5841 = vld [vmem:[#allocation2 + $0x40] sm:$0xff]
      %v5842 = vld [vmem:[#allocation2 + $0x48] sm:$0xff]
      %v5843 = vld [vmem:[#allocation2 + $0x50] sm:$0xff]
      %v5844 = vld [vmem:[#allocation2 + $0x58] sm:$0xff]
      %v5845 = vld [vmem:[#allocation2 + $0x60] sm:$0xff]
      %v5846 = vld [vmem:[#allocation2 + $0x68] sm:$0xff]
      %v5847 = vld [vmem:[#allocation2 + $0x70] sm:$0xff]
      %v5848 = vld [vmem:[#allocation2 + $0x78] sm:$0xff]
      %v5849 = vld [vmem:[#allocation2 + $0x80] sm:$0xff]
      %v5850 = vld [vmem:[#allocation2 + $0x88] sm:$0xff]
      %v5851 = vld [vmem:[#allocation2 + $0x90] sm:$0xff]
      %v5852 = vld [vmem:[#allocation2 + $0x98] sm:$0xff]
      %v5853 = vld [vmem:[#allocation2 + $0xa0] sm:$0xff]
      %v5854 = vld [vmem:[#allocation2 + $0xa8] sm:$0xff]
      %v5855 = vld [vmem:[#allocation2 + $0xb0] sm:$0xff]
      %v5856 = vld [vmem:[#allocation2 + $0xb8] sm:$0xff]
      %v5857 = vld [vmem:[#allocation2 + $0xc0] sm:$0xff]
      %v5858 = vld [vmem:[#allocation2 + $0xc8] sm:$0xff]
      %v5859 = vld [vmem:[#allocation2 + $0xd0] sm:$0xff]
      %v5860 = vld [vmem:[#allocation2 + $0xd8] sm:$0xff]
      %v5861 = vld [vmem:[#allocation2 + $0xe0] sm:$0xff]
      %v5862 = vld [vmem:[#allocation2 + $0xe8] sm:$0xff]
      %v5863 = vld [vmem:[#allocation2 + $0xf0] sm:$0xff]
      %v5864 = vld [vmem:[#allocation2 + $0xf8] sm:$0xff]
      %v5865 = vadd.f32 %v5833, %v5707
      %v5866 = vadd.f32 %v5834, %v5710
      %v5867 = vadd.f32 %v5835, %v5715
      %v5868 = vadd.f32 %v5836, %v5718
      %v5869 = vadd.f32 %v5837, %v5723
      %v5870 = vadd.f32 %v5838, %v5726
      %v5871 = vadd.f32 %v5839, %v5731
      %v5872 = vadd.f32 %v5840, %v5734
      %v5873 = vadd.f32 %v5841, %v5739
      %v5874 = vadd.f32 %v5842, %v5742
      %v5875 = vadd.f32 %v5843, %v5747
      %v5876 = vadd.f32 %v5844, %v5750
      %v5877 = vadd.f32 %v5845, %v5755
      %v5878 = vadd.f32 %v5846, %v5758
      %v5879 = vadd.f32 %v5847, %v5763
      %v5880 = vadd.f32 %v5848, %v5766
      %v5881 = vadd.f32 %v5849, %v5771
      %v5882 = vadd.f32 %v5850, %v5774
      %v5883 = vadd.f32 %v5851, %v5779
      %v5884 = vadd.f32 %v5852, %v5782
      %v5885 = vadd.f32 %v5853, %v5787
      %v5886 = vadd.f32 %v5854, %v5790
      %v5887 = vadd.f32 %v5855, %v5795
      %v5888 = vadd.f32 %v5856, %v5798
      %v5889 = vadd.f32 %v5857, %v5803
      %v5890 = vadd.f32 %v5858, %v5806
      %v5891 = vadd.f32 %v5859, %v5811
      %v5892 = vadd.f32 %v5860, %v5814
      %v5893 = vadd.f32 %v5861, %v5819
      %v5894 = vadd.f32 %v5862, %v5822
      %v5895 = vadd.f32 %v5863, %v5827
      %v5896 = vadd.f32 %v5864, %v5830
      %5897 = vst.msk [vmem:[#allocation2] sm:$0xff] %vm479, %v5865
      %5898 = vst.msk [vmem:[#allocation2 + $0x8] sm:$0xff] %vm479, %v5866
      %5899 = vst.msk [vmem:[#allocation2 + $0x10] sm:$0xff] %vm479, %v5867
      %5900 = vst.msk [vmem:[#allocation2 + $0x18] sm:$0xff] %vm479, %v5868
      %5901 = vst.msk [vmem:[#allocation2 + $0x20] sm:$0xff] %vm479, %v5869
      %5902 = vst.msk [vmem:[#allocation2 + $0x28] sm:$0xff] %vm479, %v5870
      %5903 = vst.msk [vmem:[#allocation2 + $0x30] sm:$0xff] %vm479, %v5871
      %5904 = vst.msk [vmem:[#allocation2 + $0x38] sm:$0xff] %vm479, %v5872
      %5905 = vst.msk [vmem:[#allocation2 + $0x40] sm:$0xff] %vm479, %v5873
      %5906 = vst.msk [vmem:[#allocation2 + $0x48] sm:$0xff] %vm479, %v5874
      %5907 = vst.msk [vmem:[#allocation2 + $0x50] sm:$0xff] %vm479, %v5875
      %5908 = vst.msk [vmem:[#allocation2 + $0x58] sm:$0xff] %vm479, %v5876
      %5909 = vst.msk [vmem:[#allocation2 + $0x60] sm:$0xff] %vm479, %v5877
      %5910 = vst.msk [vmem:[#allocation2 + $0x68] sm:$0xff] %vm479, %v5878
      %5911 = vst.msk [vmem:[#allocation2 + $0x70] sm:$0xff] %vm479, %v5879
      %5912 = vst.msk [vmem:[#allocation2 + $0x78] sm:$0xff] %vm479, %v5880
      %5913 = vst.msk [vmem:[#allocation2 + $0x80] sm:$0xff] %vm479, %v5881
      %5914 = vst.msk [vmem:[#allocation2 + $0x88] sm:$0xff] %vm479, %v5882
      %5915 = vst.msk [vmem:[#allocation2 + $0x90] sm:$0xff] %vm479, %v5883
      %5916 = vst.msk [vmem:[#allocation2 + $0x98] sm:$0xff] %vm479, %v5884
      %5917 = vst.msk [vmem:[#allocation2 + $0xa0] sm:$0xff] %vm479, %v5885
      %5918 = vst.msk [vmem:[#allocation2 + $0xa8] sm:$0xff] %vm479, %v5886
      %5919 = vst.msk [vmem:[#allocation2 + $0xb0] sm:$0xff] %vm479, %v5887
      %5920 = vst.msk [vmem:[#allocation2 + $0xb8] sm:$0xff] %vm479, %v5888
      %5921 = vst.msk [vmem:[#allocation2 + $0xc0] sm:$0xff] %vm479, %v5889
      %5922 = vst.msk [vmem:[#allocation2 + $0xc8] sm:$0xff] %vm479, %v5890
      %5923 = vst.msk [vmem:[#allocation2 + $0xd0] sm:$0xff] %vm479, %v5891
      %5924 = vst.msk [vmem:[#allocation2 + $0xd8] sm:$0xff] %vm479, %v5892
      %5925 = vst.msk [vmem:[#allocation2 + $0xe0] sm:$0xff] %vm479, %v5893
      %5926 = vst.msk [vmem:[#allocation2 + $0xe8] sm:$0xff] %vm479, %v5894
      %5927 = vst.msk [vmem:[#allocation2 + $0xf0] sm:$0xff] %vm479, %v5895
      %5928 = vst.msk [vmem:[#allocation2 + $0xf8] sm:$0xff] %vm479, %v5896
      // Predicated region
      $region41: #{_lambda_.5} parent=35 // pred_check
        %p5929 = pneg %p298
      $region42: #{_lambda_.5} parent=35 // pred_check_branch
        %5931 = sbr.rel (%p5929) target = $region44
      $region43: #{_lambda_.5} parent=35 // pred_region
        %v5932 = vld [vmem:[#allocation2] sm:$0xff]
        %v5933 = vld [vmem:[#allocation2 + $0x8] sm:$0xff]
        %v5934 = vld [vmem:[#allocation2 + $0x10] sm:$0xff]
        %v5935 = vld [vmem:[#allocation2 + $0x18] sm:$0xff]
        %v5936 = vld [vmem:[#allocation2 + $0x20] sm:$0xff]
        %v5937 = vld [vmem:[#allocation2 + $0x28] sm:$0xff]
        %v5938 = vld [vmem:[#allocation2 + $0x30] sm:$0xff]
        %v5939 = vld [vmem:[#allocation2 + $0x38] sm:$0xff]
        %v5940 = vld [vmem:[#allocation2 + $0x40] sm:$0xff]
        %v5941 = vld [vmem:[#allocation2 + $0x48] sm:$0xff]
        %v5942 = vld [vmem:[#allocation2 + $0x50] sm:$0xff]
        %v5943 = vld [vmem:[#allocation2 + $0x58] sm:$0xff]
        %v5944 = vld [vmem:[#allocation2 + $0x60] sm:$0xff]
        %v5945 = vld [vmem:[#allocation2 + $0x68] sm:$0xff]
        %v5946 = vld [vmem:[#allocation2 + $0x70] sm:$0xff]
        %v5947 = vld [vmem:[#allocation2 + $0x78] sm:$0xff]
        %v5948 = vld [vmem:[#allocation2 + $0x80] sm:$0xff]
        %v5949 = vld [vmem:[#allocation2 + $0x88] sm:$0xff]
        %v5950 = vld [vmem:[#allocation2 + $0x90] sm:$0xff]
        %v5951 = vld [vmem:[#allocation2 + $0x98] sm:$0xff]
        %v5952 = vld [vmem:[#allocation2 + $0xa0] sm:$0xff]
        %v5953 = vld [vmem:[#allocation2 + $0xa8] sm:$0xff]
        %v5954 = vld [vmem:[#allocation2 + $0xb0] sm:$0xff]
        %v5955 = vld [vmem:[#allocation2 + $0xb8] sm:$0xff]
        %v5956 = vld [vmem:[#allocation2 + $0xc0] sm:$0xff]
        %v5957 = vld [vmem:[#allocation2 + $0xc8] sm:$0xff]
        %v5958 = vld [vmem:[#allocation2 + $0xd0] sm:$0xff]
        %v5959 = vld [vmem:[#allocation2 + $0xd8] sm:$0xff]
        %v5960 = vld [vmem:[#allocation2 + $0xe0] sm:$0xff]
        %v5961 = vld [vmem:[#allocation2 + $0xe8] sm:$0xff]
        %v5962 = vld [vmem:[#allocation2 + $0xf0] sm:$0xff]
        %v5963 = vld [vmem:[#allocation2 + $0xf8] sm:$0xff]
        %v5964 = vld [vmem:[%s285] sm:$0x1]
        %v5966 = vlaneseq
        %v5967 = vshrl.u32 %v5966, 7
        %v5968 = vsub.s32 0, %v5967
        %v5969 = vrot.slane %v5964, %v5968
        %v5971 = vmul.f32 %v5932, %v5969
        %v5972 = vmul.f32 %v5933, %v5969
        %v5973 = vmul.f32 %v5934, %v5969
        %v5974 = vmul.f32 %v5935, %v5969
        %v5975 = vmul.f32 %v5936, %v5969
        %v5976 = vmul.f32 %v5937, %v5969
        %v5977 = vmul.f32 %v5938, %v5969
        %v5978 = vmul.f32 %v5939, %v5969
        %v5979 = vmul.f32 %v5940, %v5969
        %v5980 = vmul.f32 %v5941, %v5969
        %v5981 = vmul.f32 %v5942, %v5969
        %v5982 = vmul.f32 %v5943, %v5969
        %v5983 = vmul.f32 %v5944, %v5969
        %v5984 = vmul.f32 %v5945, %v5969
        %v5985 = vmul.f32 %v5946, %v5969
        %v5986 = vmul.f32 %v5947, %v5969
        %v5987 = vmul.f32 %v5948, %v5969
        %v5988 = vmul.f32 %v5949, %v5969
        %v5989 = vmul.f32 %v5950, %v5969
        %v5990 = vmul.f32 %v5951, %v5969
        %v5991 = vmul.f32 %v5952, %v5969
        %v5992 = vmul.f32 %v5953, %v5969
        %v5993 = vmul.f32 %v5954, %v5969
        %v5994 = vmul.f32 %v5955, %v5969
        %v5995 = vmul.f32 %v5956, %v5969
        %v5996 = vmul.f32 %v5957, %v5969
        %v5997 = vmul.f32 %v5958, %v5969
        %v5998 = vmul.f32 %v5959, %v5969
        %v5999 = vmul.f32 %v5960, %v5969
        %v6000 = vmul.f32 %v5961, %v5969
        %v6001 = vmul.f32 %v5962, %v5969
        %v6002 = vmul.f32 %v5963, %v5969
        %v6003 = vld [vmem:[%s288] sm:$0x1]
        %v6005 = vlaneseq
        %v6006 = vshrl.u32 %v6005, 7
        %v6007 = vsub.s32 0, %v6006
        %v6008 = vrot.slane %v6003, %v6007
        %v6010 = vadd.f32 %v5971, %v6008
        %v6011 = vadd.f32 %v5972, %v6008
        %v6012 = vadd.f32 %v5973, %v6008
        %v6013 = vadd.f32 %v5974, %v6008
        %v6014 = vadd.f32 %v5975, %v6008
        %v6015 = vadd.f32 %v5976, %v6008
        %v6016 = vadd.f32 %v5977, %v6008
        %v6017 = vadd.f32 %v5978, %v6008
        %v6018 = vadd.f32 %v5979, %v6008
        %v6019 = vadd.f32 %v5980, %v6008
        %v6020 = vadd.f32 %v5981, %v6008
        %v6021 = vadd.f32 %v5982, %v6008
        %v6022 = vadd.f32 %v5983, %v6008
        %v6023 = vadd.f32 %v5984, %v6008
        %v6024 = vadd.f32 %v5985, %v6008
        %v6025 = vadd.f32 %v5986, %v6008
        %v6026 = vadd.f32 %v5987, %v6008
        %v6027 = vadd.f32 %v5988, %v6008
        %v6028 = vadd.f32 %v5989, %v6008
        %v6029 = vadd.f32 %v5990, %v6008
        %v6030 = vadd.f32 %v5991, %v6008
        %v6031 = vadd.f32 %v5992, %v6008
        %v6032 = vadd.f32 %v5993, %v6008
        %v6033 = vadd.f32 %v5994, %v6008
        %v6034 = vadd.f32 %v5995, %v6008
        %v6035 = vadd.f32 %v5996, %v6008
        %v6036 = vadd.f32 %v5997, %v6008
        %v6037 = vadd.f32 %v5998, %v6008
        %v6038 = vadd.f32 %v5999, %v6008
        %v6039 = vadd.f32 %v6000, %v6008
        %v6040 = vadd.f32 %v6001, %v6008
        %v6041 = vadd.f32 %v6002, %v6008
        %v6042 = vmax.f32 %v6010, 0.0
        %v6043 = vmax.f32 %v6011, 0.0
        %v6044 = vmax.f32 %v6012, 0.0
        %v6045 = vmax.f32 %v6013, 0.0
        %v6046 = vmax.f32 %v6014, 0.0
        %v6047 = vmax.f32 %v6015, 0.0
        %v6048 = vmax.f32 %v6016, 0.0
        %v6049 = vmax.f32 %v6017, 0.0
        %v6050 = vmax.f32 %v6018, 0.0
        %v6051 = vmax.f32 %v6019, 0.0
        %v6052 = vmax.f32 %v6020, 0.0
        %v6053 = vmax.f32 %v6021, 0.0
        %v6054 = vmax.f32 %v6022, 0.0
        %v6055 = vmax.f32 %v6023, 0.0
        %v6056 = vmax.f32 %v6024, 0.0
        %v6057 = vmax.f32 %v6025, 0.0
        %v6058 = vmax.f32 %v6026, 0.0
        %v6059 = vmax.f32 %v6027, 0.0
        %v6060 = vmax.f32 %v6028, 0.0
        %v6061 = vmax.f32 %v6029, 0.0
        %v6062 = vmax.f32 %v6030, 0.0
        %v6063 = vmax.f32 %v6031, 0.0
        %v6064 = vmax.f32 %v6032, 0.0
        %v6065 = vmax.f32 %v6033, 0.0
        %v6066 = vmax.f32 %v6034, 0.0
        %v6067 = vmax.f32 %v6035, 0.0
        %v6068 = vmax.f32 %v6036, 0.0
        %v6069 = vmax.f32 %v6037, 0.0
        %v6070 = vmax.f32 %v6038, 0.0
        %v6071 = vmax.f32 %v6039, 0.0
        %v6072 = vmax.f32 %v6040, 0.0
        %v6073 = vmax.f32 %v6041, 0.0
        %v6074 = vpack.c.bf16 %v6043, %v6042
        %v6075 = vpack.c.bf16 %v6045, %v6044
        %v6076 = vpack.c.bf16 %v6047, %v6046
        %v6077 = vpack.c.bf16 %v6049, %v6048
        %v6078 = vpack.c.bf16 %v6051, %v6050
        %v6079 = vpack.c.bf16 %v6053, %v6052
        %v6080 = vpack.c.bf16 %v6055, %v6054
        %v6081 = vpack.c.bf16 %v6057, %v6056
        %v6082 = vpack.c.bf16 %v6059, %v6058
        %v6083 = vpack.c.bf16 %v6061, %v6060
        %v6084 = vpack.c.bf16 %v6063, %v6062
        %v6085 = vpack.c.bf16 %v6065, %v6064
        %v6086 = vpack.c.bf16 %v6067, %v6066
        %v6087 = vpack.c.bf16 %v6069, %v6068
        %v6088 = vpack.c.bf16 %v6071, %v6070
        %v6089 = vpack.c.bf16 %v6073, %v6072
        %v6106 = vunpack.c.l.b16 %v6074
        %v6107 = vunpack.c.h.b16 %v6074
        %v6108 = vunpack.c.l.b16 %v6075
        %v6109 = vunpack.c.h.b16 %v6075
        %v6110 = vunpack.c.l.b16 %v6076
        %v6111 = vunpack.c.h.b16 %v6076
        %v6112 = vunpack.c.l.b16 %v6077
        %v6113 = vunpack.c.h.b16 %v6077
        %v6114 = vunpack.c.l.b16 %v6078
        %v6115 = vunpack.c.h.b16 %v6078
        %v6116 = vunpack.c.l.b16 %v6079
        %v6117 = vunpack.c.h.b16 %v6079
        %v6118 = vunpack.c.l.b16 %v6080
        %v6119 = vunpack.c.h.b16 %v6080
        %v6120 = vunpack.c.l.b16 %v6081
        %v6121 = vunpack.c.h.b16 %v6081
        %v6122 = vunpack.c.l.b16 %v6082
        %v6123 = vunpack.c.h.b16 %v6082
        %v6124 = vunpack.c.l.b16 %v6083
        %v6125 = vunpack.c.h.b16 %v6083
        %v6126 = vunpack.c.l.b16 %v6084
        %v6127 = vunpack.c.h.b16 %v6084
        %v6128 = vunpack.c.l.b16 %v6085
        %v6129 = vunpack.c.h.b16 %v6085
        %v6130 = vunpack.c.l.b16 %v6086
        %v6131 = vunpack.c.h.b16 %v6086
        %v6132 = vunpack.c.l.b16 %v6087
        %v6133 = vunpack.c.h.b16 %v6087
        %v6134 = vunpack.c.l.b16 %v6088
        %v6135 = vunpack.c.h.b16 %v6088
        %v6136 = vunpack.c.l.b16 %v6089
        %v6137 = vunpack.c.h.b16 %v6089
        %v6138 = vpack.c.b16 %v6106, %v6106
        %v6139 = vpack.c.b16 %v6107, %v6107
        %v6140 = vpack.c.b16 %v6108, %v6108
        %v6141 = vpack.c.b16 %v6109, %v6109
        %v6142 = vpack.c.b16 %v6110, %v6110
        %v6143 = vpack.c.b16 %v6111, %v6111
        %v6144 = vpack.c.b16 %v6112, %v6112
        %v6145 = vpack.c.b16 %v6113, %v6113
        %v6146 = vpack.c.b16 %v6114, %v6114
        %v6147 = vpack.c.b16 %v6115, %v6115
        %v6148 = vpack.c.b16 %v6116, %v6116
        %v6149 = vpack.c.b16 %v6117, %v6117
        %v6150 = vpack.c.b16 %v6118, %v6118
        %v6151 = vpack.c.b16 %v6119, %v6119
        %v6152 = vpack.c.b16 %v6120, %v6120
        %v6153 = vpack.c.b16 %v6121, %v6121
        %v6154 = vpack.c.b16 %v6122, %v6122
        %v6155 = vpack.c.b16 %v6123, %v6123
        %v6156 = vpack.c.b16 %v6124, %v6124
        %v6157 = vpack.c.b16 %v6125, %v6125
        %v6158 = vpack.c.b16 %v6126, %v6126
        %v6159 = vpack.c.b16 %v6127, %v6127
        %v6160 = vpack.c.b16 %v6128, %v6128
        %v6161 = vpack.c.b16 %v6129, %v6129
        %v6162 = vpack.c.b16 %v6130, %v6130
        %v6163 = vpack.c.b16 %v6131, %v6131
        %v6164 = vpack.c.b16 %v6132, %v6132
        %v6165 = vpack.c.b16 %v6133, %v6133
        %v6166 = vpack.c.b16 %v6134, %v6134
        %v6167 = vpack.c.b16 %v6135, %v6135
        %v6168 = vpack.c.b16 %v6136, %v6136
        %v6169 = vpack.c.b16 %v6137, %v6137
        %vm6202 = vcmask 519168
        %6203 = vst.msk [vmem:[%s296] sm:$0xf] %vm6202, %v6138
        %6204 = vst.msk [vmem:[%s296 + $0x4] sm:$0xf] %vm6202, %v6139
        %6205 = vst.msk [vmem:[%s296 + $0x8] sm:$0xf] %vm6202, %v6140
        %6206 = vst.msk [vmem:[%s296 + $0xc] sm:$0xf] %vm6202, %v6141
        %6207 = vst.msk [vmem:[%s296 + $0x10] sm:$0xf] %vm6202, %v6142
        %6208 = vst.msk [vmem:[%s296 + $0x14] sm:$0xf] %vm6202, %v6143
        %6209 = vst.msk [vmem:[%s296 + $0x18] sm:$0xf] %vm6202, %v6144
        %6210 = vst.msk [vmem:[%s296 + $0x1c] sm:$0xf] %vm6202, %v6145
        %6211 = vst.msk [vmem:[%s296 + $0x20] sm:$0xf] %vm6202, %v6146
        %6212 = vst.msk [vmem:[%s296 + $0x24] sm:$0xf] %vm6202, %v6147
        %6213 = vst.msk [vmem:[%s296 + $0x28] sm:$0xf] %vm6202, %v6148
        %6214 = vst.msk [vmem:[%s296 + $0x2c] sm:$0xf] %vm6202, %v6149
        %6215 = vst.msk [vmem:[%s296 + $0x30] sm:$0xf] %vm6202, %v6150
        %6216 = vst.msk [vmem:[%s296 + $0x34] sm:$0xf] %vm6202, %v6151
        %6217 = vst.msk [vmem:[%s296 + $0x38] sm:$0xf] %vm6202, %v6152
        %6218 = vst.msk [vmem:[%s296 + $0x3c] sm:$0xf] %vm6202, %v6153
        %6219 = vst.msk [vmem:[%s296 + $0x40] sm:$0xf] %vm6202, %v6154
        %6220 = vst.msk [vmem:[%s296 + $0x44] sm:$0xf] %vm6202, %v6155
        %6221 = vst.msk [vmem:[%s296 + $0x48] sm:$0xf] %vm6202, %v6156
        %6222 = vst.msk [vmem:[%s296 + $0x4c] sm:$0xf] %vm6202, %v6157
        %6223 = vst.msk [vmem:[%s296 + $0x50] sm:$0xf] %vm6202, %v6158
        %6224 = vst.msk [vmem:[%s296 + $0x54] sm:$0xf] %vm6202, %v6159
        %6225 = vst.msk [vmem:[%s296 + $0x58] sm:$0xf] %vm6202, %v6160
        %6226 = vst.msk [vmem:[%s296 + $0x5c] sm:$0xf] %vm6202, %v6161
        %6227 = vst.msk [vmem:[%s296 + $0x60] sm:$0xf] %vm6202, %v6162
        %6228 = vst.msk [vmem:[%s296 + $0x64] sm:$0xf] %vm6202, %v6163
        %6229 = vst.msk [vmem:[%s296 + $0x68] sm:$0xf] %vm6202, %v6164
        %6230 = vst.msk [vmem:[%s296 + $0x6c] sm:$0xf] %vm6202, %v6165
        %6231 = vst.msk [vmem:[%s296 + $0x70] sm:$0xf] %vm6202, %v6166
        %6232 = vst.msk [vmem:[%s296 + $0x74] sm:$0xf] %vm6202, %v6167
        %6233 = vst.msk [vmem:[%s296 + $0x78] sm:$0xf] %vm6202, %v6168
        %6234 = vst.msk [vmem:[%s296 + $0x7c] sm:$0xf] %vm6202, %v6169
      $region44: #{_lambda_.5} parent=35 // pred_fallthru
        _
      %p6235 = scmp.lt.s32.totalorder %s20, 1
      %s6236 = scalar_select %p6235, %s20, 1
      %p6237 = scmp.lt.s32.totalorder %s21, 0
      %s6238 = scalar_select %p6237, %s21, 0
      %s6239 = smul.addr %s6236, 32
      %s6240 = sadd.s32 %s6238, %s6239
      %s6241 = smul.addr %s6240, 4
      %s6242 = scalar_lea.vmem %s4, %s6241
      // Predicated region
      $region45: #{_lambda_.5} parent=35 // pred_check
        %p6243 = pneg %p162
      $region46: #{_lambda_.5} parent=35 // pred_check_branch
        %6245 = sbr.rel (%p6243) target = $region48
      $region47: #{_lambda_.5} parent=35 // pred_region
        _
      $region48: #{_lambda_.5} parent=35 // pred_fallthru
        _
    $region36: #{_lambda_.5} parent=5 // pred_fallthru
      _
    %p6246 = scmp.le.s32.totalorder 2, %s10
    // Predicated region
    $region49: #{_lambda_.5} parent=5 // pred_check
      %p6247 = pneg %p6246
    $region50: #{_lambda_.5} parent=5 // pred_check_branch
      %6249 = sbr.rel (%p6247) target = $region52
    $region51: #{_lambda_.5} parent=5 // pred_region
      %s6250 = ssub.s32 %s10, 2
      // Predicated region
      $region53: #{_lambda_.5} parent=51 // pred_check
        %p6251 = pneg %p168
      $region54: #{_lambda_.5} parent=51 // pred_check_branch
        %6253 = sbr.rel (%p6251) target = $region56
      $region55: #{_lambda_.5} parent=51 // pred_region
        %p6254 = scmp.lt.s32.totalorder %s23, 1
        %s6255 = scalar_select %p6254, %s23, 1
        %p6256 = scmp.lt.s32.totalorder %s24, 0
        %s6257 = scalar_select %p6256, %s24, 0
        %s6258 = smul.addr %s6255, 32
        %s6259 = sadd.s32 %s6257, %s6258
        %s6260 = smul.addr %s6259, 4
        %s6261 = scalar_lea.vmem %s4, %s6260
      $region56: #{_lambda_.5} parent=51 // pred_fallthru
        _
    $region52: #{_lambda_.5} parent=5 // pred_fallthru
      _
  $region6: #{_lambda_.5} parent=0 // loop_footer
    %s14 = sadd.s32 1, %s10
  $region7: #{_lambda_.5} parent=0 // loop_footer_branch
    %9 = sbr.rel target = $region3
  $region8: #{_lambda_.5} parent=0 // loop_exit
    _

</llo_original>
